<compile_context>
chip_gen: v7x
topology: tpu7x:2x2x1
jax: 0.10.0
libtpu: 0.0.40
codegen_flags: <defaults>
</compile_context>

<pallas_src>
import jax
import jax.numpy as jnp
from jax.experimental import pallas as pl
from jax.experimental.pallas import tpu as pltpu


def _round_up(x, m):
    return ((x + m - 1) // m) * m


# -----------------------------------------------------------------------------
# Pallas kernel: full Discriminator MLP chain (one batch tile per grid step)
# -----------------------------------------------------------------------------
def _disc_kernel(rv_ref, er_ref,
                 w1_ref, b1_ref, w2_ref, b2_ref, w3_ref, b3_ref,
                 w4a_ref, w4b_ref, b4_ref,
                 w5_ref, b5_ref, w6_ref, b6_ref, w7_ref, b7_ref,
                 out_ref):
    f32, bf16 = jnp.float32, jnp.bfloat16

    def dense(x_bf16, w_ref, b_ref, relu):
        # bf16 x bf16 on the MXU, f32 accumulate; bias add / ReLU kept in f32
        # (v5e has no bf16 VPU).  ReLU outputs are returned as bf16 so the wide
        # intermediates live/spill at half width and feed the next MXU op directly.
        y = jnp.dot(x_bf16, w_ref[...], preferred_element_type=f32) + b_ref[...]
        return jnp.maximum(y, 0.0).astype(bf16) if relu else y

    # --- RatingDenseRepresentation ---
    h = dense(rv_ref[...], w1_ref, b1_ref, relu=True)        # (TM, 2048) bf16
    h = dense(h, w2_ref, b2_ref, relu=True)                  # (TM, 1024) bf16
    rdr = dense(h, w3_ref, b3_ref, relu=False)               # (TM, rdr)  f32

    # --- data_c = cat(rdr, emb, rev) @ W4  ==  rdr @ W4a + [emb|rev] @ W4b ---
    # Two matmuls keep everything in vregs/MXU (no VMEM scratch concat); the
    # zero-padded lanes of er_ref hit zero-padded rows of W4b -> exact.
    y4 = (jnp.dot(rdr.astype(bf16), w4a_ref[...], preferred_element_type=f32)
          + jnp.dot(er_ref[...], w4b_ref[...], preferred_element_type=f32)
          + b4_ref[...])
    h = jnp.maximum(y4, 0.0).astype(bf16)                    # (TM, 1024) bf16

    # --- remaining dis layers ---
    h = dense(h, w5_ref, b5_ref, relu=True)                  # (TM, 128)
    h = dense(h, w6_ref, b6_ref, relu=True)                  # (TM, 16)
    logits = dense(h, w7_ref, b7_ref, relu=False)            # (TM, 1) f32
    out_ref[...] = jax.nn.sigmoid(logits)


# -----------------------------------------------------------------------------
# Parameter construction (deterministic, synthetic, f32 "master" weights)
# -----------------------------------------------------------------------------
def init_params(key, num_inputs, input_size, rdr_size, c_emb_size, rev_emb_size):
    ks = jax.random.split(key, 16)
    std = 0.05

    def w(k, shape):
        return (std * jax.random.normal(k, shape)).astype(jnp.float32)

    input_dim = rdr_size + c_emb_size + rev_emb_size
    params = dict(
        emb_table=w(ks[0], (num_inputs, c_emb_size)),
        # RatingDenseRepresentation
        w1=w(ks[1], (input_size, 2048)), b1=w(ks[2], (1, 2048)),
        w2=w(ks[3], (2048, 1024)),       b2=w(ks[4], (1, 1024)),
        w3=w(ks[5], (1024, rdr_size)),   b3=w(ks[6], (1, rdr_size)),
        # dis Sequential
        w4=w(ks[7], (input_dim, 1024)),  b4=w(ks[8], (1, 1024)),
        w5=w(ks[9], (1024, 128)),        b5=w(ks[10], (1, 128)),
        w6=w(ks[11], (128, 16)),         b6=w(ks[12], (1, 16)),
        w7=w(ks[13], (16, 1)),           b7=w(ks[14], (1, 1)),
    )
    return params


# -----------------------------------------------------------------------------
# Device-aware batch-tile / VMEM-limit selection
# -----------------------------------------------------------------------------
def _tm_and_vmem(B):
    try:
        kind = jax.devices()[0].device_kind.lower()
    except Exception:
        kind = ""
    is_v7 = "v7" in kind
    vmem_limit = (32 if is_v7 else 48) * 1024 * 1024   # 64 MiB/TC on v7x, 128 MiB else
    if B <= 128:
        return _round_up(max(B, 1), 8), vmem_limit
    cands = (128, 256) if is_v7 else (128, 256, 512)
    best = None
    for tm in cands:
        b_pad = _round_up(B, tm)
        if is_v7 and (b_pad // tm) < 2:      # keep >=2 grid steps so both TCs get work
            continue
        key = (b_pad - B, -tm)               # minimize padding waste, then prefer larger TM
        if best is None or key < best[0]:
            best = (key, tm)
    return (best[1] if best is not None else 128), vmem_limit


# -----------------------------------------------------------------------------
# Wrapper
# -----------------------------------------------------------------------------
def discriminator_forward(params, rating_vector, input_index, review_embedding,
                          rdr_size, c_emb_size):
    f32, bf16 = jnp.float32, jnp.bfloat16
    B, input_size = rating_vector.shape
    rev_size = review_embedding.shape[1]
    er_dim = c_emb_size + rev_size
    er_width = _round_up(er_dim, 64)          # (emb | rev) slab padded to 64 lanes

    # Glue: embedding lookup (KB-scale table) + bf16 [emb | rev | 0] slab.
    emb = jnp.take(params["emb_table"], input_index, axis=0)          # (B, c_emb)
    er_block = jnp.concatenate(
        [emb.astype(f32), review_embedding.astype(f32),
         jnp.zeros((B, er_width - er_dim), f32)], axis=1).astype(bf16)  # (B, er_width)

    # Split W4 for the concat layer; pad the (emb|rev) half's rows to er_width
    # (padded rows only ever multiply zero lanes -> exact).
    w4 = params["w4"]
    w4a = w4[:rdr_size]                                                # (rdr, 1024)
    w4b = jnp.concatenate(
        [w4[rdr_size:], jnp.zeros((er_width - er_dim, w4.shape[1]), f32)], axis=0)

    # bf16 weights + bf16 activation streaming (kernel is HBM-BW bound); f32 biases.
    w1, w2, w3, w5, w6, w7 = (params[n].astype(bf16)
                              for n in ("w1", "w2", "w3", "w5", "w6", "w7"))
    w4a, w4b = w4a.astype(bf16), w4b.astype(bf16)
    b1, b2, b3, b4, b5, b6, b7 = (params[n].astype(f32)
                                  for n in ("b1", "b2", "b3", "b4", "b5", "b6", "b7"))

    rv = rating_vector.astype(bf16)

    TM, vmem_limit = _tm_and_vmem(B)
    B_pad = _round_up(B, TM)
    if B_pad != B:
        rv = jnp.pad(rv, ((0, B_pad - B), (0, 0)))
        er_block = jnp.pad(er_block, ((0, B_pad - B), (0, 0)))
    grid = (B_pad // TM,)

    def act_spec(cols):
        return pl.BlockSpec((TM, cols), lambda i: (i, 0))

    def const_spec(arr):
        # Weights/biases resident in VMEM across the whole grid; constant
        # index_map -> single-buffered (double-buffering would only waste VMEM).
        return pl.BlockSpec(arr.shape, lambda i: (0, 0),
                            pipeline_mode=pl.Buffered(1))

    operands = (rv, er_block,
                w1, b1, w2, b2, w3, b3, w4a, w4b, b4, w5, b5, w6, b6, w7, b7)
    in_specs = ([act_spec(input_size), act_spec(er_width)]
                + [const_spec(a) for a in operands[2:]])

    out = pl.pallas_call(
        _disc_kernel,
        out_shape=jax.ShapeDtypeStruct((B_pad, 1), f32),
        grid=grid,
        in_specs=in_specs,
        out_specs=pl.BlockSpec((TM, 1), lambda i: (i, 0)),
        compiler_params=pltpu.CompilerParams(
            dimension_semantics=("parallel",),
            vmem_limit_bytes=vmem_limit),
    )(*operands)
    return out[:B]


# -----------------------------------------------------------------------------
# Pure-JAX f32 reference (mirrors the PyTorch module)
# -----------------------------------------------------------------------------
def reference_forward(params, rating_vector, input_index, review_embedding):
    relu = lambda v: jnp.maximum(v, 0.0)
    h = relu(rating_vector @ params["w1"] + params["b1"])
    h = relu(h @ params["w2"] + params["b2"])
    rdr = h @ params["w3"] + params["b3"]
    emb = jnp.take(params["emb_table"], input_index, axis=0)
    data_c = jnp.concatenate([rdr, emb, review_embedding], axis=1)
    h = relu(data_c @ params["w4"] + params["b4"])
    h = relu(h @ params["w5"] + params["b5"])
    h = relu(h @ params["w6"] + params["b6"])
    return jax.nn.sigmoid(h @ params["w7"] + params["b7"])


if __name__ == "__main__":
    # Small, module-consistent shapes
    B = 8
    num_inputs = 10
    input_size = 32
    rdr_size = 64            # rating_dense_representation_size
    c_emb_size = 16          # c_embedding_size
    rev_emb_size = 32        # review_embedding_size

    key = jax.random.PRNGKey(0)
    k_par, k_rv, k_idx, k_rev = jax.random.split(key, 4)

    params = init_params(k_par, num_inputs, input_size, rdr_size,
                         c_emb_size, rev_emb_size)

    rating_vector = jax.random.normal(k_rv, (B, input_size), dtype=jnp.float32)
    input_index = jax.random.randint(k_idx, (B,), 0, num_inputs, dtype=jnp.int32)
    review_embedding = jax.random.normal(k_rev, (B, rev_emb_size), dtype=jnp.float32)

    out = discriminator_forward(params, rating_vector, input_index,
                                review_embedding, rdr_size, c_emb_size)
    out = jax.block_until_ready(out)

    ref = reference_forward(params, rating_vector, input_index, review_embedding)
    assert out.shape == (B, 1)
    # bf16 weights / activations with f32 accumulation -> relaxed tolerance.
    assert jnp.allclose(out, ref, atol=1e-2, rtol=1e-2), (out, ref)

    print("KERNEL_OK")
</pallas_src>

<mosaic_0001>
module attributes {stable_mosaic.version = 11 : i64} {
  func.func @_disc_kernel(%arg0: i32, %arg1: memref<8x32xbf16, #tpu.memory_space<vmem>>, %arg2: memref<8x64xbf16, #tpu.memory_space<vmem>>, %arg3: memref<32x2048xbf16, #tpu.memory_space<vmem>>, %arg4: memref<1x2048xf32, #tpu.memory_space<vmem>>, %arg5: memref<2048x1024xbf16, #tpu.memory_space<vmem>>, %arg6: memref<1x1024xf32, #tpu.memory_space<vmem>>, %arg7: memref<1024x64xbf16, #tpu.memory_space<vmem>>, %arg8: memref<1x64xf32, #tpu.memory_space<vmem>>, %arg9: memref<64x1024xbf16, #tpu.memory_space<vmem>>, %arg10: memref<64x1024xbf16, #tpu.memory_space<vmem>>, %arg11: memref<1x1024xf32, #tpu.memory_space<vmem>>, %arg12: memref<1024x128xbf16, #tpu.memory_space<vmem>>, %arg13: memref<1x128xf32, #tpu.memory_space<vmem>>, %arg14: memref<128x16xbf16, #tpu.memory_space<vmem>>, %arg15: memref<1x16xf32, #tpu.memory_space<vmem>>, %arg16: memref<16x1xbf16, #tpu.memory_space<vmem>>, %arg17: memref<1x1xf32, #tpu.memory_space<vmem>>, %arg18: memref<8x1xf32, #tpu.memory_space<vmem>>) attributes {dimension_semantics = [#tpu.dimension_semantics<parallel>], iteration_bounds = array<i64: 1>, scalar_prefetch = 0 : i64, scratch_operands = 0 : i64, tpu.core_type = #tpu.core_type<tc>, window_params = [{transform_indices = @transform_0, window_bounds = array<i64: 8, 32>}, {transform_indices = @transform_1, window_bounds = array<i64: 8, 64>}, {pipeline_mode = #tpu.pipeline_mode<synchronous>, transform_indices = @transform_2, window_bounds = array<i64: 32, 2048>}, {pipeline_mode = #tpu.pipeline_mode<synchronous>, transform_indices = @transform_3, window_bounds = array<i64: 1, 2048>}, {pipeline_mode = #tpu.pipeline_mode<synchronous>, transform_indices = @transform_4, window_bounds = array<i64: 2048, 1024>}, {pipeline_mode = #tpu.pipeline_mode<synchronous>, transform_indices = @transform_5, window_bounds = array<i64: 1, 1024>}, {pipeline_mode = #tpu.pipeline_mode<synchronous>, transform_indices = @transform_6, window_bounds = array<i64: 1024, 64>}, {pipeline_mode = #tpu.pipeline_mode<synchronous>, transform_indices = @transform_7, window_bounds = array<i64: 1, 64>}, {pipeline_mode = #tpu.pipeline_mode<synchronous>, transform_indices = @transform_8, window_bounds = array<i64: 64, 1024>}, {pipeline_mode = #tpu.pipeline_mode<synchronous>, transform_indices = @transform_9, window_bounds = array<i64: 64, 1024>}, {pipeline_mode = #tpu.pipeline_mode<synchronous>, transform_indices = @transform_10, window_bounds = array<i64: 1, 1024>}, {pipeline_mode = #tpu.pipeline_mode<synchronous>, transform_indices = @transform_11, window_bounds = array<i64: 1024, 128>}, {pipeline_mode = #tpu.pipeline_mode<synchronous>, transform_indices = @transform_12, window_bounds = array<i64: 1, 128>}, {pipeline_mode = #tpu.pipeline_mode<synchronous>, transform_indices = @transform_13, window_bounds = array<i64: 128, 16>}, {pipeline_mode = #tpu.pipeline_mode<synchronous>, transform_indices = @transform_14, window_bounds = array<i64: 1, 16>}, {pipeline_mode = #tpu.pipeline_mode<synchronous>, transform_indices = @transform_15, window_bounds = array<i64: 16, 1>}, {pipeline_mode = #tpu.pipeline_mode<synchronous>, transform_indices = @transform_16, window_bounds = array<i64: 1, 1>}, {transform_indices = @transform_17, window_bounds = array<i64: 8, 1>}]} {
    %c0 = arith.constant 0 : index
    %c0_0 = arith.constant 0 : index
    %0 = vector.load %arg1[%c0, %c0_0] : memref<8x32xbf16, #tpu.memory_space<vmem>>, vector<8x32xbf16>
    %c0_1 = arith.constant 0 : index
    %c0_2 = arith.constant 0 : index
    %1 = vector.load %arg3[%c0_1, %c0_2] : memref<32x2048xbf16, #tpu.memory_space<vmem>>, vector<32x2048xbf16>
    %cst = arith.constant dense<0.000000e+00> : vector<8x2048xf32>
    %2 = tpu.matmul %0, %1, %cst {dimension_numbers = #tpu.dot_dimension_numbers<[1], [0], [0], [1], [0, 0, 1, 1], [], []>} : vector<8x32xbf16>, vector<32x2048xbf16>, vector<8x2048xf32> -> vector<8x2048xf32>
    %c0_3 = arith.constant 0 : index
    %c0_4 = arith.constant 0 : index
    %3 = vector.load %arg4[%c0_3, %c0_4] : memref<1x2048xf32, #tpu.memory_space<vmem>>, vector<1x2048xf32>
    %4 = vector.broadcast %3 : vector<1x2048xf32> to vector<8x2048xf32>
    %5 = arith.addf %2, %4 : vector<8x2048xf32>
    %cst_5 = arith.constant 0.000000e+00 : f32
    %6 = vector.broadcast %cst_5 : f32 to vector<8x2048xf32>
    %7 = arith.maximumf %5, %6 : vector<8x2048xf32>
    %8 = arith.truncf %7 : vector<8x2048xf32> to vector<8x2048xbf16>
    %c0_6 = arith.constant 0 : index
    %c0_7 = arith.constant 0 : index
    %9 = vector.load %arg5[%c0_6, %c0_7] : memref<2048x1024xbf16, #tpu.memory_space<vmem>>, vector<2048x1024xbf16>
    %cst_8 = arith.constant dense<0.000000e+00> : vector<8x1024xf32>
    %10 = tpu.matmul %8, %9, %cst_8 {dimension_numbers = #tpu.dot_dimension_numbers<[1], [0], [0], [1], [0, 0, 1, 1], [], []>} : vector<8x2048xbf16>, vector<2048x1024xbf16>, vector<8x1024xf32> -> vector<8x1024xf32>
    %c0_9 = arith.constant 0 : index
    %c0_10 = arith.constant 0 : index
    %11 = vector.load %arg6[%c0_9, %c0_10] : memref<1x1024xf32, #tpu.memory_space<vmem>>, vector<1x1024xf32>
    %12 = vector.broadcast %11 : vector<1x1024xf32> to vector<8x1024xf32>
    %13 = arith.addf %10, %12 : vector<8x1024xf32>
    %cst_11 = arith.constant 0.000000e+00 : f32
    %14 = vector.broadcast %cst_11 : f32 to vector<8x1024xf32>
    %15 = arith.maximumf %13, %14 : vector<8x1024xf32>
    %16 = arith.truncf %15 : vector<8x1024xf32> to vector<8x1024xbf16>
    %c0_12 = arith.constant 0 : index
    %c0_13 = arith.constant 0 : index
    %17 = vector.load %arg7[%c0_12, %c0_13] : memref<1024x64xbf16, #tpu.memory_space<vmem>>, vector<1024x64xbf16>
    %cst_14 = arith.constant dense<0.000000e+00> : vector<8x64xf32>
    %18 = tpu.matmul %16, %17, %cst_14 {dimension_numbers = #tpu.dot_dimension_numbers<[1], [0], [0], [1], [0, 0, 1, 1], [], []>} : vector<8x1024xbf16>, vector<1024x64xbf16>, vector<8x64xf32> -> vector<8x64xf32>
    %c0_15 = arith.constant 0 : index
    %c0_16 = arith.constant 0 : index
    %19 = vector.load %arg8[%c0_15, %c0_16] : memref<1x64xf32, #tpu.memory_space<vmem>>, vector<1x64xf32>
    %20 = vector.broadcast %19 : vector<1x64xf32> to vector<8x64xf32>
    %21 = arith.addf %18, %20 : vector<8x64xf32>
    %22 = arith.truncf %21 : vector<8x64xf32> to vector<8x64xbf16>
    %c0_17 = arith.constant 0 : index
    %c0_18 = arith.constant 0 : index
    %23 = vector.load %arg9[%c0_17, %c0_18] : memref<64x1024xbf16, #tpu.memory_space<vmem>>, vector<64x1024xbf16>
    %cst_19 = arith.constant dense<0.000000e+00> : vector<8x1024xf32>
    %24 = tpu.matmul %22, %23, %cst_19 {dimension_numbers = #tpu.dot_dimension_numbers<[1], [0], [0], [1], [0, 0, 1, 1], [], []>} : vector<8x64xbf16>, vector<64x1024xbf16>, vector<8x1024xf32> -> vector<8x1024xf32>
    %c0_20 = arith.constant 0 : index
    %c0_21 = arith.constant 0 : index
    %25 = vector.load %arg2[%c0_20, %c0_21] : memref<8x64xbf16, #tpu.memory_space<vmem>>, vector<8x64xbf16>
    %c0_22 = arith.constant 0 : index
    %c0_23 = arith.constant 0 : index
    %26 = vector.load %arg10[%c0_22, %c0_23] : memref<64x1024xbf16, #tpu.memory_space<vmem>>, vector<64x1024xbf16>
    %cst_24 = arith.constant dense<0.000000e+00> : vector<8x1024xf32>
    %27 = tpu.matmul %25, %26, %cst_24 {dimension_numbers = #tpu.dot_dimension_numbers<[1], [0], [0], [1], [0, 0, 1, 1], [], []>} : vector<8x64xbf16>, vector<64x1024xbf16>, vector<8x1024xf32> -> vector<8x1024xf32>
    %28 = arith.addf %24, %27 : vector<8x1024xf32>
    %c0_25 = arith.constant 0 : index
    %c0_26 = arith.constant 0 : index
    %29 = vector.load %arg11[%c0_25, %c0_26] : memref<1x1024xf32, #tpu.memory_space<vmem>>, vector<1x1024xf32>
    %30 = vector.broadcast %29 : vector<1x1024xf32> to vector<8x1024xf32>
    %31 = arith.addf %28, %30 : vector<8x1024xf32>
    %cst_27 = arith.constant 0.000000e+00 : f32
    %32 = vector.broadcast %cst_27 : f32 to vector<8x1024xf32>
    %33 = arith.maximumf %31, %32 : vector<8x1024xf32>
    %34 = arith.truncf %33 : vector<8x1024xf32> to vector<8x1024xbf16>
    %c0_28 = arith.constant 0 : index
    %c0_29 = arith.constant 0 : index
    %35 = vector.load %arg12[%c0_28, %c0_29] : memref<1024x128xbf16, #tpu.memory_space<vmem>>, vector<1024x128xbf16>
    %cst_30 = arith.constant dense<0.000000e+00> : vector<8x128xf32>
    %36 = tpu.matmul %34, %35, %cst_30 {dimension_numbers = #tpu.dot_dimension_numbers<[1], [0], [0], [1], [0, 0, 1, 1], [], []>} : vector<8x1024xbf16>, vector<1024x128xbf16>, vector<8x128xf32> -> vector<8x128xf32>
    %c0_31 = arith.constant 0 : index
    %c0_32 = arith.constant 0 : index
    %37 = vector.load %arg13[%c0_31, %c0_32] : memref<1x128xf32, #tpu.memory_space<vmem>>, vector<1x128xf32>
    %38 = vector.broadcast %37 : vector<1x128xf32> to vector<8x128xf32>
    %39 = arith.addf %36, %38 : vector<8x128xf32>
    %cst_33 = arith.constant 0.000000e+00 : f32
    %40 = vector.broadcast %cst_33 : f32 to vector<8x128xf32>
    %41 = arith.maximumf %39, %40 : vector<8x128xf32>
    %42 = arith.truncf %41 : vector<8x128xf32> to vector<8x128xbf16>
    %c0_34 = arith.constant 0 : index
    %c0_35 = arith.constant 0 : index
    %43 = vector.load %arg14[%c0_34, %c0_35] : memref<128x16xbf16, #tpu.memory_space<vmem>>, vector<128x16xbf16>
    %cst_36 = arith.constant dense<0.000000e+00> : vector<8x16xf32>
    %44 = tpu.matmul %42, %43, %cst_36 {dimension_numbers = #tpu.dot_dimension_numbers<[1], [0], [0], [1], [0, 0, 1, 1], [], []>} : vector<8x128xbf16>, vector<128x16xbf16>, vector<8x16xf32> -> vector<8x16xf32>
    %c0_37 = arith.constant 0 : index
    %c0_38 = arith.constant 0 : index
    %45 = vector.load %arg15[%c0_37, %c0_38] : memref<1x16xf32, #tpu.memory_space<vmem>>, vector<1x16xf32>
    %46 = vector.broadcast %45 : vector<1x16xf32> to vector<8x16xf32>
    %47 = arith.addf %44, %46 : vector<8x16xf32>
    %cst_39 = arith.constant 0.000000e+00 : f32
    %48 = vector.broadcast %cst_39 : f32 to vector<8x16xf32>
    %49 = arith.maximumf %47, %48 : vector<8x16xf32>
    %50 = arith.truncf %49 : vector<8x16xf32> to vector<8x16xbf16>
    %c0_40 = arith.constant 0 : index
    %c0_41 = arith.constant 0 : index
    %51 = vector.load %arg16[%c0_40, %c0_41] : memref<16x1xbf16, #tpu.memory_space<vmem>>, vector<16x1xbf16>
    %cst_42 = arith.constant dense<0.000000e+00> : vector<8x1xf32>
    %52 = tpu.matmul %50, %51, %cst_42 {dimension_numbers = #tpu.dot_dimension_numbers<[1], [0], [0], [1], [0, 0, 1, 1], [], []>} : vector<8x16xbf16>, vector<16x1xbf16>, vector<8x1xf32> -> vector<8x1xf32>
    %c0_43 = arith.constant 0 : index
    %c0_44 = arith.constant 0 : index
    %53 = vector.load %arg17[%c0_43, %c0_44] : memref<1x1xf32, #tpu.memory_space<vmem>>, vector<1x1xf32>
    %54 = vector.broadcast %53 : vector<1x1xf32> to vector<8x1xf32>
    %55 = arith.addf %52, %54 : vector<8x1xf32>
    %56 = arith.negf %55 : vector<8x1xf32>
    %57 = math.exp %56 : vector<8x1xf32>
    %cst_45 = arith.constant 1.000000e+00 : f32
    %58 = vector.broadcast %cst_45 : f32 to vector<8x1xf32>
    %59 = arith.addf %58, %57 : vector<8x1xf32>
    %60 = arith.divf %58, %59 : vector<8x1xf32>
    %c0_46 = arith.constant 0 : index
    %c0_47 = arith.constant 0 : index
    %61 = vector.load %arg18[%c0_46, %c0_47] : memref<8x1xf32, #tpu.memory_space<vmem>>, vector<8x1xf32>
    tpu.vector_store %arg18[%c0_46, %c0_47], %60 {strides = array<i32>} : memref<8x1xf32, #tpu.memory_space<vmem>>, vector<8x1xf32>,
    return
  }
  func.func @transform_0(%arg0: i32) -> (i32, i32) {
    %c0_i32 = arith.constant 0 : i32
    %c0_i32_0 = arith.constant 0 : i32
    return %arg0, %c0_i32 : i32, i32
  }
  func.func @transform_1(%arg0: i32) -> (i32, i32) {
    %c0_i32 = arith.constant 0 : i32
    %c0_i32_0 = arith.constant 0 : i32
    return %arg0, %c0_i32 : i32, i32
  }
  func.func @transform_2(%arg0: i32) -> (i32, i32) {
    %c0_i32 = arith.constant 0 : i32
    %c0_i32_0 = arith.constant 0 : i32
    %c0_i32_1 = arith.constant 0 : i32
    return %c0_i32, %c0_i32_0 : i32, i32
  }
  func.func @transform_3(%arg0: i32) -> (i32, i32) {
    %c0_i32 = arith.constant 0 : i32
    %c0_i32_0 = arith.constant 0 : i32
    %c0_i32_1 = arith.constant 0 : i32
    return %c0_i32, %c0_i32_0 : i32, i32
  }
  func.func @transform_4(%arg0: i32) -> (i32, i32) {
    %c0_i32 = arith.constant 0 : i32
    %c0_i32_0 = arith.constant 0 : i32
    %c0_i32_1 = arith.constant 0 : i32
    return %c0_i32, %c0_i32_0 : i32, i32
  }
  func.func @transform_5(%arg0: i32) -> (i32, i32) {
    %c0_i32 = arith.constant 0 : i32
    %c0_i32_0 = arith.constant 0 : i32
    %c0_i32_1 = arith.constant 0 : i32
    return %c0_i32, %c0_i32_0 : i32, i32
  }
  func.func @transform_6(%arg0: i32) -> (i32, i32) {
    %c0_i32 = arith.constant 0 : i32
    %c0_i32_0 = arith.constant 0 : i32
    %c0_i32_1 = arith.constant 0 : i32
    return %c0_i32, %c0_i32_0 : i32, i32
  }
  func.func @transform_7(%arg0: i32) -> (i32, i32) {
    %c0_i32 = arith.constant 0 : i32
    %c0_i32_0 = arith.constant 0 : i32
    %c0_i32_1 = arith.constant 0 : i32
    return %c0_i32, %c0_i32_0 : i32, i32
  }
  func.func @transform_8(%arg0: i32) -> (i32, i32) {
    %c0_i32 = arith.constant 0 : i32
    %c0_i32_0 = arith.constant 0 : i32
    %c0_i32_1 = arith.constant 0 : i32
    return %c0_i32, %c0_i32_0 : i32, i32
  }
  func.func @transform_9(%arg0: i32) -> (i32, i32) {
    %c0_i32 = arith.constant 0 : i32
    %c0_i32_0 = arith.constant 0 : i32
    %c0_i32_1 = arith.constant 0 : i32
    return %c0_i32, %c0_i32_0 : i32, i32
  }
  func.func @transform_10(%arg0: i32) -> (i32, i32) {
    %c0_i32 = arith.constant 0 : i32
    %c0_i32_0 = arith.constant 0 : i32
    %c0_i32_1 = arith.constant 0 : i32
    return %c0_i32, %c0_i32_0 : i32, i32
  }
  func.func @transform_11(%arg0: i32) -> (i32, i32) {
    %c0_i32 = arith.constant 0 : i32
    %c0_i32_0 = arith.constant 0 : i32
    %c0_i32_1 = arith.constant 0 : i32
    return %c0_i32, %c0_i32_0 : i32, i32
  }
  func.func @transform_12(%arg0: i32) -> (i32, i32) {
    %c0_i32 = arith.constant 0 : i32
    %c0_i32_0 = arith.constant 0 : i32
    %c0_i32_1 = arith.constant 0 : i32
    return %c0_i32, %c0_i32_0 : i32, i32
  }
  func.func @transform_13(%arg0: i32) -> (i32, i32) {
    %c0_i32 = arith.constant 0 : i32
    %c0_i32_0 = arith.constant 0 : i32
    %c0_i32_1 = arith.constant 0 : i32
    return %c0_i32, %c0_i32_0 : i32, i32
  }
  func.func @transform_14(%arg0: i32) -> (i32, i32) {
    %c0_i32 = arith.constant 0 : i32
    %c0_i32_0 = arith.constant 0 : i32
    %c0_i32_1 = arith.constant 0 : i32
    return %c0_i32, %c0_i32_0 : i32, i32
  }
  func.func @transform_15(%arg0: i32) -> (i32, i32) {
    %c0_i32 = arith.constant 0 : i32
    %c0_i32_0 = arith.constant 0 : i32
    %c0_i32_1 = arith.constant 0 : i32
    return %c0_i32, %c0_i32_0 : i32, i32
  }
  func.func @transform_16(%arg0: i32) -> (i32, i32) {
    %c0_i32 = arith.constant 0 : i32
    %c0_i32_0 = arith.constant 0 : i32
    %c0_i32_1 = arith.constant 0 : i32
    return %c0_i32, %c0_i32_0 : i32, i32
  }
  func.func @transform_17(%arg0: i32) -> (i32, i32) {
    %c0_i32 = arith.constant 0 : i32
    %c0_i32_0 = arith.constant 0 : i32
    return %arg0, %c0_i32 : i32, i32
  }
}

</mosaic_0001>

<llo_original>
// kernel: tpu_custom_call.1
$region0: #{tpu_custom_call.1}
  #allocation0 [shape = 'u32[]', space=smem, size = 0x4, offset = 0x4, fixed_abs, tag = 'smem constant byte address 0x4 - core index']
  #allocation1 [shape = 'u32[144,128]{1,0:T(1,128)}', space=vmem, size = 0x12000, scoped, tag = 'internal scratch']
  #allocation2 [shape = 'f32[1,1]{1,0:T(1,128)S(1)}', space=vmem, size = 0x200, scoped, tag = 'scoped memory for tpu_custom_call.1']
  %s0 = inlined_call_operand.hbm [shape: bf16[8,32], index: 0, kind: input, shape index: {}]
  %s1 = inlined_call_operand.hbm [shape: bf16[8,64], index: 1, kind: input, shape index: {}]
  %s2 = inlined_call_operand.hbm [shape: bf16[32,2048], index: 2, kind: input, shape index: {}]
  %s3 = inlined_call_operand.hbm [shape: f32[1,2048], index: 3, kind: input, shape index: {}]
  %s4 = inlined_call_operand.hbm [shape: bf16[2048,1024], index: 4, kind: input, shape index: {}]
  %s5 = inlined_call_operand.hbm [shape: f32[1,1024], index: 5, kind: input, shape index: {}]
  %s6 = inlined_call_operand.vmem [shape: bf16[1024,64], index: 6, kind: input, shape index: {}]
  %s7 = inlined_call_operand.hbm [shape: f32[1,64], index: 7, kind: input, shape index: {}]
  %s8 = inlined_call_operand.hbm [shape: bf16[64,1024], index: 8, kind: input, shape index: {}]
  %s9 = inlined_call_operand.hbm [shape: bf16[64,1024], index: 9, kind: input, shape index: {}]
  %s10 = inlined_call_operand.hbm [shape: f32[1,1024], index: 10, kind: input, shape index: {}]
  %s11 = inlined_call_operand.hbm [shape: bf16[1024,128], index: 11, kind: input, shape index: {}]
  %s12 = inlined_call_operand.hbm [shape: f32[1,128], index: 12, kind: input, shape index: {}]
  %s13 = inlined_call_operand.vmem [shape: bf16[128,16], index: 13, kind: input, shape index: {}]
  %s14 = inlined_call_operand.hbm [shape: f32[1,16], index: 14, kind: input, shape index: {}]
  %s15 = inlined_call_operand.vmem [shape: bf16[16,1], index: 15, kind: input, shape index: {}]
  %s16 = inlined_call_operand.<no memory space> [shape: f32[1,1], index: 16, kind: input, shape index: {}]
  %s17 = inlined_call_operand.vmem [shape: f32[8,1], index: 17, kind: output, shape index: {}]
  %s18 = sld [smem:[#allocation0]]
  $region130: #{tpu_custom_call.1} parent=0
    _
  %s20 = ssub.s32 1, %s18
  %s21 = scalar_select 0, %s20, %s18
  %v22 = vstv %s16
  %23 = vst [vmem:[#allocation2] sm:$0x1] %v22
  $region1: #{tpu_custom_call.1} parent=0
    #allocation3 [shape = 'u8[2048]{0}', space=vmem, size = 0x800, scoped, tag = 'input window, operand 0, single buffered']
    #allocation4 [shape = 's32[1]{0}', space=sflag, size = 0x4, scoped, tag = 'scoped memory for tpu_custom_call.1']
    #allocation5 [shape = 'u8[2048]{0}', space=vmem, size = 0x800, scoped, tag = 'input window, operand 1, single buffered']
    #allocation6 [shape = 's32[1]{0}', space=sflag, size = 0x4, scoped, tag = 'scoped memory for tpu_custom_call.1']
    #allocation7 [shape = 'u8[131072]{0}', space=vmem, size = 0x20000, scoped, tag = 'input window, operand 2, single buffered']
    #allocation8 [shape = 'u8[8192]{0}', space=vmem, size = 0x2000, scoped, tag = 'input window, operand 3, single buffered']
    #allocation9 [shape = 's32[1]{0}', space=sflag, size = 0x4, scoped, tag = 'scoped memory for tpu_custom_call.1']
    #allocation10 [shape = 'u8[4194304]{0}', space=vmem, size = 0x400000, scoped, tag = 'input window, operand 4, single buffered']
    #allocation11 [shape = 'u8[4096]{0}', space=vmem, size = 0x1000, scoped, tag = 'input window, operand 5, single buffered']
    #allocation12 [shape = 's32[1]{0}', space=sflag, size = 0x4, scoped, tag = 'scoped memory for tpu_custom_call.1']
    #allocation13 [shape = 'u8[512]{0}', space=vmem, size = 0x400, scoped, tag = 'input window, operand 7, single buffered']
    #allocation14 [shape = 'u8[131072]{0}', space=vmem, size = 0x20000, scoped, tag = 'input window, operand 8, single buffered']
    #allocation15 [shape = 's32[1]{0}', space=sflag, size = 0x4, scoped, tag = 'scoped memory for tpu_custom_call.1']
    #allocation16 [shape = 'u8[131072]{0}', space=vmem, size = 0x20000, scoped, tag = 'input window, operand 9, single buffered']
    #allocation17 [shape = 'u8[4096]{0}', space=vmem, size = 0x1000, scoped, tag = 'input window, operand 10, single buffered']
    #allocation18 [shape = 's32[1]{0}', space=sflag, size = 0x4, scoped, tag = 'scoped memory for tpu_custom_call.1']
    #allocation19 [shape = 'u8[262144]{0}', space=vmem, size = 0x40000, scoped, tag = 'input window, operand 11, single buffered']
    #allocation20 [shape = 'u8[512]{0}', space=vmem, size = 0x400, scoped, tag = 'input window, operand 12, single buffered']
    #allocation21 [shape = 's32[1]{0}', space=sflag, size = 0x4, scoped, tag = 'scoped memory for tpu_custom_call.1']
    #allocation22 [shape = 'u8[512]{0}', space=vmem, size = 0x400, scoped, tag = 'input window, operand 14, single buffered']
    %24 = vsyncpa [#allocation4], 0
    %25 = vsyncpa [#allocation6], 0
    %26 = vsyncpa [#allocation9], 0
    %27 = vsyncpa [#allocation12], 0
    %28 = vsyncpa [#allocation15], 0
    %29 = vsyncpa [#allocation18], 0
    %30 = vsyncpa [#allocation21], 0
    // Predicated region
    $region2: #{tpu_custom_call.1} parent=1 // pred_check
      _
    $region3: #{tpu_custom_call.1} parent=1 // pred_check_branch
      %32 = sbr.rel (0) target = $region5
    $region4: #{tpu_custom_call.1} parent=1 // pred_region
      %s34 = ssub.s32 64, 64
      %35 = vsyncadd [#allocation4], %s34
      %s37 = sshll.u32 [#allocation3], 4
      %s38 = int_to_ptr.vmem [resolvable:$true] %s37
      %40 = dma.hbm_to_vmem [thread:$0]  %s0, 64, %s38, [#allocation4]
    $region5: #{tpu_custom_call.1} parent=1 // pred_fallthru
      _
    // Predicated region
    $region6: #{tpu_custom_call.1} parent=1 // pred_check
      _
    $region7: #{tpu_custom_call.1} parent=1 // pred_check_branch
      %42 = sbr.rel (0) target = $region9
    $region8: #{tpu_custom_call.1} parent=1 // pred_region
      %s44 = ssub.s32 64, 64
      %45 = vsyncadd [#allocation6], %s44
      %s47 = sshll.u32 [#allocation5], 4
      %s48 = int_to_ptr.vmem [resolvable:$true] %s47
      %50 = dma.hbm_to_vmem [thread:$0]  %s1, 64, %s48, [#allocation6]
    $region9: #{tpu_custom_call.1} parent=1 // pred_fallthru
      _
    // Predicated region
    $region10: #{tpu_custom_call.1} parent=1 // pred_check
      _
    $region11: #{tpu_custom_call.1} parent=1 // pred_check_branch
      %52 = sbr.rel (0) target = $region13
    $region12: #{tpu_custom_call.1} parent=1 // pred_region
      %s54 = ssub.s32 4096, 4096
      %55 = vsyncadd [#allocation6], %s54
      %s56 = sshll.u32 [#allocation7], 4
      %s57 = int_to_ptr.vmem [resolvable:$true] %s56
      %62 = dma.hbm_to_vmem [thread:$0]  %s2, 4096, %s57, [#allocation6], 1024, 1024, 64
    $region13: #{tpu_custom_call.1} parent=1 // pred_fallthru
      _
    // Predicated region
    $region14: #{tpu_custom_call.1} parent=1 // pred_check
      _
    $region15: #{tpu_custom_call.1} parent=1 // pred_check_branch
      %64 = sbr.rel (0) target = $region17
    $region16: #{tpu_custom_call.1} parent=1 // pred_region
      %s66 = ssub.s32 256, 256
      %67 = vsyncadd [#allocation9], %s66
      %s69 = sshll.u32 [#allocation8], 4
      %s70 = int_to_ptr.vmem [resolvable:$true] %s69
      %72 = dma.hbm_to_vmem [thread:$0]  %s3, 256, %s70, [#allocation9]
    $region17: #{tpu_custom_call.1} parent=1 // pred_fallthru
      _
    // Predicated region
    $region18: #{tpu_custom_call.1} parent=1 // pred_check
      _
    $region19: #{tpu_custom_call.1} parent=1 // pred_check_branch
      %74 = sbr.rel (0) target = $region21
    $region20: #{tpu_custom_call.1} parent=1 // pred_region
      %s76 = ssub.s32 131072, 131072
      %77 = vsyncadd [#allocation9], %s76
      %s78 = sshll.u32 [#allocation10], 4
      %s79 = int_to_ptr.vmem [resolvable:$true] %s78
      %84 = dma.hbm_to_vmem [thread:$0]  %s4, 131072, %s79, [#allocation9], 512, 512, 32
    $region21: #{tpu_custom_call.1} parent=1 // pred_fallthru
      _
    // Predicated region
    $region22: #{tpu_custom_call.1} parent=1 // pred_check
      _
    $region23: #{tpu_custom_call.1} parent=1 // pred_check_branch
      %86 = sbr.rel (0) target = $region25
    $region24: #{tpu_custom_call.1} parent=1 // pred_region
      %s88 = ssub.s32 128, 128
      %89 = vsyncadd [#allocation12], %s88
      %s91 = sshll.u32 [#allocation11], 4
      %s92 = int_to_ptr.vmem [resolvable:$true] %s91
      %94 = dma.hbm_to_vmem [thread:$0]  %s5, 128, %s92, [#allocation12]
    $region25: #{tpu_custom_call.1} parent=1 // pred_fallthru
      _
    // Predicated region
    $region26: #{tpu_custom_call.1} parent=1 // pred_check
      _
    $region27: #{tpu_custom_call.1} parent=1 // pred_check_branch
      %96 = sbr.rel (0) target = $region29
    $region28: #{tpu_custom_call.1} parent=1 // pred_region
      _
    $region29: #{tpu_custom_call.1} parent=1 // pred_fallthru
      _
    // Predicated region
    $region30: #{tpu_custom_call.1} parent=1 // pred_check
      _
    $region31: #{tpu_custom_call.1} parent=1 // pred_check_branch
      %98 = sbr.rel (0) target = $region33
    $region32: #{tpu_custom_call.1} parent=1 // pred_region
      %s100 = ssub.s32 16, 16
      %101 = vsyncadd [#allocation12], %s100
      %s103 = sshll.u32 [#allocation13], 4
      %s104 = int_to_ptr.vmem [resolvable:$true] %s103
      %106 = dma.hbm_to_vmem [thread:$0]  %s7, 16, %s104, [#allocation12]
    $region33: #{tpu_custom_call.1} parent=1 // pred_fallthru
      _
    // Predicated region
    $region34: #{tpu_custom_call.1} parent=1 // pred_check
      _
    $region35: #{tpu_custom_call.1} parent=1 // pred_check_branch
      %108 = sbr.rel (0) target = $region37
    $region36: #{tpu_custom_call.1} parent=1 // pred_region
      %s110 = ssub.s32 4096, 4096
      %111 = vsyncadd [#allocation15], %s110
      %s112 = sshll.u32 [#allocation14], 4
      %s113 = int_to_ptr.vmem [resolvable:$true] %s112
      %118 = dma.hbm_to_vmem [thread:$0]  %s8, 4096, %s113, [#allocation15], 512, 512, 32
    $region37: #{tpu_custom_call.1} parent=1 // pred_fallthru
      _
    // Predicated region
    $region38: #{tpu_custom_call.1} parent=1 // pred_check
      _
    $region39: #{tpu_custom_call.1} parent=1 // pred_check_branch
      %120 = sbr.rel (0) target = $region41
    $region40: #{tpu_custom_call.1} parent=1 // pred_region
      %s122 = ssub.s32 4096, 4096
      %123 = vsyncadd [#allocation15], %s122
      %s124 = sshll.u32 [#allocation16], 4
      %s125 = int_to_ptr.vmem [resolvable:$true] %s124
      %130 = dma.hbm_to_vmem [thread:$0]  %s9, 4096, %s125, [#allocation15], 512, 512, 32
    $region41: #{tpu_custom_call.1} parent=1 // pred_fallthru
      _
    // Predicated region
    $region42: #{tpu_custom_call.1} parent=1 // pred_check
      _
    $region43: #{tpu_custom_call.1} parent=1 // pred_check_branch
      %132 = sbr.rel (0) target = $region45
    $region44: #{tpu_custom_call.1} parent=1 // pred_region
      %s134 = ssub.s32 128, 128
      %135 = vsyncadd [#allocation18], %s134
      %s137 = sshll.u32 [#allocation17], 4
      %s138 = int_to_ptr.vmem [resolvable:$true] %s137
      %140 = dma.hbm_to_vmem [thread:$0]  %s10, 128, %s138, [#allocation18]
    $region45: #{tpu_custom_call.1} parent=1 // pred_fallthru
      _
    // Predicated region
    $region46: #{tpu_custom_call.1} parent=1 // pred_check
      _
    $region47: #{tpu_custom_call.1} parent=1 // pred_check_branch
      %142 = sbr.rel (0) target = $region49
    $region48: #{tpu_custom_call.1} parent=1 // pred_region
      %s144 = ssub.s32 8192, 8192
      %145 = vsyncadd [#allocation18], %s144
      %s146 = sshll.u32 [#allocation19], 4
      %s147 = int_to_ptr.vmem [resolvable:$true] %s146
      %152 = dma.hbm_to_vmem [thread:$0]  %s11, 8192, %s147, [#allocation18], 64, 64, 4
    $region49: #{tpu_custom_call.1} parent=1 // pred_fallthru
      _
    // Predicated region
    $region50: #{tpu_custom_call.1} parent=1 // pred_check
      _
    $region51: #{tpu_custom_call.1} parent=1 // pred_check_branch
      %154 = sbr.rel (0) target = $region53
    $region52: #{tpu_custom_call.1} parent=1 // pred_region
      %s156 = ssub.s32 16, 16
      %157 = vsyncadd [#allocation21], %s156
      %s159 = sshll.u32 [#allocation20], 4
      %s160 = int_to_ptr.vmem [resolvable:$true] %s159
      %162 = dma.hbm_to_vmem [thread:$0]  %s12, 16, %s160, [#allocation21]
    $region53: #{tpu_custom_call.1} parent=1 // pred_fallthru
      _
    // Predicated region
    $region54: #{tpu_custom_call.1} parent=1 // pred_check
      _
    $region55: #{tpu_custom_call.1} parent=1 // pred_check_branch
      %164 = sbr.rel (0) target = $region57
    $region56: #{tpu_custom_call.1} parent=1 // pred_region
      _
    $region57: #{tpu_custom_call.1} parent=1 // pred_fallthru
      _
    // Predicated region
    $region58: #{tpu_custom_call.1} parent=1 // pred_check
      _
    $region59: #{tpu_custom_call.1} parent=1 // pred_check_branch
      %166 = sbr.rel (0) target = $region61
    $region60: #{tpu_custom_call.1} parent=1 // pred_region
      %s168 = ssub.s32 16, 16
      %169 = vsyncadd [#allocation21], %s168
      %s171 = sshll.u32 [#allocation22], 4
      %s172 = int_to_ptr.vmem [resolvable:$true] %s171
      %174 = dma.hbm_to_vmem [thread:$0]  %s14, 16, %s172, [#allocation21]
    $region61: #{tpu_custom_call.1} parent=1 // pred_fallthru
      _
    // Predicated region
    $region62: #{tpu_custom_call.1} parent=1 // pred_check
      _
    $region63: #{tpu_custom_call.1} parent=1 // pred_check_branch
      %176 = sbr.rel (0) target = $region65
    $region64: #{tpu_custom_call.1} parent=1 // pred_region
      _
    $region65: #{tpu_custom_call.1} parent=1 // pred_fallthru
      _
    // Predicated region
    $region66: #{tpu_custom_call.1} parent=1 // pred_check
      _
    $region67: #{tpu_custom_call.1} parent=1 // pred_check_branch
      %178 = sbr.rel (0) target = $region69
    $region68: #{tpu_custom_call.1} parent=1 // pred_region
      _
    $region69: #{tpu_custom_call.1} parent=1 // pred_fallthru
      _
    // Predicated region
    $region70: #{tpu_custom_call.1} parent=1 // pred_check
      _
    $region71: #{tpu_custom_call.1} parent=1 // pred_check_branch
      %180 = sbr.rel (0) target = $region73
    $region72: #{tpu_custom_call.1} parent=1 // pred_region
      %181 = dma.done [#allocation4], 64
    $region73: #{tpu_custom_call.1} parent=1 // pred_fallthru
      _
    // Predicated region
    $region74: #{tpu_custom_call.1} parent=1 // pred_check
      _
    $region75: #{tpu_custom_call.1} parent=1 // pred_check_branch
      %183 = sbr.rel (0) target = $region77
    $region76: #{tpu_custom_call.1} parent=1 // pred_region
      %184 = dma.done [#allocation6], 64
    $region77: #{tpu_custom_call.1} parent=1 // pred_fallthru
      _
    // Predicated region
    $region78: #{tpu_custom_call.1} parent=1 // pred_check
      _
    $region79: #{tpu_custom_call.1} parent=1 // pred_check_branch
      %186 = sbr.rel (0) target = $region81
    $region80: #{tpu_custom_call.1} parent=1 // pred_region
      %187 = dma.done [#allocation6], 4096
    $region81: #{tpu_custom_call.1} parent=1 // pred_fallthru
      _
    // Predicated region
    $region82: #{tpu_custom_call.1} parent=1 // pred_check
      _
    $region83: #{tpu_custom_call.1} parent=1 // pred_check_branch
      %189 = sbr.rel (0) target = $region85
    $region84: #{tpu_custom_call.1} parent=1 // pred_region
      %190 = dma.done [#allocation9], 256
    $region85: #{tpu_custom_call.1} parent=1 // pred_fallthru
      _
    // Predicated region
    $region86: #{tpu_custom_call.1} parent=1 // pred_check
      _
    $region87: #{tpu_custom_call.1} parent=1 // pred_check_branch
      %192 = sbr.rel (0) target = $region89
    $region88: #{tpu_custom_call.1} parent=1 // pred_region
      %193 = dma.done [#allocation9], 131072
    $region89: #{tpu_custom_call.1} parent=1 // pred_fallthru
      _
    // Predicated region
    $region90: #{tpu_custom_call.1} parent=1 // pred_check
      _
    $region91: #{tpu_custom_call.1} parent=1 // pred_check_branch
      %195 = sbr.rel (0) target = $region93
    $region92: #{tpu_custom_call.1} parent=1 // pred_region
      %196 = dma.done [#allocation12], 128
    $region93: #{tpu_custom_call.1} parent=1 // pred_fallthru
      _
    // Predicated region
    $region94: #{tpu_custom_call.1} parent=1 // pred_check
      _
    $region95: #{tpu_custom_call.1} parent=1 // pred_check_branch
      %198 = sbr.rel (0) target = $region97
    $region96: #{tpu_custom_call.1} parent=1 // pred_region
      %199 = dma.done [#allocation12], 16
    $region97: #{tpu_custom_call.1} parent=1 // pred_fallthru
      _
    // Predicated region
    $region98: #{tpu_custom_call.1} parent=1 // pred_check
      _
    $region99: #{tpu_custom_call.1} parent=1 // pred_check_branch
      %201 = sbr.rel (0) target = $region101
    $region100: #{tpu_custom_call.1} parent=1 // pred_region
      %202 = dma.done [#allocation15], 4096
    $region101: #{tpu_custom_call.1} parent=1 // pred_fallthru
      _
    // Predicated region
    $region102: #{tpu_custom_call.1} parent=1 // pred_check
      _
    $region103: #{tpu_custom_call.1} parent=1 // pred_check_branch
      %204 = sbr.rel (0) target = $region105
    $region104: #{tpu_custom_call.1} parent=1 // pred_region
      %205 = dma.done [#allocation15], 4096
    $region105: #{tpu_custom_call.1} parent=1 // pred_fallthru
      _
    // Predicated region
    $region106: #{tpu_custom_call.1} parent=1 // pred_check
      _
    $region107: #{tpu_custom_call.1} parent=1 // pred_check_branch
      %207 = sbr.rel (0) target = $region109
    $region108: #{tpu_custom_call.1} parent=1 // pred_region
      %208 = dma.done [#allocation18], 128
    $region109: #{tpu_custom_call.1} parent=1 // pred_fallthru
      _
    // Predicated region
    $region110: #{tpu_custom_call.1} parent=1 // pred_check
      _
    $region111: #{tpu_custom_call.1} parent=1 // pred_check_branch
      %210 = sbr.rel (0) target = $region113
    $region112: #{tpu_custom_call.1} parent=1 // pred_region
      %211 = dma.done [#allocation18], 8192
    $region113: #{tpu_custom_call.1} parent=1 // pred_fallthru
      _
    // Predicated region
    $region114: #{tpu_custom_call.1} parent=1 // pred_check
      _
    $region115: #{tpu_custom_call.1} parent=1 // pred_check_branch
      %213 = sbr.rel (0) target = $region117
    $region116: #{tpu_custom_call.1} parent=1 // pred_region
      %214 = dma.done [#allocation21], 16
    $region117: #{tpu_custom_call.1} parent=1 // pred_fallthru
      _
    // Predicated region
    $region118: #{tpu_custom_call.1} parent=1 // pred_check
      _
    $region119: #{tpu_custom_call.1} parent=1 // pred_check_branch
      %216 = sbr.rel (0) target = $region121
    $region120: #{tpu_custom_call.1} parent=1 // pred_region
      %217 = dma.done [#allocation21], 16
    $region121: #{tpu_custom_call.1} parent=1 // pred_fallthru
      _
    %v219 = vld [vmem:[#allocation3] sm:$0xf]
    %v220 = vld [vmem:[#allocation7] sm:$0xff]
    %v221 = vld [vmem:[#allocation7 + $0x8] sm:$0xff]
    %v222 = vld [vmem:[#allocation7 + $0x10] sm:$0xff]
    %v223 = vld [vmem:[#allocation7 + $0x18] sm:$0xff]
    %v224 = vld [vmem:[#allocation7 + $0x20] sm:$0xff]
    %v225 = vld [vmem:[#allocation7 + $0x28] sm:$0xff]
    %v226 = vld [vmem:[#allocation7 + $0x30] sm:$0xff]
    %v227 = vld [vmem:[#allocation7 + $0x38] sm:$0xff]
    %v228 = vld [vmem:[#allocation7 + $0x40] sm:$0xff]
    %v229 = vld [vmem:[#allocation7 + $0x48] sm:$0xff]
    %v230 = vld [vmem:[#allocation7 + $0x50] sm:$0xff]
    %v231 = vld [vmem:[#allocation7 + $0x58] sm:$0xff]
    %v232 = vld [vmem:[#allocation7 + $0x60] sm:$0xff]
    %v233 = vld [vmem:[#allocation7 + $0x68] sm:$0xff]
    %v234 = vld [vmem:[#allocation7 + $0x70] sm:$0xff]
    %v235 = vld [vmem:[#allocation7 + $0x78] sm:$0xff]
    %v236 = vld [vmem:[#allocation7 + $0x80] sm:$0xff]
    %v237 = vld [vmem:[#allocation7 + $0x88] sm:$0xff]
    %v238 = vld [vmem:[#allocation7 + $0x90] sm:$0xff]
    %v239 = vld [vmem:[#allocation7 + $0x98] sm:$0xff]
    %v240 = vld [vmem:[#allocation7 + $0xa0] sm:$0xff]
    %v241 = vld [vmem:[#allocation7 + $0xa8] sm:$0xff]
    %v242 = vld [vmem:[#allocation7 + $0xb0] sm:$0xff]
    %v243 = vld [vmem:[#allocation7 + $0xb8] sm:$0xff]
    %v244 = vld [vmem:[#allocation7 + $0xc0] sm:$0xff]
    %v245 = vld [vmem:[#allocation7 + $0xc8] sm:$0xff]
    %v246 = vld [vmem:[#allocation7 + $0xd0] sm:$0xff]
    %v247 = vld [vmem:[#allocation7 + $0xd8] sm:$0xff]
    %v248 = vld [vmem:[#allocation7 + $0xe0] sm:$0xff]
    %v249 = vld [vmem:[#allocation7 + $0xe8] sm:$0xff]
    %v250 = vld [vmem:[#allocation7 + $0xf0] sm:$0xff]
    %v251 = vld [vmem:[#allocation7 + $0xf8] sm:$0xff]
    %v252 = vld [vmem:[#allocation8] sm:$0xff]
    %v253 = vld [vmem:[#allocation8 + $0x8] sm:$0xff]
    %v256 = vlaneseq
    %v257 = vshrl.u32 %v256, 7
    %v258 = vsub.s32 0, %v257
    %v259 = vrot.slane %v252, %v258
    %v260 = vlaneseq
    %v261 = vshrl.u32 %v260, 7
    %v262 = vsub.s32 1, %v261
    %v263 = vrot.slane %v252, %v262
    %v264 = vlaneseq
    %v265 = vshrl.u32 %v264, 7
    %v266 = vsub.s32 2, %v265
    %v267 = vrot.slane %v252, %v266
    %v268 = vlaneseq
    %v269 = vshrl.u32 %v268, 7
    %v270 = vsub.s32 3, %v269
    %v271 = vrot.slane %v252, %v270
    %v272 = vlaneseq
    %v273 = vshrl.u32 %v272, 7
    %v274 = vsub.s32 4, %v273
    %v275 = vrot.slane %v252, %v274
    %v276 = vlaneseq
    %v277 = vshrl.u32 %v276, 7
    %v278 = vsub.s32 5, %v277
    %v279 = vrot.slane %v252, %v278
    %v280 = vlaneseq
    %v281 = vshrl.u32 %v280, 7
    %v282 = vsub.s32 6, %v281
    %v283 = vrot.slane %v252, %v282
    %v284 = vlaneseq
    %v285 = vshrl.u32 %v284, 7
    %v286 = vsub.s32 7, %v285
    %v287 = vrot.slane %v252, %v286
    %v288 = vlaneseq
    %v289 = vshrl.u32 %v288, 7
    %v290 = vsub.s32 0, %v289
    %v291 = vrot.slane %v253, %v290
    %v292 = vlaneseq
    %v293 = vshrl.u32 %v292, 7
    %v294 = vsub.s32 1, %v293
    %v295 = vrot.slane %v253, %v294
    %v296 = vlaneseq
    %v297 = vshrl.u32 %v296, 7
    %v298 = vsub.s32 2, %v297
    %v299 = vrot.slane %v253, %v298
    %v300 = vlaneseq
    %v301 = vshrl.u32 %v300, 7
    %v302 = vsub.s32 3, %v301
    %v303 = vrot.slane %v253, %v302
    %v304 = vlaneseq
    %v305 = vshrl.u32 %v304, 7
    %v306 = vsub.s32 4, %v305
    %v307 = vrot.slane %v253, %v306
    %v308 = vlaneseq
    %v309 = vshrl.u32 %v308, 7
    %v310 = vsub.s32 5, %v309
    %v311 = vrot.slane %v253, %v310
    %v312 = vlaneseq
    %v313 = vshrl.u32 %v312, 7
    %v314 = vsub.s32 6, %v313
    %v315 = vrot.slane %v253, %v314
    %v316 = vlaneseq
    %v317 = vshrl.u32 %v316, 7
    %v318 = vsub.s32 7, %v317
    %v319 = vrot.slane %v253, %v318
    %v368 = vunpack.c.l.b16 %v220
    %v369 = vunpack.c.h.b16 %v220
    %v370 = vunpack.c.l.b16 %v221
    %v371 = vunpack.c.h.b16 %v221
    %v372 = vunpack.c.l.b16 %v222
    %v373 = vunpack.c.h.b16 %v222
    %v374 = vunpack.c.l.b16 %v223
    %v375 = vunpack.c.h.b16 %v223
    %v376 = vunpack.c.l.b16 %v224
    %v377 = vunpack.c.h.b16 %v224
    %v378 = vunpack.c.l.b16 %v225
    %v379 = vunpack.c.h.b16 %v225
    %v380 = vunpack.c.l.b16 %v226
    %v381 = vunpack.c.h.b16 %v226
    %v382 = vunpack.c.l.b16 %v227
    %v383 = vunpack.c.h.b16 %v227
    %v384 = vunpack.c.l.b16 %v228
    %v385 = vunpack.c.h.b16 %v228
    %v386 = vunpack.c.l.b16 %v229
    %v387 = vunpack.c.h.b16 %v229
    %v388 = vunpack.c.l.b16 %v230
    %v389 = vunpack.c.h.b16 %v230
    %v390 = vunpack.c.l.b16 %v231
    %v391 = vunpack.c.h.b16 %v231
    %v392 = vunpack.c.l.b16 %v232
    %v393 = vunpack.c.h.b16 %v232
    %v394 = vunpack.c.l.b16 %v233
    %v395 = vunpack.c.h.b16 %v233
    %v396 = vunpack.c.l.b16 %v234
    %v397 = vunpack.c.h.b16 %v234
    %v398 = vunpack.c.l.b16 %v235
    %v399 = vunpack.c.h.b16 %v235
    %v400 = vunpack.c.l.b16 %v236
    %v401 = vunpack.c.h.b16 %v236
    %v402 = vunpack.c.l.b16 %v237
    %v403 = vunpack.c.h.b16 %v237
    %v404 = vunpack.c.l.b16 %v238
    %v405 = vunpack.c.h.b16 %v238
    %v406 = vunpack.c.l.b16 %v239
    %v407 = vunpack.c.h.b16 %v239
    %v408 = vunpack.c.l.b16 %v240
    %v409 = vunpack.c.h.b16 %v240
    %v410 = vunpack.c.l.b16 %v241
    %v411 = vunpack.c.h.b16 %v241
    %v412 = vunpack.c.l.b16 %v242
    %v413 = vunpack.c.h.b16 %v242
    %v414 = vunpack.c.l.b16 %v243
    %v415 = vunpack.c.h.b16 %v243
    %v416 = vunpack.c.l.b16 %v244
    %v417 = vunpack.c.h.b16 %v244
    %v418 = vunpack.c.l.b16 %v245
    %v419 = vunpack.c.h.b16 %v245
    %v420 = vunpack.c.l.b16 %v246
    %v421 = vunpack.c.h.b16 %v246
    %v422 = vunpack.c.l.b16 %v247
    %v423 = vunpack.c.h.b16 %v247
    %v424 = vunpack.c.l.b16 %v248
    %v425 = vunpack.c.h.b16 %v248
    %v426 = vunpack.c.l.b16 %v249
    %v427 = vunpack.c.h.b16 %v249
    %v428 = vunpack.c.l.b16 %v250
    %v429 = vunpack.c.h.b16 %v250
    %v430 = vunpack.c.l.b16 %v251
    %v431 = vunpack.c.h.b16 %v251
    %v432 = vpack.c.b16 %v384, %v368
    %v433 = vpack.c.b16 %v385, %v369
    %v434 = vpack.c.b16 %v386, %v370
    %v435 = vpack.c.b16 %v387, %v371
    %v436 = vpack.c.b16 %v388, %v372
    %v437 = vpack.c.b16 %v389, %v373
    %v438 = vpack.c.b16 %v390, %v374
    %v439 = vpack.c.b16 %v391, %v375
    %v440 = vpack.c.b16 %v392, %v376
    %v441 = vpack.c.b16 %v393, %v377
    %v442 = vpack.c.b16 %v394, %v378
    %v443 = vpack.c.b16 %v395, %v379
    %v444 = vpack.c.b16 %v396, %v380
    %v445 = vpack.c.b16 %v397, %v381
    %v446 = vpack.c.b16 %v398, %v382
    %v447 = vpack.c.b16 %v399, %v383
    %v448 = vpack.c.b16 %v416, %v400
    %v449 = vpack.c.b16 %v417, %v401
    %v450 = vpack.c.b16 %v418, %v402
    %v451 = vpack.c.b16 %v419, %v403
    %v452 = vpack.c.b16 %v420, %v404
    %v453 = vpack.c.b16 %v421, %v405
    %v454 = vpack.c.b16 %v422, %v406
    %v455 = vpack.c.b16 %v423, %v407
    %v456 = vpack.c.b16 %v424, %v408
    %v457 = vpack.c.b16 %v425, %v409
    %v458 = vpack.c.b16 %v426, %v410
    %v459 = vpack.c.b16 %v427, %v411
    %v460 = vpack.c.b16 %v428, %v412
    %v461 = vpack.c.b16 %v429, %v413
    %v462 = vpack.c.b16 %v430, %v414
    %v463 = vpack.c.b16 %v431, %v415
    %vm496 = vcmask 261120
    %v498 = vsel %vm496, %v219, 0
    %500 = vmatprep.subr.bf16.mxu0 %v433
    %501 = vmatpush1.bf16.msra.mxu0 %v432
    %502 = vmatprep.subr.bf16.mxu0 %v449
    %503 = vmatpush1.bf16.msra.mxu0 %v448
    %504 = vmatprep.subr.bf16.mxu0 0
    %505 = vmatpush1.bf16.msra.mxu0 0
    %506 = vmatprep.subr.bf16.mxu0 0
    %507 = vmatpush1.bf16.msra.mxu0 0
    %508 = vmatprep.subr.bf16.mxu0 0
    %509 = vmatpush1.bf16.msra.mxu0 0
    %510 = vmatprep.subr.bf16.mxu0 0
    %511 = vmatpush1.bf16.msra.mxu0 0
    %512 = vmatprep.subr.bf16.mxu0 0
    %513 = vmatpush1.bf16.msra.mxu0 0
    %514 = vmatprep.subr.bf16.mxu0 0
    %515 = vmatpush1.bf16.msra.mxu0 0
    %516 = vmatprep.subr.bf16.mxu0 0
    %517 = vmatpush1.bf16.msra.mxu0 0
    %518 = vmatprep.subr.bf16.mxu0 0
    %519 = vmatpush1.bf16.msra.mxu0 0
    %520 = vmatprep.subr.bf16.mxu0 0
    %521 = vmatpush1.bf16.msra.mxu0 0
    %522 = vmatprep.subr.bf16.mxu0 0
    %523 = vmatpush1.bf16.msra.mxu0 0
    %524 = vmatprep.subr.bf16.mxu0 0
    %525 = vmatpush1.bf16.msra.mxu0 0
    %526 = vmatprep.subr.bf16.mxu0 0
    %527 = vmatpush1.bf16.msra.mxu0 0
    %528 = vmatprep.subr.bf16.mxu0 0
    %529 = vmatpush1.bf16.msra.mxu0 0
    %530 = vmatprep.subr.bf16.mxu0 0
    %531 = vmatpush1.bf16.msra.mxu0 0
    %532 = vmatprep.mubr.bf16.mxu0 0
    %533 = vmatmul.mubr.bf16.gmra.mrb[0].mxu0 %v498
    %v534 = vpop.f32.mrb[0].mxu0
    %v535 = vadd.f32 %v259, %v534
    %v536 = vpop.f32.mrb[0].mxu0
    %v537 = vadd.f32 %v263, %v536
    %v538 = vpop.f32.mrb[0].mxu0
    %v539 = vpop.f32.mrb[0].mxu0
    %540 = vdwg.mxu0
    %541 = vmatprep.subr.bf16.mxu0 %v435
    %542 = vmatpush1.bf16.msra.mxu0 %v434
    %543 = vmatprep.subr.bf16.mxu0 %v451
    %544 = vmatpush1.bf16.msra.mxu0 %v450
    %545 = vmatprep.subr.bf16.mxu0 0
    %546 = vmatpush1.bf16.msra.mxu0 0
    %547 = vmatprep.subr.bf16.mxu0 0
    %548 = vmatpush1.bf16.msra.mxu0 0
    %549 = vmatprep.subr.bf16.mxu0 0
    %550 = vmatpush1.bf16.msra.mxu0 0
    %551 = vmatprep.subr.bf16.mxu0 0
    %552 = vmatpush1.bf16.msra.mxu0 0
    %553 = vmatprep.subr.bf16.mxu0 0
    %554 = vmatpush1.bf16.msra.mxu0 0
    %555 = vmatprep.subr.bf16.mxu0 0
    %556 = vmatpush1.bf16.msra.mxu0 0
    %557 = vmatprep.subr.bf16.mxu0 0
    %558 = vmatpush1.bf16.msra.mxu0 0
    %559 = vmatprep.subr.bf16.mxu0 0
    %560 = vmatpush1.bf16.msra.mxu0 0
    %561 = vmatprep.subr.bf16.mxu0 0
    %562 = vmatpush1.bf16.msra.mxu0 0
    %563 = vmatprep.subr.bf16.mxu0 0
    %564 = vmatpush1.bf16.msra.mxu0 0
    %565 = vmatprep.subr.bf16.mxu0 0
    %566 = vmatpush1.bf16.msra.mxu0 0
    %567 = vmatprep.subr.bf16.mxu0 0
    %568 = vmatpush1.bf16.msra.mxu0 0
    %569 = vmatprep.subr.bf16.mxu0 0
    %570 = vmatpush1.bf16.msra.mxu0 0
    %571 = vmatprep.subr.bf16.mxu0 0
    %572 = vmatpush1.bf16.msra.mxu0 0
    %573 = vmatprep.mubr.bf16.mxu0 0
    %574 = vmatmul.mubr.bf16.gmra.mrb[0].mxu0 %v498
    %v575 = vpop.f32.mrb[0].mxu0
    %v576 = vadd.f32 %v267, %v575
    %v577 = vpop.f32.mrb[0].mxu0
    %v578 = vadd.f32 %v271, %v577
    %v579 = vpop.f32.mrb[0].mxu0
    %v580 = vpop.f32.mrb[0].mxu0
    %581 = vdwg.mxu0
    %582 = vmatprep.subr.bf16.mxu0 %v437
    %583 = vmatpush1.bf16.msra.mxu0 %v436
    %584 = vmatprep.subr.bf16.mxu0 %v453
    %585 = vmatpush1.bf16.msra.mxu0 %v452
    %586 = vmatprep.subr.bf16.mxu0 0
    %587 = vmatpush1.bf16.msra.mxu0 0
    %588 = vmatprep.subr.bf16.mxu0 0
    %589 = vmatpush1.bf16.msra.mxu0 0
    %590 = vmatprep.subr.bf16.mxu0 0
    %591 = vmatpush1.bf16.msra.mxu0 0
    %592 = vmatprep.subr.bf16.mxu0 0
    %593 = vmatpush1.bf16.msra.mxu0 0
    %594 = vmatprep.subr.bf16.mxu0 0
    %595 = vmatpush1.bf16.msra.mxu0 0
    %596 = vmatprep.subr.bf16.mxu0 0
    %597 = vmatpush1.bf16.msra.mxu0 0
    %598 = vmatprep.subr.bf16.mxu0 0
    %599 = vmatpush1.bf16.msra.mxu0 0
    %600 = vmatprep.subr.bf16.mxu0 0
    %601 = vmatpush1.bf16.msra.mxu0 0
    %602 = vmatprep.subr.bf16.mxu0 0
    %603 = vmatpush1.bf16.msra.mxu0 0
    %604 = vmatprep.subr.bf16.mxu0 0
    %605 = vmatpush1.bf16.msra.mxu0 0
    %606 = vmatprep.subr.bf16.mxu0 0
    %607 = vmatpush1.bf16.msra.mxu0 0
    %608 = vmatprep.subr.bf16.mxu0 0
    %609 = vmatpush1.bf16.msra.mxu0 0
    %610 = vmatprep.subr.bf16.mxu0 0
    %611 = vmatpush1.bf16.msra.mxu0 0
    %612 = vmatprep.subr.bf16.mxu0 0
    %613 = vmatpush1.bf16.msra.mxu0 0
    %614 = vmatprep.mubr.bf16.mxu0 0
    %615 = vmatmul.mubr.bf16.gmra.mrb[0].mxu0 %v498
    %v616 = vpop.f32.mrb[0].mxu0
    %v617 = vadd.f32 %v275, %v616
    %v618 = vpop.f32.mrb[0].mxu0
    %v619 = vadd.f32 %v279, %v618
    %v620 = vpop.f32.mrb[0].mxu0
    %v621 = vpop.f32.mrb[0].mxu0
    %622 = vdwg.mxu0
    %623 = vmatprep.subr.bf16.mxu0 %v439
    %624 = vmatpush1.bf16.msra.mxu0 %v438
    %625 = vmatprep.subr.bf16.mxu0 %v455
    %626 = vmatpush1.bf16.msra.mxu0 %v454
    %627 = vmatprep.subr.bf16.mxu0 0
    %628 = vmatpush1.bf16.msra.mxu0 0
    %629 = vmatprep.subr.bf16.mxu0 0
    %630 = vmatpush1.bf16.msra.mxu0 0
    %631 = vmatprep.subr.bf16.mxu0 0
    %632 = vmatpush1.bf16.msra.mxu0 0
    %633 = vmatprep.subr.bf16.mxu0 0
    %634 = vmatpush1.bf16.msra.mxu0 0
    %635 = vmatprep.subr.bf16.mxu0 0
    %636 = vmatpush1.bf16.msra.mxu0 0
    %637 = vmatprep.subr.bf16.mxu0 0
    %638 = vmatpush1.bf16.msra.mxu0 0
    %639 = vmatprep.subr.bf16.mxu0 0
    %640 = vmatpush1.bf16.msra.mxu0 0
    %641 = vmatprep.subr.bf16.mxu0 0
    %642 = vmatpush1.bf16.msra.mxu0 0
    %643 = vmatprep.subr.bf16.mxu0 0
    %644 = vmatpush1.bf16.msra.mxu0 0
    %645 = vmatprep.subr.bf16.mxu0 0
    %646 = vmatpush1.bf16.msra.mxu0 0
    %647 = vmatprep.subr.bf16.mxu0 0
    %648 = vmatpush1.bf16.msra.mxu0 0
    %649 = vmatprep.subr.bf16.mxu0 0
    %650 = vmatpush1.bf16.msra.mxu0 0
    %651 = vmatprep.subr.bf16.mxu0 0
    %652 = vmatpush1.bf16.msra.mxu0 0
    %653 = vmatprep.subr.bf16.mxu0 0
    %654 = vmatpush1.bf16.msra.mxu0 0
    %655 = vmatprep.mubr.bf16.mxu0 0
    %656 = vmatmul.mubr.bf16.gmra.mrb[0].mxu0 %v498
    %v657 = vpop.f32.mrb[0].mxu0
    %v658 = vadd.f32 %v283, %v657
    %v659 = vpop.f32.mrb[0].mxu0
    %v660 = vadd.f32 %v287, %v659
    %v661 = vpop.f32.mrb[0].mxu0
    %v662 = vpop.f32.mrb[0].mxu0
    %663 = vdwg.mxu0
    %664 = vmatprep.subr.bf16.mxu0 %v441
    %665 = vmatpush1.bf16.msra.mxu0 %v440
    %666 = vmatprep.subr.bf16.mxu0 %v457
    %667 = vmatpush1.bf16.msra.mxu0 %v456
    %668 = vmatprep.subr.bf16.mxu0 0
    %669 = vmatpush1.bf16.msra.mxu0 0
    %670 = vmatprep.subr.bf16.mxu0 0
    %671 = vmatpush1.bf16.msra.mxu0 0
    %672 = vmatprep.subr.bf16.mxu0 0
    %673 = vmatpush1.bf16.msra.mxu0 0
    %674 = vmatprep.subr.bf16.mxu0 0
    %675 = vmatpush1.bf16.msra.mxu0 0
    %676 = vmatprep.subr.bf16.mxu0 0
    %677 = vmatpush1.bf16.msra.mxu0 0
    %678 = vmatprep.subr.bf16.mxu0 0
    %679 = vmatpush1.bf16.msra.mxu0 0
    %680 = vmatprep.subr.bf16.mxu0 0
    %681 = vmatpush1.bf16.msra.mxu0 0
    %682 = vmatprep.subr.bf16.mxu0 0
    %683 = vmatpush1.bf16.msra.mxu0 0
    %684 = vmatprep.subr.bf16.mxu0 0
    %685 = vmatpush1.bf16.msra.mxu0 0
    %686 = vmatprep.subr.bf16.mxu0 0
    %687 = vmatpush1.bf16.msra.mxu0 0
    %688 = vmatprep.subr.bf16.mxu0 0
    %689 = vmatpush1.bf16.msra.mxu0 0
    %690 = vmatprep.subr.bf16.mxu0 0
    %691 = vmatpush1.bf16.msra.mxu0 0
    %692 = vmatprep.subr.bf16.mxu0 0
    %693 = vmatpush1.bf16.msra.mxu0 0
    %694 = vmatprep.subr.bf16.mxu0 0
    %695 = vmatpush1.bf16.msra.mxu0 0
    %696 = vmatprep.mubr.bf16.mxu0 0
    %697 = vmatmul.mubr.bf16.gmra.mrb[0].mxu0 %v498
    %v698 = vpop.f32.mrb[0].mxu0
    %v699 = vadd.f32 %v291, %v698
    %v700 = vpop.f32.mrb[0].mxu0
    %v701 = vadd.f32 %v295, %v700
    %v702 = vpop.f32.mrb[0].mxu0
    %v703 = vpop.f32.mrb[0].mxu0
    %704 = vdwg.mxu0
    %705 = vmatprep.subr.bf16.mxu0 %v443
    %706 = vmatpush1.bf16.msra.mxu0 %v442
    %707 = vmatprep.subr.bf16.mxu0 %v459
    %708 = vmatpush1.bf16.msra.mxu0 %v458
    %709 = vmatprep.subr.bf16.mxu0 0
    %710 = vmatpush1.bf16.msra.mxu0 0
    %711 = vmatprep.subr.bf16.mxu0 0
    %712 = vmatpush1.bf16.msra.mxu0 0
    %713 = vmatprep.subr.bf16.mxu0 0
    %714 = vmatpush1.bf16.msra.mxu0 0
    %715 = vmatprep.subr.bf16.mxu0 0
    %716 = vmatpush1.bf16.msra.mxu0 0
    %717 = vmatprep.subr.bf16.mxu0 0
    %718 = vmatpush1.bf16.msra.mxu0 0
    %719 = vmatprep.subr.bf16.mxu0 0
    %720 = vmatpush1.bf16.msra.mxu0 0
    %721 = vmatprep.subr.bf16.mxu0 0
    %722 = vmatpush1.bf16.msra.mxu0 0
    %723 = vmatprep.subr.bf16.mxu0 0
    %724 = vmatpush1.bf16.msra.mxu0 0
    %725 = vmatprep.subr.bf16.mxu0 0
    %726 = vmatpush1.bf16.msra.mxu0 0
    %727 = vmatprep.subr.bf16.mxu0 0
    %728 = vmatpush1.bf16.msra.mxu0 0
    %729 = vmatprep.subr.bf16.mxu0 0
    %730 = vmatpush1.bf16.msra.mxu0 0
    %731 = vmatprep.subr.bf16.mxu0 0
    %732 = vmatpush1.bf16.msra.mxu0 0
    %733 = vmatprep.subr.bf16.mxu0 0
    %734 = vmatpush1.bf16.msra.mxu0 0
    %735 = vmatprep.subr.bf16.mxu0 0
    %736 = vmatpush1.bf16.msra.mxu0 0
    %737 = vmatprep.mubr.bf16.mxu0 0
    %738 = vmatmul.mubr.bf16.gmra.mrb[0].mxu0 %v498
    %v739 = vpop.f32.mrb[0].mxu0
    %v740 = vadd.f32 %v299, %v739
    %v741 = vpop.f32.mrb[0].mxu0
    %v742 = vadd.f32 %v303, %v741
    %v743 = vpop.f32.mrb[0].mxu0
    %v744 = vpop.f32.mrb[0].mxu0
    %745 = vdwg.mxu0
    %746 = vmatprep.subr.bf16.mxu0 %v445
    %747 = vmatpush1.bf16.msra.mxu0 %v444
    %748 = vmatprep.subr.bf16.mxu0 %v461
    %749 = vmatpush1.bf16.msra.mxu0 %v460
    %750 = vmatprep.subr.bf16.mxu0 0
    %751 = vmatpush1.bf16.msra.mxu0 0
    %752 = vmatprep.subr.bf16.mxu0 0
    %753 = vmatpush1.bf16.msra.mxu0 0
    %754 = vmatprep.subr.bf16.mxu0 0
    %755 = vmatpush1.bf16.msra.mxu0 0
    %756 = vmatprep.subr.bf16.mxu0 0
    %757 = vmatpush1.bf16.msra.mxu0 0
    %758 = vmatprep.subr.bf16.mxu0 0
    %759 = vmatpush1.bf16.msra.mxu0 0
    %760 = vmatprep.subr.bf16.mxu0 0
    %761 = vmatpush1.bf16.msra.mxu0 0
    %762 = vmatprep.subr.bf16.mxu0 0
    %763 = vmatpush1.bf16.msra.mxu0 0
    %764 = vmatprep.subr.bf16.mxu0 0
    %765 = vmatpush1.bf16.msra.mxu0 0
    %766 = vmatprep.subr.bf16.mxu0 0
    %767 = vmatpush1.bf16.msra.mxu0 0
    %768 = vmatprep.subr.bf16.mxu0 0
    %769 = vmatpush1.bf16.msra.mxu0 0
    %770 = vmatprep.subr.bf16.mxu0 0
    %771 = vmatpush1.bf16.msra.mxu0 0
    %772 = vmatprep.subr.bf16.mxu0 0
    %773 = vmatpush1.bf16.msra.mxu0 0
    %774 = vmatprep.subr.bf16.mxu0 0
    %775 = vmatpush1.bf16.msra.mxu0 0
    %776 = vmatprep.subr.bf16.mxu0 0
    %777 = vmatpush1.bf16.msra.mxu0 0
    %778 = vmatprep.mubr.bf16.mxu0 0
    %779 = vmatmul.mubr.bf16.gmra.mrb[0].mxu0 %v498
    %v780 = vpop.f32.mrb[0].mxu0
    %v781 = vadd.f32 %v307, %v780
    %v782 = vpop.f32.mrb[0].mxu0
    %v783 = vadd.f32 %v311, %v782
    %v784 = vpop.f32.mrb[0].mxu0
    %v785 = vpop.f32.mrb[0].mxu0
    %786 = vdwg.mxu0
    %787 = vmatprep.subr.bf16.mxu0 %v447
    %788 = vmatpush1.bf16.msra.mxu0 %v446
    %789 = vmatprep.subr.bf16.mxu0 %v463
    %790 = vmatpush1.bf16.msra.mxu0 %v462
    %791 = vmatprep.subr.bf16.mxu0 0
    %792 = vmatpush1.bf16.msra.mxu0 0
    %793 = vmatprep.subr.bf16.mxu0 0
    %794 = vmatpush1.bf16.msra.mxu0 0
    %795 = vmatprep.subr.bf16.mxu0 0
    %796 = vmatpush1.bf16.msra.mxu0 0
    %797 = vmatprep.subr.bf16.mxu0 0
    %798 = vmatpush1.bf16.msra.mxu0 0
    %799 = vmatprep.subr.bf16.mxu0 0
    %800 = vmatpush1.bf16.msra.mxu0 0
    %801 = vmatprep.subr.bf16.mxu0 0
    %802 = vmatpush1.bf16.msra.mxu0 0
    %803 = vmatprep.subr.bf16.mxu0 0
    %804 = vmatpush1.bf16.msra.mxu0 0
    %805 = vmatprep.subr.bf16.mxu0 0
    %806 = vmatpush1.bf16.msra.mxu0 0
    %807 = vmatprep.subr.bf16.mxu0 0
    %808 = vmatpush1.bf16.msra.mxu0 0
    %809 = vmatprep.subr.bf16.mxu0 0
    %810 = vmatpush1.bf16.msra.mxu0 0
    %811 = vmatprep.subr.bf16.mxu0 0
    %812 = vmatpush1.bf16.msra.mxu0 0
    %813 = vmatprep.subr.bf16.mxu0 0
    %814 = vmatpush1.bf16.msra.mxu0 0
    %815 = vmatprep.subr.bf16.mxu0 0
    %816 = vmatpush1.bf16.msra.mxu0 0
    %817 = vmatprep.subr.bf16.mxu0 0
    %818 = vmatpush1.bf16.msra.mxu0 0
    %819 = vmatprep.mubr.bf16.mxu0 0
    %820 = vmatmul.mubr.bf16.gmra.mrb[0].mxu0 %v498
    %v821 = vpop.f32.mrb[0].mxu0
    %v822 = vadd.f32 %v315, %v821
    %v823 = vpop.f32.mrb[0].mxu0
    %v824 = vadd.f32 %v319, %v823
    %v825 = vpop.f32.mrb[0].mxu0
    %v826 = vpop.f32.mrb[0].mxu0
    %827 = vdwg.mxu0
    %v828 = vmax.f32 %v535, 0.0
    %v829 = vmax.f32 %v537, 0.0
    %v830 = vmax.f32 %v576, 0.0
    %v831 = vmax.f32 %v578, 0.0
    %v832 = vmax.f32 %v617, 0.0
    %v833 = vmax.f32 %v619, 0.0
    %v834 = vmax.f32 %v658, 0.0
    %v835 = vmax.f32 %v660, 0.0
    %v836 = vmax.f32 %v699, 0.0
    %v837 = vmax.f32 %v701, 0.0
    %v838 = vmax.f32 %v740, 0.0
    %v839 = vmax.f32 %v742, 0.0
    %v840 = vmax.f32 %v781, 0.0
    %v841 = vmax.f32 %v783, 0.0
    %v842 = vmax.f32 %v822, 0.0
    %v843 = vmax.f32 %v824, 0.0
    %v844 = vpack.c.bf16 %v828, %v828
    %v845 = vpack.c.bf16 %v829, %v829
    %v846 = vpack.c.bf16 %v830, %v830
    %v847 = vpack.c.bf16 %v831, %v831
    %v848 = vpack.c.bf16 %v832, %v832
    %v849 = vpack.c.bf16 %v833, %v833
    %v850 = vpack.c.bf16 %v834, %v834
    %v851 = vpack.c.bf16 %v835, %v835
    %v852 = vpack.c.bf16 %v836, %v836
    %v853 = vpack.c.bf16 %v837, %v837
    %v854 = vpack.c.bf16 %v838, %v838
    %v855 = vpack.c.bf16 %v839, %v839
    %v856 = vpack.c.bf16 %v840, %v840
    %v857 = vpack.c.bf16 %v841, %v841
    %v858 = vpack.c.bf16 %v842, %v842
    %v859 = vpack.c.bf16 %v843, %v843
    %v860 = vld [vmem:[#allocation10] sm:$0xff]
    %v861 = vld [vmem:[#allocation10 + $0x8] sm:$0xff]
    %v862 = vld [vmem:[#allocation10 + $0x10] sm:$0xff]
    %v863 = vld [vmem:[#allocation10 + $0x18] sm:$0xff]
    %v864 = vld [vmem:[#allocation10 + $0x20] sm:$0xff]
    %v865 = vld [vmem:[#allocation10 + $0x28] sm:$0xff]
    %v866 = vld [vmem:[#allocation10 + $0x30] sm:$0xff]
    %v867 = vld [vmem:[#allocation10 + $0x38] sm:$0xff]
    %v868 = vld [vmem:[#allocation10 + $0x40] sm:$0xff]
    %v869 = vld [vmem:[#allocation10 + $0x48] sm:$0xff]
    %v870 = vld [vmem:[#allocation10 + $0x50] sm:$0xff]
    %v871 = vld [vmem:[#allocation10 + $0x58] sm:$0xff]
    %v872 = vld [vmem:[#allocation10 + $0x60] sm:$0xff]
    %v873 = vld [vmem:[#allocation10 + $0x68] sm:$0xff]
    %v874 = vld [vmem:[#allocation10 + $0x70] sm:$0xff]
    %v875 = vld [vmem:[#allocation10 + $0x78] sm:$0xff]
    %v876 = vld [vmem:[#allocation10 + $0x80] sm:$0xff]
    %v877 = vld [vmem:[#allocation10 + $0x88] sm:$0xff]
    %v878 = vld [vmem:[#allocation10 + $0x90] sm:$0xff]
    %v879 = vld [vmem:[#allocation10 + $0x98] sm:$0xff]
    %v880 = vld [vmem:[#allocation10 + $0xa0] sm:$0xff]
    %v881 = vld [vmem:[#allocation10 + $0xa8] sm:$0xff]
    %v882 = vld [vmem:[#allocation10 + $0xb0] sm:$0xff]
    %v883 = vld [vmem:[#allocation10 + $0xb8] sm:$0xff]
    %v884 = vld [vmem:[#allocation10 + $0xc0] sm:$0xff]
    %v885 = vld [vmem:[#allocation10 + $0xc8] sm:$0xff]
    %v886 = vld [vmem:[#allocation10 + $0xd0] sm:$0xff]
    %v887 = vld [vmem:[#allocation10 + $0xd8] sm:$0xff]
    %v888 = vld [vmem:[#allocation10 + $0xe0] sm:$0xff]
    %v889 = vld [vmem:[#allocation10 + $0xe8] sm:$0xff]
    %v890 = vld [vmem:[#allocation10 + $0xf0] sm:$0xff]
    %v891 = vld [vmem:[#allocation10 + $0xf8] sm:$0xff]
    %v892 = vld [vmem:[#allocation10 + $0x100] sm:$0xff]
    %v893 = vld [vmem:[#allocation10 + $0x108] sm:$0xff]
    %v894 = vld [vmem:[#allocation10 + $0x110] sm:$0xff]
    %v895 = vld [vmem:[#allocation10 + $0x118] sm:$0xff]
    %v896 = vld [vmem:[#allocation10 + $0x120] sm:$0xff]
    %v897 = vld [vmem:[#allocation10 + $0x128] sm:$0xff]
    %v898 = vld [vmem:[#allocation10 + $0x130] sm:$0xff]
    %v899 = vld [vmem:[#allocation10 + $0x138] sm:$0xff]
    %v900 = vld [vmem:[#allocation10 + $0x140] sm:$0xff]
    %v901 = vld [vmem:[#allocation10 + $0x148] sm:$0xff]
    %v902 = vld [vmem:[#allocation10 + $0x150] sm:$0xff]
    %v903 = vld [vmem:[#allocation10 + $0x158] sm:$0xff]
    %v904 = vld [vmem:[#allocation10 + $0x160] sm:$0xff]
    %v905 = vld [vmem:[#allocation10 + $0x168] sm:$0xff]
    %v906 = vld [vmem:[#allocation10 + $0x170] sm:$0xff]
    %v907 = vld [vmem:[#allocation10 + $0x178] sm:$0xff]
    %v908 = vld [vmem:[#allocation10 + $0x180] sm:$0xff]
    %v909 = vld [vmem:[#allocation10 + $0x188] sm:$0xff]
    %v910 = vld [vmem:[#allocation10 + $0x190] sm:$0xff]
    %v911 = vld [vmem:[#allocation10 + $0x198] sm:$0xff]
    %v912 = vld [vmem:[#allocation10 + $0x1a0] sm:$0xff]
    %v913 = vld [vmem:[#allocation10 + $0x1a8] sm:$0xff]
    %v914 = vld [vmem:[#allocation10 + $0x1b0] sm:$0xff]
    %v915 = vld [vmem:[#allocation10 + $0x1b8] sm:$0xff]
    %v916 = vld [vmem:[#allocation10 + $0x1c0] sm:$0xff]
    %v917 = vld [vmem:[#allocation10 + $0x1c8] sm:$0xff]
    %v918 = vld [vmem:[#allocation10 + $0x1d0] sm:$0xff]
    %v919 = vld [vmem:[#allocation10 + $0x1d8] sm:$0xff]
    %v920 = vld [vmem:[#allocation10 + $0x1e0] sm:$0xff]
    %v921 = vld [vmem:[#allocation10 + $0x1e8] sm:$0xff]
    %v922 = vld [vmem:[#allocation10 + $0x1f0] sm:$0xff]
    %v923 = vld [vmem:[#allocation10 + $0x1f8] sm:$0xff]
    %v924 = vld [vmem:[#allocation10 + $0x200] sm:$0xff]
    %v925 = vld [vmem:[#allocation10 + $0x208] sm:$0xff]
    %v926 = vld [vmem:[#allocation10 + $0x210] sm:$0xff]
    %v927 = vld [vmem:[#allocation10 + $0x218] sm:$0xff]
    %v928 = vld [vmem:[#allocation10 + $0x220] sm:$0xff]
    %v929 = vld [vmem:[#allocation10 + $0x228] sm:$0xff]
    %v930 = vld [vmem:[#allocation10 + $0x230] sm:$0xff]
    %v931 = vld [vmem:[#allocation10 + $0x238] sm:$0xff]
    %v932 = vld [vmem:[#allocation10 + $0x240] sm:$0xff]
    %v933 = vld [vmem:[#allocation10 + $0x248] sm:$0xff]
    %v934 = vld [vmem:[#allocation10 + $0x250] sm:$0xff]
    %v935 = vld [vmem:[#allocation10 + $0x258] sm:$0xff]
    %v936 = vld [vmem:[#allocation10 + $0x260] sm:$0xff]
    %v937 = vld [vmem:[#allocation10 + $0x268] sm:$0xff]
    %v938 = vld [vmem:[#allocation10 + $0x270] sm:$0xff]
    %v939 = vld [vmem:[#allocation10 + $0x278] sm:$0xff]
    %v940 = vld [vmem:[#allocation10 + $0x280] sm:$0xff]
    %v941 = vld [vmem:[#allocation10 + $0x288] sm:$0xff]
    %v942 = vld [vmem:[#allocation10 + $0x290] sm:$0xff]
    %v943 = vld [vmem:[#allocation10 + $0x298] sm:$0xff]
    %v944 = vld [vmem:[#allocation10 + $0x2a0] sm:$0xff]
    %v945 = vld [vmem:[#allocation10 + $0x2a8] sm:$0xff]
    %v946 = vld [vmem:[#allocation10 + $0x2b0] sm:$0xff]
    %v947 = vld [vmem:[#allocation10 + $0x2b8] sm:$0xff]
    %v948 = vld [vmem:[#allocation10 + $0x2c0] sm:$0xff]
    %v949 = vld [vmem:[#allocation10 + $0x2c8] sm:$0xff]
    %v950 = vld [vmem:[#allocation10 + $0x2d0] sm:$0xff]
    %v951 = vld [vmem:[#allocation10 + $0x2d8] sm:$0xff]
    %v952 = vld [vmem:[#allocation10 + $0x2e0] sm:$0xff]
    %v953 = vld [vmem:[#allocation10 + $0x2e8] sm:$0xff]
    %v954 = vld [vmem:[#allocation10 + $0x2f0] sm:$0xff]
    %v955 = vld [vmem:[#allocation10 + $0x2f8] sm:$0xff]
    %v956 = vld [vmem:[#allocation10 + $0x300] sm:$0xff]
    %v957 = vld [vmem:[#allocation10 + $0x308] sm:$0xff]
    %v958 = vld [vmem:[#allocation10 + $0x310] sm:$0xff]
    %v959 = vld [vmem:[#allocation10 + $0x318] sm:$0xff]
    %v960 = vld [vmem:[#allocation10 + $0x320] sm:$0xff]
    %v961 = vld [vmem:[#allocation10 + $0x328] sm:$0xff]
    %v962 = vld [vmem:[#allocation10 + $0x330] sm:$0xff]
    %v963 = vld [vmem:[#allocation10 + $0x338] sm:$0xff]
    %v964 = vld [vmem:[#allocation10 + $0x340] sm:$0xff]
    %v965 = vld [vmem:[#allocation10 + $0x348] sm:$0xff]
    %v966 = vld [vmem:[#allocation10 + $0x350] sm:$0xff]
    %v967 = vld [vmem:[#allocation10 + $0x358] sm:$0xff]
    %v968 = vld [vmem:[#allocation10 + $0x360] sm:$0xff]
    %v969 = vld [vmem:[#allocation10 + $0x368] sm:$0xff]
    %v970 = vld [vmem:[#allocation10 + $0x370] sm:$0xff]
    %v971 = vld [vmem:[#allocation10 + $0x378] sm:$0xff]
    %v972 = vld [vmem:[#allocation10 + $0x380] sm:$0xff]
    %v973 = vld [vmem:[#allocation10 + $0x388] sm:$0xff]
    %v974 = vld [vmem:[#allocation10 + $0x390] sm:$0xff]
    %v975 = vld [vmem:[#allocation10 + $0x398] sm:$0xff]
    %v976 = vld [vmem:[#allocation10 + $0x3a0] sm:$0xff]
    %v977 = vld [vmem:[#allocation10 + $0x3a8] sm:$0xff]
    %v978 = vld [vmem:[#allocation10 + $0x3b0] sm:$0xff]
    %v979 = vld [vmem:[#allocation10 + $0x3b8] sm:$0xff]
    %v980 = vld [vmem:[#allocation10 + $0x3c0] sm:$0xff]
    %v981 = vld [vmem:[#allocation10 + $0x3c8] sm:$0xff]
    %v982 = vld [vmem:[#allocation10 + $0x3d0] sm:$0xff]
    %v983 = vld [vmem:[#allocation10 + $0x3d8] sm:$0xff]
    %v984 = vld [vmem:[#allocation10 + $0x3e0] sm:$0xff]
    %v985 = vld [vmem:[#allocation10 + $0x3e8] sm:$0xff]
    %v986 = vld [vmem:[#allocation10 + $0x3f0] sm:$0xff]
    %v987 = vld [vmem:[#allocation10 + $0x3f8] sm:$0xff]
    %v988 = vld [vmem:[#allocation10 + $0x400] sm:$0xff]
    %v989 = vld [vmem:[#allocation10 + $0x408] sm:$0xff]
    %v990 = vld [vmem:[#allocation10 + $0x410] sm:$0xff]
    %v991 = vld [vmem:[#allocation10 + $0x418] sm:$0xff]
    %v992 = vld [vmem:[#allocation10 + $0x420] sm:$0xff]
    %v993 = vld [vmem:[#allocation10 + $0x428] sm:$0xff]
    %v994 = vld [vmem:[#allocation10 + $0x430] sm:$0xff]
    %v995 = vld [vmem:[#allocation10 + $0x438] sm:$0xff]
    %v996 = vld [vmem:[#allocation10 + $0x440] sm:$0xff]
    %v997 = vld [vmem:[#allocation10 + $0x448] sm:$0xff]
    %v998 = vld [vmem:[#allocation10 + $0x450] sm:$0xff]
    %v999 = vld [vmem:[#allocation10 + $0x458] sm:$0xff]
    %v1000 = vld [vmem:[#allocation10 + $0x460] sm:$0xff]
    %v1001 = vld [vmem:[#allocation10 + $0x468] sm:$0xff]
    %v1002 = vld [vmem:[#allocation10 + $0x470] sm:$0xff]
    %v1003 = vld [vmem:[#allocation10 + $0x478] sm:$0xff]
    %v1004 = vld [vmem:[#allocation10 + $0x480] sm:$0xff]
    %v1005 = vld [vmem:[#allocation10 + $0x488] sm:$0xff]
    %v1006 = vld [vmem:[#allocation10 + $0x490] sm:$0xff]
    %v1007 = vld [vmem:[#allocation10 + $0x498] sm:$0xff]
    %v1008 = vld [vmem:[#allocation10 + $0x4a0] sm:$0xff]
    %v1009 = vld [vmem:[#allocation10 + $0x4a8] sm:$0xff]
    %v1010 = vld [vmem:[#allocation10 + $0x4b0] sm:$0xff]
    %v1011 = vld [vmem:[#allocation10 + $0x4b8] sm:$0xff]
    %v1012 = vld [vmem:[#allocation10 + $0x4c0] sm:$0xff]
    %v1013 = vld [vmem:[#allocation10 + $0x4c8] sm:$0xff]
    %v1014 = vld [vmem:[#allocation10 + $0x4d0] sm:$0xff]
    %v1015 = vld [vmem:[#allocation10 + $0x4d8] sm:$0xff]
    %v1016 = vld [vmem:[#allocation10 + $0x4e0] sm:$0xff]
    %v1017 = vld [vmem:[#allocation10 + $0x4e8] sm:$0xff]
    %v1018 = vld [vmem:[#allocation10 + $0x4f0] sm:$0xff]
    %v1019 = vld [vmem:[#allocation10 + $0x4f8] sm:$0xff]
    %v1020 = vld [vmem:[#allocation10 + $0x500] sm:$0xff]
    %v1021 = vld [vmem:[#allocation10 + $0x508] sm:$0xff]
    %v1022 = vld [vmem:[#allocation10 + $0x510] sm:$0xff]
    %v1023 = vld [vmem:[#allocation10 + $0x518] sm:$0xff]
    %v1024 = vld [vmem:[#allocation10 + $0x520] sm:$0xff]
    %v1025 = vld [vmem:[#allocation10 + $0x528] sm:$0xff]
    %v1026 = vld [vmem:[#allocation10 + $0x530] sm:$0xff]
    %v1027 = vld [vmem:[#allocation10 + $0x538] sm:$0xff]
    %v1028 = vld [vmem:[#allocation10 + $0x540] sm:$0xff]
    %v1029 = vld [vmem:[#allocation10 + $0x548] sm:$0xff]
    %v1030 = vld [vmem:[#allocation10 + $0x550] sm:$0xff]
    %v1031 = vld [vmem:[#allocation10 + $0x558] sm:$0xff]
    %v1032 = vld [vmem:[#allocation10 + $0x560] sm:$0xff]
    %v1033 = vld [vmem:[#allocation10 + $0x568] sm:$0xff]
    %v1034 = vld [vmem:[#allocation10 + $0x570] sm:$0xff]
    %v1035 = vld [vmem:[#allocation10 + $0x578] sm:$0xff]
    %v1036 = vld [vmem:[#allocation10 + $0x580] sm:$0xff]
    %v1037 = vld [vmem:[#allocation10 + $0x588] sm:$0xff]
    %v1038 = vld [vmem:[#allocation10 + $0x590] sm:$0xff]
    %v1039 = vld [vmem:[#allocation10 + $0x598] sm:$0xff]
    %v1040 = vld [vmem:[#allocation10 + $0x5a0] sm:$0xff]
    %v1041 = vld [vmem:[#allocation10 + $0x5a8] sm:$0xff]
    %v1042 = vld [vmem:[#allocation10 + $0x5b0] sm:$0xff]
    %v1043 = vld [vmem:[#allocation10 + $0x5b8] sm:$0xff]
    %v1044 = vld [vmem:[#allocation10 + $0x5c0] sm:$0xff]
    %v1045 = vld [vmem:[#allocation10 + $0x5c8] sm:$0xff]
    %v1046 = vld [vmem:[#allocation10 + $0x5d0] sm:$0xff]
    %v1047 = vld [vmem:[#allocation10 + $0x5d8] sm:$0xff]
    %v1048 = vld [vmem:[#allocation10 + $0x5e0] sm:$0xff]
    %v1049 = vld [vmem:[#allocation10 + $0x5e8] sm:$0xff]
    %v1050 = vld [vmem:[#allocation10 + $0x5f0] sm:$0xff]
    %v1051 = vld [vmem:[#allocation10 + $0x5f8] sm:$0xff]
    %v1052 = vld [vmem:[#allocation10 + $0x600] sm:$0xff]
    %v1053 = vld [vmem:[#allocation10 + $0x608] sm:$0xff]
    %v1054 = vld [vmem:[#allocation10 + $0x610] sm:$0xff]
    %v1055 = vld [vmem:[#allocation10 + $0x618] sm:$0xff]
    %v1056 = vld [vmem:[#allocation10 + $0x620] sm:$0xff]
    %v1057 = vld [vmem:[#allocation10 + $0x628] sm:$0xff]
    %v1058 = vld [vmem:[#allocation10 + $0x630] sm:$0xff]
    %v1059 = vld [vmem:[#allocation10 + $0x638] sm:$0xff]
    %v1060 = vld [vmem:[#allocation10 + $0x640] sm:$0xff]
    %v1061 = vld [vmem:[#allocation10 + $0x648] sm:$0xff]
    %v1062 = vld [vmem:[#allocation10 + $0x650] sm:$0xff]
    %v1063 = vld [vmem:[#allocation10 + $0x658] sm:$0xff]
    %v1064 = vld [vmem:[#allocation10 + $0x660] sm:$0xff]
    %v1065 = vld [vmem:[#allocation10 + $0x668] sm:$0xff]
    %v1066 = vld [vmem:[#allocation10 + $0x670] sm:$0xff]
    %v1067 = vld [vmem:[#allocation10 + $0x678] sm:$0xff]
    %v1068 = vld [vmem:[#allocation10 + $0x680] sm:$0xff]
    %v1069 = vld [vmem:[#allocation10 + $0x688] sm:$0xff]
    %v1070 = vld [vmem:[#allocation10 + $0x690] sm:$0xff]
    %v1071 = vld [vmem:[#allocation10 + $0x698] sm:$0xff]
    %v1072 = vld [vmem:[#allocation10 + $0x6a0] sm:$0xff]
    %v1073 = vld [vmem:[#allocation10 + $0x6a8] sm:$0xff]
    %v1074 = vld [vmem:[#allocation10 + $0x6b0] sm:$0xff]
    %v1075 = vld [vmem:[#allocation10 + $0x6b8] sm:$0xff]
    %v1076 = vld [vmem:[#allocation10 + $0x6c0] sm:$0xff]
    %v1077 = vld [vmem:[#allocation10 + $0x6c8] sm:$0xff]
    %v1078 = vld [vmem:[#allocation10 + $0x6d0] sm:$0xff]
    %v1079 = vld [vmem:[#allocation10 + $0x6d8] sm:$0xff]
    %v1080 = vld [vmem:[#allocation10 + $0x6e0] sm:$0xff]
    %v1081 = vld [vmem:[#allocation10 + $0x6e8] sm:$0xff]
    %v1082 = vld [vmem:[#allocation10 + $0x6f0] sm:$0xff]
    %v1083 = vld [vmem:[#allocation10 + $0x6f8] sm:$0xff]
    %v1084 = vld [vmem:[#allocation10 + $0x700] sm:$0xff]
    %v1085 = vld [vmem:[#allocation10 + $0x708] sm:$0xff]
    %v1086 = vld [vmem:[#allocation10 + $0x710] sm:$0xff]
    %v1087 = vld [vmem:[#allocation10 + $0x718] sm:$0xff]
    %v1088 = vld [vmem:[#allocation10 + $0x720] sm:$0xff]
    %v1089 = vld [vmem:[#allocation10 + $0x728] sm:$0xff]
    %v1090 = vld [vmem:[#allocation10 + $0x730] sm:$0xff]
    %v1091 = vld [vmem:[#allocation10 + $0x738] sm:$0xff]
    %v1092 = vld [vmem:[#allocation10 + $0x740] sm:$0xff]
    %v1093 = vld [vmem:[#allocation10 + $0x748] sm:$0xff]
    %v1094 = vld [vmem:[#allocation10 + $0x750] sm:$0xff]
    %v1095 = vld [vmem:[#allocation10 + $0x758] sm:$0xff]
    %v1096 = vld [vmem:[#allocation10 + $0x760] sm:$0xff]
    %v1097 = vld [vmem:[#allocation10 + $0x768] sm:$0xff]
    %v1098 = vld [vmem:[#allocation10 + $0x770] sm:$0xff]
    %v1099 = vld [vmem:[#allocation10 + $0x778] sm:$0xff]
    %v1100 = vld [vmem:[#allocation10 + $0x780] sm:$0xff]
    %v1101 = vld [vmem:[#allocation10 + $0x788] sm:$0xff]
    %v1102 = vld [vmem:[#allocation10 + $0x790] sm:$0xff]
    %v1103 = vld [vmem:[#allocation10 + $0x798] sm:$0xff]
    %v1104 = vld [vmem:[#allocation10 + $0x7a0] sm:$0xff]
    %v1105 = vld [vmem:[#allocation10 + $0x7a8] sm:$0xff]
    %v1106 = vld [vmem:[#allocation10 + $0x7b0] sm:$0xff]
    %v1107 = vld [vmem:[#allocation10 + $0x7b8] sm:$0xff]
    %v1108 = vld [vmem:[#allocation10 + $0x7c0] sm:$0xff]
    %v1109 = vld [vmem:[#allocation10 + $0x7c8] sm:$0xff]
    %v1110 = vld [vmem:[#allocation10 + $0x7d0] sm:$0xff]
    %v1111 = vld [vmem:[#allocation10 + $0x7d8] sm:$0xff]
    %v1112 = vld [vmem:[#allocation10 + $0x7e0] sm:$0xff]
    %v1113 = vld [vmem:[#allocation10 + $0x7e8] sm:$0xff]
    %v1114 = vld [vmem:[#allocation10 + $0x7f0] sm:$0xff]
    %v1115 = vld [vmem:[#allocation10 + $0x7f8] sm:$0xff]
    %v1116 = vld [vmem:[#allocation10 + $0x800] sm:$0xff]
    %v1117 = vld [vmem:[#allocation10 + $0x808] sm:$0xff]
    %v1118 = vld [vmem:[#allocation10 + $0x810] sm:$0xff]
    %v1119 = vld [vmem:[#allocation10 + $0x818] sm:$0xff]
    %v1120 = vld [vmem:[#allocation10 + $0x820] sm:$0xff]
    %v1121 = vld [vmem:[#allocation10 + $0x828] sm:$0xff]
    %v1122 = vld [vmem:[#allocation10 + $0x830] sm:$0xff]
    %v1123 = vld [vmem:[#allocation10 + $0x838] sm:$0xff]
    %v1124 = vld [vmem:[#allocation10 + $0x840] sm:$0xff]
    %v1125 = vld [vmem:[#allocation10 + $0x848] sm:$0xff]
    %v1126 = vld [vmem:[#allocation10 + $0x850] sm:$0xff]
    %v1127 = vld [vmem:[#allocation10 + $0x858] sm:$0xff]
    %v1128 = vld [vmem:[#allocation10 + $0x860] sm:$0xff]
    %v1129 = vld [vmem:[#allocation10 + $0x868] sm:$0xff]
    %v1130 = vld [vmem:[#allocation10 + $0x870] sm:$0xff]
    %v1131 = vld [vmem:[#allocation10 + $0x878] sm:$0xff]
    %v1132 = vld [vmem:[#allocation10 + $0x880] sm:$0xff]
    %v1133 = vld [vmem:[#allocation10 + $0x888] sm:$0xff]
    %v1134 = vld [vmem:[#allocation10 + $0x890] sm:$0xff]
    %v1135 = vld [vmem:[#allocation10 + $0x898] sm:$0xff]
    %v1136 = vld [vmem:[#allocation10 + $0x8a0] sm:$0xff]
    %v1137 = vld [vmem:[#allocation10 + $0x8a8] sm:$0xff]
    %v1138 = vld [vmem:[#allocation10 + $0x8b0] sm:$0xff]
    %v1139 = vld [vmem:[#allocation10 + $0x8b8] sm:$0xff]
    %v1140 = vld [vmem:[#allocation10 + $0x8c0] sm:$0xff]
    %v1141 = vld [vmem:[#allocation10 + $0x8c8] sm:$0xff]
    %v1142 = vld [vmem:[#allocation10 + $0x8d0] sm:$0xff]
    %v1143 = vld [vmem:[#allocation10 + $0x8d8] sm:$0xff]
    %v1144 = vld [vmem:[#allocation10 + $0x8e0] sm:$0xff]
    %v1145 = vld [vmem:[#allocation10 + $0x8e8] sm:$0xff]
    %v1146 = vld [vmem:[#allocation10 + $0x8f0] sm:$0xff]
    %v1147 = vld [vmem:[#allocation10 + $0x8f8] sm:$0xff]
    %v1148 = vld [vmem:[#allocation10 + $0x900] sm:$0xff]
    %v1149 = vld [vmem:[#allocation10 + $0x908] sm:$0xff]
    %v1150 = vld [vmem:[#allocation10 + $0x910] sm:$0xff]
    %v1151 = vld [vmem:[#allocation10 + $0x918] sm:$0xff]
    %v1152 = vld [vmem:[#allocation10 + $0x920] sm:$0xff]
    %v1153 = vld [vmem:[#allocation10 + $0x928] sm:$0xff]
    %v1154 = vld [vmem:[#allocation10 + $0x930] sm:$0xff]
    %v1155 = vld [vmem:[#allocation10 + $0x938] sm:$0xff]
    %v1156 = vld [vmem:[#allocation10 + $0x940] sm:$0xff]
    %v1157 = vld [vmem:[#allocation10 + $0x948] sm:$0xff]
    %v1158 = vld [vmem:[#allocation10 + $0x950] sm:$0xff]
    %v1159 = vld [vmem:[#allocation10 + $0x958] sm:$0xff]
    %v1160 = vld [vmem:[#allocation10 + $0x960] sm:$0xff]
    %v1161 = vld [vmem:[#allocation10 + $0x968] sm:$0xff]
    %v1162 = vld [vmem:[#allocation10 + $0x970] sm:$0xff]
    %v1163 = vld [vmem:[#allocation10 + $0x978] sm:$0xff]
    %v1164 = vld [vmem:[#allocation10 + $0x980] sm:$0xff]
    %v1165 = vld [vmem:[#allocation10 + $0x988] sm:$0xff]
    %v1166 = vld [vmem:[#allocation10 + $0x990] sm:$0xff]
    %v1167 = vld [vmem:[#allocation10 + $0x998] sm:$0xff]
    %v1168 = vld [vmem:[#allocation10 + $0x9a0] sm:$0xff]
    %v1169 = vld [vmem:[#allocation10 + $0x9a8] sm:$0xff]
    %v1170 = vld [vmem:[#allocation10 + $0x9b0] sm:$0xff]
    %v1171 = vld [vmem:[#allocation10 + $0x9b8] sm:$0xff]
    %v1172 = vld [vmem:[#allocation10 + $0x9c0] sm:$0xff]
    %v1173 = vld [vmem:[#allocation10 + $0x9c8] sm:$0xff]
    %v1174 = vld [vmem:[#allocation10 + $0x9d0] sm:$0xff]
    %v1175 = vld [vmem:[#allocation10 + $0x9d8] sm:$0xff]
    %v1176 = vld [vmem:[#allocation10 + $0x9e0] sm:$0xff]
    %v1177 = vld [vmem:[#allocation10 + $0x9e8] sm:$0xff]
    %v1178 = vld [vmem:[#allocation10 + $0x9f0] sm:$0xff]
    %v1179 = vld [vmem:[#allocation10 + $0x9f8] sm:$0xff]
    %v1180 = vld [vmem:[#allocation10 + $0xa00] sm:$0xff]
    %v1181 = vld [vmem:[#allocation10 + $0xa08] sm:$0xff]
    %v1182 = vld [vmem:[#allocation10 + $0xa10] sm:$0xff]
    %v1183 = vld [vmem:[#allocation10 + $0xa18] sm:$0xff]
    %v1184 = vld [vmem:[#allocation10 + $0xa20] sm:$0xff]
    %v1185 = vld [vmem:[#allocation10 + $0xa28] sm:$0xff]
    %v1186 = vld [vmem:[#allocation10 + $0xa30] sm:$0xff]
    %v1187 = vld [vmem:[#allocation10 + $0xa38] sm:$0xff]
    %v1188 = vld [vmem:[#allocation10 + $0xa40] sm:$0xff]
    %v1189 = vld [vmem:[#allocation10 + $0xa48] sm:$0xff]
    %v1190 = vld [vmem:[#allocation10 + $0xa50] sm:$0xff]
    %v1191 = vld [vmem:[#allocation10 + $0xa58] sm:$0xff]
    %v1192 = vld [vmem:[#allocation10 + $0xa60] sm:$0xff]
    %v1193 = vld [vmem:[#allocation10 + $0xa68] sm:$0xff]
    %v1194 = vld [vmem:[#allocation10 + $0xa70] sm:$0xff]
    %v1195 = vld [vmem:[#allocation10 + $0xa78] sm:$0xff]
    %v1196 = vld [vmem:[#allocation10 + $0xa80] sm:$0xff]
    %v1197 = vld [vmem:[#allocation10 + $0xa88] sm:$0xff]
    %v1198 = vld [vmem:[#allocation10 + $0xa90] sm:$0xff]
    %v1199 = vld [vmem:[#allocation10 + $0xa98] sm:$0xff]
    %v1200 = vld [vmem:[#allocation10 + $0xaa0] sm:$0xff]
    %v1201 = vld [vmem:[#allocation10 + $0xaa8] sm:$0xff]
    %v1202 = vld [vmem:[#allocation10 + $0xab0] sm:$0xff]
    %v1203 = vld [vmem:[#allocation10 + $0xab8] sm:$0xff]
    %v1204 = vld [vmem:[#allocation10 + $0xac0] sm:$0xff]
    %v1205 = vld [vmem:[#allocation10 + $0xac8] sm:$0xff]
    %v1206 = vld [vmem:[#allocation10 + $0xad0] sm:$0xff]
    %v1207 = vld [vmem:[#allocation10 + $0xad8] sm:$0xff]
    %v1208 = vld [vmem:[#allocation10 + $0xae0] sm:$0xff]
    %v1209 = vld [vmem:[#allocation10 + $0xae8] sm:$0xff]
    %v1210 = vld [vmem:[#allocation10 + $0xaf0] sm:$0xff]
    %v1211 = vld [vmem:[#allocation10 + $0xaf8] sm:$0xff]
    %v1212 = vld [vmem:[#allocation10 + $0xb00] sm:$0xff]
    %v1213 = vld [vmem:[#allocation10 + $0xb08] sm:$0xff]
    %v1214 = vld [vmem:[#allocation10 + $0xb10] sm:$0xff]
    %v1215 = vld [vmem:[#allocation10 + $0xb18] sm:$0xff]
    %v1216 = vld [vmem:[#allocation10 + $0xb20] sm:$0xff]
    %v1217 = vld [vmem:[#allocation10 + $0xb28] sm:$0xff]
    %v1218 = vld [vmem:[#allocation10 + $0xb30] sm:$0xff]
    %v1219 = vld [vmem:[#allocation10 + $0xb38] sm:$0xff]
    %v1220 = vld [vmem:[#allocation10 + $0xb40] sm:$0xff]
    %v1221 = vld [vmem:[#allocation10 + $0xb48] sm:$0xff]
    %v1222 = vld [vmem:[#allocation10 + $0xb50] sm:$0xff]
    %v1223 = vld [vmem:[#allocation10 + $0xb58] sm:$0xff]
    %v1224 = vld [vmem:[#allocation10 + $0xb60] sm:$0xff]
    %v1225 = vld [vmem:[#allocation10 + $0xb68] sm:$0xff]
    %v1226 = vld [vmem:[#allocation10 + $0xb70] sm:$0xff]
    %v1227 = vld [vmem:[#allocation10 + $0xb78] sm:$0xff]
    %v1228 = vld [vmem:[#allocation10 + $0xb80] sm:$0xff]
    %v1229 = vld [vmem:[#allocation10 + $0xb88] sm:$0xff]
    %v1230 = vld [vmem:[#allocation10 + $0xb90] sm:$0xff]
    %v1231 = vld [vmem:[#allocation10 + $0xb98] sm:$0xff]
    %v1232 = vld [vmem:[#allocation10 + $0xba0] sm:$0xff]
    %v1233 = vld [vmem:[#allocation10 + $0xba8] sm:$0xff]
    %v1234 = vld [vmem:[#allocation10 + $0xbb0] sm:$0xff]
    %v1235 = vld [vmem:[#allocation10 + $0xbb8] sm:$0xff]
    %v1236 = vld [vmem:[#allocation10 + $0xbc0] sm:$0xff]
    %v1237 = vld [vmem:[#allocation10 + $0xbc8] sm:$0xff]
    %v1238 = vld [vmem:[#allocation10 + $0xbd0] sm:$0xff]
    %v1239 = vld [vmem:[#allocation10 + $0xbd8] sm:$0xff]
    %v1240 = vld [vmem:[#allocation10 + $0xbe0] sm:$0xff]
    %v1241 = vld [vmem:[#allocation10 + $0xbe8] sm:$0xff]
    %v1242 = vld [vmem:[#allocation10 + $0xbf0] sm:$0xff]
    %v1243 = vld [vmem:[#allocation10 + $0xbf8] sm:$0xff]
    %v1244 = vld [vmem:[#allocation10 + $0xc00] sm:$0xff]
    %v1245 = vld [vmem:[#allocation10 + $0xc08] sm:$0xff]
    %v1246 = vld [vmem:[#allocation10 + $0xc10] sm:$0xff]
    %v1247 = vld [vmem:[#allocation10 + $0xc18] sm:$0xff]
    %v1248 = vld [vmem:[#allocation10 + $0xc20] sm:$0xff]
    %v1249 = vld [vmem:[#allocation10 + $0xc28] sm:$0xff]
    %v1250 = vld [vmem:[#allocation10 + $0xc30] sm:$0xff]
    %v1251 = vld [vmem:[#allocation10 + $0xc38] sm:$0xff]
    %v1252 = vld [vmem:[#allocation10 + $0xc40] sm:$0xff]
    %v1253 = vld [vmem:[#allocation10 + $0xc48] sm:$0xff]
    %v1254 = vld [vmem:[#allocation10 + $0xc50] sm:$0xff]
    %v1255 = vld [vmem:[#allocation10 + $0xc58] sm:$0xff]
    %v1256 = vld [vmem:[#allocation10 + $0xc60] sm:$0xff]
    %v1257 = vld [vmem:[#allocation10 + $0xc68] sm:$0xff]
    %v1258 = vld [vmem:[#allocation10 + $0xc70] sm:$0xff]
    %v1259 = vld [vmem:[#allocation10 + $0xc78] sm:$0xff]
    %v1260 = vld [vmem:[#allocation10 + $0xc80] sm:$0xff]
    %v1261 = vld [vmem:[#allocation10 + $0xc88] sm:$0xff]
    %v1262 = vld [vmem:[#allocation10 + $0xc90] sm:$0xff]
    %v1263 = vld [vmem:[#allocation10 + $0xc98] sm:$0xff]
    %v1264 = vld [vmem:[#allocation10 + $0xca0] sm:$0xff]
    %v1265 = vld [vmem:[#allocation10 + $0xca8] sm:$0xff]
    %v1266 = vld [vmem:[#allocation10 + $0xcb0] sm:$0xff]
    %v1267 = vld [vmem:[#allocation10 + $0xcb8] sm:$0xff]
    %v1268 = vld [vmem:[#allocation10 + $0xcc0] sm:$0xff]
    %v1269 = vld [vmem:[#allocation10 + $0xcc8] sm:$0xff]
    %v1270 = vld [vmem:[#allocation10 + $0xcd0] sm:$0xff]
    %v1271 = vld [vmem:[#allocation10 + $0xcd8] sm:$0xff]
    %v1272 = vld [vmem:[#allocation10 + $0xce0] sm:$0xff]
    %v1273 = vld [vmem:[#allocation10 + $0xce8] sm:$0xff]
    %v1274 = vld [vmem:[#allocation10 + $0xcf0] sm:$0xff]
    %v1275 = vld [vmem:[#allocation10 + $0xcf8] sm:$0xff]
    %v1276 = vld [vmem:[#allocation10 + $0xd00] sm:$0xff]
    %v1277 = vld [vmem:[#allocation10 + $0xd08] sm:$0xff]
    %v1278 = vld [vmem:[#allocation10 + $0xd10] sm:$0xff]
    %v1279 = vld [vmem:[#allocation10 + $0xd18] sm:$0xff]
    %v1280 = vld [vmem:[#allocation10 + $0xd20] sm:$0xff]
    %v1281 = vld [vmem:[#allocation10 + $0xd28] sm:$0xff]
    %v1282 = vld [vmem:[#allocation10 + $0xd30] sm:$0xff]
    %v1283 = vld [vmem:[#allocation10 + $0xd38] sm:$0xff]
    %v1284 = vld [vmem:[#allocation10 + $0xd40] sm:$0xff]
    %v1285 = vld [vmem:[#allocation10 + $0xd48] sm:$0xff]
    %v1286 = vld [vmem:[#allocation10 + $0xd50] sm:$0xff]
    %v1287 = vld [vmem:[#allocation10 + $0xd58] sm:$0xff]
    %v1288 = vld [vmem:[#allocation10 + $0xd60] sm:$0xff]
    %v1289 = vld [vmem:[#allocation10 + $0xd68] sm:$0xff]
    %v1290 = vld [vmem:[#allocation10 + $0xd70] sm:$0xff]
    %v1291 = vld [vmem:[#allocation10 + $0xd78] sm:$0xff]
    %v1292 = vld [vmem:[#allocation10 + $0xd80] sm:$0xff]
    %v1293 = vld [vmem:[#allocation10 + $0xd88] sm:$0xff]
    %v1294 = vld [vmem:[#allocation10 + $0xd90] sm:$0xff]
    %v1295 = vld [vmem:[#allocation10 + $0xd98] sm:$0xff]
    %v1296 = vld [vmem:[#allocation10 + $0xda0] sm:$0xff]
    %v1297 = vld [vmem:[#allocation10 + $0xda8] sm:$0xff]
    %v1298 = vld [vmem:[#allocation10 + $0xdb0] sm:$0xff]
    %v1299 = vld [vmem:[#allocation10 + $0xdb8] sm:$0xff]
    %v1300 = vld [vmem:[#allocation10 + $0xdc0] sm:$0xff]
    %v1301 = vld [vmem:[#allocation10 + $0xdc8] sm:$0xff]
    %v1302 = vld [vmem:[#allocation10 + $0xdd0] sm:$0xff]
    %v1303 = vld [vmem:[#allocation10 + $0xdd8] sm:$0xff]
    %v1304 = vld [vmem:[#allocation10 + $0xde0] sm:$0xff]
    %v1305 = vld [vmem:[#allocation10 + $0xde8] sm:$0xff]
    %v1306 = vld [vmem:[#allocation10 + $0xdf0] sm:$0xff]
    %v1307 = vld [vmem:[#allocation10 + $0xdf8] sm:$0xff]
    %v1308 = vld [vmem:[#allocation10 + $0xe00] sm:$0xff]
    %v1309 = vld [vmem:[#allocation10 + $0xe08] sm:$0xff]
    %v1310 = vld [vmem:[#allocation10 + $0xe10] sm:$0xff]
    %v1311 = vld [vmem:[#allocation10 + $0xe18] sm:$0xff]
    %v1312 = vld [vmem:[#allocation10 + $0xe20] sm:$0xff]
    %v1313 = vld [vmem:[#allocation10 + $0xe28] sm:$0xff]
    %v1314 = vld [vmem:[#allocation10 + $0xe30] sm:$0xff]
    %v1315 = vld [vmem:[#allocation10 + $0xe38] sm:$0xff]
    %v1316 = vld [vmem:[#allocation10 + $0xe40] sm:$0xff]
    %v1317 = vld [vmem:[#allocation10 + $0xe48] sm:$0xff]
    %v1318 = vld [vmem:[#allocation10 + $0xe50] sm:$0xff]
    %v1319 = vld [vmem:[#allocation10 + $0xe58] sm:$0xff]
    %v1320 = vld [vmem:[#allocation10 + $0xe60] sm:$0xff]
    %v1321 = vld [vmem:[#allocation10 + $0xe68] sm:$0xff]
    %v1322 = vld [vmem:[#allocation10 + $0xe70] sm:$0xff]
    %v1323 = vld [vmem:[#allocation10 + $0xe78] sm:$0xff]
    %v1324 = vld [vmem:[#allocation10 + $0xe80] sm:$0xff]
    %v1325 = vld [vmem:[#allocation10 + $0xe88] sm:$0xff]
    %v1326 = vld [vmem:[#allocation10 + $0xe90] sm:$0xff]
    %v1327 = vld [vmem:[#allocation10 + $0xe98] sm:$0xff]
    %v1328 = vld [vmem:[#allocation10 + $0xea0] sm:$0xff]
    %v1329 = vld [vmem:[#allocation10 + $0xea8] sm:$0xff]
    %v1330 = vld [vmem:[#allocation10 + $0xeb0] sm:$0xff]
    %v1331 = vld [vmem:[#allocation10 + $0xeb8] sm:$0xff]
    %v1332 = vld [vmem:[#allocation10 + $0xec0] sm:$0xff]
    %v1333 = vld [vmem:[#allocation10 + $0xec8] sm:$0xff]
    %v1334 = vld [vmem:[#allocation10 + $0xed0] sm:$0xff]
    %v1335 = vld [vmem:[#allocation10 + $0xed8] sm:$0xff]
    %v1336 = vld [vmem:[#allocation10 + $0xee0] sm:$0xff]
    %v1337 = vld [vmem:[#allocation10 + $0xee8] sm:$0xff]
    %v1338 = vld [vmem:[#allocation10 + $0xef0] sm:$0xff]
    %v1339 = vld [vmem:[#allocation10 + $0xef8] sm:$0xff]
    %v1340 = vld [vmem:[#allocation10 + $0xf00] sm:$0xff]
    %v1341 = vld [vmem:[#allocation10 + $0xf08] sm:$0xff]
    %v1342 = vld [vmem:[#allocation10 + $0xf10] sm:$0xff]
    %v1343 = vld [vmem:[#allocation10 + $0xf18] sm:$0xff]
    %v1344 = vld [vmem:[#allocation10 + $0xf20] sm:$0xff]
    %v1345 = vld [vmem:[#allocation10 + $0xf28] sm:$0xff]
    %v1346 = vld [vmem:[#allocation10 + $0xf30] sm:$0xff]
    %v1347 = vld [vmem:[#allocation10 + $0xf38] sm:$0xff]
    %v1348 = vld [vmem:[#allocation10 + $0xf40] sm:$0xff]
    %v1349 = vld [vmem:[#allocation10 + $0xf48] sm:$0xff]
    %v1350 = vld [vmem:[#allocation10 + $0xf50] sm:$0xff]
    %v1351 = vld [vmem:[#allocation10 + $0xf58] sm:$0xff]
    %v1352 = vld [vmem:[#allocation10 + $0xf60] sm:$0xff]
    %v1353 = vld [vmem:[#allocation10 + $0xf68] sm:$0xff]
    %v1354 = vld [vmem:[#allocation10 + $0xf70] sm:$0xff]
    %v1355 = vld [vmem:[#allocation10 + $0xf78] sm:$0xff]
    %v1356 = vld [vmem:[#allocation10 + $0xf80] sm:$0xff]
    %v1357 = vld [vmem:[#allocation10 + $0xf88] sm:$0xff]
    %v1358 = vld [vmem:[#allocation10 + $0xf90] sm:$0xff]
    %v1359 = vld [vmem:[#allocation10 + $0xf98] sm:$0xff]
    %v1360 = vld [vmem:[#allocation10 + $0xfa0] sm:$0xff]
    %v1361 = vld [vmem:[#allocation10 + $0xfa8] sm:$0xff]
    %v1362 = vld [vmem:[#allocation10 + $0xfb0] sm:$0xff]
    %v1363 = vld [vmem:[#allocation10 + $0xfb8] sm:$0xff]
    %v1364 = vld [vmem:[#allocation10 + $0xfc0] sm:$0xff]
    %v1365 = vld [vmem:[#allocation10 + $0xfc8] sm:$0xff]
    %v1366 = vld [vmem:[#allocation10 + $0xfd0] sm:$0xff]
    %v1367 = vld [vmem:[#allocation10 + $0xfd8] sm:$0xff]
    %v1368 = vld [vmem:[#allocation10 + $0xfe0] sm:$0xff]
    %v1369 = vld [vmem:[#allocation10 + $0xfe8] sm:$0xff]
    %v1370 = vld [vmem:[#allocation10 + $0xff0] sm:$0xff]
    %v1371 = vld [vmem:[#allocation10 + $0xff8] sm:$0xff]
    %v1372 = vld [vmem:[#allocation10 + $0x1000] sm:$0xff]
    %v1373 = vld [vmem:[#allocation10 + $0x1008] sm:$0xff]
    %v1374 = vld [vmem:[#allocation10 + $0x1010] sm:$0xff]
    %v1375 = vld [vmem:[#allocation10 + $0x1018] sm:$0xff]
    %v1376 = vld [vmem:[#allocation10 + $0x1020] sm:$0xff]
    %v1377 = vld [vmem:[#allocation10 + $0x1028] sm:$0xff]
    %v1378 = vld [vmem:[#allocation10 + $0x1030] sm:$0xff]
    %v1379 = vld [vmem:[#allocation10 + $0x1038] sm:$0xff]
    %v1380 = vld [vmem:[#allocation10 + $0x1040] sm:$0xff]
    %v1381 = vld [vmem:[#allocation10 + $0x1048] sm:$0xff]
    %v1382 = vld [vmem:[#allocation10 + $0x1050] sm:$0xff]
    %v1383 = vld [vmem:[#allocation10 + $0x1058] sm:$0xff]
    %v1384 = vld [vmem:[#allocation10 + $0x1060] sm:$0xff]
    %v1385 = vld [vmem:[#allocation10 + $0x1068] sm:$0xff]
    %v1386 = vld [vmem:[#allocation10 + $0x1070] sm:$0xff]
    %v1387 = vld [vmem:[#allocation10 + $0x1078] sm:$0xff]
    %v1388 = vld [vmem:[#allocation10 + $0x1080] sm:$0xff]
    %v1389 = vld [vmem:[#allocation10 + $0x1088] sm:$0xff]
    %v1390 = vld [vmem:[#allocation10 + $0x1090] sm:$0xff]
    %v1391 = vld [vmem:[#allocation10 + $0x1098] sm:$0xff]
    %v1392 = vld [vmem:[#allocation10 + $0x10a0] sm:$0xff]
    %v1393 = vld [vmem:[#allocation10 + $0x10a8] sm:$0xff]
    %v1394 = vld [vmem:[#allocation10 + $0x10b0] sm:$0xff]
    %v1395 = vld [vmem:[#allocation10 + $0x10b8] sm:$0xff]
    %v1396 = vld [vmem:[#allocation10 + $0x10c0] sm:$0xff]
    %v1397 = vld [vmem:[#allocation10 + $0x10c8] sm:$0xff]
    %v1398 = vld [vmem:[#allocation10 + $0x10d0] sm:$0xff]
    %v1399 = vld [vmem:[#allocation10 + $0x10d8] sm:$0xff]
    %v1400 = vld [vmem:[#allocation10 + $0x10e0] sm:$0xff]
    %v1401 = vld [vmem:[#allocation10 + $0x10e8] sm:$0xff]
    %v1402 = vld [vmem:[#allocation10 + $0x10f0] sm:$0xff]
    %v1403 = vld [vmem:[#allocation10 + $0x10f8] sm:$0xff]
    %v1404 = vld [vmem:[#allocation10 + $0x1100] sm:$0xff]
    %v1405 = vld [vmem:[#allocation10 + $0x1108] sm:$0xff]
    %v1406 = vld [vmem:[#allocation10 + $0x1110] sm:$0xff]
    %v1407 = vld [vmem:[#allocation10 + $0x1118] sm:$0xff]
    %v1408 = vld [vmem:[#allocation10 + $0x1120] sm:$0xff]
    %v1409 = vld [vmem:[#allocation10 + $0x1128] sm:$0xff]
    %v1410 = vld [vmem:[#allocation10 + $0x1130] sm:$0xff]
    %v1411 = vld [vmem:[#allocation10 + $0x1138] sm:$0xff]
    %v1412 = vld [vmem:[#allocation10 + $0x1140] sm:$0xff]
    %v1413 = vld [vmem:[#allocation10 + $0x1148] sm:$0xff]
    %v1414 = vld [vmem:[#allocation10 + $0x1150] sm:$0xff]
    %v1415 = vld [vmem:[#allocation10 + $0x1158] sm:$0xff]
    %v1416 = vld [vmem:[#allocation10 + $0x1160] sm:$0xff]
    %v1417 = vld [vmem:[#allocation10 + $0x1168] sm:$0xff]
    %v1418 = vld [vmem:[#allocation10 + $0x1170] sm:$0xff]
    %v1419 = vld [vmem:[#allocation10 + $0x1178] sm:$0xff]
    %v1420 = vld [vmem:[#allocation10 + $0x1180] sm:$0xff]
    %v1421 = vld [vmem:[#allocation10 + $0x1188] sm:$0xff]
    %v1422 = vld [vmem:[#allocation10 + $0x1190] sm:$0xff]
    %v1423 = vld [vmem:[#allocation10 + $0x1198] sm:$0xff]
    %v1424 = vld [vmem:[#allocation10 + $0x11a0] sm:$0xff]
    %v1425 = vld [vmem:[#allocation10 + $0x11a8] sm:$0xff]
    %v1426 = vld [vmem:[#allocation10 + $0x11b0] sm:$0xff]
    %v1427 = vld [vmem:[#allocation10 + $0x11b8] sm:$0xff]
    %v1428 = vld [vmem:[#allocation10 + $0x11c0] sm:$0xff]
    %v1429 = vld [vmem:[#allocation10 + $0x11c8] sm:$0xff]
    %v1430 = vld [vmem:[#allocation10 + $0x11d0] sm:$0xff]
    %v1431 = vld [vmem:[#allocation10 + $0x11d8] sm:$0xff]
    %v1432 = vld [vmem:[#allocation10 + $0x11e0] sm:$0xff]
    %v1433 = vld [vmem:[#allocation10 + $0x11e8] sm:$0xff]
    %v1434 = vld [vmem:[#allocation10 + $0x11f0] sm:$0xff]
    %v1435 = vld [vmem:[#allocation10 + $0x11f8] sm:$0xff]
    %v1436 = vld [vmem:[#allocation10 + $0x1200] sm:$0xff]
    %v1437 = vld [vmem:[#allocation10 + $0x1208] sm:$0xff]
    %v1438 = vld [vmem:[#allocation10 + $0x1210] sm:$0xff]
    %v1439 = vld [vmem:[#allocation10 + $0x1218] sm:$0xff]
    %v1440 = vld [vmem:[#allocation10 + $0x1220] sm:$0xff]
    %v1441 = vld [vmem:[#allocation10 + $0x1228] sm:$0xff]
    %v1442 = vld [vmem:[#allocation10 + $0x1230] sm:$0xff]
    %v1443 = vld [vmem:[#allocation10 + $0x1238] sm:$0xff]
    %v1444 = vld [vmem:[#allocation10 + $0x1240] sm:$0xff]
    %v1445 = vld [vmem:[#allocation10 + $0x1248] sm:$0xff]
    %v1446 = vld [vmem:[#allocation10 + $0x1250] sm:$0xff]
    %v1447 = vld [vmem:[#allocation10 + $0x1258] sm:$0xff]
    %v1448 = vld [vmem:[#allocation10 + $0x1260] sm:$0xff]
    %v1449 = vld [vmem:[#allocation10 + $0x1268] sm:$0xff]
    %v1450 = vld [vmem:[#allocation10 + $0x1270] sm:$0xff]
    %v1451 = vld [vmem:[#allocation10 + $0x1278] sm:$0xff]
    %v1452 = vld [vmem:[#allocation10 + $0x1280] sm:$0xff]
    %v1453 = vld [vmem:[#allocation10 + $0x1288] sm:$0xff]
    %v1454 = vld [vmem:[#allocation10 + $0x1290] sm:$0xff]
    %v1455 = vld [vmem:[#allocation10 + $0x1298] sm:$0xff]
    %v1456 = vld [vmem:[#allocation10 + $0x12a0] sm:$0xff]
    %v1457 = vld [vmem:[#allocation10 + $0x12a8] sm:$0xff]
    %v1458 = vld [vmem:[#allocation10 + $0x12b0] sm:$0xff]
    %v1459 = vld [vmem:[#allocation10 + $0x12b8] sm:$0xff]
    %v1460 = vld [vmem:[#allocation10 + $0x12c0] sm:$0xff]
    %v1461 = vld [vmem:[#allocation10 + $0x12c8] sm:$0xff]
    %v1462 = vld [vmem:[#allocation10 + $0x12d0] sm:$0xff]
    %v1463 = vld [vmem:[#allocation10 + $0x12d8] sm:$0xff]
    %v1464 = vld [vmem:[#allocation10 + $0x12e0] sm:$0xff]
    %v1465 = vld [vmem:[#allocation10 + $0x12e8] sm:$0xff]
    %v1466 = vld [vmem:[#allocation10 + $0x12f0] sm:$0xff]
    %v1467 = vld [vmem:[#allocation10 + $0x12f8] sm:$0xff]
    %v1468 = vld [vmem:[#allocation10 + $0x1300] sm:$0xff]
    %v1469 = vld [vmem:[#allocation10 + $0x1308] sm:$0xff]
    %v1470 = vld [vmem:[#allocation10 + $0x1310] sm:$0xff]
    %v1471 = vld [vmem:[#allocation10 + $0x1318] sm:$0xff]
    %v1472 = vld [vmem:[#allocation10 + $0x1320] sm:$0xff]
    %v1473 = vld [vmem:[#allocation10 + $0x1328] sm:$0xff]
    %v1474 = vld [vmem:[#allocation10 + $0x1330] sm:$0xff]
    %v1475 = vld [vmem:[#allocation10 + $0x1338] sm:$0xff]
    %v1476 = vld [vmem:[#allocation10 + $0x1340] sm:$0xff]
    %v1477 = vld [vmem:[#allocation10 + $0x1348] sm:$0xff]
    %v1478 = vld [vmem:[#allocation10 + $0x1350] sm:$0xff]
    %v1479 = vld [vmem:[#allocation10 + $0x1358] sm:$0xff]
    %v1480 = vld [vmem:[#allocation10 + $0x1360] sm:$0xff]
    %v1481 = vld [vmem:[#allocation10 + $0x1368] sm:$0xff]
    %v1482 = vld [vmem:[#allocation10 + $0x1370] sm:$0xff]
    %v1483 = vld [vmem:[#allocation10 + $0x1378] sm:$0xff]
    %v1484 = vld [vmem:[#allocation10 + $0x1380] sm:$0xff]
    %v1485 = vld [vmem:[#allocation10 + $0x1388] sm:$0xff]
    %v1486 = vld [vmem:[#allocation10 + $0x1390] sm:$0xff]
    %v1487 = vld [vmem:[#allocation10 + $0x1398] sm:$0xff]
    %v1488 = vld [vmem:[#allocation10 + $0x13a0] sm:$0xff]
    %v1489 = vld [vmem:[#allocation10 + $0x13a8] sm:$0xff]
    %v1490 = vld [vmem:[#allocation10 + $0x13b0] sm:$0xff]
    %v1491 = vld [vmem:[#allocation10 + $0x13b8] sm:$0xff]
    %v1492 = vld [vmem:[#allocation10 + $0x13c0] sm:$0xff]
    %v1493 = vld [vmem:[#allocation10 + $0x13c8] sm:$0xff]
    %v1494 = vld [vmem:[#allocation10 + $0x13d0] sm:$0xff]
    %v1495 = vld [vmem:[#allocation10 + $0x13d8] sm:$0xff]
    %v1496 = vld [vmem:[#allocation10 + $0x13e0] sm:$0xff]
    %v1497 = vld [vmem:[#allocation10 + $0x13e8] sm:$0xff]
    %v1498 = vld [vmem:[#allocation10 + $0x13f0] sm:$0xff]
    %v1499 = vld [vmem:[#allocation10 + $0x13f8] sm:$0xff]
    %v1500 = vld [vmem:[#allocation10 + $0x1400] sm:$0xff]
    %v1501 = vld [vmem:[#allocation10 + $0x1408] sm:$0xff]
    %v1502 = vld [vmem:[#allocation10 + $0x1410] sm:$0xff]
    %v1503 = vld [vmem:[#allocation10 + $0x1418] sm:$0xff]
    %v1504 = vld [vmem:[#allocation10 + $0x1420] sm:$0xff]
    %v1505 = vld [vmem:[#allocation10 + $0x1428] sm:$0xff]
    %v1506 = vld [vmem:[#allocation10 + $0x1430] sm:$0xff]
    %v1507 = vld [vmem:[#allocation10 + $0x1438] sm:$0xff]
    %v1508 = vld [vmem:[#allocation10 + $0x1440] sm:$0xff]
    %v1509 = vld [vmem:[#allocation10 + $0x1448] sm:$0xff]
    %v1510 = vld [vmem:[#allocation10 + $0x1450] sm:$0xff]
    %v1511 = vld [vmem:[#allocation10 + $0x1458] sm:$0xff]
    %v1512 = vld [vmem:[#allocation10 + $0x1460] sm:$0xff]
    %v1513 = vld [vmem:[#allocation10 + $0x1468] sm:$0xff]
    %v1514 = vld [vmem:[#allocation10 + $0x1470] sm:$0xff]
    %v1515 = vld [vmem:[#allocation10 + $0x1478] sm:$0xff]
    %v1516 = vld [vmem:[#allocation10 + $0x1480] sm:$0xff]
    %v1517 = vld [vmem:[#allocation10 + $0x1488] sm:$0xff]
    %v1518 = vld [vmem:[#allocation10 + $0x1490] sm:$0xff]
    %v1519 = vld [vmem:[#allocation10 + $0x1498] sm:$0xff]
    %v1520 = vld [vmem:[#allocation10 + $0x14a0] sm:$0xff]
    %v1521 = vld [vmem:[#allocation10 + $0x14a8] sm:$0xff]
    %v1522 = vld [vmem:[#allocation10 + $0x14b0] sm:$0xff]
    %v1523 = vld [vmem:[#allocation10 + $0x14b8] sm:$0xff]
    %v1524 = vld [vmem:[#allocation10 + $0x14c0] sm:$0xff]
    %v1525 = vld [vmem:[#allocation10 + $0x14c8] sm:$0xff]
    %v1526 = vld [vmem:[#allocation10 + $0x14d0] sm:$0xff]
    %v1527 = vld [vmem:[#allocation10 + $0x14d8] sm:$0xff]
    %v1528 = vld [vmem:[#allocation10 + $0x14e0] sm:$0xff]
    %v1529 = vld [vmem:[#allocation10 + $0x14e8] sm:$0xff]
    %v1530 = vld [vmem:[#allocation10 + $0x14f0] sm:$0xff]
    %v1531 = vld [vmem:[#allocation10 + $0x14f8] sm:$0xff]
    %v1532 = vld [vmem:[#allocation10 + $0x1500] sm:$0xff]
    %v1533 = vld [vmem:[#allocation10 + $0x1508] sm:$0xff]
    %v1534 = vld [vmem:[#allocation10 + $0x1510] sm:$0xff]
    %v1535 = vld [vmem:[#allocation10 + $0x1518] sm:$0xff]
    %v1536 = vld [vmem:[#allocation10 + $0x1520] sm:$0xff]
    %v1537 = vld [vmem:[#allocation10 + $0x1528] sm:$0xff]
    %v1538 = vld [vmem:[#allocation10 + $0x1530] sm:$0xff]
    %v1539 = vld [vmem:[#allocation10 + $0x1538] sm:$0xff]
    %v1540 = vld [vmem:[#allocation10 + $0x1540] sm:$0xff]
    %v1541 = vld [vmem:[#allocation10 + $0x1548] sm:$0xff]
    %v1542 = vld [vmem:[#allocation10 + $0x1550] sm:$0xff]
    %v1543 = vld [vmem:[#allocation10 + $0x1558] sm:$0xff]
    %v1544 = vld [vmem:[#allocation10 + $0x1560] sm:$0xff]
    %v1545 = vld [vmem:[#allocation10 + $0x1568] sm:$0xff]
    %v1546 = vld [vmem:[#allocation10 + $0x1570] sm:$0xff]
    %v1547 = vld [vmem:[#allocation10 + $0x1578] sm:$0xff]
    %v1548 = vld [vmem:[#allocation10 + $0x1580] sm:$0xff]
    %v1549 = vld [vmem:[#allocation10 + $0x1588] sm:$0xff]
    %v1550 = vld [vmem:[#allocation10 + $0x1590] sm:$0xff]
    %v1551 = vld [vmem:[#allocation10 + $0x1598] sm:$0xff]
    %v1552 = vld [vmem:[#allocation10 + $0x15a0] sm:$0xff]
    %v1553 = vld [vmem:[#allocation10 + $0x15a8] sm:$0xff]
    %v1554 = vld [vmem:[#allocation10 + $0x15b0] sm:$0xff]
    %v1555 = vld [vmem:[#allocation10 + $0x15b8] sm:$0xff]
    %v1556 = vld [vmem:[#allocation10 + $0x15c0] sm:$0xff]
    %v1557 = vld [vmem:[#allocation10 + $0x15c8] sm:$0xff]
    %v1558 = vld [vmem:[#allocation10 + $0x15d0] sm:$0xff]
    %v1559 = vld [vmem:[#allocation10 + $0x15d8] sm:$0xff]
    %v1560 = vld [vmem:[#allocation10 + $0x15e0] sm:$0xff]
    %v1561 = vld [vmem:[#allocation10 + $0x15e8] sm:$0xff]
    %v1562 = vld [vmem:[#allocation10 + $0x15f0] sm:$0xff]
    %v1563 = vld [vmem:[#allocation10 + $0x15f8] sm:$0xff]
    %v1564 = vld [vmem:[#allocation10 + $0x1600] sm:$0xff]
    %v1565 = vld [vmem:[#allocation10 + $0x1608] sm:$0xff]
    %v1566 = vld [vmem:[#allocation10 + $0x1610] sm:$0xff]
    %v1567 = vld [vmem:[#allocation10 + $0x1618] sm:$0xff]
    %v1568 = vld [vmem:[#allocation10 + $0x1620] sm:$0xff]
    %v1569 = vld [vmem:[#allocation10 + $0x1628] sm:$0xff]
    %v1570 = vld [vmem:[#allocation10 + $0x1630] sm:$0xff]
    %v1571 = vld [vmem:[#allocation10 + $0x1638] sm:$0xff]
    %v1572 = vld [vmem:[#allocation10 + $0x1640] sm:$0xff]
    %v1573 = vld [vmem:[#allocation10 + $0x1648] sm:$0xff]
    %v1574 = vld [vmem:[#allocation10 + $0x1650] sm:$0xff]
    %v1575 = vld [vmem:[#allocation10 + $0x1658] sm:$0xff]
    %v1576 = vld [vmem:[#allocation10 + $0x1660] sm:$0xff]
    %v1577 = vld [vmem:[#allocation10 + $0x1668] sm:$0xff]
    %v1578 = vld [vmem:[#allocation10 + $0x1670] sm:$0xff]
    %v1579 = vld [vmem:[#allocation10 + $0x1678] sm:$0xff]
    %v1580 = vld [vmem:[#allocation10 + $0x1680] sm:$0xff]
    %v1581 = vld [vmem:[#allocation10 + $0x1688] sm:$0xff]
    %v1582 = vld [vmem:[#allocation10 + $0x1690] sm:$0xff]
    %v1583 = vld [vmem:[#allocation10 + $0x1698] sm:$0xff]
    %v1584 = vld [vmem:[#allocation10 + $0x16a0] sm:$0xff]
    %v1585 = vld [vmem:[#allocation10 + $0x16a8] sm:$0xff]
    %v1586 = vld [vmem:[#allocation10 + $0x16b0] sm:$0xff]
    %v1587 = vld [vmem:[#allocation10 + $0x16b8] sm:$0xff]
    %v1588 = vld [vmem:[#allocation10 + $0x16c0] sm:$0xff]
    %v1589 = vld [vmem:[#allocation10 + $0x16c8] sm:$0xff]
    %v1590 = vld [vmem:[#allocation10 + $0x16d0] sm:$0xff]
    %v1591 = vld [vmem:[#allocation10 + $0x16d8] sm:$0xff]
    %v1592 = vld [vmem:[#allocation10 + $0x16e0] sm:$0xff]
    %v1593 = vld [vmem:[#allocation10 + $0x16e8] sm:$0xff]
    %v1594 = vld [vmem:[#allocation10 + $0x16f0] sm:$0xff]
    %v1595 = vld [vmem:[#allocation10 + $0x16f8] sm:$0xff]
    %v1596 = vld [vmem:[#allocation10 + $0x1700] sm:$0xff]
    %v1597 = vld [vmem:[#allocation10 + $0x1708] sm:$0xff]
    %v1598 = vld [vmem:[#allocation10 + $0x1710] sm:$0xff]
    %v1599 = vld [vmem:[#allocation10 + $0x1718] sm:$0xff]
    %v1600 = vld [vmem:[#allocation10 + $0x1720] sm:$0xff]
    %v1601 = vld [vmem:[#allocation10 + $0x1728] sm:$0xff]
    %v1602 = vld [vmem:[#allocation10 + $0x1730] sm:$0xff]
    %v1603 = vld [vmem:[#allocation10 + $0x1738] sm:$0xff]
    %v1604 = vld [vmem:[#allocation10 + $0x1740] sm:$0xff]
    %v1605 = vld [vmem:[#allocation10 + $0x1748] sm:$0xff]
    %v1606 = vld [vmem:[#allocation10 + $0x1750] sm:$0xff]
    %v1607 = vld [vmem:[#allocation10 + $0x1758] sm:$0xff]
    %v1608 = vld [vmem:[#allocation10 + $0x1760] sm:$0xff]
    %v1609 = vld [vmem:[#allocation10 + $0x1768] sm:$0xff]
    %v1610 = vld [vmem:[#allocation10 + $0x1770] sm:$0xff]
    %v1611 = vld [vmem:[#allocation10 + $0x1778] sm:$0xff]
    %v1612 = vld [vmem:[#allocation10 + $0x1780] sm:$0xff]
    %v1613 = vld [vmem:[#allocation10 + $0x1788] sm:$0xff]
    %v1614 = vld [vmem:[#allocation10 + $0x1790] sm:$0xff]
    %v1615 = vld [vmem:[#allocation10 + $0x1798] sm:$0xff]
    %v1616 = vld [vmem:[#allocation10 + $0x17a0] sm:$0xff]
    %v1617 = vld [vmem:[#allocation10 + $0x17a8] sm:$0xff]
    %v1618 = vld [vmem:[#allocation10 + $0x17b0] sm:$0xff]
    %v1619 = vld [vmem:[#allocation10 + $0x17b8] sm:$0xff]
    %v1620 = vld [vmem:[#allocation10 + $0x17c0] sm:$0xff]
    %v1621 = vld [vmem:[#allocation10 + $0x17c8] sm:$0xff]
    %v1622 = vld [vmem:[#allocation10 + $0x17d0] sm:$0xff]
    %v1623 = vld [vmem:[#allocation10 + $0x17d8] sm:$0xff]
    %v1624 = vld [vmem:[#allocation10 + $0x17e0] sm:$0xff]
    %v1625 = vld [vmem:[#allocation10 + $0x17e8] sm:$0xff]
    %v1626 = vld [vmem:[#allocation10 + $0x17f0] sm:$0xff]
    %v1627 = vld [vmem:[#allocation10 + $0x17f8] sm:$0xff]
    %v1628 = vld [vmem:[#allocation10 + $0x1800] sm:$0xff]
    %v1629 = vld [vmem:[#allocation10 + $0x1808] sm:$0xff]
    %v1630 = vld [vmem:[#allocation10 + $0x1810] sm:$0xff]
    %v1631 = vld [vmem:[#allocation10 + $0x1818] sm:$0xff]
    %v1632 = vld [vmem:[#allocation10 + $0x1820] sm:$0xff]
    %v1633 = vld [vmem:[#allocation10 + $0x1828] sm:$0xff]
    %v1634 = vld [vmem:[#allocation10 + $0x1830] sm:$0xff]
    %v1635 = vld [vmem:[#allocation10 + $0x1838] sm:$0xff]
    %v1636 = vld [vmem:[#allocation10 + $0x1840] sm:$0xff]
    %v1637 = vld [vmem:[#allocation10 + $0x1848] sm:$0xff]
    %v1638 = vld [vmem:[#allocation10 + $0x1850] sm:$0xff]
    %v1639 = vld [vmem:[#allocation10 + $0x1858] sm:$0xff]
    %v1640 = vld [vmem:[#allocation10 + $0x1860] sm:$0xff]
    %v1641 = vld [vmem:[#allocation10 + $0x1868] sm:$0xff]
    %v1642 = vld [vmem:[#allocation10 + $0x1870] sm:$0xff]
    %v1643 = vld [vmem:[#allocation10 + $0x1878] sm:$0xff]
    %v1644 = vld [vmem:[#allocation10 + $0x1880] sm:$0xff]
    %v1645 = vld [vmem:[#allocation10 + $0x1888] sm:$0xff]
    %v1646 = vld [vmem:[#allocation10 + $0x1890] sm:$0xff]
    %v1647 = vld [vmem:[#allocation10 + $0x1898] sm:$0xff]
    %v1648 = vld [vmem:[#allocation10 + $0x18a0] sm:$0xff]
    %v1649 = vld [vmem:[#allocation10 + $0x18a8] sm:$0xff]
    %v1650 = vld [vmem:[#allocation10 + $0x18b0] sm:$0xff]
    %v1651 = vld [vmem:[#allocation10 + $0x18b8] sm:$0xff]
    %v1652 = vld [vmem:[#allocation10 + $0x18c0] sm:$0xff]
    %v1653 = vld [vmem:[#allocation10 + $0x18c8] sm:$0xff]
    %v1654 = vld [vmem:[#allocation10 + $0x18d0] sm:$0xff]
    %v1655 = vld [vmem:[#allocation10 + $0x18d8] sm:$0xff]
    %v1656 = vld [vmem:[#allocation10 + $0x18e0] sm:$0xff]
    %v1657 = vld [vmem:[#allocation10 + $0x18e8] sm:$0xff]
    %v1658 = vld [vmem:[#allocation10 + $0x18f0] sm:$0xff]
    %v1659 = vld [vmem:[#allocation10 + $0x18f8] sm:$0xff]
    %v1660 = vld [vmem:[#allocation10 + $0x1900] sm:$0xff]
    %v1661 = vld [vmem:[#allocation10 + $0x1908] sm:$0xff]
    %v1662 = vld [vmem:[#allocation10 + $0x1910] sm:$0xff]
    %v1663 = vld [vmem:[#allocation10 + $0x1918] sm:$0xff]
    %v1664 = vld [vmem:[#allocation10 + $0x1920] sm:$0xff]
    %v1665 = vld [vmem:[#allocation10 + $0x1928] sm:$0xff]
    %v1666 = vld [vmem:[#allocation10 + $0x1930] sm:$0xff]
    %v1667 = vld [vmem:[#allocation10 + $0x1938] sm:$0xff]
    %v1668 = vld [vmem:[#allocation10 + $0x1940] sm:$0xff]
    %v1669 = vld [vmem:[#allocation10 + $0x1948] sm:$0xff]
    %v1670 = vld [vmem:[#allocation10 + $0x1950] sm:$0xff]
    %v1671 = vld [vmem:[#allocation10 + $0x1958] sm:$0xff]
    %v1672 = vld [vmem:[#allocation10 + $0x1960] sm:$0xff]
    %v1673 = vld [vmem:[#allocation10 + $0x1968] sm:$0xff]
    %v1674 = vld [vmem:[#allocation10 + $0x1970] sm:$0xff]
    %v1675 = vld [vmem:[#allocation10 + $0x1978] sm:$0xff]
    %v1676 = vld [vmem:[#allocation10 + $0x1980] sm:$0xff]
    %v1677 = vld [vmem:[#allocation10 + $0x1988] sm:$0xff]
    %v1678 = vld [vmem:[#allocation10 + $0x1990] sm:$0xff]
    %v1679 = vld [vmem:[#allocation10 + $0x1998] sm:$0xff]
    %v1680 = vld [vmem:[#allocation10 + $0x19a0] sm:$0xff]
    %v1681 = vld [vmem:[#allocation10 + $0x19a8] sm:$0xff]
    %v1682 = vld [vmem:[#allocation10 + $0x19b0] sm:$0xff]
    %v1683 = vld [vmem:[#allocation10 + $0x19b8] sm:$0xff]
    %v1684 = vld [vmem:[#allocation10 + $0x19c0] sm:$0xff]
    %v1685 = vld [vmem:[#allocation10 + $0x19c8] sm:$0xff]
    %v1686 = vld [vmem:[#allocation10 + $0x19d0] sm:$0xff]
    %v1687 = vld [vmem:[#allocation10 + $0x19d8] sm:$0xff]
    %v1688 = vld [vmem:[#allocation10 + $0x19e0] sm:$0xff]
    %v1689 = vld [vmem:[#allocation10 + $0x19e8] sm:$0xff]
    %v1690 = vld [vmem:[#allocation10 + $0x19f0] sm:$0xff]
    %v1691 = vld [vmem:[#allocation10 + $0x19f8] sm:$0xff]
    %v1692 = vld [vmem:[#allocation10 + $0x1a00] sm:$0xff]
    %v1693 = vld [vmem:[#allocation10 + $0x1a08] sm:$0xff]
    %v1694 = vld [vmem:[#allocation10 + $0x1a10] sm:$0xff]
    %v1695 = vld [vmem:[#allocation10 + $0x1a18] sm:$0xff]
    %v1696 = vld [vmem:[#allocation10 + $0x1a20] sm:$0xff]
    %v1697 = vld [vmem:[#allocation10 + $0x1a28] sm:$0xff]
    %v1698 = vld [vmem:[#allocation10 + $0x1a30] sm:$0xff]
    %v1699 = vld [vmem:[#allocation10 + $0x1a38] sm:$0xff]
    %v1700 = vld [vmem:[#allocation10 + $0x1a40] sm:$0xff]
    %v1701 = vld [vmem:[#allocation10 + $0x1a48] sm:$0xff]
    %v1702 = vld [vmem:[#allocation10 + $0x1a50] sm:$0xff]
    %v1703 = vld [vmem:[#allocation10 + $0x1a58] sm:$0xff]
    %v1704 = vld [vmem:[#allocation10 + $0x1a60] sm:$0xff]
    %v1705 = vld [vmem:[#allocation10 + $0x1a68] sm:$0xff]
    %v1706 = vld [vmem:[#allocation10 + $0x1a70] sm:$0xff]
    %v1707 = vld [vmem:[#allocation10 + $0x1a78] sm:$0xff]
    %v1708 = vld [vmem:[#allocation10 + $0x1a80] sm:$0xff]
    %v1709 = vld [vmem:[#allocation10 + $0x1a88] sm:$0xff]
    %v1710 = vld [vmem:[#allocation10 + $0x1a90] sm:$0xff]
    %v1711 = vld [vmem:[#allocation10 + $0x1a98] sm:$0xff]
    %v1712 = vld [vmem:[#allocation10 + $0x1aa0] sm:$0xff]
    %v1713 = vld [vmem:[#allocation10 + $0x1aa8] sm:$0xff]
    %v1714 = vld [vmem:[#allocation10 + $0x1ab0] sm:$0xff]
    %v1715 = vld [vmem:[#allocation10 + $0x1ab8] sm:$0xff]
    %v1716 = vld [vmem:[#allocation10 + $0x1ac0] sm:$0xff]
    %v1717 = vld [vmem:[#allocation10 + $0x1ac8] sm:$0xff]
    %v1718 = vld [vmem:[#allocation10 + $0x1ad0] sm:$0xff]
    %v1719 = vld [vmem:[#allocation10 + $0x1ad8] sm:$0xff]
    %v1720 = vld [vmem:[#allocation10 + $0x1ae0] sm:$0xff]
    %v1721 = vld [vmem:[#allocation10 + $0x1ae8] sm:$0xff]
    %v1722 = vld [vmem:[#allocation10 + $0x1af0] sm:$0xff]
    %v1723 = vld [vmem:[#allocation10 + $0x1af8] sm:$0xff]
    %v1724 = vld [vmem:[#allocation10 + $0x1b00] sm:$0xff]
    %v1725 = vld [vmem:[#allocation10 + $0x1b08] sm:$0xff]
    %v1726 = vld [vmem:[#allocation10 + $0x1b10] sm:$0xff]
    %v1727 = vld [vmem:[#allocation10 + $0x1b18] sm:$0xff]
    %v1728 = vld [vmem:[#allocation10 + $0x1b20] sm:$0xff]
    %v1729 = vld [vmem:[#allocation10 + $0x1b28] sm:$0xff]
    %v1730 = vld [vmem:[#allocation10 + $0x1b30] sm:$0xff]
    %v1731 = vld [vmem:[#allocation10 + $0x1b38] sm:$0xff]
    %v1732 = vld [vmem:[#allocation10 + $0x1b40] sm:$0xff]
    %v1733 = vld [vmem:[#allocation10 + $0x1b48] sm:$0xff]
    %v1734 = vld [vmem:[#allocation10 + $0x1b50] sm:$0xff]
    %v1735 = vld [vmem:[#allocation10 + $0x1b58] sm:$0xff]
    %v1736 = vld [vmem:[#allocation10 + $0x1b60] sm:$0xff]
    %v1737 = vld [vmem:[#allocation10 + $0x1b68] sm:$0xff]
    %v1738 = vld [vmem:[#allocation10 + $0x1b70] sm:$0xff]
    %v1739 = vld [vmem:[#allocation10 + $0x1b78] sm:$0xff]
    %v1740 = vld [vmem:[#allocation10 + $0x1b80] sm:$0xff]
    %v1741 = vld [vmem:[#allocation10 + $0x1b88] sm:$0xff]
    %v1742 = vld [vmem:[#allocation10 + $0x1b90] sm:$0xff]
    %v1743 = vld [vmem:[#allocation10 + $0x1b98] sm:$0xff]
    %v1744 = vld [vmem:[#allocation10 + $0x1ba0] sm:$0xff]
    %v1745 = vld [vmem:[#allocation10 + $0x1ba8] sm:$0xff]
    %v1746 = vld [vmem:[#allocation10 + $0x1bb0] sm:$0xff]
    %v1747 = vld [vmem:[#allocation10 + $0x1bb8] sm:$0xff]
    %v1748 = vld [vmem:[#allocation10 + $0x1bc0] sm:$0xff]
    %v1749 = vld [vmem:[#allocation10 + $0x1bc8] sm:$0xff]
    %v1750 = vld [vmem:[#allocation10 + $0x1bd0] sm:$0xff]
    %v1751 = vld [vmem:[#allocation10 + $0x1bd8] sm:$0xff]
    %v1752 = vld [vmem:[#allocation10 + $0x1be0] sm:$0xff]
    %v1753 = vld [vmem:[#allocation10 + $0x1be8] sm:$0xff]
    %v1754 = vld [vmem:[#allocation10 + $0x1bf0] sm:$0xff]
    %v1755 = vld [vmem:[#allocation10 + $0x1bf8] sm:$0xff]
    %v1756 = vld [vmem:[#allocation10 + $0x1c00] sm:$0xff]
    %v1757 = vld [vmem:[#allocation10 + $0x1c08] sm:$0xff]
    %v1758 = vld [vmem:[#allocation10 + $0x1c10] sm:$0xff]
    %v1759 = vld [vmem:[#allocation10 + $0x1c18] sm:$0xff]
    %v1760 = vld [vmem:[#allocation10 + $0x1c20] sm:$0xff]
    %v1761 = vld [vmem:[#allocation10 + $0x1c28] sm:$0xff]
    %v1762 = vld [vmem:[#allocation10 + $0x1c30] sm:$0xff]
    %v1763 = vld [vmem:[#allocation10 + $0x1c38] sm:$0xff]
    %v1764 = vld [vmem:[#allocation10 + $0x1c40] sm:$0xff]
    %v1765 = vld [vmem:[#allocation10 + $0x1c48] sm:$0xff]
    %v1766 = vld [vmem:[#allocation10 + $0x1c50] sm:$0xff]
    %v1767 = vld [vmem:[#allocation10 + $0x1c58] sm:$0xff]
    %v1768 = vld [vmem:[#allocation10 + $0x1c60] sm:$0xff]
    %v1769 = vld [vmem:[#allocation10 + $0x1c68] sm:$0xff]
    %v1770 = vld [vmem:[#allocation10 + $0x1c70] sm:$0xff]
    %v1771 = vld [vmem:[#allocation10 + $0x1c78] sm:$0xff]
    %v1772 = vld [vmem:[#allocation10 + $0x1c80] sm:$0xff]
    %v1773 = vld [vmem:[#allocation10 + $0x1c88] sm:$0xff]
    %v1774 = vld [vmem:[#allocation10 + $0x1c90] sm:$0xff]
    %v1775 = vld [vmem:[#allocation10 + $0x1c98] sm:$0xff]
    %v1776 = vld [vmem:[#allocation10 + $0x1ca0] sm:$0xff]
    %v1777 = vld [vmem:[#allocation10 + $0x1ca8] sm:$0xff]
    %v1778 = vld [vmem:[#allocation10 + $0x1cb0] sm:$0xff]
    %v1779 = vld [vmem:[#allocation10 + $0x1cb8] sm:$0xff]
    %v1780 = vld [vmem:[#allocation10 + $0x1cc0] sm:$0xff]
    %v1781 = vld [vmem:[#allocation10 + $0x1cc8] sm:$0xff]
    %v1782 = vld [vmem:[#allocation10 + $0x1cd0] sm:$0xff]
    %v1783 = vld [vmem:[#allocation10 + $0x1cd8] sm:$0xff]
    %v1784 = vld [vmem:[#allocation10 + $0x1ce0] sm:$0xff]
    %v1785 = vld [vmem:[#allocation10 + $0x1ce8] sm:$0xff]
    %v1786 = vld [vmem:[#allocation10 + $0x1cf0] sm:$0xff]
    %v1787 = vld [vmem:[#allocation10 + $0x1cf8] sm:$0xff]
    %v1788 = vld [vmem:[#allocation10 + $0x1d00] sm:$0xff]
    %v1789 = vld [vmem:[#allocation10 + $0x1d08] sm:$0xff]
    %v1790 = vld [vmem:[#allocation10 + $0x1d10] sm:$0xff]
    %v1791 = vld [vmem:[#allocation10 + $0x1d18] sm:$0xff]
    %v1792 = vld [vmem:[#allocation10 + $0x1d20] sm:$0xff]
    %v1793 = vld [vmem:[#allocation10 + $0x1d28] sm:$0xff]
    %v1794 = vld [vmem:[#allocation10 + $0x1d30] sm:$0xff]
    %v1795 = vld [vmem:[#allocation10 + $0x1d38] sm:$0xff]
    %v1796 = vld [vmem:[#allocation10 + $0x1d40] sm:$0xff]
    %v1797 = vld [vmem:[#allocation10 + $0x1d48] sm:$0xff]
    %v1798 = vld [vmem:[#allocation10 + $0x1d50] sm:$0xff]
    %v1799 = vld [vmem:[#allocation10 + $0x1d58] sm:$0xff]
    %v1800 = vld [vmem:[#allocation10 + $0x1d60] sm:$0xff]
    %v1801 = vld [vmem:[#allocation10 + $0x1d68] sm:$0xff]
    %v1802 = vld [vmem:[#allocation10 + $0x1d70] sm:$0xff]
    %v1803 = vld [vmem:[#allocation10 + $0x1d78] sm:$0xff]
    %v1804 = vld [vmem:[#allocation10 + $0x1d80] sm:$0xff]
    %v1805 = vld [vmem:[#allocation10 + $0x1d88] sm:$0xff]
    %v1806 = vld [vmem:[#allocation10 + $0x1d90] sm:$0xff]
    %v1807 = vld [vmem:[#allocation10 + $0x1d98] sm:$0xff]
    %v1808 = vld [vmem:[#allocation10 + $0x1da0] sm:$0xff]
    %v1809 = vld [vmem:[#allocation10 + $0x1da8] sm:$0xff]
    %v1810 = vld [vmem:[#allocation10 + $0x1db0] sm:$0xff]
    %v1811 = vld [vmem:[#allocation10 + $0x1db8] sm:$0xff]
    %v1812 = vld [vmem:[#allocation10 + $0x1dc0] sm:$0xff]
    %v1813 = vld [vmem:[#allocation10 + $0x1dc8] sm:$0xff]
    %v1814 = vld [vmem:[#allocation10 + $0x1dd0] sm:$0xff]
    %v1815 = vld [vmem:[#allocation10 + $0x1dd8] sm:$0xff]
    %v1816 = vld [vmem:[#allocation10 + $0x1de0] sm:$0xff]
    %v1817 = vld [vmem:[#allocation10 + $0x1de8] sm:$0xff]
    %v1818 = vld [vmem:[#allocation10 + $0x1df0] sm:$0xff]
    %v1819 = vld [vmem:[#allocation10 + $0x1df8] sm:$0xff]
    %v1820 = vld [vmem:[#allocation10 + $0x1e00] sm:$0xff]
    %v1821 = vld [vmem:[#allocation10 + $0x1e08] sm:$0xff]
    %v1822 = vld [vmem:[#allocation10 + $0x1e10] sm:$0xff]
    %v1823 = vld [vmem:[#allocation10 + $0x1e18] sm:$0xff]
    %v1824 = vld [vmem:[#allocation10 + $0x1e20] sm:$0xff]
    %v1825 = vld [vmem:[#allocation10 + $0x1e28] sm:$0xff]
    %v1826 = vld [vmem:[#allocation10 + $0x1e30] sm:$0xff]
    %v1827 = vld [vmem:[#allocation10 + $0x1e38] sm:$0xff]
    %v1828 = vld [vmem:[#allocation10 + $0x1e40] sm:$0xff]
    %v1829 = vld [vmem:[#allocation10 + $0x1e48] sm:$0xff]
    %v1830 = vld [vmem:[#allocation10 + $0x1e50] sm:$0xff]
    %v1831 = vld [vmem:[#allocation10 + $0x1e58] sm:$0xff]
    %v1832 = vld [vmem:[#allocation10 + $0x1e60] sm:$0xff]
    %v1833 = vld [vmem:[#allocation10 + $0x1e68] sm:$0xff]
    %v1834 = vld [vmem:[#allocation10 + $0x1e70] sm:$0xff]
    %v1835 = vld [vmem:[#allocation10 + $0x1e78] sm:$0xff]
    %v1836 = vld [vmem:[#allocation10 + $0x1e80] sm:$0xff]
    %v1837 = vld [vmem:[#allocation10 + $0x1e88] sm:$0xff]
    %v1838 = vld [vmem:[#allocation10 + $0x1e90] sm:$0xff]
    %v1839 = vld [vmem:[#allocation10 + $0x1e98] sm:$0xff]
    %v1840 = vld [vmem:[#allocation10 + $0x1ea0] sm:$0xff]
    %v1841 = vld [vmem:[#allocation10 + $0x1ea8] sm:$0xff]
    %v1842 = vld [vmem:[#allocation10 + $0x1eb0] sm:$0xff]
    %v1843 = vld [vmem:[#allocation10 + $0x1eb8] sm:$0xff]
    %v1844 = vld [vmem:[#allocation10 + $0x1ec0] sm:$0xff]
    %v1845 = vld [vmem:[#allocation10 + $0x1ec8] sm:$0xff]
    %v1846 = vld [vmem:[#allocation10 + $0x1ed0] sm:$0xff]
    %v1847 = vld [vmem:[#allocation10 + $0x1ed8] sm:$0xff]
    %v1848 = vld [vmem:[#allocation10 + $0x1ee0] sm:$0xff]
    %v1849 = vld [vmem:[#allocation10 + $0x1ee8] sm:$0xff]
    %v1850 = vld [vmem:[#allocation10 + $0x1ef0] sm:$0xff]
    %v1851 = vld [vmem:[#allocation10 + $0x1ef8] sm:$0xff]
    %v1852 = vld [vmem:[#allocation10 + $0x1f00] sm:$0xff]
    %v1853 = vld [vmem:[#allocation10 + $0x1f08] sm:$0xff]
    %v1854 = vld [vmem:[#allocation10 + $0x1f10] sm:$0xff]
    %v1855 = vld [vmem:[#allocation10 + $0x1f18] sm:$0xff]
    %v1856 = vld [vmem:[#allocation10 + $0x1f20] sm:$0xff]
    %v1857 = vld [vmem:[#allocation10 + $0x1f28] sm:$0xff]
    %v1858 = vld [vmem:[#allocation10 + $0x1f30] sm:$0xff]
    %v1859 = vld [vmem:[#allocation10 + $0x1f38] sm:$0xff]
    %v1860 = vld [vmem:[#allocation10 + $0x1f40] sm:$0xff]
    %v1861 = vld [vmem:[#allocation10 + $0x1f48] sm:$0xff]
    %v1862 = vld [vmem:[#allocation10 + $0x1f50] sm:$0xff]
    %v1863 = vld [vmem:[#allocation10 + $0x1f58] sm:$0xff]
    %v1864 = vld [vmem:[#allocation10 + $0x1f60] sm:$0xff]
    %v1865 = vld [vmem:[#allocation10 + $0x1f68] sm:$0xff]
    %v1866 = vld [vmem:[#allocation10 + $0x1f70] sm:$0xff]
    %v1867 = vld [vmem:[#allocation10 + $0x1f78] sm:$0xff]
    %v1868 = vld [vmem:[#allocation10 + $0x1f80] sm:$0xff]
    %v1869 = vld [vmem:[#allocation10 + $0x1f88] sm:$0xff]
    %v1870 = vld [vmem:[#allocation10 + $0x1f90] sm:$0xff]
    %v1871 = vld [vmem:[#allocation10 + $0x1f98] sm:$0xff]
    %v1872 = vld [vmem:[#allocation10 + $0x1fa0] sm:$0xff]
    %v1873 = vld [vmem:[#allocation10 + $0x1fa8] sm:$0xff]
    %v1874 = vld [vmem:[#allocation10 + $0x1fb0] sm:$0xff]
    %v1875 = vld [vmem:[#allocation10 + $0x1fb8] sm:$0xff]
    %v1876 = vld [vmem:[#allocation10 + $0x1fc0] sm:$0xff]
    %v1877 = vld [vmem:[#allocation10 + $0x1fc8] sm:$0xff]
    %v1878 = vld [vmem:[#allocation10 + $0x1fd0] sm:$0xff]
    %v1879 = vld [vmem:[#allocation10 + $0x1fd8] sm:$0xff]
    %v1880 = vld [vmem:[#allocation10 + $0x1fe0] sm:$0xff]
    %v1881 = vld [vmem:[#allocation10 + $0x1fe8] sm:$0xff]
    %v1882 = vld [vmem:[#allocation10 + $0x1ff0] sm:$0xff]
    %v1883 = vld [vmem:[#allocation10 + $0x1ff8] sm:$0xff]
    %v1884 = vld [vmem:[#allocation11] sm:$0xff]
    %v1886 = vlaneseq
    %v1887 = vshrl.u32 %v1886, 7
    %v1888 = vsub.s32 0, %v1887
    %v1889 = vrot.slane %v1884, %v1888
    %v1890 = vlaneseq
    %v1891 = vshrl.u32 %v1890, 7
    %v1892 = vsub.s32 1, %v1891
    %v1893 = vrot.slane %v1884, %v1892
    %v1894 = vlaneseq
    %v1895 = vshrl.u32 %v1894, 7
    %v1896 = vsub.s32 2, %v1895
    %v1897 = vrot.slane %v1884, %v1896
    %v1898 = vlaneseq
    %v1899 = vshrl.u32 %v1898, 7
    %v1900 = vsub.s32 3, %v1899
    %v1901 = vrot.slane %v1884, %v1900
    %v1902 = vlaneseq
    %v1903 = vshrl.u32 %v1902, 7
    %v1904 = vsub.s32 4, %v1903
    %v1905 = vrot.slane %v1884, %v1904
    %v1906 = vlaneseq
    %v1907 = vshrl.u32 %v1906, 7
    %v1908 = vsub.s32 5, %v1907
    %v1909 = vrot.slane %v1884, %v1908
    %v1910 = vlaneseq
    %v1911 = vshrl.u32 %v1910, 7
    %v1912 = vsub.s32 6, %v1911
    %v1913 = vrot.slane %v1884, %v1912
    %v1914 = vlaneseq
    %v1915 = vshrl.u32 %v1914, 7
    %v1916 = vsub.s32 7, %v1915
    %v1917 = vrot.slane %v1884, %v1916
    %v2950 = vunpack.c.l.b16 %v860
    %v2951 = vunpack.c.h.b16 %v860
    %v2952 = vunpack.c.l.b16 %v861
    %v2953 = vunpack.c.h.b16 %v861
    %v2954 = vunpack.c.l.b16 %v862
    %v2955 = vunpack.c.h.b16 %v862
    %v2956 = vunpack.c.l.b16 %v863
    %v2957 = vunpack.c.h.b16 %v863
    %v2958 = vunpack.c.l.b16 %v864
    %v2959 = vunpack.c.h.b16 %v864
    %v2960 = vunpack.c.l.b16 %v865
    %v2961 = vunpack.c.h.b16 %v865
    %v2962 = vunpack.c.l.b16 %v866
    %v2963 = vunpack.c.h.b16 %v866
    %v2964 = vunpack.c.l.b16 %v867
    %v2965 = vunpack.c.h.b16 %v867
    %v2966 = vunpack.c.l.b16 %v868
    %v2967 = vunpack.c.h.b16 %v868
    %v2968 = vunpack.c.l.b16 %v869
    %v2969 = vunpack.c.h.b16 %v869
    %v2970 = vunpack.c.l.b16 %v870
    %v2971 = vunpack.c.h.b16 %v870
    %v2972 = vunpack.c.l.b16 %v871
    %v2973 = vunpack.c.h.b16 %v871
    %v2974 = vunpack.c.l.b16 %v872
    %v2975 = vunpack.c.h.b16 %v872
    %v2976 = vunpack.c.l.b16 %v873
    %v2977 = vunpack.c.h.b16 %v873
    %v2978 = vunpack.c.l.b16 %v874
    %v2979 = vunpack.c.h.b16 %v874
    %v2980 = vunpack.c.l.b16 %v875
    %v2981 = vunpack.c.h.b16 %v875
    %v2982 = vunpack.c.l.b16 %v876
    %v2983 = vunpack.c.h.b16 %v876
    %v2984 = vunpack.c.l.b16 %v877
    %v2985 = vunpack.c.h.b16 %v877
    %v2986 = vunpack.c.l.b16 %v878
    %v2987 = vunpack.c.h.b16 %v878
    %v2988 = vunpack.c.l.b16 %v879
    %v2989 = vunpack.c.h.b16 %v879
    %v2990 = vunpack.c.l.b16 %v880
    %v2991 = vunpack.c.h.b16 %v880
    %v2992 = vunpack.c.l.b16 %v881
    %v2993 = vunpack.c.h.b16 %v881
    %v2994 = vunpack.c.l.b16 %v882
    %v2995 = vunpack.c.h.b16 %v882
    %v2996 = vunpack.c.l.b16 %v883
    %v2997 = vunpack.c.h.b16 %v883
    %v2998 = vunpack.c.l.b16 %v884
    %v2999 = vunpack.c.h.b16 %v884
    %v3000 = vunpack.c.l.b16 %v885
    %v3001 = vunpack.c.h.b16 %v885
    %v3002 = vunpack.c.l.b16 %v886
    %v3003 = vunpack.c.h.b16 %v886
    %v3004 = vunpack.c.l.b16 %v887
    %v3005 = vunpack.c.h.b16 %v887
    %v3006 = vunpack.c.l.b16 %v888
    %v3007 = vunpack.c.h.b16 %v888
    %v3008 = vunpack.c.l.b16 %v889
    %v3009 = vunpack.c.h.b16 %v889
    %v3010 = vunpack.c.l.b16 %v890
    %v3011 = vunpack.c.h.b16 %v890
    %v3012 = vunpack.c.l.b16 %v891
    %v3013 = vunpack.c.h.b16 %v891
    %v3014 = vunpack.c.l.b16 %v892
    %v3015 = vunpack.c.h.b16 %v892
    %v3016 = vunpack.c.l.b16 %v893
    %v3017 = vunpack.c.h.b16 %v893
    %v3018 = vunpack.c.l.b16 %v894
    %v3019 = vunpack.c.h.b16 %v894
    %v3020 = vunpack.c.l.b16 %v895
    %v3021 = vunpack.c.h.b16 %v895
    %v3022 = vunpack.c.l.b16 %v896
    %v3023 = vunpack.c.h.b16 %v896
    %v3024 = vunpack.c.l.b16 %v897
    %v3025 = vunpack.c.h.b16 %v897
    %v3026 = vunpack.c.l.b16 %v898
    %v3027 = vunpack.c.h.b16 %v898
    %v3028 = vunpack.c.l.b16 %v899
    %v3029 = vunpack.c.h.b16 %v899
    %v3030 = vunpack.c.l.b16 %v900
    %v3031 = vunpack.c.h.b16 %v900
    %v3032 = vunpack.c.l.b16 %v901
    %v3033 = vunpack.c.h.b16 %v901
    %v3034 = vunpack.c.l.b16 %v902
    %v3035 = vunpack.c.h.b16 %v902
    %v3036 = vunpack.c.l.b16 %v903
    %v3037 = vunpack.c.h.b16 %v903
    %v3038 = vunpack.c.l.b16 %v904
    %v3039 = vunpack.c.h.b16 %v904
    %v3040 = vunpack.c.l.b16 %v905
    %v3041 = vunpack.c.h.b16 %v905
    %v3042 = vunpack.c.l.b16 %v906
    %v3043 = vunpack.c.h.b16 %v906
    %v3044 = vunpack.c.l.b16 %v907
    %v3045 = vunpack.c.h.b16 %v907
    %v3046 = vunpack.c.l.b16 %v908
    %v3047 = vunpack.c.h.b16 %v908
    %v3048 = vunpack.c.l.b16 %v909
    %v3049 = vunpack.c.h.b16 %v909
    %v3050 = vunpack.c.l.b16 %v910
    %v3051 = vunpack.c.h.b16 %v910
    %v3052 = vunpack.c.l.b16 %v911
    %v3053 = vunpack.c.h.b16 %v911
    %v3054 = vunpack.c.l.b16 %v912
    %v3055 = vunpack.c.h.b16 %v912
    %v3056 = vunpack.c.l.b16 %v913
    %v3057 = vunpack.c.h.b16 %v913
    %v3058 = vunpack.c.l.b16 %v914
    %v3059 = vunpack.c.h.b16 %v914
    %v3060 = vunpack.c.l.b16 %v915
    %v3061 = vunpack.c.h.b16 %v915
    %v3062 = vunpack.c.l.b16 %v916
    %v3063 = vunpack.c.h.b16 %v916
    %v3064 = vunpack.c.l.b16 %v917
    %v3065 = vunpack.c.h.b16 %v917
    %v3066 = vunpack.c.l.b16 %v918
    %v3067 = vunpack.c.h.b16 %v918
    %v3068 = vunpack.c.l.b16 %v919
    %v3069 = vunpack.c.h.b16 %v919
    %v3070 = vunpack.c.l.b16 %v920
    %v3071 = vunpack.c.h.b16 %v920
    %v3072 = vunpack.c.l.b16 %v921
    %v3073 = vunpack.c.h.b16 %v921
    %v3074 = vunpack.c.l.b16 %v922
    %v3075 = vunpack.c.h.b16 %v922
    %v3076 = vunpack.c.l.b16 %v923
    %v3077 = vunpack.c.h.b16 %v923
    %v3078 = vunpack.c.l.b16 %v924
    %v3079 = vunpack.c.h.b16 %v924
    %v3080 = vunpack.c.l.b16 %v925
    %v3081 = vunpack.c.h.b16 %v925
    %v3082 = vunpack.c.l.b16 %v926
    %v3083 = vunpack.c.h.b16 %v926
    %v3084 = vunpack.c.l.b16 %v927
    %v3085 = vunpack.c.h.b16 %v927
    %v3086 = vunpack.c.l.b16 %v928
    %v3087 = vunpack.c.h.b16 %v928
    %v3088 = vunpack.c.l.b16 %v929
    %v3089 = vunpack.c.h.b16 %v929
    %v3090 = vunpack.c.l.b16 %v930
    %v3091 = vunpack.c.h.b16 %v930
    %v3092 = vunpack.c.l.b16 %v931
    %v3093 = vunpack.c.h.b16 %v931
    %v3094 = vunpack.c.l.b16 %v932
    %v3095 = vunpack.c.h.b16 %v932
    %v3096 = vunpack.c.l.b16 %v933
    %v3097 = vunpack.c.h.b16 %v933
    %v3098 = vunpack.c.l.b16 %v934
    %v3099 = vunpack.c.h.b16 %v934
    %v3100 = vunpack.c.l.b16 %v935
    %v3101 = vunpack.c.h.b16 %v935
    %v3102 = vunpack.c.l.b16 %v936
    %v3103 = vunpack.c.h.b16 %v936
    %v3104 = vunpack.c.l.b16 %v937
    %v3105 = vunpack.c.h.b16 %v937
    %v3106 = vunpack.c.l.b16 %v938
    %v3107 = vunpack.c.h.b16 %v938
    %v3108 = vunpack.c.l.b16 %v939
    %v3109 = vunpack.c.h.b16 %v939
    %v3110 = vunpack.c.l.b16 %v940
    %v3111 = vunpack.c.h.b16 %v940
    %v3112 = vunpack.c.l.b16 %v941
    %v3113 = vunpack.c.h.b16 %v941
    %v3114 = vunpack.c.l.b16 %v942
    %v3115 = vunpack.c.h.b16 %v942
    %v3116 = vunpack.c.l.b16 %v943
    %v3117 = vunpack.c.h.b16 %v943
    %v3118 = vunpack.c.l.b16 %v944
    %v3119 = vunpack.c.h.b16 %v944
    %v3120 = vunpack.c.l.b16 %v945
    %v3121 = vunpack.c.h.b16 %v945
    %v3122 = vunpack.c.l.b16 %v946
    %v3123 = vunpack.c.h.b16 %v946
    %v3124 = vunpack.c.l.b16 %v947
    %v3125 = vunpack.c.h.b16 %v947
    %v3126 = vunpack.c.l.b16 %v948
    %v3127 = vunpack.c.h.b16 %v948
    %v3128 = vunpack.c.l.b16 %v949
    %v3129 = vunpack.c.h.b16 %v949
    %v3130 = vunpack.c.l.b16 %v950
    %v3131 = vunpack.c.h.b16 %v950
    %v3132 = vunpack.c.l.b16 %v951
    %v3133 = vunpack.c.h.b16 %v951
    %v3134 = vunpack.c.l.b16 %v952
    %v3135 = vunpack.c.h.b16 %v952
    %v3136 = vunpack.c.l.b16 %v953
    %v3137 = vunpack.c.h.b16 %v953
    %v3138 = vunpack.c.l.b16 %v954
    %v3139 = vunpack.c.h.b16 %v954
    %v3140 = vunpack.c.l.b16 %v955
    %v3141 = vunpack.c.h.b16 %v955
    %v3142 = vunpack.c.l.b16 %v956
    %v3143 = vunpack.c.h.b16 %v956
    %v3144 = vunpack.c.l.b16 %v957
    %v3145 = vunpack.c.h.b16 %v957
    %v3146 = vunpack.c.l.b16 %v958
    %v3147 = vunpack.c.h.b16 %v958
    %v3148 = vunpack.c.l.b16 %v959
    %v3149 = vunpack.c.h.b16 %v959
    %v3150 = vunpack.c.l.b16 %v960
    %v3151 = vunpack.c.h.b16 %v960
    %v3152 = vunpack.c.l.b16 %v961
    %v3153 = vunpack.c.h.b16 %v961
    %v3154 = vunpack.c.l.b16 %v962
    %v3155 = vunpack.c.h.b16 %v962
    %v3156 = vunpack.c.l.b16 %v963
    %v3157 = vunpack.c.h.b16 %v963
    %v3158 = vunpack.c.l.b16 %v964
    %v3159 = vunpack.c.h.b16 %v964
    %v3160 = vunpack.c.l.b16 %v965
    %v3161 = vunpack.c.h.b16 %v965
    %v3162 = vunpack.c.l.b16 %v966
    %v3163 = vunpack.c.h.b16 %v966
    %v3164 = vunpack.c.l.b16 %v967
    %v3165 = vunpack.c.h.b16 %v967
    %v3166 = vunpack.c.l.b16 %v968
    %v3167 = vunpack.c.h.b16 %v968
    %v3168 = vunpack.c.l.b16 %v969
    %v3169 = vunpack.c.h.b16 %v969
    %v3170 = vunpack.c.l.b16 %v970
    %v3171 = vunpack.c.h.b16 %v970
    %v3172 = vunpack.c.l.b16 %v971
    %v3173 = vunpack.c.h.b16 %v971
    %v3174 = vunpack.c.l.b16 %v972
    %v3175 = vunpack.c.h.b16 %v972
    %v3176 = vunpack.c.l.b16 %v973
    %v3177 = vunpack.c.h.b16 %v973
    %v3178 = vunpack.c.l.b16 %v974
    %v3179 = vunpack.c.h.b16 %v974
    %v3180 = vunpack.c.l.b16 %v975
    %v3181 = vunpack.c.h.b16 %v975
    %v3182 = vunpack.c.l.b16 %v976
    %v3183 = vunpack.c.h.b16 %v976
    %v3184 = vunpack.c.l.b16 %v977
    %v3185 = vunpack.c.h.b16 %v977
    %v3186 = vunpack.c.l.b16 %v978
    %v3187 = vunpack.c.h.b16 %v978
    %v3188 = vunpack.c.l.b16 %v979
    %v3189 = vunpack.c.h.b16 %v979
    %v3190 = vunpack.c.l.b16 %v980
    %v3191 = vunpack.c.h.b16 %v980
    %v3192 = vunpack.c.l.b16 %v981
    %v3193 = vunpack.c.h.b16 %v981
    %v3194 = vunpack.c.l.b16 %v982
    %v3195 = vunpack.c.h.b16 %v982
    %v3196 = vunpack.c.l.b16 %v983
    %v3197 = vunpack.c.h.b16 %v983
    %v3198 = vunpack.c.l.b16 %v984
    %v3199 = vunpack.c.h.b16 %v984
    %v3200 = vunpack.c.l.b16 %v985
    %v3201 = vunpack.c.h.b16 %v985
    %v3202 = vunpack.c.l.b16 %v986
    %v3203 = vunpack.c.h.b16 %v986
    %v3204 = vunpack.c.l.b16 %v987
    %v3205 = vunpack.c.h.b16 %v987
    %v3206 = vunpack.c.l.b16 %v988
    %v3207 = vunpack.c.h.b16 %v988
    %v3208 = vunpack.c.l.b16 %v989
    %v3209 = vunpack.c.h.b16 %v989
    %v3210 = vunpack.c.l.b16 %v990
    %v3211 = vunpack.c.h.b16 %v990
    %v3212 = vunpack.c.l.b16 %v991
    %v3213 = vunpack.c.h.b16 %v991
    %v3214 = vunpack.c.l.b16 %v992
    %v3215 = vunpack.c.h.b16 %v992
    %v3216 = vunpack.c.l.b16 %v993
    %v3217 = vunpack.c.h.b16 %v993
    %v3218 = vunpack.c.l.b16 %v994
    %v3219 = vunpack.c.h.b16 %v994
    %v3220 = vunpack.c.l.b16 %v995
    %v3221 = vunpack.c.h.b16 %v995
    %v3222 = vunpack.c.l.b16 %v996
    %v3223 = vunpack.c.h.b16 %v996
    %v3224 = vunpack.c.l.b16 %v997
    %v3225 = vunpack.c.h.b16 %v997
    %v3226 = vunpack.c.l.b16 %v998
    %v3227 = vunpack.c.h.b16 %v998
    %v3228 = vunpack.c.l.b16 %v999
    %v3229 = vunpack.c.h.b16 %v999
    %v3230 = vunpack.c.l.b16 %v1000
    %v3231 = vunpack.c.h.b16 %v1000
    %v3232 = vunpack.c.l.b16 %v1001
    %v3233 = vunpack.c.h.b16 %v1001
    %v3234 = vunpack.c.l.b16 %v1002
    %v3235 = vunpack.c.h.b16 %v1002
    %v3236 = vunpack.c.l.b16 %v1003
    %v3237 = vunpack.c.h.b16 %v1003
    %v3238 = vunpack.c.l.b16 %v1004
    %v3239 = vunpack.c.h.b16 %v1004
    %v3240 = vunpack.c.l.b16 %v1005
    %v3241 = vunpack.c.h.b16 %v1005
    %v3242 = vunpack.c.l.b16 %v1006
    %v3243 = vunpack.c.h.b16 %v1006
    %v3244 = vunpack.c.l.b16 %v1007
    %v3245 = vunpack.c.h.b16 %v1007
    %v3246 = vunpack.c.l.b16 %v1008
    %v3247 = vunpack.c.h.b16 %v1008
    %v3248 = vunpack.c.l.b16 %v1009
    %v3249 = vunpack.c.h.b16 %v1009
    %v3250 = vunpack.c.l.b16 %v1010
    %v3251 = vunpack.c.h.b16 %v1010
    %v3252 = vunpack.c.l.b16 %v1011
    %v3253 = vunpack.c.h.b16 %v1011
    %v3254 = vunpack.c.l.b16 %v1012
    %v3255 = vunpack.c.h.b16 %v1012
    %v3256 = vunpack.c.l.b16 %v1013
    %v3257 = vunpack.c.h.b16 %v1013
    %v3258 = vunpack.c.l.b16 %v1014
    %v3259 = vunpack.c.h.b16 %v1014
    %v3260 = vunpack.c.l.b16 %v1015
    %v3261 = vunpack.c.h.b16 %v1015
    %v3262 = vunpack.c.l.b16 %v1016
    %v3263 = vunpack.c.h.b16 %v1016
    %v3264 = vunpack.c.l.b16 %v1017
    %v3265 = vunpack.c.h.b16 %v1017
    %v3266 = vunpack.c.l.b16 %v1018
    %v3267 = vunpack.c.h.b16 %v1018
    %v3268 = vunpack.c.l.b16 %v1019
    %v3269 = vunpack.c.h.b16 %v1019
    %v3270 = vunpack.c.l.b16 %v1020
    %v3271 = vunpack.c.h.b16 %v1020
    %v3272 = vunpack.c.l.b16 %v1021
    %v3273 = vunpack.c.h.b16 %v1021
    %v3274 = vunpack.c.l.b16 %v1022
    %v3275 = vunpack.c.h.b16 %v1022
    %v3276 = vunpack.c.l.b16 %v1023
    %v3277 = vunpack.c.h.b16 %v1023
    %v3278 = vunpack.c.l.b16 %v1024
    %v3279 = vunpack.c.h.b16 %v1024
    %v3280 = vunpack.c.l.b16 %v1025
    %v3281 = vunpack.c.h.b16 %v1025
    %v3282 = vunpack.c.l.b16 %v1026
    %v3283 = vunpack.c.h.b16 %v1026
    %v3284 = vunpack.c.l.b16 %v1027
    %v3285 = vunpack.c.h.b16 %v1027
    %v3286 = vunpack.c.l.b16 %v1028
    %v3287 = vunpack.c.h.b16 %v1028
    %v3288 = vunpack.c.l.b16 %v1029
    %v3289 = vunpack.c.h.b16 %v1029
    %v3290 = vunpack.c.l.b16 %v1030
    %v3291 = vunpack.c.h.b16 %v1030
    %v3292 = vunpack.c.l.b16 %v1031
    %v3293 = vunpack.c.h.b16 %v1031
    %v3294 = vunpack.c.l.b16 %v1032
    %v3295 = vunpack.c.h.b16 %v1032
    %v3296 = vunpack.c.l.b16 %v1033
    %v3297 = vunpack.c.h.b16 %v1033
    %v3298 = vunpack.c.l.b16 %v1034
    %v3299 = vunpack.c.h.b16 %v1034
    %v3300 = vunpack.c.l.b16 %v1035
    %v3301 = vunpack.c.h.b16 %v1035
    %v3302 = vunpack.c.l.b16 %v1036
    %v3303 = vunpack.c.h.b16 %v1036
    %v3304 = vunpack.c.l.b16 %v1037
    %v3305 = vunpack.c.h.b16 %v1037
    %v3306 = vunpack.c.l.b16 %v1038
    %v3307 = vunpack.c.h.b16 %v1038
    %v3308 = vunpack.c.l.b16 %v1039
    %v3309 = vunpack.c.h.b16 %v1039
    %v3310 = vunpack.c.l.b16 %v1040
    %v3311 = vunpack.c.h.b16 %v1040
    %v3312 = vunpack.c.l.b16 %v1041
    %v3313 = vunpack.c.h.b16 %v1041
    %v3314 = vunpack.c.l.b16 %v1042
    %v3315 = vunpack.c.h.b16 %v1042
    %v3316 = vunpack.c.l.b16 %v1043
    %v3317 = vunpack.c.h.b16 %v1043
    %v3318 = vunpack.c.l.b16 %v1044
    %v3319 = vunpack.c.h.b16 %v1044
    %v3320 = vunpack.c.l.b16 %v1045
    %v3321 = vunpack.c.h.b16 %v1045
    %v3322 = vunpack.c.l.b16 %v1046
    %v3323 = vunpack.c.h.b16 %v1046
    %v3324 = vunpack.c.l.b16 %v1047
    %v3325 = vunpack.c.h.b16 %v1047
    %v3326 = vunpack.c.l.b16 %v1048
    %v3327 = vunpack.c.h.b16 %v1048
    %v3328 = vunpack.c.l.b16 %v1049
    %v3329 = vunpack.c.h.b16 %v1049
    %v3330 = vunpack.c.l.b16 %v1050
    %v3331 = vunpack.c.h.b16 %v1050
    %v3332 = vunpack.c.l.b16 %v1051
    %v3333 = vunpack.c.h.b16 %v1051
    %v3334 = vunpack.c.l.b16 %v1052
    %v3335 = vunpack.c.h.b16 %v1052
    %v3336 = vunpack.c.l.b16 %v1053
    %v3337 = vunpack.c.h.b16 %v1053
    %v3338 = vunpack.c.l.b16 %v1054
    %v3339 = vunpack.c.h.b16 %v1054
    %v3340 = vunpack.c.l.b16 %v1055
    %v3341 = vunpack.c.h.b16 %v1055
    %v3342 = vunpack.c.l.b16 %v1056
    %v3343 = vunpack.c.h.b16 %v1056
    %v3344 = vunpack.c.l.b16 %v1057
    %v3345 = vunpack.c.h.b16 %v1057
    %v3346 = vunpack.c.l.b16 %v1058
    %v3347 = vunpack.c.h.b16 %v1058
    %v3348 = vunpack.c.l.b16 %v1059
    %v3349 = vunpack.c.h.b16 %v1059
    %v3350 = vunpack.c.l.b16 %v1060
    %v3351 = vunpack.c.h.b16 %v1060
    %v3352 = vunpack.c.l.b16 %v1061
    %v3353 = vunpack.c.h.b16 %v1061
    %v3354 = vunpack.c.l.b16 %v1062
    %v3355 = vunpack.c.h.b16 %v1062
    %v3356 = vunpack.c.l.b16 %v1063
    %v3357 = vunpack.c.h.b16 %v1063
    %v3358 = vunpack.c.l.b16 %v1064
    %v3359 = vunpack.c.h.b16 %v1064
    %v3360 = vunpack.c.l.b16 %v1065
    %v3361 = vunpack.c.h.b16 %v1065
    %v3362 = vunpack.c.l.b16 %v1066
    %v3363 = vunpack.c.h.b16 %v1066
    %v3364 = vunpack.c.l.b16 %v1067
    %v3365 = vunpack.c.h.b16 %v1067
    %v3366 = vunpack.c.l.b16 %v1068
    %v3367 = vunpack.c.h.b16 %v1068
    %v3368 = vunpack.c.l.b16 %v1069
    %v3369 = vunpack.c.h.b16 %v1069
    %v3370 = vunpack.c.l.b16 %v1070
    %v3371 = vunpack.c.h.b16 %v1070
    %v3372 = vunpack.c.l.b16 %v1071
    %v3373 = vunpack.c.h.b16 %v1071
    %v3374 = vunpack.c.l.b16 %v1072
    %v3375 = vunpack.c.h.b16 %v1072
    %v3376 = vunpack.c.l.b16 %v1073
    %v3377 = vunpack.c.h.b16 %v1073
    %v3378 = vunpack.c.l.b16 %v1074
    %v3379 = vunpack.c.h.b16 %v1074
    %v3380 = vunpack.c.l.b16 %v1075
    %v3381 = vunpack.c.h.b16 %v1075
    %v3382 = vunpack.c.l.b16 %v1076
    %v3383 = vunpack.c.h.b16 %v1076
    %v3384 = vunpack.c.l.b16 %v1077
    %v3385 = vunpack.c.h.b16 %v1077
    %v3386 = vunpack.c.l.b16 %v1078
    %v3387 = vunpack.c.h.b16 %v1078
    %v3388 = vunpack.c.l.b16 %v1079
    %v3389 = vunpack.c.h.b16 %v1079
    %v3390 = vunpack.c.l.b16 %v1080
    %v3391 = vunpack.c.h.b16 %v1080
    %v3392 = vunpack.c.l.b16 %v1081
    %v3393 = vunpack.c.h.b16 %v1081
    %v3394 = vunpack.c.l.b16 %v1082
    %v3395 = vunpack.c.h.b16 %v1082
    %v3396 = vunpack.c.l.b16 %v1083
    %v3397 = vunpack.c.h.b16 %v1083
    %v3398 = vunpack.c.l.b16 %v1084
    %v3399 = vunpack.c.h.b16 %v1084
    %v3400 = vunpack.c.l.b16 %v1085
    %v3401 = vunpack.c.h.b16 %v1085
    %v3402 = vunpack.c.l.b16 %v1086
    %v3403 = vunpack.c.h.b16 %v1086
    %v3404 = vunpack.c.l.b16 %v1087
    %v3405 = vunpack.c.h.b16 %v1087
    %v3406 = vunpack.c.l.b16 %v1088
    %v3407 = vunpack.c.h.b16 %v1088
    %v3408 = vunpack.c.l.b16 %v1089
    %v3409 = vunpack.c.h.b16 %v1089
    %v3410 = vunpack.c.l.b16 %v1090
    %v3411 = vunpack.c.h.b16 %v1090
    %v3412 = vunpack.c.l.b16 %v1091
    %v3413 = vunpack.c.h.b16 %v1091
    %v3414 = vunpack.c.l.b16 %v1092
    %v3415 = vunpack.c.h.b16 %v1092
    %v3416 = vunpack.c.l.b16 %v1093
    %v3417 = vunpack.c.h.b16 %v1093
    %v3418 = vunpack.c.l.b16 %v1094
    %v3419 = vunpack.c.h.b16 %v1094
    %v3420 = vunpack.c.l.b16 %v1095
    %v3421 = vunpack.c.h.b16 %v1095
    %v3422 = vunpack.c.l.b16 %v1096
    %v3423 = vunpack.c.h.b16 %v1096
    %v3424 = vunpack.c.l.b16 %v1097
    %v3425 = vunpack.c.h.b16 %v1097
    %v3426 = vunpack.c.l.b16 %v1098
    %v3427 = vunpack.c.h.b16 %v1098
    %v3428 = vunpack.c.l.b16 %v1099
    %v3429 = vunpack.c.h.b16 %v1099
    %v3430 = vunpack.c.l.b16 %v1100
    %v3431 = vunpack.c.h.b16 %v1100
    %v3432 = vunpack.c.l.b16 %v1101
    %v3433 = vunpack.c.h.b16 %v1101
    %v3434 = vunpack.c.l.b16 %v1102
    %v3435 = vunpack.c.h.b16 %v1102
    %v3436 = vunpack.c.l.b16 %v1103
    %v3437 = vunpack.c.h.b16 %v1103
    %v3438 = vunpack.c.l.b16 %v1104
    %v3439 = vunpack.c.h.b16 %v1104
    %v3440 = vunpack.c.l.b16 %v1105
    %v3441 = vunpack.c.h.b16 %v1105
    %v3442 = vunpack.c.l.b16 %v1106
    %v3443 = vunpack.c.h.b16 %v1106
    %v3444 = vunpack.c.l.b16 %v1107
    %v3445 = vunpack.c.h.b16 %v1107
    %v3446 = vunpack.c.l.b16 %v1108
    %v3447 = vunpack.c.h.b16 %v1108
    %v3448 = vunpack.c.l.b16 %v1109
    %v3449 = vunpack.c.h.b16 %v1109
    %v3450 = vunpack.c.l.b16 %v1110
    %v3451 = vunpack.c.h.b16 %v1110
    %v3452 = vunpack.c.l.b16 %v1111
    %v3453 = vunpack.c.h.b16 %v1111
    %v3454 = vunpack.c.l.b16 %v1112
    %v3455 = vunpack.c.h.b16 %v1112
    %v3456 = vunpack.c.l.b16 %v1113
    %v3457 = vunpack.c.h.b16 %v1113
    %v3458 = vunpack.c.l.b16 %v1114
    %v3459 = vunpack.c.h.b16 %v1114
    %v3460 = vunpack.c.l.b16 %v1115
    %v3461 = vunpack.c.h.b16 %v1115
    %v3462 = vunpack.c.l.b16 %v1116
    %v3463 = vunpack.c.h.b16 %v1116
    %v3464 = vunpack.c.l.b16 %v1117
    %v3465 = vunpack.c.h.b16 %v1117
    %v3466 = vunpack.c.l.b16 %v1118
    %v3467 = vunpack.c.h.b16 %v1118
    %v3468 = vunpack.c.l.b16 %v1119
    %v3469 = vunpack.c.h.b16 %v1119
    %v3470 = vunpack.c.l.b16 %v1120
    %v3471 = vunpack.c.h.b16 %v1120
    %v3472 = vunpack.c.l.b16 %v1121
    %v3473 = vunpack.c.h.b16 %v1121
    %v3474 = vunpack.c.l.b16 %v1122
    %v3475 = vunpack.c.h.b16 %v1122
    %v3476 = vunpack.c.l.b16 %v1123
    %v3477 = vunpack.c.h.b16 %v1123
    %v3478 = vunpack.c.l.b16 %v1124
    %v3479 = vunpack.c.h.b16 %v1124
    %v3480 = vunpack.c.l.b16 %v1125
    %v3481 = vunpack.c.h.b16 %v1125
    %v3482 = vunpack.c.l.b16 %v1126
    %v3483 = vunpack.c.h.b16 %v1126
    %v3484 = vunpack.c.l.b16 %v1127
    %v3485 = vunpack.c.h.b16 %v1127
    %v3486 = vunpack.c.l.b16 %v1128
    %v3487 = vunpack.c.h.b16 %v1128
    %v3488 = vunpack.c.l.b16 %v1129
    %v3489 = vunpack.c.h.b16 %v1129
    %v3490 = vunpack.c.l.b16 %v1130
    %v3491 = vunpack.c.h.b16 %v1130
    %v3492 = vunpack.c.l.b16 %v1131
    %v3493 = vunpack.c.h.b16 %v1131
    %v3494 = vunpack.c.l.b16 %v1132
    %v3495 = vunpack.c.h.b16 %v1132
    %v3496 = vunpack.c.l.b16 %v1133
    %v3497 = vunpack.c.h.b16 %v1133
    %v3498 = vunpack.c.l.b16 %v1134
    %v3499 = vunpack.c.h.b16 %v1134
    %v3500 = vunpack.c.l.b16 %v1135
    %v3501 = vunpack.c.h.b16 %v1135
    %v3502 = vunpack.c.l.b16 %v1136
    %v3503 = vunpack.c.h.b16 %v1136
    %v3504 = vunpack.c.l.b16 %v1137
    %v3505 = vunpack.c.h.b16 %v1137
    %v3506 = vunpack.c.l.b16 %v1138
    %v3507 = vunpack.c.h.b16 %v1138
    %v3508 = vunpack.c.l.b16 %v1139
    %v3509 = vunpack.c.h.b16 %v1139
    %v3510 = vunpack.c.l.b16 %v1140
    %v3511 = vunpack.c.h.b16 %v1140
    %v3512 = vunpack.c.l.b16 %v1141
    %v3513 = vunpack.c.h.b16 %v1141
    %v3514 = vunpack.c.l.b16 %v1142
    %v3515 = vunpack.c.h.b16 %v1142
    %v3516 = vunpack.c.l.b16 %v1143
    %v3517 = vunpack.c.h.b16 %v1143
    %v3518 = vunpack.c.l.b16 %v1144
    %v3519 = vunpack.c.h.b16 %v1144
    %v3520 = vunpack.c.l.b16 %v1145
    %v3521 = vunpack.c.h.b16 %v1145
    %v3522 = vunpack.c.l.b16 %v1146
    %v3523 = vunpack.c.h.b16 %v1146
    %v3524 = vunpack.c.l.b16 %v1147
    %v3525 = vunpack.c.h.b16 %v1147
    %v3526 = vunpack.c.l.b16 %v1148
    %v3527 = vunpack.c.h.b16 %v1148
    %v3528 = vunpack.c.l.b16 %v1149
    %v3529 = vunpack.c.h.b16 %v1149
    %v3530 = vunpack.c.l.b16 %v1150
    %v3531 = vunpack.c.h.b16 %v1150
    %v3532 = vunpack.c.l.b16 %v1151
    %v3533 = vunpack.c.h.b16 %v1151
    %v3534 = vunpack.c.l.b16 %v1152
    %v3535 = vunpack.c.h.b16 %v1152
    %v3536 = vunpack.c.l.b16 %v1153
    %v3537 = vunpack.c.h.b16 %v1153
    %v3538 = vunpack.c.l.b16 %v1154
    %v3539 = vunpack.c.h.b16 %v1154
    %v3540 = vunpack.c.l.b16 %v1155
    %v3541 = vunpack.c.h.b16 %v1155
    %v3542 = vunpack.c.l.b16 %v1156
    %v3543 = vunpack.c.h.b16 %v1156
    %v3544 = vunpack.c.l.b16 %v1157
    %v3545 = vunpack.c.h.b16 %v1157
    %v3546 = vunpack.c.l.b16 %v1158
    %v3547 = vunpack.c.h.b16 %v1158
    %v3548 = vunpack.c.l.b16 %v1159
    %v3549 = vunpack.c.h.b16 %v1159
    %v3550 = vunpack.c.l.b16 %v1160
    %v3551 = vunpack.c.h.b16 %v1160
    %v3552 = vunpack.c.l.b16 %v1161
    %v3553 = vunpack.c.h.b16 %v1161
    %v3554 = vunpack.c.l.b16 %v1162
    %v3555 = vunpack.c.h.b16 %v1162
    %v3556 = vunpack.c.l.b16 %v1163
    %v3557 = vunpack.c.h.b16 %v1163
    %v3558 = vunpack.c.l.b16 %v1164
    %v3559 = vunpack.c.h.b16 %v1164
    %v3560 = vunpack.c.l.b16 %v1165
    %v3561 = vunpack.c.h.b16 %v1165
    %v3562 = vunpack.c.l.b16 %v1166
    %v3563 = vunpack.c.h.b16 %v1166
    %v3564 = vunpack.c.l.b16 %v1167
    %v3565 = vunpack.c.h.b16 %v1167
    %v3566 = vunpack.c.l.b16 %v1168
    %v3567 = vunpack.c.h.b16 %v1168
    %v3568 = vunpack.c.l.b16 %v1169
    %v3569 = vunpack.c.h.b16 %v1169
    %v3570 = vunpack.c.l.b16 %v1170
    %v3571 = vunpack.c.h.b16 %v1170
    %v3572 = vunpack.c.l.b16 %v1171
    %v3573 = vunpack.c.h.b16 %v1171
    %v3574 = vunpack.c.l.b16 %v1172
    %v3575 = vunpack.c.h.b16 %v1172
    %v3576 = vunpack.c.l.b16 %v1173
    %v3577 = vunpack.c.h.b16 %v1173
    %v3578 = vunpack.c.l.b16 %v1174
    %v3579 = vunpack.c.h.b16 %v1174
    %v3580 = vunpack.c.l.b16 %v1175
    %v3581 = vunpack.c.h.b16 %v1175
    %v3582 = vunpack.c.l.b16 %v1176
    %v3583 = vunpack.c.h.b16 %v1176
    %v3584 = vunpack.c.l.b16 %v1177
    %v3585 = vunpack.c.h.b16 %v1177
    %v3586 = vunpack.c.l.b16 %v1178
    %v3587 = vunpack.c.h.b16 %v1178
    %v3588 = vunpack.c.l.b16 %v1179
    %v3589 = vunpack.c.h.b16 %v1179
    %v3590 = vunpack.c.l.b16 %v1180
    %v3591 = vunpack.c.h.b16 %v1180
    %v3592 = vunpack.c.l.b16 %v1181
    %v3593 = vunpack.c.h.b16 %v1181
    %v3594 = vunpack.c.l.b16 %v1182
    %v3595 = vunpack.c.h.b16 %v1182
    %v3596 = vunpack.c.l.b16 %v1183
    %v3597 = vunpack.c.h.b16 %v1183
    %v3598 = vunpack.c.l.b16 %v1184
    %v3599 = vunpack.c.h.b16 %v1184
    %v3600 = vunpack.c.l.b16 %v1185
    %v3601 = vunpack.c.h.b16 %v1185
    %v3602 = vunpack.c.l.b16 %v1186
    %v3603 = vunpack.c.h.b16 %v1186
    %v3604 = vunpack.c.l.b16 %v1187
    %v3605 = vunpack.c.h.b16 %v1187
    %v3606 = vunpack.c.l.b16 %v1188
    %v3607 = vunpack.c.h.b16 %v1188
    %v3608 = vunpack.c.l.b16 %v1189
    %v3609 = vunpack.c.h.b16 %v1189
    %v3610 = vunpack.c.l.b16 %v1190
    %v3611 = vunpack.c.h.b16 %v1190
    %v3612 = vunpack.c.l.b16 %v1191
    %v3613 = vunpack.c.h.b16 %v1191
    %v3614 = vunpack.c.l.b16 %v1192
    %v3615 = vunpack.c.h.b16 %v1192
    %v3616 = vunpack.c.l.b16 %v1193
    %v3617 = vunpack.c.h.b16 %v1193
    %v3618 = vunpack.c.l.b16 %v1194
    %v3619 = vunpack.c.h.b16 %v1194
    %v3620 = vunpack.c.l.b16 %v1195
    %v3621 = vunpack.c.h.b16 %v1195
    %v3622 = vunpack.c.l.b16 %v1196
    %v3623 = vunpack.c.h.b16 %v1196
    %v3624 = vunpack.c.l.b16 %v1197
    %v3625 = vunpack.c.h.b16 %v1197
    %v3626 = vunpack.c.l.b16 %v1198
    %v3627 = vunpack.c.h.b16 %v1198
    %v3628 = vunpack.c.l.b16 %v1199
    %v3629 = vunpack.c.h.b16 %v1199
    %v3630 = vunpack.c.l.b16 %v1200
    %v3631 = vunpack.c.h.b16 %v1200
    %v3632 = vunpack.c.l.b16 %v1201
    %v3633 = vunpack.c.h.b16 %v1201
    %v3634 = vunpack.c.l.b16 %v1202
    %v3635 = vunpack.c.h.b16 %v1202
    %v3636 = vunpack.c.l.b16 %v1203
    %v3637 = vunpack.c.h.b16 %v1203
    %v3638 = vunpack.c.l.b16 %v1204
    %v3639 = vunpack.c.h.b16 %v1204
    %v3640 = vunpack.c.l.b16 %v1205
    %v3641 = vunpack.c.h.b16 %v1205
    %v3642 = vunpack.c.l.b16 %v1206
    %v3643 = vunpack.c.h.b16 %v1206
    %v3644 = vunpack.c.l.b16 %v1207
    %v3645 = vunpack.c.h.b16 %v1207
    %v3646 = vunpack.c.l.b16 %v1208
    %v3647 = vunpack.c.h.b16 %v1208
    %v3648 = vunpack.c.l.b16 %v1209
    %v3649 = vunpack.c.h.b16 %v1209
    %v3650 = vunpack.c.l.b16 %v1210
    %v3651 = vunpack.c.h.b16 %v1210
    %v3652 = vunpack.c.l.b16 %v1211
    %v3653 = vunpack.c.h.b16 %v1211
    %v3654 = vunpack.c.l.b16 %v1212
    %v3655 = vunpack.c.h.b16 %v1212
    %v3656 = vunpack.c.l.b16 %v1213
    %v3657 = vunpack.c.h.b16 %v1213
    %v3658 = vunpack.c.l.b16 %v1214
    %v3659 = vunpack.c.h.b16 %v1214
    %v3660 = vunpack.c.l.b16 %v1215
    %v3661 = vunpack.c.h.b16 %v1215
    %v3662 = vunpack.c.l.b16 %v1216
    %v3663 = vunpack.c.h.b16 %v1216
    %v3664 = vunpack.c.l.b16 %v1217
    %v3665 = vunpack.c.h.b16 %v1217
    %v3666 = vunpack.c.l.b16 %v1218
    %v3667 = vunpack.c.h.b16 %v1218
    %v3668 = vunpack.c.l.b16 %v1219
    %v3669 = vunpack.c.h.b16 %v1219
    %v3670 = vunpack.c.l.b16 %v1220
    %v3671 = vunpack.c.h.b16 %v1220
    %v3672 = vunpack.c.l.b16 %v1221
    %v3673 = vunpack.c.h.b16 %v1221
    %v3674 = vunpack.c.l.b16 %v1222
    %v3675 = vunpack.c.h.b16 %v1222
    %v3676 = vunpack.c.l.b16 %v1223
    %v3677 = vunpack.c.h.b16 %v1223
    %v3678 = vunpack.c.l.b16 %v1224
    %v3679 = vunpack.c.h.b16 %v1224
    %v3680 = vunpack.c.l.b16 %v1225
    %v3681 = vunpack.c.h.b16 %v1225
    %v3682 = vunpack.c.l.b16 %v1226
    %v3683 = vunpack.c.h.b16 %v1226
    %v3684 = vunpack.c.l.b16 %v1227
    %v3685 = vunpack.c.h.b16 %v1227
    %v3686 = vunpack.c.l.b16 %v1228
    %v3687 = vunpack.c.h.b16 %v1228
    %v3688 = vunpack.c.l.b16 %v1229
    %v3689 = vunpack.c.h.b16 %v1229
    %v3690 = vunpack.c.l.b16 %v1230
    %v3691 = vunpack.c.h.b16 %v1230
    %v3692 = vunpack.c.l.b16 %v1231
    %v3693 = vunpack.c.h.b16 %v1231
    %v3694 = vunpack.c.l.b16 %v1232
    %v3695 = vunpack.c.h.b16 %v1232
    %v3696 = vunpack.c.l.b16 %v1233
    %v3697 = vunpack.c.h.b16 %v1233
    %v3698 = vunpack.c.l.b16 %v1234
    %v3699 = vunpack.c.h.b16 %v1234
    %v3700 = vunpack.c.l.b16 %v1235
    %v3701 = vunpack.c.h.b16 %v1235
    %v3702 = vunpack.c.l.b16 %v1236
    %v3703 = vunpack.c.h.b16 %v1236
    %v3704 = vunpack.c.l.b16 %v1237
    %v3705 = vunpack.c.h.b16 %v1237
    %v3706 = vunpack.c.l.b16 %v1238
    %v3707 = vunpack.c.h.b16 %v1238
    %v3708 = vunpack.c.l.b16 %v1239
    %v3709 = vunpack.c.h.b16 %v1239
    %v3710 = vunpack.c.l.b16 %v1240
    %v3711 = vunpack.c.h.b16 %v1240
    %v3712 = vunpack.c.l.b16 %v1241
    %v3713 = vunpack.c.h.b16 %v1241
    %v3714 = vunpack.c.l.b16 %v1242
    %v3715 = vunpack.c.h.b16 %v1242
    %v3716 = vunpack.c.l.b16 %v1243
    %v3717 = vunpack.c.h.b16 %v1243
    %v3718 = vunpack.c.l.b16 %v1244
    %v3719 = vunpack.c.h.b16 %v1244
    %v3720 = vunpack.c.l.b16 %v1245
    %v3721 = vunpack.c.h.b16 %v1245
    %v3722 = vunpack.c.l.b16 %v1246
    %v3723 = vunpack.c.h.b16 %v1246
    %v3724 = vunpack.c.l.b16 %v1247
    %v3725 = vunpack.c.h.b16 %v1247
    %v3726 = vunpack.c.l.b16 %v1248
    %v3727 = vunpack.c.h.b16 %v1248
    %v3728 = vunpack.c.l.b16 %v1249
    %v3729 = vunpack.c.h.b16 %v1249
    %v3730 = vunpack.c.l.b16 %v1250
    %v3731 = vunpack.c.h.b16 %v1250
    %v3732 = vunpack.c.l.b16 %v1251
    %v3733 = vunpack.c.h.b16 %v1251
    %v3734 = vunpack.c.l.b16 %v1252
    %v3735 = vunpack.c.h.b16 %v1252
    %v3736 = vunpack.c.l.b16 %v1253
    %v3737 = vunpack.c.h.b16 %v1253
    %v3738 = vunpack.c.l.b16 %v1254
    %v3739 = vunpack.c.h.b16 %v1254
    %v3740 = vunpack.c.l.b16 %v1255
    %v3741 = vunpack.c.h.b16 %v1255
    %v3742 = vunpack.c.l.b16 %v1256
    %v3743 = vunpack.c.h.b16 %v1256
    %v3744 = vunpack.c.l.b16 %v1257
    %v3745 = vunpack.c.h.b16 %v1257
    %v3746 = vunpack.c.l.b16 %v1258
    %v3747 = vunpack.c.h.b16 %v1258
    %v3748 = vunpack.c.l.b16 %v1259
    %v3749 = vunpack.c.h.b16 %v1259
    %v3750 = vunpack.c.l.b16 %v1260
    %v3751 = vunpack.c.h.b16 %v1260
    %v3752 = vunpack.c.l.b16 %v1261
    %v3753 = vunpack.c.h.b16 %v1261
    %v3754 = vunpack.c.l.b16 %v1262
    %v3755 = vunpack.c.h.b16 %v1262
    %v3756 = vunpack.c.l.b16 %v1263
    %v3757 = vunpack.c.h.b16 %v1263
    %v3758 = vunpack.c.l.b16 %v1264
    %v3759 = vunpack.c.h.b16 %v1264
    %v3760 = vunpack.c.l.b16 %v1265
    %v3761 = vunpack.c.h.b16 %v1265
    %v3762 = vunpack.c.l.b16 %v1266
    %v3763 = vunpack.c.h.b16 %v1266
    %v3764 = vunpack.c.l.b16 %v1267
    %v3765 = vunpack.c.h.b16 %v1267
    %v3766 = vunpack.c.l.b16 %v1268
    %v3767 = vunpack.c.h.b16 %v1268
    %v3768 = vunpack.c.l.b16 %v1269
    %v3769 = vunpack.c.h.b16 %v1269
    %v3770 = vunpack.c.l.b16 %v1270
    %v3771 = vunpack.c.h.b16 %v1270
    %v3772 = vunpack.c.l.b16 %v1271
    %v3773 = vunpack.c.h.b16 %v1271
    %v3774 = vunpack.c.l.b16 %v1272
    %v3775 = vunpack.c.h.b16 %v1272
    %v3776 = vunpack.c.l.b16 %v1273
    %v3777 = vunpack.c.h.b16 %v1273
    %v3778 = vunpack.c.l.b16 %v1274
    %v3779 = vunpack.c.h.b16 %v1274
    %v3780 = vunpack.c.l.b16 %v1275
    %v3781 = vunpack.c.h.b16 %v1275
    %v3782 = vunpack.c.l.b16 %v1276
    %v3783 = vunpack.c.h.b16 %v1276
    %v3784 = vunpack.c.l.b16 %v1277
    %v3785 = vunpack.c.h.b16 %v1277
    %v3786 = vunpack.c.l.b16 %v1278
    %v3787 = vunpack.c.h.b16 %v1278
    %v3788 = vunpack.c.l.b16 %v1279
    %v3789 = vunpack.c.h.b16 %v1279
    %v3790 = vunpack.c.l.b16 %v1280
    %v3791 = vunpack.c.h.b16 %v1280
    %v3792 = vunpack.c.l.b16 %v1281
    %v3793 = vunpack.c.h.b16 %v1281
    %v3794 = vunpack.c.l.b16 %v1282
    %v3795 = vunpack.c.h.b16 %v1282
    %v3796 = vunpack.c.l.b16 %v1283
    %v3797 = vunpack.c.h.b16 %v1283
    %v3798 = vunpack.c.l.b16 %v1284
    %v3799 = vunpack.c.h.b16 %v1284
    %v3800 = vunpack.c.l.b16 %v1285
    %v3801 = vunpack.c.h.b16 %v1285
    %v3802 = vunpack.c.l.b16 %v1286
    %v3803 = vunpack.c.h.b16 %v1286
    %v3804 = vunpack.c.l.b16 %v1287
    %v3805 = vunpack.c.h.b16 %v1287
    %v3806 = vunpack.c.l.b16 %v1288
    %v3807 = vunpack.c.h.b16 %v1288
    %v3808 = vunpack.c.l.b16 %v1289
    %v3809 = vunpack.c.h.b16 %v1289
    %v3810 = vunpack.c.l.b16 %v1290
    %v3811 = vunpack.c.h.b16 %v1290
    %v3812 = vunpack.c.l.b16 %v1291
    %v3813 = vunpack.c.h.b16 %v1291
    %v3814 = vunpack.c.l.b16 %v1292
    %v3815 = vunpack.c.h.b16 %v1292
    %v3816 = vunpack.c.l.b16 %v1293
    %v3817 = vunpack.c.h.b16 %v1293
    %v3818 = vunpack.c.l.b16 %v1294
    %v3819 = vunpack.c.h.b16 %v1294
    %v3820 = vunpack.c.l.b16 %v1295
    %v3821 = vunpack.c.h.b16 %v1295
    %v3822 = vunpack.c.l.b16 %v1296
    %v3823 = vunpack.c.h.b16 %v1296
    %v3824 = vunpack.c.l.b16 %v1297
    %v3825 = vunpack.c.h.b16 %v1297
    %v3826 = vunpack.c.l.b16 %v1298
    %v3827 = vunpack.c.h.b16 %v1298
    %v3828 = vunpack.c.l.b16 %v1299
    %v3829 = vunpack.c.h.b16 %v1299
    %v3830 = vunpack.c.l.b16 %v1300
    %v3831 = vunpack.c.h.b16 %v1300
    %v3832 = vunpack.c.l.b16 %v1301
    %v3833 = vunpack.c.h.b16 %v1301
    %v3834 = vunpack.c.l.b16 %v1302
    %v3835 = vunpack.c.h.b16 %v1302
    %v3836 = vunpack.c.l.b16 %v1303
    %v3837 = vunpack.c.h.b16 %v1303
    %v3838 = vunpack.c.l.b16 %v1304
    %v3839 = vunpack.c.h.b16 %v1304
    %v3840 = vunpack.c.l.b16 %v1305
    %v3841 = vunpack.c.h.b16 %v1305
    %v3842 = vunpack.c.l.b16 %v1306
    %v3843 = vunpack.c.h.b16 %v1306
    %v3844 = vunpack.c.l.b16 %v1307
    %v3845 = vunpack.c.h.b16 %v1307
    %v3846 = vunpack.c.l.b16 %v1308
    %v3847 = vunpack.c.h.b16 %v1308
    %v3848 = vunpack.c.l.b16 %v1309
    %v3849 = vunpack.c.h.b16 %v1309
    %v3850 = vunpack.c.l.b16 %v1310
    %v3851 = vunpack.c.h.b16 %v1310
    %v3852 = vunpack.c.l.b16 %v1311
    %v3853 = vunpack.c.h.b16 %v1311
    %v3854 = vunpack.c.l.b16 %v1312
    %v3855 = vunpack.c.h.b16 %v1312
    %v3856 = vunpack.c.l.b16 %v1313
    %v3857 = vunpack.c.h.b16 %v1313
    %v3858 = vunpack.c.l.b16 %v1314
    %v3859 = vunpack.c.h.b16 %v1314
    %v3860 = vunpack.c.l.b16 %v1315
    %v3861 = vunpack.c.h.b16 %v1315
    %v3862 = vunpack.c.l.b16 %v1316
    %v3863 = vunpack.c.h.b16 %v1316
    %v3864 = vunpack.c.l.b16 %v1317
    %v3865 = vunpack.c.h.b16 %v1317
    %v3866 = vunpack.c.l.b16 %v1318
    %v3867 = vunpack.c.h.b16 %v1318
    %v3868 = vunpack.c.l.b16 %v1319
    %v3869 = vunpack.c.h.b16 %v1319
    %v3870 = vunpack.c.l.b16 %v1320
    %v3871 = vunpack.c.h.b16 %v1320
    %v3872 = vunpack.c.l.b16 %v1321
    %v3873 = vunpack.c.h.b16 %v1321
    %v3874 = vunpack.c.l.b16 %v1322
    %v3875 = vunpack.c.h.b16 %v1322
    %v3876 = vunpack.c.l.b16 %v1323
    %v3877 = vunpack.c.h.b16 %v1323
    %v3878 = vunpack.c.l.b16 %v1324
    %v3879 = vunpack.c.h.b16 %v1324
    %v3880 = vunpack.c.l.b16 %v1325
    %v3881 = vunpack.c.h.b16 %v1325
    %v3882 = vunpack.c.l.b16 %v1326
    %v3883 = vunpack.c.h.b16 %v1326
    %v3884 = vunpack.c.l.b16 %v1327
    %v3885 = vunpack.c.h.b16 %v1327
    %v3886 = vunpack.c.l.b16 %v1328
    %v3887 = vunpack.c.h.b16 %v1328
    %v3888 = vunpack.c.l.b16 %v1329
    %v3889 = vunpack.c.h.b16 %v1329
    %v3890 = vunpack.c.l.b16 %v1330
    %v3891 = vunpack.c.h.b16 %v1330
    %v3892 = vunpack.c.l.b16 %v1331
    %v3893 = vunpack.c.h.b16 %v1331
    %v3894 = vunpack.c.l.b16 %v1332
    %v3895 = vunpack.c.h.b16 %v1332
    %v3896 = vunpack.c.l.b16 %v1333
    %v3897 = vunpack.c.h.b16 %v1333
    %v3898 = vunpack.c.l.b16 %v1334
    %v3899 = vunpack.c.h.b16 %v1334
    %v3900 = vunpack.c.l.b16 %v1335
    %v3901 = vunpack.c.h.b16 %v1335
    %v3902 = vunpack.c.l.b16 %v1336
    %v3903 = vunpack.c.h.b16 %v1336
    %v3904 = vunpack.c.l.b16 %v1337
    %v3905 = vunpack.c.h.b16 %v1337
    %v3906 = vunpack.c.l.b16 %v1338
    %v3907 = vunpack.c.h.b16 %v1338
    %v3908 = vunpack.c.l.b16 %v1339
    %v3909 = vunpack.c.h.b16 %v1339
    %v3910 = vunpack.c.l.b16 %v1340
    %v3911 = vunpack.c.h.b16 %v1340
    %v3912 = vunpack.c.l.b16 %v1341
    %v3913 = vunpack.c.h.b16 %v1341
    %v3914 = vunpack.c.l.b16 %v1342
    %v3915 = vunpack.c.h.b16 %v1342
    %v3916 = vunpack.c.l.b16 %v1343
    %v3917 = vunpack.c.h.b16 %v1343
    %v3918 = vunpack.c.l.b16 %v1344
    %v3919 = vunpack.c.h.b16 %v1344
    %v3920 = vunpack.c.l.b16 %v1345
    %v3921 = vunpack.c.h.b16 %v1345
    %v3922 = vunpack.c.l.b16 %v1346
    %v3923 = vunpack.c.h.b16 %v1346
    %v3924 = vunpack.c.l.b16 %v1347
    %v3925 = vunpack.c.h.b16 %v1347
    %v3926 = vunpack.c.l.b16 %v1348
    %v3927 = vunpack.c.h.b16 %v1348
    %v3928 = vunpack.c.l.b16 %v1349
    %v3929 = vunpack.c.h.b16 %v1349
    %v3930 = vunpack.c.l.b16 %v1350
    %v3931 = vunpack.c.h.b16 %v1350
    %v3932 = vunpack.c.l.b16 %v1351
    %v3933 = vunpack.c.h.b16 %v1351
    %v3934 = vunpack.c.l.b16 %v1352
    %v3935 = vunpack.c.h.b16 %v1352
    %v3936 = vunpack.c.l.b16 %v1353
    %v3937 = vunpack.c.h.b16 %v1353
    %v3938 = vunpack.c.l.b16 %v1354
    %v3939 = vunpack.c.h.b16 %v1354
    %v3940 = vunpack.c.l.b16 %v1355
    %v3941 = vunpack.c.h.b16 %v1355
    %v3942 = vunpack.c.l.b16 %v1356
    %v3943 = vunpack.c.h.b16 %v1356
    %v3944 = vunpack.c.l.b16 %v1357
    %v3945 = vunpack.c.h.b16 %v1357
    %v3946 = vunpack.c.l.b16 %v1358
    %v3947 = vunpack.c.h.b16 %v1358
    %v3948 = vunpack.c.l.b16 %v1359
    %v3949 = vunpack.c.h.b16 %v1359
    %v3950 = vunpack.c.l.b16 %v1360
    %v3951 = vunpack.c.h.b16 %v1360
    %v3952 = vunpack.c.l.b16 %v1361
    %v3953 = vunpack.c.h.b16 %v1361
    %v3954 = vunpack.c.l.b16 %v1362
    %v3955 = vunpack.c.h.b16 %v1362
    %v3956 = vunpack.c.l.b16 %v1363
    %v3957 = vunpack.c.h.b16 %v1363
    %v3958 = vunpack.c.l.b16 %v1364
    %v3959 = vunpack.c.h.b16 %v1364
    %v3960 = vunpack.c.l.b16 %v1365
    %v3961 = vunpack.c.h.b16 %v1365
    %v3962 = vunpack.c.l.b16 %v1366
    %v3963 = vunpack.c.h.b16 %v1366
    %v3964 = vunpack.c.l.b16 %v1367
    %v3965 = vunpack.c.h.b16 %v1367
    %v3966 = vunpack.c.l.b16 %v1368
    %v3967 = vunpack.c.h.b16 %v1368
    %v3968 = vunpack.c.l.b16 %v1369
    %v3969 = vunpack.c.h.b16 %v1369
    %v3970 = vunpack.c.l.b16 %v1370
    %v3971 = vunpack.c.h.b16 %v1370
    %v3972 = vunpack.c.l.b16 %v1371
    %v3973 = vunpack.c.h.b16 %v1371
    %v3974 = vunpack.c.l.b16 %v1372
    %v3975 = vunpack.c.h.b16 %v1372
    %v3976 = vunpack.c.l.b16 %v1373
    %v3977 = vunpack.c.h.b16 %v1373
    %v3978 = vunpack.c.l.b16 %v1374
    %v3979 = vunpack.c.h.b16 %v1374
    %v3980 = vunpack.c.l.b16 %v1375
    %v3981 = vunpack.c.h.b16 %v1375
    %v3982 = vunpack.c.l.b16 %v1376
    %v3983 = vunpack.c.h.b16 %v1376
    %v3984 = vunpack.c.l.b16 %v1377
    %v3985 = vunpack.c.h.b16 %v1377
    %v3986 = vunpack.c.l.b16 %v1378
    %v3987 = vunpack.c.h.b16 %v1378
    %v3988 = vunpack.c.l.b16 %v1379
    %v3989 = vunpack.c.h.b16 %v1379
    %v3990 = vunpack.c.l.b16 %v1380
    %v3991 = vunpack.c.h.b16 %v1380
    %v3992 = vunpack.c.l.b16 %v1381
    %v3993 = vunpack.c.h.b16 %v1381
    %v3994 = vunpack.c.l.b16 %v1382
    %v3995 = vunpack.c.h.b16 %v1382
    %v3996 = vunpack.c.l.b16 %v1383
    %v3997 = vunpack.c.h.b16 %v1383
    %v3998 = vunpack.c.l.b16 %v1384
    %v3999 = vunpack.c.h.b16 %v1384
    %v4000 = vunpack.c.l.b16 %v1385
    %v4001 = vunpack.c.h.b16 %v1385
    %v4002 = vunpack.c.l.b16 %v1386
    %v4003 = vunpack.c.h.b16 %v1386
    %v4004 = vunpack.c.l.b16 %v1387
    %v4005 = vunpack.c.h.b16 %v1387
    %v4006 = vunpack.c.l.b16 %v1388
    %v4007 = vunpack.c.h.b16 %v1388
    %v4008 = vunpack.c.l.b16 %v1389
    %v4009 = vunpack.c.h.b16 %v1389
    %v4010 = vunpack.c.l.b16 %v1390
    %v4011 = vunpack.c.h.b16 %v1390
    %v4012 = vunpack.c.l.b16 %v1391
    %v4013 = vunpack.c.h.b16 %v1391
    %v4014 = vunpack.c.l.b16 %v1392
    %v4015 = vunpack.c.h.b16 %v1392
    %v4016 = vunpack.c.l.b16 %v1393
    %v4017 = vunpack.c.h.b16 %v1393
    %v4018 = vunpack.c.l.b16 %v1394
    %v4019 = vunpack.c.h.b16 %v1394
    %v4020 = vunpack.c.l.b16 %v1395
    %v4021 = vunpack.c.h.b16 %v1395
    %v4022 = vunpack.c.l.b16 %v1396
    %v4023 = vunpack.c.h.b16 %v1396
    %v4024 = vunpack.c.l.b16 %v1397
    %v4025 = vunpack.c.h.b16 %v1397
    %v4026 = vunpack.c.l.b16 %v1398
    %v4027 = vunpack.c.h.b16 %v1398
    %v4028 = vunpack.c.l.b16 %v1399
    %v4029 = vunpack.c.h.b16 %v1399
    %v4030 = vunpack.c.l.b16 %v1400
    %v4031 = vunpack.c.h.b16 %v1400
    %v4032 = vunpack.c.l.b16 %v1401
    %v4033 = vunpack.c.h.b16 %v1401
    %v4034 = vunpack.c.l.b16 %v1402
    %v4035 = vunpack.c.h.b16 %v1402
    %v4036 = vunpack.c.l.b16 %v1403
    %v4037 = vunpack.c.h.b16 %v1403
    %v4038 = vunpack.c.l.b16 %v1404
    %v4039 = vunpack.c.h.b16 %v1404
    %v4040 = vunpack.c.l.b16 %v1405
    %v4041 = vunpack.c.h.b16 %v1405
    %v4042 = vunpack.c.l.b16 %v1406
    %v4043 = vunpack.c.h.b16 %v1406
    %v4044 = vunpack.c.l.b16 %v1407
    %v4045 = vunpack.c.h.b16 %v1407
    %v4046 = vunpack.c.l.b16 %v1408
    %v4047 = vunpack.c.h.b16 %v1408
    %v4048 = vunpack.c.l.b16 %v1409
    %v4049 = vunpack.c.h.b16 %v1409
    %v4050 = vunpack.c.l.b16 %v1410
    %v4051 = vunpack.c.h.b16 %v1410
    %v4052 = vunpack.c.l.b16 %v1411
    %v4053 = vunpack.c.h.b16 %v1411
    %v4054 = vunpack.c.l.b16 %v1412
    %v4055 = vunpack.c.h.b16 %v1412
    %v4056 = vunpack.c.l.b16 %v1413
    %v4057 = vunpack.c.h.b16 %v1413
    %v4058 = vunpack.c.l.b16 %v1414
    %v4059 = vunpack.c.h.b16 %v1414
    %v4060 = vunpack.c.l.b16 %v1415
    %v4061 = vunpack.c.h.b16 %v1415
    %v4062 = vunpack.c.l.b16 %v1416
    %v4063 = vunpack.c.h.b16 %v1416
    %v4064 = vunpack.c.l.b16 %v1417
    %v4065 = vunpack.c.h.b16 %v1417
    %v4066 = vunpack.c.l.b16 %v1418
    %v4067 = vunpack.c.h.b16 %v1418
    %v4068 = vunpack.c.l.b16 %v1419
    %v4069 = vunpack.c.h.b16 %v1419
    %v4070 = vunpack.c.l.b16 %v1420
    %v4071 = vunpack.c.h.b16 %v1420
    %v4072 = vunpack.c.l.b16 %v1421
    %v4073 = vunpack.c.h.b16 %v1421
    %v4074 = vunpack.c.l.b16 %v1422
    %v4075 = vunpack.c.h.b16 %v1422
    %v4076 = vunpack.c.l.b16 %v1423
    %v4077 = vunpack.c.h.b16 %v1423
    %v4078 = vunpack.c.l.b16 %v1424
    %v4079 = vunpack.c.h.b16 %v1424
    %v4080 = vunpack.c.l.b16 %v1425
    %v4081 = vunpack.c.h.b16 %v1425
    %v4082 = vunpack.c.l.b16 %v1426
    %v4083 = vunpack.c.h.b16 %v1426
    %v4084 = vunpack.c.l.b16 %v1427
    %v4085 = vunpack.c.h.b16 %v1427
    %v4086 = vunpack.c.l.b16 %v1428
    %v4087 = vunpack.c.h.b16 %v1428
    %v4088 = vunpack.c.l.b16 %v1429
    %v4089 = vunpack.c.h.b16 %v1429
    %v4090 = vunpack.c.l.b16 %v1430
    %v4091 = vunpack.c.h.b16 %v1430
    %v4092 = vunpack.c.l.b16 %v1431
    %v4093 = vunpack.c.h.b16 %v1431
    %v4094 = vunpack.c.l.b16 %v1432
    %v4095 = vunpack.c.h.b16 %v1432
    %v4096 = vunpack.c.l.b16 %v1433
    %v4097 = vunpack.c.h.b16 %v1433
    %v4098 = vunpack.c.l.b16 %v1434
    %v4099 = vunpack.c.h.b16 %v1434
    %v4100 = vunpack.c.l.b16 %v1435
    %v4101 = vunpack.c.h.b16 %v1435
    %v4102 = vunpack.c.l.b16 %v1436
    %v4103 = vunpack.c.h.b16 %v1436
    %v4104 = vunpack.c.l.b16 %v1437
    %v4105 = vunpack.c.h.b16 %v1437
    %v4106 = vunpack.c.l.b16 %v1438
    %v4107 = vunpack.c.h.b16 %v1438
    %v4108 = vunpack.c.l.b16 %v1439
    %v4109 = vunpack.c.h.b16 %v1439
    %v4110 = vunpack.c.l.b16 %v1440
    %v4111 = vunpack.c.h.b16 %v1440
    %v4112 = vunpack.c.l.b16 %v1441
    %v4113 = vunpack.c.h.b16 %v1441
    %v4114 = vunpack.c.l.b16 %v1442
    %v4115 = vunpack.c.h.b16 %v1442
    %v4116 = vunpack.c.l.b16 %v1443
    %v4117 = vunpack.c.h.b16 %v1443
    %v4118 = vunpack.c.l.b16 %v1444
    %v4119 = vunpack.c.h.b16 %v1444
    %v4120 = vunpack.c.l.b16 %v1445
    %v4121 = vunpack.c.h.b16 %v1445
    %v4122 = vunpack.c.l.b16 %v1446
    %v4123 = vunpack.c.h.b16 %v1446
    %v4124 = vunpack.c.l.b16 %v1447
    %v4125 = vunpack.c.h.b16 %v1447
    %v4126 = vunpack.c.l.b16 %v1448
    %v4127 = vunpack.c.h.b16 %v1448
    %v4128 = vunpack.c.l.b16 %v1449
    %v4129 = vunpack.c.h.b16 %v1449
    %v4130 = vunpack.c.l.b16 %v1450
    %v4131 = vunpack.c.h.b16 %v1450
    %v4132 = vunpack.c.l.b16 %v1451
    %v4133 = vunpack.c.h.b16 %v1451
    %v4134 = vunpack.c.l.b16 %v1452
    %v4135 = vunpack.c.h.b16 %v1452
    %v4136 = vunpack.c.l.b16 %v1453
    %v4137 = vunpack.c.h.b16 %v1453
    %v4138 = vunpack.c.l.b16 %v1454
    %v4139 = vunpack.c.h.b16 %v1454
    %v4140 = vunpack.c.l.b16 %v1455
    %v4141 = vunpack.c.h.b16 %v1455
    %v4142 = vunpack.c.l.b16 %v1456
    %v4143 = vunpack.c.h.b16 %v1456
    %v4144 = vunpack.c.l.b16 %v1457
    %v4145 = vunpack.c.h.b16 %v1457
    %v4146 = vunpack.c.l.b16 %v1458
    %v4147 = vunpack.c.h.b16 %v1458
    %v4148 = vunpack.c.l.b16 %v1459
    %v4149 = vunpack.c.h.b16 %v1459
    %v4150 = vunpack.c.l.b16 %v1460
    %v4151 = vunpack.c.h.b16 %v1460
    %v4152 = vunpack.c.l.b16 %v1461
    %v4153 = vunpack.c.h.b16 %v1461
    %v4154 = vunpack.c.l.b16 %v1462
    %v4155 = vunpack.c.h.b16 %v1462
    %v4156 = vunpack.c.l.b16 %v1463
    %v4157 = vunpack.c.h.b16 %v1463
    %v4158 = vunpack.c.l.b16 %v1464
    %v4159 = vunpack.c.h.b16 %v1464
    %v4160 = vunpack.c.l.b16 %v1465
    %v4161 = vunpack.c.h.b16 %v1465
    %v4162 = vunpack.c.l.b16 %v1466
    %v4163 = vunpack.c.h.b16 %v1466
    %v4164 = vunpack.c.l.b16 %v1467
    %v4165 = vunpack.c.h.b16 %v1467
    %v4166 = vunpack.c.l.b16 %v1468
    %v4167 = vunpack.c.h.b16 %v1468
    %v4168 = vunpack.c.l.b16 %v1469
    %v4169 = vunpack.c.h.b16 %v1469
    %v4170 = vunpack.c.l.b16 %v1470
    %v4171 = vunpack.c.h.b16 %v1470
    %v4172 = vunpack.c.l.b16 %v1471
    %v4173 = vunpack.c.h.b16 %v1471
    %v4174 = vunpack.c.l.b16 %v1472
    %v4175 = vunpack.c.h.b16 %v1472
    %v4176 = vunpack.c.l.b16 %v1473
    %v4177 = vunpack.c.h.b16 %v1473
    %v4178 = vunpack.c.l.b16 %v1474
    %v4179 = vunpack.c.h.b16 %v1474
    %v4180 = vunpack.c.l.b16 %v1475
    %v4181 = vunpack.c.h.b16 %v1475
    %v4182 = vunpack.c.l.b16 %v1476
    %v4183 = vunpack.c.h.b16 %v1476
    %v4184 = vunpack.c.l.b16 %v1477
    %v4185 = vunpack.c.h.b16 %v1477
    %v4186 = vunpack.c.l.b16 %v1478
    %v4187 = vunpack.c.h.b16 %v1478
    %v4188 = vunpack.c.l.b16 %v1479
    %v4189 = vunpack.c.h.b16 %v1479
    %v4190 = vunpack.c.l.b16 %v1480
    %v4191 = vunpack.c.h.b16 %v1480
    %v4192 = vunpack.c.l.b16 %v1481
    %v4193 = vunpack.c.h.b16 %v1481
    %v4194 = vunpack.c.l.b16 %v1482
    %v4195 = vunpack.c.h.b16 %v1482
    %v4196 = vunpack.c.l.b16 %v1483
    %v4197 = vunpack.c.h.b16 %v1483
    %v4198 = vunpack.c.l.b16 %v1484
    %v4199 = vunpack.c.h.b16 %v1484
    %v4200 = vunpack.c.l.b16 %v1485
    %v4201 = vunpack.c.h.b16 %v1485
    %v4202 = vunpack.c.l.b16 %v1486
    %v4203 = vunpack.c.h.b16 %v1486
    %v4204 = vunpack.c.l.b16 %v1487
    %v4205 = vunpack.c.h.b16 %v1487
    %v4206 = vunpack.c.l.b16 %v1488
    %v4207 = vunpack.c.h.b16 %v1488
    %v4208 = vunpack.c.l.b16 %v1489
    %v4209 = vunpack.c.h.b16 %v1489
    %v4210 = vunpack.c.l.b16 %v1490
    %v4211 = vunpack.c.h.b16 %v1490
    %v4212 = vunpack.c.l.b16 %v1491
    %v4213 = vunpack.c.h.b16 %v1491
    %v4214 = vunpack.c.l.b16 %v1492
    %v4215 = vunpack.c.h.b16 %v1492
    %v4216 = vunpack.c.l.b16 %v1493
    %v4217 = vunpack.c.h.b16 %v1493
    %v4218 = vunpack.c.l.b16 %v1494
    %v4219 = vunpack.c.h.b16 %v1494
    %v4220 = vunpack.c.l.b16 %v1495
    %v4221 = vunpack.c.h.b16 %v1495
    %v4222 = vunpack.c.l.b16 %v1496
    %v4223 = vunpack.c.h.b16 %v1496
    %v4224 = vunpack.c.l.b16 %v1497
    %v4225 = vunpack.c.h.b16 %v1497
    %v4226 = vunpack.c.l.b16 %v1498
    %v4227 = vunpack.c.h.b16 %v1498
    %v4228 = vunpack.c.l.b16 %v1499
    %v4229 = vunpack.c.h.b16 %v1499
    %v4230 = vunpack.c.l.b16 %v1500
    %v4231 = vunpack.c.h.b16 %v1500
    %v4232 = vunpack.c.l.b16 %v1501
    %v4233 = vunpack.c.h.b16 %v1501
    %v4234 = vunpack.c.l.b16 %v1502
    %v4235 = vunpack.c.h.b16 %v1502
    %v4236 = vunpack.c.l.b16 %v1503
    %v4237 = vunpack.c.h.b16 %v1503
    %v4238 = vunpack.c.l.b16 %v1504
    %v4239 = vunpack.c.h.b16 %v1504
    %v4240 = vunpack.c.l.b16 %v1505
    %v4241 = vunpack.c.h.b16 %v1505
    %v4242 = vunpack.c.l.b16 %v1506
    %v4243 = vunpack.c.h.b16 %v1506
    %v4244 = vunpack.c.l.b16 %v1507
    %v4245 = vunpack.c.h.b16 %v1507
    %v4246 = vunpack.c.l.b16 %v1508
    %v4247 = vunpack.c.h.b16 %v1508
    %v4248 = vunpack.c.l.b16 %v1509
    %v4249 = vunpack.c.h.b16 %v1509
    %v4250 = vunpack.c.l.b16 %v1510
    %v4251 = vunpack.c.h.b16 %v1510
    %v4252 = vunpack.c.l.b16 %v1511
    %v4253 = vunpack.c.h.b16 %v1511
    %v4254 = vunpack.c.l.b16 %v1512
    %v4255 = vunpack.c.h.b16 %v1512
    %v4256 = vunpack.c.l.b16 %v1513
    %v4257 = vunpack.c.h.b16 %v1513
    %v4258 = vunpack.c.l.b16 %v1514
    %v4259 = vunpack.c.h.b16 %v1514
    %v4260 = vunpack.c.l.b16 %v1515
    %v4261 = vunpack.c.h.b16 %v1515
    %v4262 = vunpack.c.l.b16 %v1516
    %v4263 = vunpack.c.h.b16 %v1516
    %v4264 = vunpack.c.l.b16 %v1517
    %v4265 = vunpack.c.h.b16 %v1517
    %v4266 = vunpack.c.l.b16 %v1518
    %v4267 = vunpack.c.h.b16 %v1518
    %v4268 = vunpack.c.l.b16 %v1519
    %v4269 = vunpack.c.h.b16 %v1519
    %v4270 = vunpack.c.l.b16 %v1520
    %v4271 = vunpack.c.h.b16 %v1520
    %v4272 = vunpack.c.l.b16 %v1521
    %v4273 = vunpack.c.h.b16 %v1521
    %v4274 = vunpack.c.l.b16 %v1522
    %v4275 = vunpack.c.h.b16 %v1522
    %v4276 = vunpack.c.l.b16 %v1523
    %v4277 = vunpack.c.h.b16 %v1523
    %v4278 = vunpack.c.l.b16 %v1524
    %v4279 = vunpack.c.h.b16 %v1524
    %v4280 = vunpack.c.l.b16 %v1525
    %v4281 = vunpack.c.h.b16 %v1525
    %v4282 = vunpack.c.l.b16 %v1526
    %v4283 = vunpack.c.h.b16 %v1526
    %v4284 = vunpack.c.l.b16 %v1527
    %v4285 = vunpack.c.h.b16 %v1527
    %v4286 = vunpack.c.l.b16 %v1528
    %v4287 = vunpack.c.h.b16 %v1528
    %v4288 = vunpack.c.l.b16 %v1529
    %v4289 = vunpack.c.h.b16 %v1529
    %v4290 = vunpack.c.l.b16 %v1530
    %v4291 = vunpack.c.h.b16 %v1530
    %v4292 = vunpack.c.l.b16 %v1531
    %v4293 = vunpack.c.h.b16 %v1531
    %v4294 = vunpack.c.l.b16 %v1532
    %v4295 = vunpack.c.h.b16 %v1532
    %v4296 = vunpack.c.l.b16 %v1533
    %v4297 = vunpack.c.h.b16 %v1533
    %v4298 = vunpack.c.l.b16 %v1534
    %v4299 = vunpack.c.h.b16 %v1534
    %v4300 = vunpack.c.l.b16 %v1535
    %v4301 = vunpack.c.h.b16 %v1535
    %v4302 = vunpack.c.l.b16 %v1536
    %v4303 = vunpack.c.h.b16 %v1536
    %v4304 = vunpack.c.l.b16 %v1537
    %v4305 = vunpack.c.h.b16 %v1537
    %v4306 = vunpack.c.l.b16 %v1538
    %v4307 = vunpack.c.h.b16 %v1538
    %v4308 = vunpack.c.l.b16 %v1539
    %v4309 = vunpack.c.h.b16 %v1539
    %v4310 = vunpack.c.l.b16 %v1540
    %v4311 = vunpack.c.h.b16 %v1540
    %v4312 = vunpack.c.l.b16 %v1541
    %v4313 = vunpack.c.h.b16 %v1541
    %v4314 = vunpack.c.l.b16 %v1542
    %v4315 = vunpack.c.h.b16 %v1542
    %v4316 = vunpack.c.l.b16 %v1543
    %v4317 = vunpack.c.h.b16 %v1543
    %v4318 = vunpack.c.l.b16 %v1544
    %v4319 = vunpack.c.h.b16 %v1544
    %v4320 = vunpack.c.l.b16 %v1545
    %v4321 = vunpack.c.h.b16 %v1545
    %v4322 = vunpack.c.l.b16 %v1546
    %v4323 = vunpack.c.h.b16 %v1546
    %v4324 = vunpack.c.l.b16 %v1547
    %v4325 = vunpack.c.h.b16 %v1547
    %v4326 = vunpack.c.l.b16 %v1548
    %v4327 = vunpack.c.h.b16 %v1548
    %v4328 = vunpack.c.l.b16 %v1549
    %v4329 = vunpack.c.h.b16 %v1549
    %v4330 = vunpack.c.l.b16 %v1550
    %v4331 = vunpack.c.h.b16 %v1550
    %v4332 = vunpack.c.l.b16 %v1551
    %v4333 = vunpack.c.h.b16 %v1551
    %v4334 = vunpack.c.l.b16 %v1552
    %v4335 = vunpack.c.h.b16 %v1552
    %v4336 = vunpack.c.l.b16 %v1553
    %v4337 = vunpack.c.h.b16 %v1553
    %v4338 = vunpack.c.l.b16 %v1554
    %v4339 = vunpack.c.h.b16 %v1554
    %v4340 = vunpack.c.l.b16 %v1555
    %v4341 = vunpack.c.h.b16 %v1555
    %v4342 = vunpack.c.l.b16 %v1556
    %v4343 = vunpack.c.h.b16 %v1556
    %v4344 = vunpack.c.l.b16 %v1557
    %v4345 = vunpack.c.h.b16 %v1557
    %v4346 = vunpack.c.l.b16 %v1558
    %v4347 = vunpack.c.h.b16 %v1558
    %v4348 = vunpack.c.l.b16 %v1559
    %v4349 = vunpack.c.h.b16 %v1559
    %v4350 = vunpack.c.l.b16 %v1560
    %v4351 = vunpack.c.h.b16 %v1560
    %v4352 = vunpack.c.l.b16 %v1561
    %v4353 = vunpack.c.h.b16 %v1561
    %v4354 = vunpack.c.l.b16 %v1562
    %v4355 = vunpack.c.h.b16 %v1562
    %v4356 = vunpack.c.l.b16 %v1563
    %v4357 = vunpack.c.h.b16 %v1563
    %v4358 = vunpack.c.l.b16 %v1564
    %v4359 = vunpack.c.h.b16 %v1564
    %v4360 = vunpack.c.l.b16 %v1565
    %v4361 = vunpack.c.h.b16 %v1565
    %v4362 = vunpack.c.l.b16 %v1566
    %v4363 = vunpack.c.h.b16 %v1566
    %v4364 = vunpack.c.l.b16 %v1567
    %v4365 = vunpack.c.h.b16 %v1567
    %v4366 = vunpack.c.l.b16 %v1568
    %v4367 = vunpack.c.h.b16 %v1568
    %v4368 = vunpack.c.l.b16 %v1569
    %v4369 = vunpack.c.h.b16 %v1569
    %v4370 = vunpack.c.l.b16 %v1570
    %v4371 = vunpack.c.h.b16 %v1570
    %v4372 = vunpack.c.l.b16 %v1571
    %v4373 = vunpack.c.h.b16 %v1571
    %v4374 = vunpack.c.l.b16 %v1572
    %v4375 = vunpack.c.h.b16 %v1572
    %v4376 = vunpack.c.l.b16 %v1573
    %v4377 = vunpack.c.h.b16 %v1573
    %v4378 = vunpack.c.l.b16 %v1574
    %v4379 = vunpack.c.h.b16 %v1574
    %v4380 = vunpack.c.l.b16 %v1575
    %v4381 = vunpack.c.h.b16 %v1575
    %v4382 = vunpack.c.l.b16 %v1576
    %v4383 = vunpack.c.h.b16 %v1576
    %v4384 = vunpack.c.l.b16 %v1577
    %v4385 = vunpack.c.h.b16 %v1577
    %v4386 = vunpack.c.l.b16 %v1578
    %v4387 = vunpack.c.h.b16 %v1578
    %v4388 = vunpack.c.l.b16 %v1579
    %v4389 = vunpack.c.h.b16 %v1579
    %v4390 = vunpack.c.l.b16 %v1580
    %v4391 = vunpack.c.h.b16 %v1580
    %v4392 = vunpack.c.l.b16 %v1581
    %v4393 = vunpack.c.h.b16 %v1581
    %v4394 = vunpack.c.l.b16 %v1582
    %v4395 = vunpack.c.h.b16 %v1582
    %v4396 = vunpack.c.l.b16 %v1583
    %v4397 = vunpack.c.h.b16 %v1583
    %v4398 = vunpack.c.l.b16 %v1584
    %v4399 = vunpack.c.h.b16 %v1584
    %v4400 = vunpack.c.l.b16 %v1585
    %v4401 = vunpack.c.h.b16 %v1585
    %v4402 = vunpack.c.l.b16 %v1586
    %v4403 = vunpack.c.h.b16 %v1586
    %v4404 = vunpack.c.l.b16 %v1587
    %v4405 = vunpack.c.h.b16 %v1587
    %v4406 = vunpack.c.l.b16 %v1588
    %v4407 = vunpack.c.h.b16 %v1588
    %v4408 = vunpack.c.l.b16 %v1589
    %v4409 = vunpack.c.h.b16 %v1589
    %v4410 = vunpack.c.l.b16 %v1590
    %v4411 = vunpack.c.h.b16 %v1590
    %v4412 = vunpack.c.l.b16 %v1591
    %v4413 = vunpack.c.h.b16 %v1591
    %v4414 = vunpack.c.l.b16 %v1592
    %v4415 = vunpack.c.h.b16 %v1592
    %v4416 = vunpack.c.l.b16 %v1593
    %v4417 = vunpack.c.h.b16 %v1593
    %v4418 = vunpack.c.l.b16 %v1594
    %v4419 = vunpack.c.h.b16 %v1594
    %v4420 = vunpack.c.l.b16 %v1595
    %v4421 = vunpack.c.h.b16 %v1595
    %v4422 = vunpack.c.l.b16 %v1596
    %v4423 = vunpack.c.h.b16 %v1596
    %v4424 = vunpack.c.l.b16 %v1597
    %v4425 = vunpack.c.h.b16 %v1597
    %v4426 = vunpack.c.l.b16 %v1598
    %v4427 = vunpack.c.h.b16 %v1598
    %v4428 = vunpack.c.l.b16 %v1599
    %v4429 = vunpack.c.h.b16 %v1599
    %v4430 = vunpack.c.l.b16 %v1600
    %v4431 = vunpack.c.h.b16 %v1600
    %v4432 = vunpack.c.l.b16 %v1601
    %v4433 = vunpack.c.h.b16 %v1601
    %v4434 = vunpack.c.l.b16 %v1602
    %v4435 = vunpack.c.h.b16 %v1602
    %v4436 = vunpack.c.l.b16 %v1603
    %v4437 = vunpack.c.h.b16 %v1603
    %v4438 = vunpack.c.l.b16 %v1604
    %v4439 = vunpack.c.h.b16 %v1604
    %v4440 = vunpack.c.l.b16 %v1605
    %v4441 = vunpack.c.h.b16 %v1605
    %v4442 = vunpack.c.l.b16 %v1606
    %v4443 = vunpack.c.h.b16 %v1606
    %v4444 = vunpack.c.l.b16 %v1607
    %v4445 = vunpack.c.h.b16 %v1607
    %v4446 = vunpack.c.l.b16 %v1608
    %v4447 = vunpack.c.h.b16 %v1608
    %v4448 = vunpack.c.l.b16 %v1609
    %v4449 = vunpack.c.h.b16 %v1609
    %v4450 = vunpack.c.l.b16 %v1610
    %v4451 = vunpack.c.h.b16 %v1610
    %v4452 = vunpack.c.l.b16 %v1611
    %v4453 = vunpack.c.h.b16 %v1611
    %v4454 = vunpack.c.l.b16 %v1612
    %v4455 = vunpack.c.h.b16 %v1612
    %v4456 = vunpack.c.l.b16 %v1613
    %v4457 = vunpack.c.h.b16 %v1613
    %v4458 = vunpack.c.l.b16 %v1614
    %v4459 = vunpack.c.h.b16 %v1614
    %v4460 = vunpack.c.l.b16 %v1615
    %v4461 = vunpack.c.h.b16 %v1615
    %v4462 = vunpack.c.l.b16 %v1616
    %v4463 = vunpack.c.h.b16 %v1616
    %v4464 = vunpack.c.l.b16 %v1617
    %v4465 = vunpack.c.h.b16 %v1617
    %v4466 = vunpack.c.l.b16 %v1618
    %v4467 = vunpack.c.h.b16 %v1618
    %v4468 = vunpack.c.l.b16 %v1619
    %v4469 = vunpack.c.h.b16 %v1619
    %v4470 = vunpack.c.l.b16 %v1620
    %v4471 = vunpack.c.h.b16 %v1620
    %v4472 = vunpack.c.l.b16 %v1621
    %v4473 = vunpack.c.h.b16 %v1621
    %v4474 = vunpack.c.l.b16 %v1622
    %v4475 = vunpack.c.h.b16 %v1622
    %v4476 = vunpack.c.l.b16 %v1623
    %v4477 = vunpack.c.h.b16 %v1623
    %v4478 = vunpack.c.l.b16 %v1624
    %v4479 = vunpack.c.h.b16 %v1624
    %v4480 = vunpack.c.l.b16 %v1625
    %v4481 = vunpack.c.h.b16 %v1625
    %v4482 = vunpack.c.l.b16 %v1626
    %v4483 = vunpack.c.h.b16 %v1626
    %v4484 = vunpack.c.l.b16 %v1627
    %v4485 = vunpack.c.h.b16 %v1627
    %v4486 = vunpack.c.l.b16 %v1628
    %v4487 = vunpack.c.h.b16 %v1628
    %v4488 = vunpack.c.l.b16 %v1629
    %v4489 = vunpack.c.h.b16 %v1629
    %v4490 = vunpack.c.l.b16 %v1630
    %v4491 = vunpack.c.h.b16 %v1630
    %v4492 = vunpack.c.l.b16 %v1631
    %v4493 = vunpack.c.h.b16 %v1631
    %v4494 = vunpack.c.l.b16 %v1632
    %v4495 = vunpack.c.h.b16 %v1632
    %v4496 = vunpack.c.l.b16 %v1633
    %v4497 = vunpack.c.h.b16 %v1633
    %v4498 = vunpack.c.l.b16 %v1634
    %v4499 = vunpack.c.h.b16 %v1634
    %v4500 = vunpack.c.l.b16 %v1635
    %v4501 = vunpack.c.h.b16 %v1635
    %v4502 = vunpack.c.l.b16 %v1636
    %v4503 = vunpack.c.h.b16 %v1636
    %v4504 = vunpack.c.l.b16 %v1637
    %v4505 = vunpack.c.h.b16 %v1637
    %v4506 = vunpack.c.l.b16 %v1638
    %v4507 = vunpack.c.h.b16 %v1638
    %v4508 = vunpack.c.l.b16 %v1639
    %v4509 = vunpack.c.h.b16 %v1639
    %v4510 = vunpack.c.l.b16 %v1640
    %v4511 = vunpack.c.h.b16 %v1640
    %v4512 = vunpack.c.l.b16 %v1641
    %v4513 = vunpack.c.h.b16 %v1641
    %v4514 = vunpack.c.l.b16 %v1642
    %v4515 = vunpack.c.h.b16 %v1642
    %v4516 = vunpack.c.l.b16 %v1643
    %v4517 = vunpack.c.h.b16 %v1643
    %v4518 = vunpack.c.l.b16 %v1644
    %v4519 = vunpack.c.h.b16 %v1644
    %v4520 = vunpack.c.l.b16 %v1645
    %v4521 = vunpack.c.h.b16 %v1645
    %v4522 = vunpack.c.l.b16 %v1646
    %v4523 = vunpack.c.h.b16 %v1646
    %v4524 = vunpack.c.l.b16 %v1647
    %v4525 = vunpack.c.h.b16 %v1647
    %v4526 = vunpack.c.l.b16 %v1648
    %v4527 = vunpack.c.h.b16 %v1648
    %v4528 = vunpack.c.l.b16 %v1649
    %v4529 = vunpack.c.h.b16 %v1649
    %v4530 = vunpack.c.l.b16 %v1650
    %v4531 = vunpack.c.h.b16 %v1650
    %v4532 = vunpack.c.l.b16 %v1651
    %v4533 = vunpack.c.h.b16 %v1651
    %v4534 = vunpack.c.l.b16 %v1652
    %v4535 = vunpack.c.h.b16 %v1652
    %v4536 = vunpack.c.l.b16 %v1653
    %v4537 = vunpack.c.h.b16 %v1653
    %v4538 = vunpack.c.l.b16 %v1654
    %v4539 = vunpack.c.h.b16 %v1654
    %v4540 = vunpack.c.l.b16 %v1655
    %v4541 = vunpack.c.h.b16 %v1655
    %v4542 = vunpack.c.l.b16 %v1656
    %v4543 = vunpack.c.h.b16 %v1656
    %v4544 = vunpack.c.l.b16 %v1657
    %v4545 = vunpack.c.h.b16 %v1657
    %v4546 = vunpack.c.l.b16 %v1658
    %v4547 = vunpack.c.h.b16 %v1658
    %v4548 = vunpack.c.l.b16 %v1659
    %v4549 = vunpack.c.h.b16 %v1659
    %v4550 = vunpack.c.l.b16 %v1660
    %v4551 = vunpack.c.h.b16 %v1660
    %v4552 = vunpack.c.l.b16 %v1661
    %v4553 = vunpack.c.h.b16 %v1661
    %v4554 = vunpack.c.l.b16 %v1662
    %v4555 = vunpack.c.h.b16 %v1662
    %v4556 = vunpack.c.l.b16 %v1663
    %v4557 = vunpack.c.h.b16 %v1663
    %v4558 = vunpack.c.l.b16 %v1664
    %v4559 = vunpack.c.h.b16 %v1664
    %v4560 = vunpack.c.l.b16 %v1665
    %v4561 = vunpack.c.h.b16 %v1665
    %v4562 = vunpack.c.l.b16 %v1666
    %v4563 = vunpack.c.h.b16 %v1666
    %v4564 = vunpack.c.l.b16 %v1667
    %v4565 = vunpack.c.h.b16 %v1667
    %v4566 = vunpack.c.l.b16 %v1668
    %v4567 = vunpack.c.h.b16 %v1668
    %v4568 = vunpack.c.l.b16 %v1669
    %v4569 = vunpack.c.h.b16 %v1669
    %v4570 = vunpack.c.l.b16 %v1670
    %v4571 = vunpack.c.h.b16 %v1670
    %v4572 = vunpack.c.l.b16 %v1671
    %v4573 = vunpack.c.h.b16 %v1671
    %v4574 = vunpack.c.l.b16 %v1672
    %v4575 = vunpack.c.h.b16 %v1672
    %v4576 = vunpack.c.l.b16 %v1673
    %v4577 = vunpack.c.h.b16 %v1673
    %v4578 = vunpack.c.l.b16 %v1674
    %v4579 = vunpack.c.h.b16 %v1674
    %v4580 = vunpack.c.l.b16 %v1675
    %v4581 = vunpack.c.h.b16 %v1675
    %v4582 = vunpack.c.l.b16 %v1676
    %v4583 = vunpack.c.h.b16 %v1676
    %v4584 = vunpack.c.l.b16 %v1677
    %v4585 = vunpack.c.h.b16 %v1677
    %v4586 = vunpack.c.l.b16 %v1678
    %v4587 = vunpack.c.h.b16 %v1678
    %v4588 = vunpack.c.l.b16 %v1679
    %v4589 = vunpack.c.h.b16 %v1679
    %v4590 = vunpack.c.l.b16 %v1680
    %v4591 = vunpack.c.h.b16 %v1680
    %v4592 = vunpack.c.l.b16 %v1681
    %v4593 = vunpack.c.h.b16 %v1681
    %v4594 = vunpack.c.l.b16 %v1682
    %v4595 = vunpack.c.h.b16 %v1682
    %v4596 = vunpack.c.l.b16 %v1683
    %v4597 = vunpack.c.h.b16 %v1683
    %v4598 = vunpack.c.l.b16 %v1684
    %v4599 = vunpack.c.h.b16 %v1684
    %v4600 = vunpack.c.l.b16 %v1685
    %v4601 = vunpack.c.h.b16 %v1685
    %v4602 = vunpack.c.l.b16 %v1686
    %v4603 = vunpack.c.h.b16 %v1686
    %v4604 = vunpack.c.l.b16 %v1687
    %v4605 = vunpack.c.h.b16 %v1687
    %v4606 = vunpack.c.l.b16 %v1688
    %v4607 = vunpack.c.h.b16 %v1688
    %v4608 = vunpack.c.l.b16 %v1689
    %v4609 = vunpack.c.h.b16 %v1689
    %v4610 = vunpack.c.l.b16 %v1690
    %v4611 = vunpack.c.h.b16 %v1690
    %v4612 = vunpack.c.l.b16 %v1691
    %v4613 = vunpack.c.h.b16 %v1691
    %v4614 = vunpack.c.l.b16 %v1692
    %v4615 = vunpack.c.h.b16 %v1692
    %v4616 = vunpack.c.l.b16 %v1693
    %v4617 = vunpack.c.h.b16 %v1693
    %v4618 = vunpack.c.l.b16 %v1694
    %v4619 = vunpack.c.h.b16 %v1694
    %v4620 = vunpack.c.l.b16 %v1695
    %v4621 = vunpack.c.h.b16 %v1695
    %v4622 = vunpack.c.l.b16 %v1696
    %v4623 = vunpack.c.h.b16 %v1696
    %v4624 = vunpack.c.l.b16 %v1697
    %v4625 = vunpack.c.h.b16 %v1697
    %v4626 = vunpack.c.l.b16 %v1698
    %v4627 = vunpack.c.h.b16 %v1698
    %v4628 = vunpack.c.l.b16 %v1699
    %v4629 = vunpack.c.h.b16 %v1699
    %v4630 = vunpack.c.l.b16 %v1700
    %v4631 = vunpack.c.h.b16 %v1700
    %v4632 = vunpack.c.l.b16 %v1701
    %v4633 = vunpack.c.h.b16 %v1701
    %v4634 = vunpack.c.l.b16 %v1702
    %v4635 = vunpack.c.h.b16 %v1702
    %v4636 = vunpack.c.l.b16 %v1703
    %v4637 = vunpack.c.h.b16 %v1703
    %v4638 = vunpack.c.l.b16 %v1704
    %v4639 = vunpack.c.h.b16 %v1704
    %v4640 = vunpack.c.l.b16 %v1705
    %v4641 = vunpack.c.h.b16 %v1705
    %v4642 = vunpack.c.l.b16 %v1706
    %v4643 = vunpack.c.h.b16 %v1706
    %v4644 = vunpack.c.l.b16 %v1707
    %v4645 = vunpack.c.h.b16 %v1707
    %v4646 = vunpack.c.l.b16 %v1708
    %v4647 = vunpack.c.h.b16 %v1708
    %v4648 = vunpack.c.l.b16 %v1709
    %v4649 = vunpack.c.h.b16 %v1709
    %v4650 = vunpack.c.l.b16 %v1710
    %v4651 = vunpack.c.h.b16 %v1710
    %v4652 = vunpack.c.l.b16 %v1711
    %v4653 = vunpack.c.h.b16 %v1711
    %v4654 = vunpack.c.l.b16 %v1712
    %v4655 = vunpack.c.h.b16 %v1712
    %v4656 = vunpack.c.l.b16 %v1713
    %v4657 = vunpack.c.h.b16 %v1713
    %v4658 = vunpack.c.l.b16 %v1714
    %v4659 = vunpack.c.h.b16 %v1714
    %v4660 = vunpack.c.l.b16 %v1715
    %v4661 = vunpack.c.h.b16 %v1715
    %v4662 = vunpack.c.l.b16 %v1716
    %v4663 = vunpack.c.h.b16 %v1716
    %v4664 = vunpack.c.l.b16 %v1717
    %v4665 = vunpack.c.h.b16 %v1717
    %v4666 = vunpack.c.l.b16 %v1718
    %v4667 = vunpack.c.h.b16 %v1718
    %v4668 = vunpack.c.l.b16 %v1719
    %v4669 = vunpack.c.h.b16 %v1719
    %v4670 = vunpack.c.l.b16 %v1720
    %v4671 = vunpack.c.h.b16 %v1720
    %v4672 = vunpack.c.l.b16 %v1721
    %v4673 = vunpack.c.h.b16 %v1721
    %v4674 = vunpack.c.l.b16 %v1722
    %v4675 = vunpack.c.h.b16 %v1722
    %v4676 = vunpack.c.l.b16 %v1723
    %v4677 = vunpack.c.h.b16 %v1723
    %v4678 = vunpack.c.l.b16 %v1724
    %v4679 = vunpack.c.h.b16 %v1724
    %v4680 = vunpack.c.l.b16 %v1725
    %v4681 = vunpack.c.h.b16 %v1725
    %v4682 = vunpack.c.l.b16 %v1726
    %v4683 = vunpack.c.h.b16 %v1726
    %v4684 = vunpack.c.l.b16 %v1727
    %v4685 = vunpack.c.h.b16 %v1727
    %v4686 = vunpack.c.l.b16 %v1728
    %v4687 = vunpack.c.h.b16 %v1728
    %v4688 = vunpack.c.l.b16 %v1729
    %v4689 = vunpack.c.h.b16 %v1729
    %v4690 = vunpack.c.l.b16 %v1730
    %v4691 = vunpack.c.h.b16 %v1730
    %v4692 = vunpack.c.l.b16 %v1731
    %v4693 = vunpack.c.h.b16 %v1731
    %v4694 = vunpack.c.l.b16 %v1732
    %v4695 = vunpack.c.h.b16 %v1732
    %v4696 = vunpack.c.l.b16 %v1733
    %v4697 = vunpack.c.h.b16 %v1733
    %v4698 = vunpack.c.l.b16 %v1734
    %v4699 = vunpack.c.h.b16 %v1734
    %v4700 = vunpack.c.l.b16 %v1735
    %v4701 = vunpack.c.h.b16 %v1735
    %v4702 = vunpack.c.l.b16 %v1736
    %v4703 = vunpack.c.h.b16 %v1736
    %v4704 = vunpack.c.l.b16 %v1737
    %v4705 = vunpack.c.h.b16 %v1737
    %v4706 = vunpack.c.l.b16 %v1738
    %v4707 = vunpack.c.h.b16 %v1738
    %v4708 = vunpack.c.l.b16 %v1739
    %v4709 = vunpack.c.h.b16 %v1739
    %v4710 = vunpack.c.l.b16 %v1740
    %v4711 = vunpack.c.h.b16 %v1740
    %v4712 = vunpack.c.l.b16 %v1741
    %v4713 = vunpack.c.h.b16 %v1741
    %v4714 = vunpack.c.l.b16 %v1742
    %v4715 = vunpack.c.h.b16 %v1742
    %v4716 = vunpack.c.l.b16 %v1743
    %v4717 = vunpack.c.h.b16 %v1743
    %v4718 = vunpack.c.l.b16 %v1744
    %v4719 = vunpack.c.h.b16 %v1744
    %v4720 = vunpack.c.l.b16 %v1745
    %v4721 = vunpack.c.h.b16 %v1745
    %v4722 = vunpack.c.l.b16 %v1746
    %v4723 = vunpack.c.h.b16 %v1746
    %v4724 = vunpack.c.l.b16 %v1747
    %v4725 = vunpack.c.h.b16 %v1747
    %v4726 = vunpack.c.l.b16 %v1748
    %v4727 = vunpack.c.h.b16 %v1748
    %v4728 = vunpack.c.l.b16 %v1749
    %v4729 = vunpack.c.h.b16 %v1749
    %v4730 = vunpack.c.l.b16 %v1750
    %v4731 = vunpack.c.h.b16 %v1750
    %v4732 = vunpack.c.l.b16 %v1751
    %v4733 = vunpack.c.h.b16 %v1751
    %v4734 = vunpack.c.l.b16 %v1752
    %v4735 = vunpack.c.h.b16 %v1752
    %v4736 = vunpack.c.l.b16 %v1753
    %v4737 = vunpack.c.h.b16 %v1753
    %v4738 = vunpack.c.l.b16 %v1754
    %v4739 = vunpack.c.h.b16 %v1754
    %v4740 = vunpack.c.l.b16 %v1755
    %v4741 = vunpack.c.h.b16 %v1755
    %v4742 = vunpack.c.l.b16 %v1756
    %v4743 = vunpack.c.h.b16 %v1756
    %v4744 = vunpack.c.l.b16 %v1757
    %v4745 = vunpack.c.h.b16 %v1757
    %v4746 = vunpack.c.l.b16 %v1758
    %v4747 = vunpack.c.h.b16 %v1758
    %v4748 = vunpack.c.l.b16 %v1759
    %v4749 = vunpack.c.h.b16 %v1759
    %v4750 = vunpack.c.l.b16 %v1760
    %v4751 = vunpack.c.h.b16 %v1760
    %v4752 = vunpack.c.l.b16 %v1761
    %v4753 = vunpack.c.h.b16 %v1761
    %v4754 = vunpack.c.l.b16 %v1762
    %v4755 = vunpack.c.h.b16 %v1762
    %v4756 = vunpack.c.l.b16 %v1763
    %v4757 = vunpack.c.h.b16 %v1763
    %v4758 = vunpack.c.l.b16 %v1764
    %v4759 = vunpack.c.h.b16 %v1764
    %v4760 = vunpack.c.l.b16 %v1765
    %v4761 = vunpack.c.h.b16 %v1765
    %v4762 = vunpack.c.l.b16 %v1766
    %v4763 = vunpack.c.h.b16 %v1766
    %v4764 = vunpack.c.l.b16 %v1767
    %v4765 = vunpack.c.h.b16 %v1767
    %v4766 = vunpack.c.l.b16 %v1768
    %v4767 = vunpack.c.h.b16 %v1768
    %v4768 = vunpack.c.l.b16 %v1769
    %v4769 = vunpack.c.h.b16 %v1769
    %v4770 = vunpack.c.l.b16 %v1770
    %v4771 = vunpack.c.h.b16 %v1770
    %v4772 = vunpack.c.l.b16 %v1771
    %v4773 = vunpack.c.h.b16 %v1771
    %v4774 = vunpack.c.l.b16 %v1772
    %v4775 = vunpack.c.h.b16 %v1772
    %v4776 = vunpack.c.l.b16 %v1773
    %v4777 = vunpack.c.h.b16 %v1773
    %v4778 = vunpack.c.l.b16 %v1774
    %v4779 = vunpack.c.h.b16 %v1774
    %v4780 = vunpack.c.l.b16 %v1775
    %v4781 = vunpack.c.h.b16 %v1775
    %v4782 = vunpack.c.l.b16 %v1776
    %v4783 = vunpack.c.h.b16 %v1776
    %v4784 = vunpack.c.l.b16 %v1777
    %v4785 = vunpack.c.h.b16 %v1777
    %v4786 = vunpack.c.l.b16 %v1778
    %v4787 = vunpack.c.h.b16 %v1778
    %v4788 = vunpack.c.l.b16 %v1779
    %v4789 = vunpack.c.h.b16 %v1779
    %v4790 = vunpack.c.l.b16 %v1780
    %v4791 = vunpack.c.h.b16 %v1780
    %v4792 = vunpack.c.l.b16 %v1781
    %v4793 = vunpack.c.h.b16 %v1781
    %v4794 = vunpack.c.l.b16 %v1782
    %v4795 = vunpack.c.h.b16 %v1782
    %v4796 = vunpack.c.l.b16 %v1783
    %v4797 = vunpack.c.h.b16 %v1783
    %v4798 = vunpack.c.l.b16 %v1784
    %v4799 = vunpack.c.h.b16 %v1784
    %v4800 = vunpack.c.l.b16 %v1785
    %v4801 = vunpack.c.h.b16 %v1785
    %v4802 = vunpack.c.l.b16 %v1786
    %v4803 = vunpack.c.h.b16 %v1786
    %v4804 = vunpack.c.l.b16 %v1787
    %v4805 = vunpack.c.h.b16 %v1787
    %v4806 = vunpack.c.l.b16 %v1788
    %v4807 = vunpack.c.h.b16 %v1788
    %v4808 = vunpack.c.l.b16 %v1789
    %v4809 = vunpack.c.h.b16 %v1789
    %v4810 = vunpack.c.l.b16 %v1790
    %v4811 = vunpack.c.h.b16 %v1790
    %v4812 = vunpack.c.l.b16 %v1791
    %v4813 = vunpack.c.h.b16 %v1791
    %v4814 = vunpack.c.l.b16 %v1792
    %v4815 = vunpack.c.h.b16 %v1792
    %v4816 = vunpack.c.l.b16 %v1793
    %v4817 = vunpack.c.h.b16 %v1793
    %v4818 = vunpack.c.l.b16 %v1794
    %v4819 = vunpack.c.h.b16 %v1794
    %v4820 = vunpack.c.l.b16 %v1795
    %v4821 = vunpack.c.h.b16 %v1795
    %v4822 = vunpack.c.l.b16 %v1796
    %v4823 = vunpack.c.h.b16 %v1796
    %v4824 = vunpack.c.l.b16 %v1797
    %v4825 = vunpack.c.h.b16 %v1797
    %v4826 = vunpack.c.l.b16 %v1798
    %v4827 = vunpack.c.h.b16 %v1798
    %v4828 = vunpack.c.l.b16 %v1799
    %v4829 = vunpack.c.h.b16 %v1799
    %v4830 = vunpack.c.l.b16 %v1800
    %v4831 = vunpack.c.h.b16 %v1800
    %v4832 = vunpack.c.l.b16 %v1801
    %v4833 = vunpack.c.h.b16 %v1801
    %v4834 = vunpack.c.l.b16 %v1802
    %v4835 = vunpack.c.h.b16 %v1802
    %v4836 = vunpack.c.l.b16 %v1803
    %v4837 = vunpack.c.h.b16 %v1803
    %v4838 = vunpack.c.l.b16 %v1804
    %v4839 = vunpack.c.h.b16 %v1804
    %v4840 = vunpack.c.l.b16 %v1805
    %v4841 = vunpack.c.h.b16 %v1805
    %v4842 = vunpack.c.l.b16 %v1806
    %v4843 = vunpack.c.h.b16 %v1806
    %v4844 = vunpack.c.l.b16 %v1807
    %v4845 = vunpack.c.h.b16 %v1807
    %v4846 = vunpack.c.l.b16 %v1808
    %v4847 = vunpack.c.h.b16 %v1808
    %v4848 = vunpack.c.l.b16 %v1809
    %v4849 = vunpack.c.h.b16 %v1809
    %v4850 = vunpack.c.l.b16 %v1810
    %v4851 = vunpack.c.h.b16 %v1810
    %v4852 = vunpack.c.l.b16 %v1811
    %v4853 = vunpack.c.h.b16 %v1811
    %v4854 = vunpack.c.l.b16 %v1812
    %v4855 = vunpack.c.h.b16 %v1812
    %v4856 = vunpack.c.l.b16 %v1813
    %v4857 = vunpack.c.h.b16 %v1813
    %v4858 = vunpack.c.l.b16 %v1814
    %v4859 = vunpack.c.h.b16 %v1814
    %v4860 = vunpack.c.l.b16 %v1815
    %v4861 = vunpack.c.h.b16 %v1815
    %v4862 = vunpack.c.l.b16 %v1816
    %v4863 = vunpack.c.h.b16 %v1816
    %v4864 = vunpack.c.l.b16 %v1817
    %v4865 = vunpack.c.h.b16 %v1817
    %v4866 = vunpack.c.l.b16 %v1818
    %v4867 = vunpack.c.h.b16 %v1818
    %v4868 = vunpack.c.l.b16 %v1819
    %v4869 = vunpack.c.h.b16 %v1819
    %v4870 = vunpack.c.l.b16 %v1820
    %v4871 = vunpack.c.h.b16 %v1820
    %v4872 = vunpack.c.l.b16 %v1821
    %v4873 = vunpack.c.h.b16 %v1821
    %v4874 = vunpack.c.l.b16 %v1822
    %v4875 = vunpack.c.h.b16 %v1822
    %v4876 = vunpack.c.l.b16 %v1823
    %v4877 = vunpack.c.h.b16 %v1823
    %v4878 = vunpack.c.l.b16 %v1824
    %v4879 = vunpack.c.h.b16 %v1824
    %v4880 = vunpack.c.l.b16 %v1825
    %v4881 = vunpack.c.h.b16 %v1825
    %v4882 = vunpack.c.l.b16 %v1826
    %v4883 = vunpack.c.h.b16 %v1826
    %v4884 = vunpack.c.l.b16 %v1827
    %v4885 = vunpack.c.h.b16 %v1827
    %v4886 = vunpack.c.l.b16 %v1828
    %v4887 = vunpack.c.h.b16 %v1828
    %v4888 = vunpack.c.l.b16 %v1829
    %v4889 = vunpack.c.h.b16 %v1829
    %v4890 = vunpack.c.l.b16 %v1830
    %v4891 = vunpack.c.h.b16 %v1830
    %v4892 = vunpack.c.l.b16 %v1831
    %v4893 = vunpack.c.h.b16 %v1831
    %v4894 = vunpack.c.l.b16 %v1832
    %v4895 = vunpack.c.h.b16 %v1832
    %v4896 = vunpack.c.l.b16 %v1833
    %v4897 = vunpack.c.h.b16 %v1833
    %v4898 = vunpack.c.l.b16 %v1834
    %v4899 = vunpack.c.h.b16 %v1834
    %v4900 = vunpack.c.l.b16 %v1835
    %v4901 = vunpack.c.h.b16 %v1835
    %v4902 = vunpack.c.l.b16 %v1836
    %v4903 = vunpack.c.h.b16 %v1836
    %v4904 = vunpack.c.l.b16 %v1837
    %v4905 = vunpack.c.h.b16 %v1837
    %v4906 = vunpack.c.l.b16 %v1838
    %v4907 = vunpack.c.h.b16 %v1838
    %v4908 = vunpack.c.l.b16 %v1839
    %v4909 = vunpack.c.h.b16 %v1839
    %v4910 = vunpack.c.l.b16 %v1840
    %v4911 = vunpack.c.h.b16 %v1840
    %v4912 = vunpack.c.l.b16 %v1841
    %v4913 = vunpack.c.h.b16 %v1841
    %v4914 = vunpack.c.l.b16 %v1842
    %v4915 = vunpack.c.h.b16 %v1842
    %v4916 = vunpack.c.l.b16 %v1843
    %v4917 = vunpack.c.h.b16 %v1843
    %v4918 = vunpack.c.l.b16 %v1844
    %v4919 = vunpack.c.h.b16 %v1844
    %v4920 = vunpack.c.l.b16 %v1845
    %v4921 = vunpack.c.h.b16 %v1845
    %v4922 = vunpack.c.l.b16 %v1846
    %v4923 = vunpack.c.h.b16 %v1846
    %v4924 = vunpack.c.l.b16 %v1847
    %v4925 = vunpack.c.h.b16 %v1847
    %v4926 = vunpack.c.l.b16 %v1848
    %v4927 = vunpack.c.h.b16 %v1848
    %v4928 = vunpack.c.l.b16 %v1849
    %v4929 = vunpack.c.h.b16 %v1849
    %v4930 = vunpack.c.l.b16 %v1850
    %v4931 = vunpack.c.h.b16 %v1850
    %v4932 = vunpack.c.l.b16 %v1851
    %v4933 = vunpack.c.h.b16 %v1851
    %v4934 = vunpack.c.l.b16 %v1852
    %v4935 = vunpack.c.h.b16 %v1852
    %v4936 = vunpack.c.l.b16 %v1853
    %v4937 = vunpack.c.h.b16 %v1853
    %v4938 = vunpack.c.l.b16 %v1854
    %v4939 = vunpack.c.h.b16 %v1854
    %v4940 = vunpack.c.l.b16 %v1855
    %v4941 = vunpack.c.h.b16 %v1855
    %v4942 = vunpack.c.l.b16 %v1856
    %v4943 = vunpack.c.h.b16 %v1856
    %v4944 = vunpack.c.l.b16 %v1857
    %v4945 = vunpack.c.h.b16 %v1857
    %v4946 = vunpack.c.l.b16 %v1858
    %v4947 = vunpack.c.h.b16 %v1858
    %v4948 = vunpack.c.l.b16 %v1859
    %v4949 = vunpack.c.h.b16 %v1859
    %v4950 = vunpack.c.l.b16 %v1860
    %v4951 = vunpack.c.h.b16 %v1860
    %v4952 = vunpack.c.l.b16 %v1861
    %v4953 = vunpack.c.h.b16 %v1861
    %v4954 = vunpack.c.l.b16 %v1862
    %v4955 = vunpack.c.h.b16 %v1862
    %v4956 = vunpack.c.l.b16 %v1863
    %v4957 = vunpack.c.h.b16 %v1863
    %v4958 = vunpack.c.l.b16 %v1864
    %v4959 = vunpack.c.h.b16 %v1864
    %v4960 = vunpack.c.l.b16 %v1865
    %v4961 = vunpack.c.h.b16 %v1865
    %v4962 = vunpack.c.l.b16 %v1866
    %v4963 = vunpack.c.h.b16 %v1866
    %v4964 = vunpack.c.l.b16 %v1867
    %v4965 = vunpack.c.h.b16 %v1867
    %v4966 = vunpack.c.l.b16 %v1868
    %v4967 = vunpack.c.h.b16 %v1868
    %v4968 = vunpack.c.l.b16 %v1869
    %v4969 = vunpack.c.h.b16 %v1869
    %v4970 = vunpack.c.l.b16 %v1870
    %v4971 = vunpack.c.h.b16 %v1870
    %v4972 = vunpack.c.l.b16 %v1871
    %v4973 = vunpack.c.h.b16 %v1871
    %v4974 = vunpack.c.l.b16 %v1872
    %v4975 = vunpack.c.h.b16 %v1872
    %v4976 = vunpack.c.l.b16 %v1873
    %v4977 = vunpack.c.h.b16 %v1873
    %v4978 = vunpack.c.l.b16 %v1874
    %v4979 = vunpack.c.h.b16 %v1874
    %v4980 = vunpack.c.l.b16 %v1875
    %v4981 = vunpack.c.h.b16 %v1875
    %v4982 = vunpack.c.l.b16 %v1876
    %v4983 = vunpack.c.h.b16 %v1876
    %v4984 = vunpack.c.l.b16 %v1877
    %v4985 = vunpack.c.h.b16 %v1877
    %v4986 = vunpack.c.l.b16 %v1878
    %v4987 = vunpack.c.h.b16 %v1878
    %v4988 = vunpack.c.l.b16 %v1879
    %v4989 = vunpack.c.h.b16 %v1879
    %v4990 = vunpack.c.l.b16 %v1880
    %v4991 = vunpack.c.h.b16 %v1880
    %v4992 = vunpack.c.l.b16 %v1881
    %v4993 = vunpack.c.h.b16 %v1881
    %v4994 = vunpack.c.l.b16 %v1882
    %v4995 = vunpack.c.h.b16 %v1882
    %v4996 = vunpack.c.l.b16 %v1883
    %v4997 = vunpack.c.h.b16 %v1883
    %v4998 = vpack.c.b16 %v2958, %v2950
    %v4999 = vpack.c.b16 %v2959, %v2951
    %v5000 = vpack.c.b16 %v2960, %v2952
    %v5001 = vpack.c.b16 %v2961, %v2953
    %v5002 = vpack.c.b16 %v2962, %v2954
    %v5003 = vpack.c.b16 %v2963, %v2955
    %v5004 = vpack.c.b16 %v2964, %v2956
    %v5005 = vpack.c.b16 %v2965, %v2957
    %v5006 = vpack.c.b16 %v2974, %v2966
    %v5007 = vpack.c.b16 %v2975, %v2967
    %v5008 = vpack.c.b16 %v2976, %v2968
    %v5009 = vpack.c.b16 %v2977, %v2969
    %v5010 = vpack.c.b16 %v2978, %v2970
    %v5011 = vpack.c.b16 %v2979, %v2971
    %v5012 = vpack.c.b16 %v2980, %v2972
    %v5013 = vpack.c.b16 %v2981, %v2973
    %v5014 = vpack.c.b16 %v2990, %v2982
    %v5015 = vpack.c.b16 %v2991, %v2983
    %v5016 = vpack.c.b16 %v2992, %v2984
    %v5017 = vpack.c.b16 %v2993, %v2985
    %v5018 = vpack.c.b16 %v2994, %v2986
    %v5019 = vpack.c.b16 %v2995, %v2987
    %v5020 = vpack.c.b16 %v2996, %v2988
    %v5021 = vpack.c.b16 %v2997, %v2989
    %v5022 = vpack.c.b16 %v3006, %v2998
    %v5023 = vpack.c.b16 %v3007, %v2999
    %v5024 = vpack.c.b16 %v3008, %v3000
    %v5025 = vpack.c.b16 %v3009, %v3001
    %v5026 = vpack.c.b16 %v3010, %v3002
    %v5027 = vpack.c.b16 %v3011, %v3003
    %v5028 = vpack.c.b16 %v3012, %v3004
    %v5029 = vpack.c.b16 %v3013, %v3005
    %v5030 = vpack.c.b16 %v3022, %v3014
    %v5031 = vpack.c.b16 %v3023, %v3015
    %v5032 = vpack.c.b16 %v3024, %v3016
    %v5033 = vpack.c.b16 %v3025, %v3017
    %v5034 = vpack.c.b16 %v3026, %v3018
    %v5035 = vpack.c.b16 %v3027, %v3019
    %v5036 = vpack.c.b16 %v3028, %v3020
    %v5037 = vpack.c.b16 %v3029, %v3021
    %v5038 = vpack.c.b16 %v3038, %v3030
    %v5039 = vpack.c.b16 %v3039, %v3031
    %v5040 = vpack.c.b16 %v3040, %v3032
    %v5041 = vpack.c.b16 %v3041, %v3033
    %v5042 = vpack.c.b16 %v3042, %v3034
    %v5043 = vpack.c.b16 %v3043, %v3035
    %v5044 = vpack.c.b16 %v3044, %v3036
    %v5045 = vpack.c.b16 %v3045, %v3037
    %v5046 = vpack.c.b16 %v3054, %v3046
    %v5047 = vpack.c.b16 %v3055, %v3047
    %v5048 = vpack.c.b16 %v3056, %v3048
    %v5049 = vpack.c.b16 %v3057, %v3049
    %v5050 = vpack.c.b16 %v3058, %v3050
    %v5051 = vpack.c.b16 %v3059, %v3051
    %v5052 = vpack.c.b16 %v3060, %v3052
    %v5053 = vpack.c.b16 %v3061, %v3053
    %v5054 = vpack.c.b16 %v3070, %v3062
    %v5055 = vpack.c.b16 %v3071, %v3063
    %v5056 = vpack.c.b16 %v3072, %v3064
    %v5057 = vpack.c.b16 %v3073, %v3065
    %v5058 = vpack.c.b16 %v3074, %v3066
    %v5059 = vpack.c.b16 %v3075, %v3067
    %v5060 = vpack.c.b16 %v3076, %v3068
    %v5061 = vpack.c.b16 %v3077, %v3069
    %v5062 = vpack.c.b16 %v3086, %v3078
    %v5063 = vpack.c.b16 %v3087, %v3079
    %v5064 = vpack.c.b16 %v3088, %v3080
    %v5065 = vpack.c.b16 %v3089, %v3081
    %v5066 = vpack.c.b16 %v3090, %v3082
    %v5067 = vpack.c.b16 %v3091, %v3083
    %v5068 = vpack.c.b16 %v3092, %v3084
    %v5069 = vpack.c.b16 %v3093, %v3085
    %v5070 = vpack.c.b16 %v3102, %v3094
    %v5071 = vpack.c.b16 %v3103, %v3095
    %v5072 = vpack.c.b16 %v3104, %v3096
    %v5073 = vpack.c.b16 %v3105, %v3097
    %v5074 = vpack.c.b16 %v3106, %v3098
    %v5075 = vpack.c.b16 %v3107, %v3099
    %v5076 = vpack.c.b16 %v3108, %v3100
    %v5077 = vpack.c.b16 %v3109, %v3101
    %v5078 = vpack.c.b16 %v3118, %v3110
    %v5079 = vpack.c.b16 %v3119, %v3111
    %v5080 = vpack.c.b16 %v3120, %v3112
    %v5081 = vpack.c.b16 %v3121, %v3113
    %v5082 = vpack.c.b16 %v3122, %v3114
    %v5083 = vpack.c.b16 %v3123, %v3115
    %v5084 = vpack.c.b16 %v3124, %v3116
    %v5085 = vpack.c.b16 %v3125, %v3117
    %v5086 = vpack.c.b16 %v3134, %v3126
    %v5087 = vpack.c.b16 %v3135, %v3127
    %v5088 = vpack.c.b16 %v3136, %v3128
    %v5089 = vpack.c.b16 %v3137, %v3129
    %v5090 = vpack.c.b16 %v3138, %v3130
    %v5091 = vpack.c.b16 %v3139, %v3131
    %v5092 = vpack.c.b16 %v3140, %v3132
    %v5093 = vpack.c.b16 %v3141, %v3133
    %v5094 = vpack.c.b16 %v3150, %v3142
    %v5095 = vpack.c.b16 %v3151, %v3143
    %v5096 = vpack.c.b16 %v3152, %v3144
    %v5097 = vpack.c.b16 %v3153, %v3145
    %v5098 = vpack.c.b16 %v3154, %v3146
    %v5099 = vpack.c.b16 %v3155, %v3147
    %v5100 = vpack.c.b16 %v3156, %v3148
    %v5101 = vpack.c.b16 %v3157, %v3149
    %v5102 = vpack.c.b16 %v3166, %v3158
    %v5103 = vpack.c.b16 %v3167, %v3159
    %v5104 = vpack.c.b16 %v3168, %v3160
    %v5105 = vpack.c.b16 %v3169, %v3161
    %v5106 = vpack.c.b16 %v3170, %v3162
    %v5107 = vpack.c.b16 %v3171, %v3163
    %v5108 = vpack.c.b16 %v3172, %v3164
    %v5109 = vpack.c.b16 %v3173, %v3165
    %v5110 = vpack.c.b16 %v3182, %v3174
    %v5111 = vpack.c.b16 %v3183, %v3175
    %v5112 = vpack.c.b16 %v3184, %v3176
    %v5113 = vpack.c.b16 %v3185, %v3177
    %v5114 = vpack.c.b16 %v3186, %v3178
    %v5115 = vpack.c.b16 %v3187, %v3179
    %v5116 = vpack.c.b16 %v3188, %v3180
    %v5117 = vpack.c.b16 %v3189, %v3181
    %v5118 = vpack.c.b16 %v3198, %v3190
    %v5119 = vpack.c.b16 %v3199, %v3191
    %v5120 = vpack.c.b16 %v3200, %v3192
    %v5121 = vpack.c.b16 %v3201, %v3193
    %v5122 = vpack.c.b16 %v3202, %v3194
    %v5123 = vpack.c.b16 %v3203, %v3195
    %v5124 = vpack.c.b16 %v3204, %v3196
    %v5125 = vpack.c.b16 %v3205, %v3197
    %v5126 = vpack.c.b16 %v3214, %v3206
    %v5127 = vpack.c.b16 %v3215, %v3207
    %v5128 = vpack.c.b16 %v3216, %v3208
    %v5129 = vpack.c.b16 %v3217, %v3209
    %v5130 = vpack.c.b16 %v3218, %v3210
    %v5131 = vpack.c.b16 %v3219, %v3211
    %v5132 = vpack.c.b16 %v3220, %v3212
    %v5133 = vpack.c.b16 %v3221, %v3213
    %v5134 = vpack.c.b16 %v3230, %v3222
    %v5135 = vpack.c.b16 %v3231, %v3223
    %v5136 = vpack.c.b16 %v3232, %v3224
    %v5137 = vpack.c.b16 %v3233, %v3225
    %v5138 = vpack.c.b16 %v3234, %v3226
    %v5139 = vpack.c.b16 %v3235, %v3227
    %v5140 = vpack.c.b16 %v3236, %v3228
    %v5141 = vpack.c.b16 %v3237, %v3229
    %v5142 = vpack.c.b16 %v3246, %v3238
    %v5143 = vpack.c.b16 %v3247, %v3239
    %v5144 = vpack.c.b16 %v3248, %v3240
    %v5145 = vpack.c.b16 %v3249, %v3241
    %v5146 = vpack.c.b16 %v3250, %v3242
    %v5147 = vpack.c.b16 %v3251, %v3243
    %v5148 = vpack.c.b16 %v3252, %v3244
    %v5149 = vpack.c.b16 %v3253, %v3245
    %v5150 = vpack.c.b16 %v3262, %v3254
    %v5151 = vpack.c.b16 %v3263, %v3255
    %v5152 = vpack.c.b16 %v3264, %v3256
    %v5153 = vpack.c.b16 %v3265, %v3257
    %v5154 = vpack.c.b16 %v3266, %v3258
    %v5155 = vpack.c.b16 %v3267, %v3259
    %v5156 = vpack.c.b16 %v3268, %v3260
    %v5157 = vpack.c.b16 %v3269, %v3261
    %v5158 = vpack.c.b16 %v3278, %v3270
    %v5159 = vpack.c.b16 %v3279, %v3271
    %v5160 = vpack.c.b16 %v3280, %v3272
    %v5161 = vpack.c.b16 %v3281, %v3273
    %v5162 = vpack.c.b16 %v3282, %v3274
    %v5163 = vpack.c.b16 %v3283, %v3275
    %v5164 = vpack.c.b16 %v3284, %v3276
    %v5165 = vpack.c.b16 %v3285, %v3277
    %v5166 = vpack.c.b16 %v3294, %v3286
    %v5167 = vpack.c.b16 %v3295, %v3287
    %v5168 = vpack.c.b16 %v3296, %v3288
    %v5169 = vpack.c.b16 %v3297, %v3289
    %v5170 = vpack.c.b16 %v3298, %v3290
    %v5171 = vpack.c.b16 %v3299, %v3291
    %v5172 = vpack.c.b16 %v3300, %v3292
    %v5173 = vpack.c.b16 %v3301, %v3293
    %v5174 = vpack.c.b16 %v3310, %v3302
    %v5175 = vpack.c.b16 %v3311, %v3303
    %v5176 = vpack.c.b16 %v3312, %v3304
    %v5177 = vpack.c.b16 %v3313, %v3305
    %v5178 = vpack.c.b16 %v3314, %v3306
    %v5179 = vpack.c.b16 %v3315, %v3307
    %v5180 = vpack.c.b16 %v3316, %v3308
    %v5181 = vpack.c.b16 %v3317, %v3309
    %v5182 = vpack.c.b16 %v3326, %v3318
    %v5183 = vpack.c.b16 %v3327, %v3319
    %v5184 = vpack.c.b16 %v3328, %v3320
    %v5185 = vpack.c.b16 %v3329, %v3321
    %v5186 = vpack.c.b16 %v3330, %v3322
    %v5187 = vpack.c.b16 %v3331, %v3323
    %v5188 = vpack.c.b16 %v3332, %v3324
    %v5189 = vpack.c.b16 %v3333, %v3325
    %v5190 = vpack.c.b16 %v3342, %v3334
    %v5191 = vpack.c.b16 %v3343, %v3335
    %v5192 = vpack.c.b16 %v3344, %v3336
    %v5193 = vpack.c.b16 %v3345, %v3337
    %v5194 = vpack.c.b16 %v3346, %v3338
    %v5195 = vpack.c.b16 %v3347, %v3339
    %v5196 = vpack.c.b16 %v3348, %v3340
    %v5197 = vpack.c.b16 %v3349, %v3341
    %v5198 = vpack.c.b16 %v3358, %v3350
    %v5199 = vpack.c.b16 %v3359, %v3351
    %v5200 = vpack.c.b16 %v3360, %v3352
    %v5201 = vpack.c.b16 %v3361, %v3353
    %v5202 = vpack.c.b16 %v3362, %v3354
    %v5203 = vpack.c.b16 %v3363, %v3355
    %v5204 = vpack.c.b16 %v3364, %v3356
    %v5205 = vpack.c.b16 %v3365, %v3357
    %v5206 = vpack.c.b16 %v3374, %v3366
    %v5207 = vpack.c.b16 %v3375, %v3367
    %v5208 = vpack.c.b16 %v3376, %v3368
    %v5209 = vpack.c.b16 %v3377, %v3369
    %v5210 = vpack.c.b16 %v3378, %v3370
    %v5211 = vpack.c.b16 %v3379, %v3371
    %v5212 = vpack.c.b16 %v3380, %v3372
    %v5213 = vpack.c.b16 %v3381, %v3373
    %v5214 = vpack.c.b16 %v3390, %v3382
    %v5215 = vpack.c.b16 %v3391, %v3383
    %v5216 = vpack.c.b16 %v3392, %v3384
    %v5217 = vpack.c.b16 %v3393, %v3385
    %v5218 = vpack.c.b16 %v3394, %v3386
    %v5219 = vpack.c.b16 %v3395, %v3387
    %v5220 = vpack.c.b16 %v3396, %v3388
    %v5221 = vpack.c.b16 %v3397, %v3389
    %v5222 = vpack.c.b16 %v3406, %v3398
    %v5223 = vpack.c.b16 %v3407, %v3399
    %v5224 = vpack.c.b16 %v3408, %v3400
    %v5225 = vpack.c.b16 %v3409, %v3401
    %v5226 = vpack.c.b16 %v3410, %v3402
    %v5227 = vpack.c.b16 %v3411, %v3403
    %v5228 = vpack.c.b16 %v3412, %v3404
    %v5229 = vpack.c.b16 %v3413, %v3405
    %v5230 = vpack.c.b16 %v3422, %v3414
    %v5231 = vpack.c.b16 %v3423, %v3415
    %v5232 = vpack.c.b16 %v3424, %v3416
    %v5233 = vpack.c.b16 %v3425, %v3417
    %v5234 = vpack.c.b16 %v3426, %v3418
    %v5235 = vpack.c.b16 %v3427, %v3419
    %v5236 = vpack.c.b16 %v3428, %v3420
    %v5237 = vpack.c.b16 %v3429, %v3421
    %v5238 = vpack.c.b16 %v3438, %v3430
    %v5239 = vpack.c.b16 %v3439, %v3431
    %v5240 = vpack.c.b16 %v3440, %v3432
    %v5241 = vpack.c.b16 %v3441, %v3433
    %v5242 = vpack.c.b16 %v3442, %v3434
    %v5243 = vpack.c.b16 %v3443, %v3435
    %v5244 = vpack.c.b16 %v3444, %v3436
    %v5245 = vpack.c.b16 %v3445, %v3437
    %v5246 = vpack.c.b16 %v3454, %v3446
    %v5247 = vpack.c.b16 %v3455, %v3447
    %v5248 = vpack.c.b16 %v3456, %v3448
    %v5249 = vpack.c.b16 %v3457, %v3449
    %v5250 = vpack.c.b16 %v3458, %v3450
    %v5251 = vpack.c.b16 %v3459, %v3451
    %v5252 = vpack.c.b16 %v3460, %v3452
    %v5253 = vpack.c.b16 %v3461, %v3453
    %v5254 = vpack.c.b16 %v3470, %v3462
    %v5255 = vpack.c.b16 %v3471, %v3463
    %v5256 = vpack.c.b16 %v3472, %v3464
    %v5257 = vpack.c.b16 %v3473, %v3465
    %v5258 = vpack.c.b16 %v3474, %v3466
    %v5259 = vpack.c.b16 %v3475, %v3467
    %v5260 = vpack.c.b16 %v3476, %v3468
    %v5261 = vpack.c.b16 %v3477, %v3469
    %v5262 = vpack.c.b16 %v3486, %v3478
    %v5263 = vpack.c.b16 %v3487, %v3479
    %v5264 = vpack.c.b16 %v3488, %v3480
    %v5265 = vpack.c.b16 %v3489, %v3481
    %v5266 = vpack.c.b16 %v3490, %v3482
    %v5267 = vpack.c.b16 %v3491, %v3483
    %v5268 = vpack.c.b16 %v3492, %v3484
    %v5269 = vpack.c.b16 %v3493, %v3485
    %v5270 = vpack.c.b16 %v3502, %v3494
    %v5271 = vpack.c.b16 %v3503, %v3495
    %v5272 = vpack.c.b16 %v3504, %v3496
    %v5273 = vpack.c.b16 %v3505, %v3497
    %v5274 = vpack.c.b16 %v3506, %v3498
    %v5275 = vpack.c.b16 %v3507, %v3499
    %v5276 = vpack.c.b16 %v3508, %v3500
    %v5277 = vpack.c.b16 %v3509, %v3501
    %v5278 = vpack.c.b16 %v3518, %v3510
    %v5279 = vpack.c.b16 %v3519, %v3511
    %v5280 = vpack.c.b16 %v3520, %v3512
    %v5281 = vpack.c.b16 %v3521, %v3513
    %v5282 = vpack.c.b16 %v3522, %v3514
    %v5283 = vpack.c.b16 %v3523, %v3515
    %v5284 = vpack.c.b16 %v3524, %v3516
    %v5285 = vpack.c.b16 %v3525, %v3517
    %v5286 = vpack.c.b16 %v3534, %v3526
    %v5287 = vpack.c.b16 %v3535, %v3527
    %v5288 = vpack.c.b16 %v3536, %v3528
    %v5289 = vpack.c.b16 %v3537, %v3529
    %v5290 = vpack.c.b16 %v3538, %v3530
    %v5291 = vpack.c.b16 %v3539, %v3531
    %v5292 = vpack.c.b16 %v3540, %v3532
    %v5293 = vpack.c.b16 %v3541, %v3533
    %v5294 = vpack.c.b16 %v3550, %v3542
    %v5295 = vpack.c.b16 %v3551, %v3543
    %v5296 = vpack.c.b16 %v3552, %v3544
    %v5297 = vpack.c.b16 %v3553, %v3545
    %v5298 = vpack.c.b16 %v3554, %v3546
    %v5299 = vpack.c.b16 %v3555, %v3547
    %v5300 = vpack.c.b16 %v3556, %v3548
    %v5301 = vpack.c.b16 %v3557, %v3549
    %v5302 = vpack.c.b16 %v3566, %v3558
    %v5303 = vpack.c.b16 %v3567, %v3559
    %v5304 = vpack.c.b16 %v3568, %v3560
    %v5305 = vpack.c.b16 %v3569, %v3561
    %v5306 = vpack.c.b16 %v3570, %v3562
    %v5307 = vpack.c.b16 %v3571, %v3563
    %v5308 = vpack.c.b16 %v3572, %v3564
    %v5309 = vpack.c.b16 %v3573, %v3565
    %v5310 = vpack.c.b16 %v3582, %v3574
    %v5311 = vpack.c.b16 %v3583, %v3575
    %v5312 = vpack.c.b16 %v3584, %v3576
    %v5313 = vpack.c.b16 %v3585, %v3577
    %v5314 = vpack.c.b16 %v3586, %v3578
    %v5315 = vpack.c.b16 %v3587, %v3579
    %v5316 = vpack.c.b16 %v3588, %v3580
    %v5317 = vpack.c.b16 %v3589, %v3581
    %v5318 = vpack.c.b16 %v3598, %v3590
    %v5319 = vpack.c.b16 %v3599, %v3591
    %v5320 = vpack.c.b16 %v3600, %v3592
    %v5321 = vpack.c.b16 %v3601, %v3593
    %v5322 = vpack.c.b16 %v3602, %v3594
    %v5323 = vpack.c.b16 %v3603, %v3595
    %v5324 = vpack.c.b16 %v3604, %v3596
    %v5325 = vpack.c.b16 %v3605, %v3597
    %v5326 = vpack.c.b16 %v3614, %v3606
    %v5327 = vpack.c.b16 %v3615, %v3607
    %v5328 = vpack.c.b16 %v3616, %v3608
    %v5329 = vpack.c.b16 %v3617, %v3609
    %v5330 = vpack.c.b16 %v3618, %v3610
    %v5331 = vpack.c.b16 %v3619, %v3611
    %v5332 = vpack.c.b16 %v3620, %v3612
    %v5333 = vpack.c.b16 %v3621, %v3613
    %v5334 = vpack.c.b16 %v3630, %v3622
    %v5335 = vpack.c.b16 %v3631, %v3623
    %v5336 = vpack.c.b16 %v3632, %v3624
    %v5337 = vpack.c.b16 %v3633, %v3625
    %v5338 = vpack.c.b16 %v3634, %v3626
    %v5339 = vpack.c.b16 %v3635, %v3627
    %v5340 = vpack.c.b16 %v3636, %v3628
    %v5341 = vpack.c.b16 %v3637, %v3629
    %v5342 = vpack.c.b16 %v3646, %v3638
    %v5343 = vpack.c.b16 %v3647, %v3639
    %v5344 = vpack.c.b16 %v3648, %v3640
    %v5345 = vpack.c.b16 %v3649, %v3641
    %v5346 = vpack.c.b16 %v3650, %v3642
    %v5347 = vpack.c.b16 %v3651, %v3643
    %v5348 = vpack.c.b16 %v3652, %v3644
    %v5349 = vpack.c.b16 %v3653, %v3645
    %v5350 = vpack.c.b16 %v3662, %v3654
    %v5351 = vpack.c.b16 %v3663, %v3655
    %v5352 = vpack.c.b16 %v3664, %v3656
    %v5353 = vpack.c.b16 %v3665, %v3657
    %v5354 = vpack.c.b16 %v3666, %v3658
    %v5355 = vpack.c.b16 %v3667, %v3659
    %v5356 = vpack.c.b16 %v3668, %v3660
    %v5357 = vpack.c.b16 %v3669, %v3661
    %v5358 = vpack.c.b16 %v3678, %v3670
    %v5359 = vpack.c.b16 %v3679, %v3671
    %v5360 = vpack.c.b16 %v3680, %v3672
    %v5361 = vpack.c.b16 %v3681, %v3673
    %v5362 = vpack.c.b16 %v3682, %v3674
    %v5363 = vpack.c.b16 %v3683, %v3675
    %v5364 = vpack.c.b16 %v3684, %v3676
    %v5365 = vpack.c.b16 %v3685, %v3677
    %v5366 = vpack.c.b16 %v3694, %v3686
    %v5367 = vpack.c.b16 %v3695, %v3687
    %v5368 = vpack.c.b16 %v3696, %v3688
    %v5369 = vpack.c.b16 %v3697, %v3689
    %v5370 = vpack.c.b16 %v3698, %v3690
    %v5371 = vpack.c.b16 %v3699, %v3691
    %v5372 = vpack.c.b16 %v3700, %v3692
    %v5373 = vpack.c.b16 %v3701, %v3693
    %v5374 = vpack.c.b16 %v3710, %v3702
    %v5375 = vpack.c.b16 %v3711, %v3703
    %v5376 = vpack.c.b16 %v3712, %v3704
    %v5377 = vpack.c.b16 %v3713, %v3705
    %v5378 = vpack.c.b16 %v3714, %v3706
    %v5379 = vpack.c.b16 %v3715, %v3707
    %v5380 = vpack.c.b16 %v3716, %v3708
    %v5381 = vpack.c.b16 %v3717, %v3709
    %v5382 = vpack.c.b16 %v3726, %v3718
    %v5383 = vpack.c.b16 %v3727, %v3719
    %v5384 = vpack.c.b16 %v3728, %v3720
    %v5385 = vpack.c.b16 %v3729, %v3721
    %v5386 = vpack.c.b16 %v3730, %v3722
    %v5387 = vpack.c.b16 %v3731, %v3723
    %v5388 = vpack.c.b16 %v3732, %v3724
    %v5389 = vpack.c.b16 %v3733, %v3725
    %v5390 = vpack.c.b16 %v3742, %v3734
    %v5391 = vpack.c.b16 %v3743, %v3735
    %v5392 = vpack.c.b16 %v3744, %v3736
    %v5393 = vpack.c.b16 %v3745, %v3737
    %v5394 = vpack.c.b16 %v3746, %v3738
    %v5395 = vpack.c.b16 %v3747, %v3739
    %v5396 = vpack.c.b16 %v3748, %v3740
    %v5397 = vpack.c.b16 %v3749, %v3741
    %v5398 = vpack.c.b16 %v3758, %v3750
    %v5399 = vpack.c.b16 %v3759, %v3751
    %v5400 = vpack.c.b16 %v3760, %v3752
    %v5401 = vpack.c.b16 %v3761, %v3753
    %v5402 = vpack.c.b16 %v3762, %v3754
    %v5403 = vpack.c.b16 %v3763, %v3755
    %v5404 = vpack.c.b16 %v3764, %v3756
    %v5405 = vpack.c.b16 %v3765, %v3757
    %v5406 = vpack.c.b16 %v3774, %v3766
    %v5407 = vpack.c.b16 %v3775, %v3767
    %v5408 = vpack.c.b16 %v3776, %v3768
    %v5409 = vpack.c.b16 %v3777, %v3769
    %v5410 = vpack.c.b16 %v3778, %v3770
    %v5411 = vpack.c.b16 %v3779, %v3771
    %v5412 = vpack.c.b16 %v3780, %v3772
    %v5413 = vpack.c.b16 %v3781, %v3773
    %v5414 = vpack.c.b16 %v3790, %v3782
    %v5415 = vpack.c.b16 %v3791, %v3783
    %v5416 = vpack.c.b16 %v3792, %v3784
    %v5417 = vpack.c.b16 %v3793, %v3785
    %v5418 = vpack.c.b16 %v3794, %v3786
    %v5419 = vpack.c.b16 %v3795, %v3787
    %v5420 = vpack.c.b16 %v3796, %v3788
    %v5421 = vpack.c.b16 %v3797, %v3789
    %v5422 = vpack.c.b16 %v3806, %v3798
    %v5423 = vpack.c.b16 %v3807, %v3799
    %v5424 = vpack.c.b16 %v3808, %v3800
    %v5425 = vpack.c.b16 %v3809, %v3801
    %v5426 = vpack.c.b16 %v3810, %v3802
    %v5427 = vpack.c.b16 %v3811, %v3803
    %v5428 = vpack.c.b16 %v3812, %v3804
    %v5429 = vpack.c.b16 %v3813, %v3805
    %v5430 = vpack.c.b16 %v3822, %v3814
    %v5431 = vpack.c.b16 %v3823, %v3815
    %v5432 = vpack.c.b16 %v3824, %v3816
    %v5433 = vpack.c.b16 %v3825, %v3817
    %v5434 = vpack.c.b16 %v3826, %v3818
    %v5435 = vpack.c.b16 %v3827, %v3819
    %v5436 = vpack.c.b16 %v3828, %v3820
    %v5437 = vpack.c.b16 %v3829, %v3821
    %v5438 = vpack.c.b16 %v3838, %v3830
    %v5439 = vpack.c.b16 %v3839, %v3831
    %v5440 = vpack.c.b16 %v3840, %v3832
    %v5441 = vpack.c.b16 %v3841, %v3833
    %v5442 = vpack.c.b16 %v3842, %v3834
    %v5443 = vpack.c.b16 %v3843, %v3835
    %v5444 = vpack.c.b16 %v3844, %v3836
    %v5445 = vpack.c.b16 %v3845, %v3837
    %v5446 = vpack.c.b16 %v3854, %v3846
    %v5447 = vpack.c.b16 %v3855, %v3847
    %v5448 = vpack.c.b16 %v3856, %v3848
    %v5449 = vpack.c.b16 %v3857, %v3849
    %v5450 = vpack.c.b16 %v3858, %v3850
    %v5451 = vpack.c.b16 %v3859, %v3851
    %v5452 = vpack.c.b16 %v3860, %v3852
    %v5453 = vpack.c.b16 %v3861, %v3853
    %v5454 = vpack.c.b16 %v3870, %v3862
    %v5455 = vpack.c.b16 %v3871, %v3863
    %v5456 = vpack.c.b16 %v3872, %v3864
    %v5457 = vpack.c.b16 %v3873, %v3865
    %v5458 = vpack.c.b16 %v3874, %v3866
    %v5459 = vpack.c.b16 %v3875, %v3867
    %v5460 = vpack.c.b16 %v3876, %v3868
    %v5461 = vpack.c.b16 %v3877, %v3869
    %v5462 = vpack.c.b16 %v3886, %v3878
    %v5463 = vpack.c.b16 %v3887, %v3879
    %v5464 = vpack.c.b16 %v3888, %v3880
    %v5465 = vpack.c.b16 %v3889, %v3881
    %v5466 = vpack.c.b16 %v3890, %v3882
    %v5467 = vpack.c.b16 %v3891, %v3883
    %v5468 = vpack.c.b16 %v3892, %v3884
    %v5469 = vpack.c.b16 %v3893, %v3885
    %v5470 = vpack.c.b16 %v3902, %v3894
    %v5471 = vpack.c.b16 %v3903, %v3895
    %v5472 = vpack.c.b16 %v3904, %v3896
    %v5473 = vpack.c.b16 %v3905, %v3897
    %v5474 = vpack.c.b16 %v3906, %v3898
    %v5475 = vpack.c.b16 %v3907, %v3899
    %v5476 = vpack.c.b16 %v3908, %v3900
    %v5477 = vpack.c.b16 %v3909, %v3901
    %v5478 = vpack.c.b16 %v3918, %v3910
    %v5479 = vpack.c.b16 %v3919, %v3911
    %v5480 = vpack.c.b16 %v3920, %v3912
    %v5481 = vpack.c.b16 %v3921, %v3913
    %v5482 = vpack.c.b16 %v3922, %v3914
    %v5483 = vpack.c.b16 %v3923, %v3915
    %v5484 = vpack.c.b16 %v3924, %v3916
    %v5485 = vpack.c.b16 %v3925, %v3917
    %v5486 = vpack.c.b16 %v3934, %v3926
    %v5487 = vpack.c.b16 %v3935, %v3927
    %v5488 = vpack.c.b16 %v3936, %v3928
    %v5489 = vpack.c.b16 %v3937, %v3929
    %v5490 = vpack.c.b16 %v3938, %v3930
    %v5491 = vpack.c.b16 %v3939, %v3931
    %v5492 = vpack.c.b16 %v3940, %v3932
    %v5493 = vpack.c.b16 %v3941, %v3933
    %v5494 = vpack.c.b16 %v3950, %v3942
    %v5495 = vpack.c.b16 %v3951, %v3943
    %v5496 = vpack.c.b16 %v3952, %v3944
    %v5497 = vpack.c.b16 %v3953, %v3945
    %v5498 = vpack.c.b16 %v3954, %v3946
    %v5499 = vpack.c.b16 %v3955, %v3947
    %v5500 = vpack.c.b16 %v3956, %v3948
    %v5501 = vpack.c.b16 %v3957, %v3949
    %v5502 = vpack.c.b16 %v3966, %v3958
    %v5503 = vpack.c.b16 %v3967, %v3959
    %v5504 = vpack.c.b16 %v3968, %v3960
    %v5505 = vpack.c.b16 %v3969, %v3961
    %v5506 = vpack.c.b16 %v3970, %v3962
    %v5507 = vpack.c.b16 %v3971, %v3963
    %v5508 = vpack.c.b16 %v3972, %v3964
    %v5509 = vpack.c.b16 %v3973, %v3965
    %v5510 = vpack.c.b16 %v3982, %v3974
    %v5511 = vpack.c.b16 %v3983, %v3975
    %v5512 = vpack.c.b16 %v3984, %v3976
    %v5513 = vpack.c.b16 %v3985, %v3977
    %v5514 = vpack.c.b16 %v3986, %v3978
    %v5515 = vpack.c.b16 %v3987, %v3979
    %v5516 = vpack.c.b16 %v3988, %v3980
    %v5517 = vpack.c.b16 %v3989, %v3981
    %v5518 = vpack.c.b16 %v3998, %v3990
    %v5519 = vpack.c.b16 %v3999, %v3991
    %v5520 = vpack.c.b16 %v4000, %v3992
    %v5521 = vpack.c.b16 %v4001, %v3993
    %v5522 = vpack.c.b16 %v4002, %v3994
    %v5523 = vpack.c.b16 %v4003, %v3995
    %v5524 = vpack.c.b16 %v4004, %v3996
    %v5525 = vpack.c.b16 %v4005, %v3997
    %v5526 = vpack.c.b16 %v4014, %v4006
    %v5527 = vpack.c.b16 %v4015, %v4007
    %v5528 = vpack.c.b16 %v4016, %v4008
    %v5529 = vpack.c.b16 %v4017, %v4009
    %v5530 = vpack.c.b16 %v4018, %v4010
    %v5531 = vpack.c.b16 %v4019, %v4011
    %v5532 = vpack.c.b16 %v4020, %v4012
    %v5533 = vpack.c.b16 %v4021, %v4013
    %v5534 = vpack.c.b16 %v4030, %v4022
    %v5535 = vpack.c.b16 %v4031, %v4023
    %v5536 = vpack.c.b16 %v4032, %v4024
    %v5537 = vpack.c.b16 %v4033, %v4025
    %v5538 = vpack.c.b16 %v4034, %v4026
    %v5539 = vpack.c.b16 %v4035, %v4027
    %v5540 = vpack.c.b16 %v4036, %v4028
    %v5541 = vpack.c.b16 %v4037, %v4029
    %v5542 = vpack.c.b16 %v4046, %v4038
    %v5543 = vpack.c.b16 %v4047, %v4039
    %v5544 = vpack.c.b16 %v4048, %v4040
    %v5545 = vpack.c.b16 %v4049, %v4041
    %v5546 = vpack.c.b16 %v4050, %v4042
    %v5547 = vpack.c.b16 %v4051, %v4043
    %v5548 = vpack.c.b16 %v4052, %v4044
    %v5549 = vpack.c.b16 %v4053, %v4045
    %v5550 = vpack.c.b16 %v4062, %v4054
    %v5551 = vpack.c.b16 %v4063, %v4055
    %v5552 = vpack.c.b16 %v4064, %v4056
    %v5553 = vpack.c.b16 %v4065, %v4057
    %v5554 = vpack.c.b16 %v4066, %v4058
    %v5555 = vpack.c.b16 %v4067, %v4059
    %v5556 = vpack.c.b16 %v4068, %v4060
    %v5557 = vpack.c.b16 %v4069, %v4061
    %v5558 = vpack.c.b16 %v4078, %v4070
    %v5559 = vpack.c.b16 %v4079, %v4071
    %v5560 = vpack.c.b16 %v4080, %v4072
    %v5561 = vpack.c.b16 %v4081, %v4073
    %v5562 = vpack.c.b16 %v4082, %v4074
    %v5563 = vpack.c.b16 %v4083, %v4075
    %v5564 = vpack.c.b16 %v4084, %v4076
    %v5565 = vpack.c.b16 %v4085, %v4077
    %v5566 = vpack.c.b16 %v4094, %v4086
    %v5567 = vpack.c.b16 %v4095, %v4087
    %v5568 = vpack.c.b16 %v4096, %v4088
    %v5569 = vpack.c.b16 %v4097, %v4089
    %v5570 = vpack.c.b16 %v4098, %v4090
    %v5571 = vpack.c.b16 %v4099, %v4091
    %v5572 = vpack.c.b16 %v4100, %v4092
    %v5573 = vpack.c.b16 %v4101, %v4093
    %v5574 = vpack.c.b16 %v4110, %v4102
    %v5575 = vpack.c.b16 %v4111, %v4103
    %v5576 = vpack.c.b16 %v4112, %v4104
    %v5577 = vpack.c.b16 %v4113, %v4105
    %v5578 = vpack.c.b16 %v4114, %v4106
    %v5579 = vpack.c.b16 %v4115, %v4107
    %v5580 = vpack.c.b16 %v4116, %v4108
    %v5581 = vpack.c.b16 %v4117, %v4109
    %v5582 = vpack.c.b16 %v4126, %v4118
    %v5583 = vpack.c.b16 %v4127, %v4119
    %v5584 = vpack.c.b16 %v4128, %v4120
    %v5585 = vpack.c.b16 %v4129, %v4121
    %v5586 = vpack.c.b16 %v4130, %v4122
    %v5587 = vpack.c.b16 %v4131, %v4123
    %v5588 = vpack.c.b16 %v4132, %v4124
    %v5589 = vpack.c.b16 %v4133, %v4125
    %v5590 = vpack.c.b16 %v4142, %v4134
    %v5591 = vpack.c.b16 %v4143, %v4135
    %v5592 = vpack.c.b16 %v4144, %v4136
    %v5593 = vpack.c.b16 %v4145, %v4137
    %v5594 = vpack.c.b16 %v4146, %v4138
    %v5595 = vpack.c.b16 %v4147, %v4139
    %v5596 = vpack.c.b16 %v4148, %v4140
    %v5597 = vpack.c.b16 %v4149, %v4141
    %v5598 = vpack.c.b16 %v4158, %v4150
    %v5599 = vpack.c.b16 %v4159, %v4151
    %v5600 = vpack.c.b16 %v4160, %v4152
    %v5601 = vpack.c.b16 %v4161, %v4153
    %v5602 = vpack.c.b16 %v4162, %v4154
    %v5603 = vpack.c.b16 %v4163, %v4155
    %v5604 = vpack.c.b16 %v4164, %v4156
    %v5605 = vpack.c.b16 %v4165, %v4157
    %v5606 = vpack.c.b16 %v4174, %v4166
    %v5607 = vpack.c.b16 %v4175, %v4167
    %v5608 = vpack.c.b16 %v4176, %v4168
    %v5609 = vpack.c.b16 %v4177, %v4169
    %v5610 = vpack.c.b16 %v4178, %v4170
    %v5611 = vpack.c.b16 %v4179, %v4171
    %v5612 = vpack.c.b16 %v4180, %v4172
    %v5613 = vpack.c.b16 %v4181, %v4173
    %v5614 = vpack.c.b16 %v4190, %v4182
    %v5615 = vpack.c.b16 %v4191, %v4183
    %v5616 = vpack.c.b16 %v4192, %v4184
    %v5617 = vpack.c.b16 %v4193, %v4185
    %v5618 = vpack.c.b16 %v4194, %v4186
    %v5619 = vpack.c.b16 %v4195, %v4187
    %v5620 = vpack.c.b16 %v4196, %v4188
    %v5621 = vpack.c.b16 %v4197, %v4189
    %v5622 = vpack.c.b16 %v4206, %v4198
    %v5623 = vpack.c.b16 %v4207, %v4199
    %v5624 = vpack.c.b16 %v4208, %v4200
    %v5625 = vpack.c.b16 %v4209, %v4201
    %v5626 = vpack.c.b16 %v4210, %v4202
    %v5627 = vpack.c.b16 %v4211, %v4203
    %v5628 = vpack.c.b16 %v4212, %v4204
    %v5629 = vpack.c.b16 %v4213, %v4205
    %v5630 = vpack.c.b16 %v4222, %v4214
    %v5631 = vpack.c.b16 %v4223, %v4215
    %v5632 = vpack.c.b16 %v4224, %v4216
    %v5633 = vpack.c.b16 %v4225, %v4217
    %v5634 = vpack.c.b16 %v4226, %v4218
    %v5635 = vpack.c.b16 %v4227, %v4219
    %v5636 = vpack.c.b16 %v4228, %v4220
    %v5637 = vpack.c.b16 %v4229, %v4221
    %v5638 = vpack.c.b16 %v4238, %v4230
    %v5639 = vpack.c.b16 %v4239, %v4231
    %v5640 = vpack.c.b16 %v4240, %v4232
    %v5641 = vpack.c.b16 %v4241, %v4233
    %v5642 = vpack.c.b16 %v4242, %v4234
    %v5643 = vpack.c.b16 %v4243, %v4235
    %v5644 = vpack.c.b16 %v4244, %v4236
    %v5645 = vpack.c.b16 %v4245, %v4237
    %v5646 = vpack.c.b16 %v4254, %v4246
    %v5647 = vpack.c.b16 %v4255, %v4247
    %v5648 = vpack.c.b16 %v4256, %v4248
    %v5649 = vpack.c.b16 %v4257, %v4249
    %v5650 = vpack.c.b16 %v4258, %v4250
    %v5651 = vpack.c.b16 %v4259, %v4251
    %v5652 = vpack.c.b16 %v4260, %v4252
    %v5653 = vpack.c.b16 %v4261, %v4253
    %v5654 = vpack.c.b16 %v4270, %v4262
    %v5655 = vpack.c.b16 %v4271, %v4263
    %v5656 = vpack.c.b16 %v4272, %v4264
    %v5657 = vpack.c.b16 %v4273, %v4265
    %v5658 = vpack.c.b16 %v4274, %v4266
    %v5659 = vpack.c.b16 %v4275, %v4267
    %v5660 = vpack.c.b16 %v4276, %v4268
    %v5661 = vpack.c.b16 %v4277, %v4269
    %v5662 = vpack.c.b16 %v4286, %v4278
    %v5663 = vpack.c.b16 %v4287, %v4279
    %v5664 = vpack.c.b16 %v4288, %v4280
    %v5665 = vpack.c.b16 %v4289, %v4281
    %v5666 = vpack.c.b16 %v4290, %v4282
    %v5667 = vpack.c.b16 %v4291, %v4283
    %v5668 = vpack.c.b16 %v4292, %v4284
    %v5669 = vpack.c.b16 %v4293, %v4285
    %v5670 = vpack.c.b16 %v4302, %v4294
    %v5671 = vpack.c.b16 %v4303, %v4295
    %v5672 = vpack.c.b16 %v4304, %v4296
    %v5673 = vpack.c.b16 %v4305, %v4297
    %v5674 = vpack.c.b16 %v4306, %v4298
    %v5675 = vpack.c.b16 %v4307, %v4299
    %v5676 = vpack.c.b16 %v4308, %v4300
    %v5677 = vpack.c.b16 %v4309, %v4301
    %v5678 = vpack.c.b16 %v4318, %v4310
    %v5679 = vpack.c.b16 %v4319, %v4311
    %v5680 = vpack.c.b16 %v4320, %v4312
    %v5681 = vpack.c.b16 %v4321, %v4313
    %v5682 = vpack.c.b16 %v4322, %v4314
    %v5683 = vpack.c.b16 %v4323, %v4315
    %v5684 = vpack.c.b16 %v4324, %v4316
    %v5685 = vpack.c.b16 %v4325, %v4317
    %v5686 = vpack.c.b16 %v4334, %v4326
    %v5687 = vpack.c.b16 %v4335, %v4327
    %v5688 = vpack.c.b16 %v4336, %v4328
    %v5689 = vpack.c.b16 %v4337, %v4329
    %v5690 = vpack.c.b16 %v4338, %v4330
    %v5691 = vpack.c.b16 %v4339, %v4331
    %v5692 = vpack.c.b16 %v4340, %v4332
    %v5693 = vpack.c.b16 %v4341, %v4333
    %v5694 = vpack.c.b16 %v4350, %v4342
    %v5695 = vpack.c.b16 %v4351, %v4343
    %v5696 = vpack.c.b16 %v4352, %v4344
    %v5697 = vpack.c.b16 %v4353, %v4345
    %v5698 = vpack.c.b16 %v4354, %v4346
    %v5699 = vpack.c.b16 %v4355, %v4347
    %v5700 = vpack.c.b16 %v4356, %v4348
    %v5701 = vpack.c.b16 %v4357, %v4349
    %v5702 = vpack.c.b16 %v4366, %v4358
    %v5703 = vpack.c.b16 %v4367, %v4359
    %v5704 = vpack.c.b16 %v4368, %v4360
    %v5705 = vpack.c.b16 %v4369, %v4361
    %v5706 = vpack.c.b16 %v4370, %v4362
    %v5707 = vpack.c.b16 %v4371, %v4363
    %v5708 = vpack.c.b16 %v4372, %v4364
    %v5709 = vpack.c.b16 %v4373, %v4365
    %v5710 = vpack.c.b16 %v4382, %v4374
    %v5711 = vpack.c.b16 %v4383, %v4375
    %v5712 = vpack.c.b16 %v4384, %v4376
    %v5713 = vpack.c.b16 %v4385, %v4377
    %v5714 = vpack.c.b16 %v4386, %v4378
    %v5715 = vpack.c.b16 %v4387, %v4379
    %v5716 = vpack.c.b16 %v4388, %v4380
    %v5717 = vpack.c.b16 %v4389, %v4381
    %v5718 = vpack.c.b16 %v4398, %v4390
    %v5719 = vpack.c.b16 %v4399, %v4391
    %v5720 = vpack.c.b16 %v4400, %v4392
    %v5721 = vpack.c.b16 %v4401, %v4393
    %v5722 = vpack.c.b16 %v4402, %v4394
    %v5723 = vpack.c.b16 %v4403, %v4395
    %v5724 = vpack.c.b16 %v4404, %v4396
    %v5725 = vpack.c.b16 %v4405, %v4397
    %v5726 = vpack.c.b16 %v4414, %v4406
    %v5727 = vpack.c.b16 %v4415, %v4407
    %v5728 = vpack.c.b16 %v4416, %v4408
    %v5729 = vpack.c.b16 %v4417, %v4409
    %v5730 = vpack.c.b16 %v4418, %v4410
    %v5731 = vpack.c.b16 %v4419, %v4411
    %v5732 = vpack.c.b16 %v4420, %v4412
    %v5733 = vpack.c.b16 %v4421, %v4413
    %v5734 = vpack.c.b16 %v4430, %v4422
    %v5735 = vpack.c.b16 %v4431, %v4423
    %v5736 = vpack.c.b16 %v4432, %v4424
    %v5737 = vpack.c.b16 %v4433, %v4425
    %v5738 = vpack.c.b16 %v4434, %v4426
    %v5739 = vpack.c.b16 %v4435, %v4427
    %v5740 = vpack.c.b16 %v4436, %v4428
    %v5741 = vpack.c.b16 %v4437, %v4429
    %v5742 = vpack.c.b16 %v4446, %v4438
    %v5743 = vpack.c.b16 %v4447, %v4439
    %v5744 = vpack.c.b16 %v4448, %v4440
    %v5745 = vpack.c.b16 %v4449, %v4441
    %v5746 = vpack.c.b16 %v4450, %v4442
    %v5747 = vpack.c.b16 %v4451, %v4443
    %v5748 = vpack.c.b16 %v4452, %v4444
    %v5749 = vpack.c.b16 %v4453, %v4445
    %v5750 = vpack.c.b16 %v4462, %v4454
    %v5751 = vpack.c.b16 %v4463, %v4455
    %v5752 = vpack.c.b16 %v4464, %v4456
    %v5753 = vpack.c.b16 %v4465, %v4457
    %v5754 = vpack.c.b16 %v4466, %v4458
    %v5755 = vpack.c.b16 %v4467, %v4459
    %v5756 = vpack.c.b16 %v4468, %v4460
    %v5757 = vpack.c.b16 %v4469, %v4461
    %v5758 = vpack.c.b16 %v4478, %v4470
    %v5759 = vpack.c.b16 %v4479, %v4471
    %v5760 = vpack.c.b16 %v4480, %v4472
    %v5761 = vpack.c.b16 %v4481, %v4473
    %v5762 = vpack.c.b16 %v4482, %v4474
    %v5763 = vpack.c.b16 %v4483, %v4475
    %v5764 = vpack.c.b16 %v4484, %v4476
    %v5765 = vpack.c.b16 %v4485, %v4477
    %v5766 = vpack.c.b16 %v4494, %v4486
    %v5767 = vpack.c.b16 %v4495, %v4487
    %v5768 = vpack.c.b16 %v4496, %v4488
    %v5769 = vpack.c.b16 %v4497, %v4489
    %v5770 = vpack.c.b16 %v4498, %v4490
    %v5771 = vpack.c.b16 %v4499, %v4491
    %v5772 = vpack.c.b16 %v4500, %v4492
    %v5773 = vpack.c.b16 %v4501, %v4493
    %v5774 = vpack.c.b16 %v4510, %v4502
    %v5775 = vpack.c.b16 %v4511, %v4503
    %v5776 = vpack.c.b16 %v4512, %v4504
    %v5777 = vpack.c.b16 %v4513, %v4505
    %v5778 = vpack.c.b16 %v4514, %v4506
    %v5779 = vpack.c.b16 %v4515, %v4507
    %v5780 = vpack.c.b16 %v4516, %v4508
    %v5781 = vpack.c.b16 %v4517, %v4509
    %v5782 = vpack.c.b16 %v4526, %v4518
    %v5783 = vpack.c.b16 %v4527, %v4519
    %v5784 = vpack.c.b16 %v4528, %v4520
    %v5785 = vpack.c.b16 %v4529, %v4521
    %v5786 = vpack.c.b16 %v4530, %v4522
    %v5787 = vpack.c.b16 %v4531, %v4523
    %v5788 = vpack.c.b16 %v4532, %v4524
    %v5789 = vpack.c.b16 %v4533, %v4525
    %v5790 = vpack.c.b16 %v4542, %v4534
    %v5791 = vpack.c.b16 %v4543, %v4535
    %v5792 = vpack.c.b16 %v4544, %v4536
    %v5793 = vpack.c.b16 %v4545, %v4537
    %v5794 = vpack.c.b16 %v4546, %v4538
    %v5795 = vpack.c.b16 %v4547, %v4539
    %v5796 = vpack.c.b16 %v4548, %v4540
    %v5797 = vpack.c.b16 %v4549, %v4541
    %v5798 = vpack.c.b16 %v4558, %v4550
    %v5799 = vpack.c.b16 %v4559, %v4551
    %v5800 = vpack.c.b16 %v4560, %v4552
    %v5801 = vpack.c.b16 %v4561, %v4553
    %v5802 = vpack.c.b16 %v4562, %v4554
    %v5803 = vpack.c.b16 %v4563, %v4555
    %v5804 = vpack.c.b16 %v4564, %v4556
    %v5805 = vpack.c.b16 %v4565, %v4557
    %v5806 = vpack.c.b16 %v4574, %v4566
    %v5807 = vpack.c.b16 %v4575, %v4567
    %v5808 = vpack.c.b16 %v4576, %v4568
    %v5809 = vpack.c.b16 %v4577, %v4569
    %v5810 = vpack.c.b16 %v4578, %v4570
    %v5811 = vpack.c.b16 %v4579, %v4571
    %v5812 = vpack.c.b16 %v4580, %v4572
    %v5813 = vpack.c.b16 %v4581, %v4573
    %v5814 = vpack.c.b16 %v4590, %v4582
    %v5815 = vpack.c.b16 %v4591, %v4583
    %v5816 = vpack.c.b16 %v4592, %v4584
    %v5817 = vpack.c.b16 %v4593, %v4585
    %v5818 = vpack.c.b16 %v4594, %v4586
    %v5819 = vpack.c.b16 %v4595, %v4587
    %v5820 = vpack.c.b16 %v4596, %v4588
    %v5821 = vpack.c.b16 %v4597, %v4589
    %v5822 = vpack.c.b16 %v4606, %v4598
    %v5823 = vpack.c.b16 %v4607, %v4599
    %v5824 = vpack.c.b16 %v4608, %v4600
    %v5825 = vpack.c.b16 %v4609, %v4601
    %v5826 = vpack.c.b16 %v4610, %v4602
    %v5827 = vpack.c.b16 %v4611, %v4603
    %v5828 = vpack.c.b16 %v4612, %v4604
    %v5829 = vpack.c.b16 %v4613, %v4605
    %v5830 = vpack.c.b16 %v4622, %v4614
    %v5831 = vpack.c.b16 %v4623, %v4615
    %v5832 = vpack.c.b16 %v4624, %v4616
    %v5833 = vpack.c.b16 %v4625, %v4617
    %v5834 = vpack.c.b16 %v4626, %v4618
    %v5835 = vpack.c.b16 %v4627, %v4619
    %v5836 = vpack.c.b16 %v4628, %v4620
    %v5837 = vpack.c.b16 %v4629, %v4621
    %v5838 = vpack.c.b16 %v4638, %v4630
    %v5839 = vpack.c.b16 %v4639, %v4631
    %v5840 = vpack.c.b16 %v4640, %v4632
    %v5841 = vpack.c.b16 %v4641, %v4633
    %v5842 = vpack.c.b16 %v4642, %v4634
    %v5843 = vpack.c.b16 %v4643, %v4635
    %v5844 = vpack.c.b16 %v4644, %v4636
    %v5845 = vpack.c.b16 %v4645, %v4637
    %v5846 = vpack.c.b16 %v4654, %v4646
    %v5847 = vpack.c.b16 %v4655, %v4647
    %v5848 = vpack.c.b16 %v4656, %v4648
    %v5849 = vpack.c.b16 %v4657, %v4649
    %v5850 = vpack.c.b16 %v4658, %v4650
    %v5851 = vpack.c.b16 %v4659, %v4651
    %v5852 = vpack.c.b16 %v4660, %v4652
    %v5853 = vpack.c.b16 %v4661, %v4653
    %v5854 = vpack.c.b16 %v4670, %v4662
    %v5855 = vpack.c.b16 %v4671, %v4663
    %v5856 = vpack.c.b16 %v4672, %v4664
    %v5857 = vpack.c.b16 %v4673, %v4665
    %v5858 = vpack.c.b16 %v4674, %v4666
    %v5859 = vpack.c.b16 %v4675, %v4667
    %v5860 = vpack.c.b16 %v4676, %v4668
    %v5861 = vpack.c.b16 %v4677, %v4669
    %v5862 = vpack.c.b16 %v4686, %v4678
    %v5863 = vpack.c.b16 %v4687, %v4679
    %v5864 = vpack.c.b16 %v4688, %v4680
    %v5865 = vpack.c.b16 %v4689, %v4681
    %v5866 = vpack.c.b16 %v4690, %v4682
    %v5867 = vpack.c.b16 %v4691, %v4683
    %v5868 = vpack.c.b16 %v4692, %v4684
    %v5869 = vpack.c.b16 %v4693, %v4685
    %v5870 = vpack.c.b16 %v4702, %v4694
    %v5871 = vpack.c.b16 %v4703, %v4695
    %v5872 = vpack.c.b16 %v4704, %v4696
    %v5873 = vpack.c.b16 %v4705, %v4697
    %v5874 = vpack.c.b16 %v4706, %v4698
    %v5875 = vpack.c.b16 %v4707, %v4699
    %v5876 = vpack.c.b16 %v4708, %v4700
    %v5877 = vpack.c.b16 %v4709, %v4701
    %v5878 = vpack.c.b16 %v4718, %v4710
    %v5879 = vpack.c.b16 %v4719, %v4711
    %v5880 = vpack.c.b16 %v4720, %v4712
    %v5881 = vpack.c.b16 %v4721, %v4713
    %v5882 = vpack.c.b16 %v4722, %v4714
    %v5883 = vpack.c.b16 %v4723, %v4715
    %v5884 = vpack.c.b16 %v4724, %v4716
    %v5885 = vpack.c.b16 %v4725, %v4717
    %v5886 = vpack.c.b16 %v4734, %v4726
    %v5887 = vpack.c.b16 %v4735, %v4727
    %v5888 = vpack.c.b16 %v4736, %v4728
    %v5889 = vpack.c.b16 %v4737, %v4729
    %v5890 = vpack.c.b16 %v4738, %v4730
    %v5891 = vpack.c.b16 %v4739, %v4731
    %v5892 = vpack.c.b16 %v4740, %v4732
    %v5893 = vpack.c.b16 %v4741, %v4733
    %v5894 = vpack.c.b16 %v4750, %v4742
    %v5895 = vpack.c.b16 %v4751, %v4743
    %v5896 = vpack.c.b16 %v4752, %v4744
    %v5897 = vpack.c.b16 %v4753, %v4745
    %v5898 = vpack.c.b16 %v4754, %v4746
    %v5899 = vpack.c.b16 %v4755, %v4747
    %v5900 = vpack.c.b16 %v4756, %v4748
    %v5901 = vpack.c.b16 %v4757, %v4749
    %v5902 = vpack.c.b16 %v4766, %v4758
    %v5903 = vpack.c.b16 %v4767, %v4759
    %v5904 = vpack.c.b16 %v4768, %v4760
    %v5905 = vpack.c.b16 %v4769, %v4761
    %v5906 = vpack.c.b16 %v4770, %v4762
    %v5907 = vpack.c.b16 %v4771, %v4763
    %v5908 = vpack.c.b16 %v4772, %v4764
    %v5909 = vpack.c.b16 %v4773, %v4765
    %v5910 = vpack.c.b16 %v4782, %v4774
    %v5911 = vpack.c.b16 %v4783, %v4775
    %v5912 = vpack.c.b16 %v4784, %v4776
    %v5913 = vpack.c.b16 %v4785, %v4777
    %v5914 = vpack.c.b16 %v4786, %v4778
    %v5915 = vpack.c.b16 %v4787, %v4779
    %v5916 = vpack.c.b16 %v4788, %v4780
    %v5917 = vpack.c.b16 %v4789, %v4781
    %v5918 = vpack.c.b16 %v4798, %v4790
    %v5919 = vpack.c.b16 %v4799, %v4791
    %v5920 = vpack.c.b16 %v4800, %v4792
    %v5921 = vpack.c.b16 %v4801, %v4793
    %v5922 = vpack.c.b16 %v4802, %v4794
    %v5923 = vpack.c.b16 %v4803, %v4795
    %v5924 = vpack.c.b16 %v4804, %v4796
    %v5925 = vpack.c.b16 %v4805, %v4797
    %v5926 = vpack.c.b16 %v4814, %v4806
    %v5927 = vpack.c.b16 %v4815, %v4807
    %v5928 = vpack.c.b16 %v4816, %v4808
    %v5929 = vpack.c.b16 %v4817, %v4809
    %v5930 = vpack.c.b16 %v4818, %v4810
    %v5931 = vpack.c.b16 %v4819, %v4811
    %v5932 = vpack.c.b16 %v4820, %v4812
    %v5933 = vpack.c.b16 %v4821, %v4813
    %v5934 = vpack.c.b16 %v4830, %v4822
    %v5935 = vpack.c.b16 %v4831, %v4823
    %v5936 = vpack.c.b16 %v4832, %v4824
    %v5937 = vpack.c.b16 %v4833, %v4825
    %v5938 = vpack.c.b16 %v4834, %v4826
    %v5939 = vpack.c.b16 %v4835, %v4827
    %v5940 = vpack.c.b16 %v4836, %v4828
    %v5941 = vpack.c.b16 %v4837, %v4829
    %v5942 = vpack.c.b16 %v4846, %v4838
    %v5943 = vpack.c.b16 %v4847, %v4839
    %v5944 = vpack.c.b16 %v4848, %v4840
    %v5945 = vpack.c.b16 %v4849, %v4841
    %v5946 = vpack.c.b16 %v4850, %v4842
    %v5947 = vpack.c.b16 %v4851, %v4843
    %v5948 = vpack.c.b16 %v4852, %v4844
    %v5949 = vpack.c.b16 %v4853, %v4845
    %v5950 = vpack.c.b16 %v4862, %v4854
    %v5951 = vpack.c.b16 %v4863, %v4855
    %v5952 = vpack.c.b16 %v4864, %v4856
    %v5953 = vpack.c.b16 %v4865, %v4857
    %v5954 = vpack.c.b16 %v4866, %v4858
    %v5955 = vpack.c.b16 %v4867, %v4859
    %v5956 = vpack.c.b16 %v4868, %v4860
    %v5957 = vpack.c.b16 %v4869, %v4861
    %v5958 = vpack.c.b16 %v4878, %v4870
    %v5959 = vpack.c.b16 %v4879, %v4871
    %v5960 = vpack.c.b16 %v4880, %v4872
    %v5961 = vpack.c.b16 %v4881, %v4873
    %v5962 = vpack.c.b16 %v4882, %v4874
    %v5963 = vpack.c.b16 %v4883, %v4875
    %v5964 = vpack.c.b16 %v4884, %v4876
    %v5965 = vpack.c.b16 %v4885, %v4877
    %v5966 = vpack.c.b16 %v4894, %v4886
    %v5967 = vpack.c.b16 %v4895, %v4887
    %v5968 = vpack.c.b16 %v4896, %v4888
    %v5969 = vpack.c.b16 %v4897, %v4889
    %v5970 = vpack.c.b16 %v4898, %v4890
    %v5971 = vpack.c.b16 %v4899, %v4891
    %v5972 = vpack.c.b16 %v4900, %v4892
    %v5973 = vpack.c.b16 %v4901, %v4893
    %v5974 = vpack.c.b16 %v4910, %v4902
    %v5975 = vpack.c.b16 %v4911, %v4903
    %v5976 = vpack.c.b16 %v4912, %v4904
    %v5977 = vpack.c.b16 %v4913, %v4905
    %v5978 = vpack.c.b16 %v4914, %v4906
    %v5979 = vpack.c.b16 %v4915, %v4907
    %v5980 = vpack.c.b16 %v4916, %v4908
    %v5981 = vpack.c.b16 %v4917, %v4909
    %v5982 = vpack.c.b16 %v4926, %v4918
    %v5983 = vpack.c.b16 %v4927, %v4919
    %v5984 = vpack.c.b16 %v4928, %v4920
    %v5985 = vpack.c.b16 %v4929, %v4921
    %v5986 = vpack.c.b16 %v4930, %v4922
    %v5987 = vpack.c.b16 %v4931, %v4923
    %v5988 = vpack.c.b16 %v4932, %v4924
    %v5989 = vpack.c.b16 %v4933, %v4925
    %v5990 = vpack.c.b16 %v4942, %v4934
    %v5991 = vpack.c.b16 %v4943, %v4935
    %v5992 = vpack.c.b16 %v4944, %v4936
    %v5993 = vpack.c.b16 %v4945, %v4937
    %v5994 = vpack.c.b16 %v4946, %v4938
    %v5995 = vpack.c.b16 %v4947, %v4939
    %v5996 = vpack.c.b16 %v4948, %v4940
    %v5997 = vpack.c.b16 %v4949, %v4941
    %v5998 = vpack.c.b16 %v4958, %v4950
    %v5999 = vpack.c.b16 %v4959, %v4951
    %v6000 = vpack.c.b16 %v4960, %v4952
    %v6001 = vpack.c.b16 %v4961, %v4953
    %v6002 = vpack.c.b16 %v4962, %v4954
    %v6003 = vpack.c.b16 %v4963, %v4955
    %v6004 = vpack.c.b16 %v4964, %v4956
    %v6005 = vpack.c.b16 %v4965, %v4957
    %v6006 = vpack.c.b16 %v4974, %v4966
    %v6007 = vpack.c.b16 %v4975, %v4967
    %v6008 = vpack.c.b16 %v4976, %v4968
    %v6009 = vpack.c.b16 %v4977, %v4969
    %v6010 = vpack.c.b16 %v4978, %v4970
    %v6011 = vpack.c.b16 %v4979, %v4971
    %v6012 = vpack.c.b16 %v4980, %v4972
    %v6013 = vpack.c.b16 %v4981, %v4973
    %v6014 = vpack.c.b16 %v4990, %v4982
    %v6015 = vpack.c.b16 %v4991, %v4983
    %v6016 = vpack.c.b16 %v4992, %v4984
    %v6017 = vpack.c.b16 %v4993, %v4985
    %v6018 = vpack.c.b16 %v4994, %v4986
    %v6019 = vpack.c.b16 %v4995, %v4987
    %v6020 = vpack.c.b16 %v4996, %v4988
    %v6021 = vpack.c.b16 %v4997, %v4989
    %7046 = vmatprep.subr.bf16.mxu0 %v4999
    %7047 = vmatpush1.bf16.msra.mxu0 %v4998
    %7048 = vmatprep.subr.bf16.mxu0 %v5007
    %7049 = vmatpush1.bf16.msra.mxu0 %v5006
    %7050 = vmatprep.subr.bf16.mxu0 %v5015
    %7051 = vmatpush1.bf16.msra.mxu0 %v5014
    %7052 = vmatprep.subr.bf16.mxu0 %v5023
    %7053 = vmatpush1.bf16.msra.mxu0 %v5022
    %7054 = vmatprep.subr.bf16.mxu0 %v5031
    %7055 = vmatpush1.bf16.msra.mxu0 %v5030
    %7056 = vmatprep.subr.bf16.mxu0 %v5039
    %7057 = vmatpush1.bf16.msra.mxu0 %v5038
    %7058 = vmatprep.subr.bf16.mxu0 %v5047
    %7059 = vmatpush1.bf16.msra.mxu0 %v5046
    %7060 = vmatprep.subr.bf16.mxu0 %v5055
    %7061 = vmatpush1.bf16.msra.mxu0 %v5054
    %7062 = vmatprep.subr.bf16.mxu0 %v5063
    %7063 = vmatpush1.bf16.msra.mxu0 %v5062
    %7064 = vmatprep.subr.bf16.mxu0 %v5071
    %7065 = vmatpush1.bf16.msra.mxu0 %v5070
    %7066 = vmatprep.subr.bf16.mxu0 %v5079
    %7067 = vmatpush1.bf16.msra.mxu0 %v5078
    %7068 = vmatprep.subr.bf16.mxu0 %v5087
    %7069 = vmatpush1.bf16.msra.mxu0 %v5086
    %7070 = vmatprep.subr.bf16.mxu0 %v5095
    %7071 = vmatpush1.bf16.msra.mxu0 %v5094
    %7072 = vmatprep.subr.bf16.mxu0 %v5103
    %7073 = vmatpush1.bf16.msra.mxu0 %v5102
    %7074 = vmatprep.subr.bf16.mxu0 %v5111
    %7075 = vmatpush1.bf16.msra.mxu0 %v5110
    %7076 = vmatprep.subr.bf16.mxu0 %v5119
    %7077 = vmatpush1.bf16.msra.mxu0 %v5118
    %7078 = vmatprep.mubr.bf16.mxu0 %v845
    %7079 = vmatmul.mubr.bf16.gmra.mrb[0].mxu0 %v844
    %v7080 = vpop.f32.mrb[0].mxu0
    %v7081 = vadd.f32 %v1889, %v7080
    %v7082 = vpop.f32.mrb[0].mxu0
    %v7083 = vadd.f32 %v1893, %v7082
    %v7084 = vpop.f32.mrb[0].mxu0
    %v7085 = vpop.f32.mrb[0].mxu0
    %7086 = vdwg.mxu0
    %7087 = vmatprep.subr.bf16.mxu0 %v5127
    %7088 = vmatpush1.bf16.msra.mxu0 %v5126
    %7089 = vmatprep.subr.bf16.mxu0 %v5135
    %7090 = vmatpush1.bf16.msra.mxu0 %v5134
    %7091 = vmatprep.subr.bf16.mxu0 %v5143
    %7092 = vmatpush1.bf16.msra.mxu0 %v5142
    %7093 = vmatprep.subr.bf16.mxu0 %v5151
    %7094 = vmatpush1.bf16.msra.mxu0 %v5150
    %7095 = vmatprep.subr.bf16.mxu0 %v5159
    %7096 = vmatpush1.bf16.msra.mxu0 %v5158
    %7097 = vmatprep.subr.bf16.mxu0 %v5167
    %7098 = vmatpush1.bf16.msra.mxu0 %v5166
    %7099 = vmatprep.subr.bf16.mxu0 %v5175
    %7100 = vmatpush1.bf16.msra.mxu0 %v5174
    %7101 = vmatprep.subr.bf16.mxu0 %v5183
    %7102 = vmatpush1.bf16.msra.mxu0 %v5182
    %7103 = vmatprep.subr.bf16.mxu0 %v5191
    %7104 = vmatpush1.bf16.msra.mxu0 %v5190
    %7105 = vmatprep.subr.bf16.mxu0 %v5199
    %7106 = vmatpush1.bf16.msra.mxu0 %v5198
    %7107 = vmatprep.subr.bf16.mxu0 %v5207
    %7108 = vmatpush1.bf16.msra.mxu0 %v5206
    %7109 = vmatprep.subr.bf16.mxu0 %v5215
    %7110 = vmatpush1.bf16.msra.mxu0 %v5214
    %7111 = vmatprep.subr.bf16.mxu0 %v5223
    %7112 = vmatpush1.bf16.msra.mxu0 %v5222
    %7113 = vmatprep.subr.bf16.mxu0 %v5231
    %7114 = vmatpush1.bf16.msra.mxu0 %v5230
    %7115 = vmatprep.subr.bf16.mxu0 %v5239
    %7116 = vmatpush1.bf16.msra.mxu0 %v5238
    %7117 = vmatprep.subr.bf16.mxu0 %v5247
    %7118 = vmatpush1.bf16.msra.mxu0 %v5246
    %7119 = vmatprep.mubr.bf16.mxu0 %v847
    %7120 = vmatmul.mubr.bf16.gmra.mrb[0].mxu0 %v846
    %v7121 = vpop.f32.mrb[0].mxu0
    %v7122 = vadd.f32 %v7081, %v7121
    %v7123 = vpop.f32.mrb[0].mxu0
    %v7124 = vadd.f32 %v7083, %v7123
    %v7125 = vpop.f32.mrb[0].mxu0
    %v7126 = vpop.f32.mrb[0].mxu0
    %7127 = vdwg.mxu0
    %7128 = vmatprep.subr.bf16.mxu0 %v5255
    %7129 = vmatpush1.bf16.msra.mxu0 %v5254
    %7130 = vmatprep.subr.bf16.mxu0 %v5263
    %7131 = vmatpush1.bf16.msra.mxu0 %v5262
    %7132 = vmatprep.subr.bf16.mxu0 %v5271
    %7133 = vmatpush1.bf16.msra.mxu0 %v5270
    %7134 = vmatprep.subr.bf16.mxu0 %v5279
    %7135 = vmatpush1.bf16.msra.mxu0 %v5278
    %7136 = vmatprep.subr.bf16.mxu0 %v5287
    %7137 = vmatpush1.bf16.msra.mxu0 %v5286
    %7138 = vmatprep.subr.bf16.mxu0 %v5295
    %7139 = vmatpush1.bf16.msra.mxu0 %v5294
    %7140 = vmatprep.subr.bf16.mxu0 %v5303
    %7141 = vmatpush1.bf16.msra.mxu0 %v5302
    %7142 = vmatprep.subr.bf16.mxu0 %v5311
    %7143 = vmatpush1.bf16.msra.mxu0 %v5310
    %7144 = vmatprep.subr.bf16.mxu0 %v5319
    %7145 = vmatpush1.bf16.msra.mxu0 %v5318
    %7146 = vmatprep.subr.bf16.mxu0 %v5327
    %7147 = vmatpush1.bf16.msra.mxu0 %v5326
    %7148 = vmatprep.subr.bf16.mxu0 %v5335
    %7149 = vmatpush1.bf16.msra.mxu0 %v5334
    %7150 = vmatprep.subr.bf16.mxu0 %v5343
    %7151 = vmatpush1.bf16.msra.mxu0 %v5342
    %7152 = vmatprep.subr.bf16.mxu0 %v5351
    %7153 = vmatpush1.bf16.msra.mxu0 %v5350
    %7154 = vmatprep.subr.bf16.mxu0 %v5359
    %7155 = vmatpush1.bf16.msra.mxu0 %v5358
    %7156 = vmatprep.subr.bf16.mxu0 %v5367
    %7157 = vmatpush1.bf16.msra.mxu0 %v5366
    %7158 = vmatprep.subr.bf16.mxu0 %v5375
    %7159 = vmatpush1.bf16.msra.mxu0 %v5374
    %7160 = vmatprep.mubr.bf16.mxu0 %v849
    %7161 = vmatmul.mubr.bf16.gmra.mrb[0].mxu0 %v848
    %v7162 = vpop.f32.mrb[0].mxu0
    %v7163 = vadd.f32 %v7122, %v7162
    %v7164 = vpop.f32.mrb[0].mxu0
    %v7165 = vadd.f32 %v7124, %v7164
    %v7166 = vpop.f32.mrb[0].mxu0
    %v7167 = vpop.f32.mrb[0].mxu0
    %7168 = vdwg.mxu0
    %7169 = vmatprep.subr.bf16.mxu0 %v5383
    %7170 = vmatpush1.bf16.msra.mxu0 %v5382
    %7171 = vmatprep.subr.bf16.mxu0 %v5391
    %7172 = vmatpush1.bf16.msra.mxu0 %v5390
    %7173 = vmatprep.subr.bf16.mxu0 %v5399
    %7174 = vmatpush1.bf16.msra.mxu0 %v5398
    %7175 = vmatprep.subr.bf16.mxu0 %v5407
    %7176 = vmatpush1.bf16.msra.mxu0 %v5406
    %7177 = vmatprep.subr.bf16.mxu0 %v5415
    %7178 = vmatpush1.bf16.msra.mxu0 %v5414
    %7179 = vmatprep.subr.bf16.mxu0 %v5423
    %7180 = vmatpush1.bf16.msra.mxu0 %v5422
    %7181 = vmatprep.subr.bf16.mxu0 %v5431
    %7182 = vmatpush1.bf16.msra.mxu0 %v5430
    %7183 = vmatprep.subr.bf16.mxu0 %v5439
    %7184 = vmatpush1.bf16.msra.mxu0 %v5438
    %7185 = vmatprep.subr.bf16.mxu0 %v5447
    %7186 = vmatpush1.bf16.msra.mxu0 %v5446
    %7187 = vmatprep.subr.bf16.mxu0 %v5455
    %7188 = vmatpush1.bf16.msra.mxu0 %v5454
    %7189 = vmatprep.subr.bf16.mxu0 %v5463
    %7190 = vmatpush1.bf16.msra.mxu0 %v5462
    %7191 = vmatprep.subr.bf16.mxu0 %v5471
    %7192 = vmatpush1.bf16.msra.mxu0 %v5470
    %7193 = vmatprep.subr.bf16.mxu0 %v5479
    %7194 = vmatpush1.bf16.msra.mxu0 %v5478
    %7195 = vmatprep.subr.bf16.mxu0 %v5487
    %7196 = vmatpush1.bf16.msra.mxu0 %v5486
    %7197 = vmatprep.subr.bf16.mxu0 %v5495
    %7198 = vmatpush1.bf16.msra.mxu0 %v5494
    %7199 = vmatprep.subr.bf16.mxu0 %v5503
    %7200 = vmatpush1.bf16.msra.mxu0 %v5502
    %7201 = vmatprep.mubr.bf16.mxu0 %v851
    %7202 = vmatmul.mubr.bf16.gmra.mrb[0].mxu0 %v850
    %v7203 = vpop.f32.mrb[0].mxu0
    %v7204 = vadd.f32 %v7163, %v7203
    %v7205 = vpop.f32.mrb[0].mxu0
    %v7206 = vadd.f32 %v7165, %v7205
    %v7207 = vpop.f32.mrb[0].mxu0
    %v7208 = vpop.f32.mrb[0].mxu0
    %7209 = vdwg.mxu0
    %7210 = vmatprep.subr.bf16.mxu0 %v5511
    %7211 = vmatpush1.bf16.msra.mxu0 %v5510
    %7212 = vmatprep.subr.bf16.mxu0 %v5519
    %7213 = vmatpush1.bf16.msra.mxu0 %v5518
    %7214 = vmatprep.subr.bf16.mxu0 %v5527
    %7215 = vmatpush1.bf16.msra.mxu0 %v5526
    %7216 = vmatprep.subr.bf16.mxu0 %v5535
    %7217 = vmatpush1.bf16.msra.mxu0 %v5534
    %7218 = vmatprep.subr.bf16.mxu0 %v5543
    %7219 = vmatpush1.bf16.msra.mxu0 %v5542
    %7220 = vmatprep.subr.bf16.mxu0 %v5551
    %7221 = vmatpush1.bf16.msra.mxu0 %v5550
    %7222 = vmatprep.subr.bf16.mxu0 %v5559
    %7223 = vmatpush1.bf16.msra.mxu0 %v5558
    %7224 = vmatprep.subr.bf16.mxu0 %v5567
    %7225 = vmatpush1.bf16.msra.mxu0 %v5566
    %7226 = vmatprep.subr.bf16.mxu0 %v5575
    %7227 = vmatpush1.bf16.msra.mxu0 %v5574
    %7228 = vmatprep.subr.bf16.mxu0 %v5583
    %7229 = vmatpush1.bf16.msra.mxu0 %v5582
    %7230 = vmatprep.subr.bf16.mxu0 %v5591
    %7231 = vmatpush1.bf16.msra.mxu0 %v5590
    %7232 = vmatprep.subr.bf16.mxu0 %v5599
    %7233 = vmatpush1.bf16.msra.mxu0 %v5598
    %7234 = vmatprep.subr.bf16.mxu0 %v5607
    %7235 = vmatpush1.bf16.msra.mxu0 %v5606
    %7236 = vmatprep.subr.bf16.mxu0 %v5615
    %7237 = vmatpush1.bf16.msra.mxu0 %v5614
    %7238 = vmatprep.subr.bf16.mxu0 %v5623
    %7239 = vmatpush1.bf16.msra.mxu0 %v5622
    %7240 = vmatprep.subr.bf16.mxu0 %v5631
    %7241 = vmatpush1.bf16.msra.mxu0 %v5630
    %7242 = vmatprep.mubr.bf16.mxu0 %v853
    %7243 = vmatmul.mubr.bf16.gmra.mrb[0].mxu0 %v852
    %v7244 = vpop.f32.mrb[0].mxu0
    %v7245 = vadd.f32 %v7204, %v7244
    %v7246 = vpop.f32.mrb[0].mxu0
    %v7247 = vadd.f32 %v7206, %v7246
    %v7248 = vpop.f32.mrb[0].mxu0
    %v7249 = vpop.f32.mrb[0].mxu0
    %7250 = vdwg.mxu0
    %7251 = vmatprep.subr.bf16.mxu0 %v5639
    %7252 = vmatpush1.bf16.msra.mxu0 %v5638
    %7253 = vmatprep.subr.bf16.mxu0 %v5647
    %7254 = vmatpush1.bf16.msra.mxu0 %v5646
    %7255 = vmatprep.subr.bf16.mxu0 %v5655
    %7256 = vmatpush1.bf16.msra.mxu0 %v5654
    %7257 = vmatprep.subr.bf16.mxu0 %v5663
    %7258 = vmatpush1.bf16.msra.mxu0 %v5662
    %7259 = vmatprep.subr.bf16.mxu0 %v5671
    %7260 = vmatpush1.bf16.msra.mxu0 %v5670
    %7261 = vmatprep.subr.bf16.mxu0 %v5679
    %7262 = vmatpush1.bf16.msra.mxu0 %v5678
    %7263 = vmatprep.subr.bf16.mxu0 %v5687
    %7264 = vmatpush1.bf16.msra.mxu0 %v5686
    %7265 = vmatprep.subr.bf16.mxu0 %v5695
    %7266 = vmatpush1.bf16.msra.mxu0 %v5694
    %7267 = vmatprep.subr.bf16.mxu0 %v5703
    %7268 = vmatpush1.bf16.msra.mxu0 %v5702
    %7269 = vmatprep.subr.bf16.mxu0 %v5711
    %7270 = vmatpush1.bf16.msra.mxu0 %v5710
    %7271 = vmatprep.subr.bf16.mxu0 %v5719
    %7272 = vmatpush1.bf16.msra.mxu0 %v5718
    %7273 = vmatprep.subr.bf16.mxu0 %v5727
    %7274 = vmatpush1.bf16.msra.mxu0 %v5726
    %7275 = vmatprep.subr.bf16.mxu0 %v5735
    %7276 = vmatpush1.bf16.msra.mxu0 %v5734
    %7277 = vmatprep.subr.bf16.mxu0 %v5743
    %7278 = vmatpush1.bf16.msra.mxu0 %v5742
    %7279 = vmatprep.subr.bf16.mxu0 %v5751
    %7280 = vmatpush1.bf16.msra.mxu0 %v5750
    %7281 = vmatprep.subr.bf16.mxu0 %v5759
    %7282 = vmatpush1.bf16.msra.mxu0 %v5758
    %7283 = vmatprep.mubr.bf16.mxu0 %v855
    %7284 = vmatmul.mubr.bf16.gmra.mrb[0].mxu0 %v854
    %v7285 = vpop.f32.mrb[0].mxu0
    %v7286 = vadd.f32 %v7245, %v7285
    %v7287 = vpop.f32.mrb[0].mxu0
    %v7288 = vadd.f32 %v7247, %v7287
    %v7289 = vpop.f32.mrb[0].mxu0
    %v7290 = vpop.f32.mrb[0].mxu0
    %7291 = vdwg.mxu0
    %7292 = vmatprep.subr.bf16.mxu0 %v5767
    %7293 = vmatpush1.bf16.msra.mxu0 %v5766
    %7294 = vmatprep.subr.bf16.mxu0 %v5775
    %7295 = vmatpush1.bf16.msra.mxu0 %v5774
    %7296 = vmatprep.subr.bf16.mxu0 %v5783
    %7297 = vmatpush1.bf16.msra.mxu0 %v5782
    %7298 = vmatprep.subr.bf16.mxu0 %v5791
    %7299 = vmatpush1.bf16.msra.mxu0 %v5790
    %7300 = vmatprep.subr.bf16.mxu0 %v5799
    %7301 = vmatpush1.bf16.msra.mxu0 %v5798
    %7302 = vmatprep.subr.bf16.mxu0 %v5807
    %7303 = vmatpush1.bf16.msra.mxu0 %v5806
    %7304 = vmatprep.subr.bf16.mxu0 %v5815
    %7305 = vmatpush1.bf16.msra.mxu0 %v5814
    %7306 = vmatprep.subr.bf16.mxu0 %v5823
    %7307 = vmatpush1.bf16.msra.mxu0 %v5822
    %7308 = vmatprep.subr.bf16.mxu0 %v5831
    %7309 = vmatpush1.bf16.msra.mxu0 %v5830
    %7310 = vmatprep.subr.bf16.mxu0 %v5839
    %7311 = vmatpush1.bf16.msra.mxu0 %v5838
    %7312 = vmatprep.subr.bf16.mxu0 %v5847
    %7313 = vmatpush1.bf16.msra.mxu0 %v5846
    %7314 = vmatprep.subr.bf16.mxu0 %v5855
    %7315 = vmatpush1.bf16.msra.mxu0 %v5854
    %7316 = vmatprep.subr.bf16.mxu0 %v5863
    %7317 = vmatpush1.bf16.msra.mxu0 %v5862
    %7318 = vmatprep.subr.bf16.mxu0 %v5871
    %7319 = vmatpush1.bf16.msra.mxu0 %v5870
    %7320 = vmatprep.subr.bf16.mxu0 %v5879
    %7321 = vmatpush1.bf16.msra.mxu0 %v5878
    %7322 = vmatprep.subr.bf16.mxu0 %v5887
    %7323 = vmatpush1.bf16.msra.mxu0 %v5886
    %7324 = vmatprep.mubr.bf16.mxu0 %v857
    %7325 = vmatmul.mubr.bf16.gmra.mrb[0].mxu0 %v856
    %v7326 = vpop.f32.mrb[0].mxu0
    %v7327 = vadd.f32 %v7286, %v7326
    %v7328 = vpop.f32.mrb[0].mxu0
    %v7329 = vadd.f32 %v7288, %v7328
    %v7330 = vpop.f32.mrb[0].mxu0
    %v7331 = vpop.f32.mrb[0].mxu0
    %7332 = vdwg.mxu0
    %7333 = vmatprep.subr.bf16.mxu0 %v5895
    %7334 = vmatpush1.bf16.msra.mxu0 %v5894
    %7335 = vmatprep.subr.bf16.mxu0 %v5903
    %7336 = vmatpush1.bf16.msra.mxu0 %v5902
    %7337 = vmatprep.subr.bf16.mxu0 %v5911
    %7338 = vmatpush1.bf16.msra.mxu0 %v5910
    %7339 = vmatprep.subr.bf16.mxu0 %v5919
    %7340 = vmatpush1.bf16.msra.mxu0 %v5918
    %7341 = vmatprep.subr.bf16.mxu0 %v5927
    %7342 = vmatpush1.bf16.msra.mxu0 %v5926
    %7343 = vmatprep.subr.bf16.mxu0 %v5935
    %7344 = vmatpush1.bf16.msra.mxu0 %v5934
    %7345 = vmatprep.subr.bf16.mxu0 %v5943
    %7346 = vmatpush1.bf16.msra.mxu0 %v5942
    %7347 = vmatprep.subr.bf16.mxu0 %v5951
    %7348 = vmatpush1.bf16.msra.mxu0 %v5950
    %7349 = vmatprep.subr.bf16.mxu0 %v5959
    %7350 = vmatpush1.bf16.msra.mxu0 %v5958
    %7351 = vmatprep.subr.bf16.mxu0 %v5967
    %7352 = vmatpush1.bf16.msra.mxu0 %v5966
    %7353 = vmatprep.subr.bf16.mxu0 %v5975
    %7354 = vmatpush1.bf16.msra.mxu0 %v5974
    %7355 = vmatprep.subr.bf16.mxu0 %v5983
    %7356 = vmatpush1.bf16.msra.mxu0 %v5982
    %7357 = vmatprep.subr.bf16.mxu0 %v5991
    %7358 = vmatpush1.bf16.msra.mxu0 %v5990
    %7359 = vmatprep.subr.bf16.mxu0 %v5999
    %7360 = vmatpush1.bf16.msra.mxu0 %v5998
    %7361 = vmatprep.subr.bf16.mxu0 %v6007
    %7362 = vmatpush1.bf16.msra.mxu0 %v6006
    %7363 = vmatprep.subr.bf16.mxu0 %v6015
    %7364 = vmatpush1.bf16.msra.mxu0 %v6014
    %7365 = vmatprep.mubr.bf16.mxu0 %v859
    %7366 = vmatmul.mubr.bf16.gmra.mrb[0].mxu0 %v858
    %v7367 = vpop.f32.mrb[0].mxu0
    %v7368 = vadd.f32 %v7327, %v7367
    %v7369 = vpop.f32.mrb[0].mxu0
    %v7370 = vadd.f32 %v7329, %v7369
    %v7371 = vpop.f32.mrb[0].mxu0
    %v7372 = vpop.f32.mrb[0].mxu0
    %7373 = vdwg.mxu0
    %7374 = vmatprep.subr.bf16.mxu0 %v5001
    %7375 = vmatpush1.bf16.msra.mxu0 %v5000
    %7376 = vmatprep.subr.bf16.mxu0 %v5009
    %7377 = vmatpush1.bf16.msra.mxu0 %v5008
    %7378 = vmatprep.subr.bf16.mxu0 %v5017
    %7379 = vmatpush1.bf16.msra.mxu0 %v5016
    %7380 = vmatprep.subr.bf16.mxu0 %v5025
    %7381 = vmatpush1.bf16.msra.mxu0 %v5024
    %7382 = vmatprep.subr.bf16.mxu0 %v5033
    %7383 = vmatpush1.bf16.msra.mxu0 %v5032
    %7384 = vmatprep.subr.bf16.mxu0 %v5041
    %7385 = vmatpush1.bf16.msra.mxu0 %v5040
    %7386 = vmatprep.subr.bf16.mxu0 %v5049
    %7387 = vmatpush1.bf16.msra.mxu0 %v5048
    %7388 = vmatprep.subr.bf16.mxu0 %v5057
    %7389 = vmatpush1.bf16.msra.mxu0 %v5056
    %7390 = vmatprep.subr.bf16.mxu0 %v5065
    %7391 = vmatpush1.bf16.msra.mxu0 %v5064
    %7392 = vmatprep.subr.bf16.mxu0 %v5073
    %7393 = vmatpush1.bf16.msra.mxu0 %v5072
    %7394 = vmatprep.subr.bf16.mxu0 %v5081
    %7395 = vmatpush1.bf16.msra.mxu0 %v5080
    %7396 = vmatprep.subr.bf16.mxu0 %v5089
    %7397 = vmatpush1.bf16.msra.mxu0 %v5088
    %7398 = vmatprep.subr.bf16.mxu0 %v5097
    %7399 = vmatpush1.bf16.msra.mxu0 %v5096
    %7400 = vmatprep.subr.bf16.mxu0 %v5105
    %7401 = vmatpush1.bf16.msra.mxu0 %v5104
    %7402 = vmatprep.subr.bf16.mxu0 %v5113
    %7403 = vmatpush1.bf16.msra.mxu0 %v5112
    %7404 = vmatprep.subr.bf16.mxu0 %v5121
    %7405 = vmatpush1.bf16.msra.mxu0 %v5120
    %7406 = vmatprep.mubr.bf16.mxu0 %v845
    %7407 = vmatmul.mubr.bf16.gmra.mrb[0].mxu0 %v844
    %v7408 = vpop.f32.mrb[0].mxu0
    %v7409 = vadd.f32 %v1897, %v7408
    %v7410 = vpop.f32.mrb[0].mxu0
    %v7411 = vadd.f32 %v1901, %v7410
    %v7412 = vpop.f32.mrb[0].mxu0
    %v7413 = vpop.f32.mrb[0].mxu0
    %7414 = vdwg.mxu0
    %7415 = vmatprep.subr.bf16.mxu0 %v5129
    %7416 = vmatpush1.bf16.msra.mxu0 %v5128
    %7417 = vmatprep.subr.bf16.mxu0 %v5137
    %7418 = vmatpush1.bf16.msra.mxu0 %v5136
    %7419 = vmatprep.subr.bf16.mxu0 %v5145
    %7420 = vmatpush1.bf16.msra.mxu0 %v5144
    %7421 = vmatprep.subr.bf16.mxu0 %v5153
    %7422 = vmatpush1.bf16.msra.mxu0 %v5152
    %7423 = vmatprep.subr.bf16.mxu0 %v5161
    %7424 = vmatpush1.bf16.msra.mxu0 %v5160
    %7425 = vmatprep.subr.bf16.mxu0 %v5169
    %7426 = vmatpush1.bf16.msra.mxu0 %v5168
    %7427 = vmatprep.subr.bf16.mxu0 %v5177
    %7428 = vmatpush1.bf16.msra.mxu0 %v5176
    %7429 = vmatprep.subr.bf16.mxu0 %v5185
    %7430 = vmatpush1.bf16.msra.mxu0 %v5184
    %7431 = vmatprep.subr.bf16.mxu0 %v5193
    %7432 = vmatpush1.bf16.msra.mxu0 %v5192
    %7433 = vmatprep.subr.bf16.mxu0 %v5201
    %7434 = vmatpush1.bf16.msra.mxu0 %v5200
    %7435 = vmatprep.subr.bf16.mxu0 %v5209
    %7436 = vmatpush1.bf16.msra.mxu0 %v5208
    %7437 = vmatprep.subr.bf16.mxu0 %v5217
    %7438 = vmatpush1.bf16.msra.mxu0 %v5216
    %7439 = vmatprep.subr.bf16.mxu0 %v5225
    %7440 = vmatpush1.bf16.msra.mxu0 %v5224
    %7441 = vmatprep.subr.bf16.mxu0 %v5233
    %7442 = vmatpush1.bf16.msra.mxu0 %v5232
    %7443 = vmatprep.subr.bf16.mxu0 %v5241
    %7444 = vmatpush1.bf16.msra.mxu0 %v5240
    %7445 = vmatprep.subr.bf16.mxu0 %v5249
    %7446 = vmatpush1.bf16.msra.mxu0 %v5248
    %7447 = vmatprep.mubr.bf16.mxu0 %v847
    %7448 = vmatmul.mubr.bf16.gmra.mrb[0].mxu0 %v846
    %v7449 = vpop.f32.mrb[0].mxu0
    %v7450 = vadd.f32 %v7409, %v7449
    %v7451 = vpop.f32.mrb[0].mxu0
    %v7452 = vadd.f32 %v7411, %v7451
    %v7453 = vpop.f32.mrb[0].mxu0
    %v7454 = vpop.f32.mrb[0].mxu0
    %7455 = vdwg.mxu0
    %7456 = vmatprep.subr.bf16.mxu0 %v5257
    %7457 = vmatpush1.bf16.msra.mxu0 %v5256
    %7458 = vmatprep.subr.bf16.mxu0 %v5265
    %7459 = vmatpush1.bf16.msra.mxu0 %v5264
    %7460 = vmatprep.subr.bf16.mxu0 %v5273
    %7461 = vmatpush1.bf16.msra.mxu0 %v5272
    %7462 = vmatprep.subr.bf16.mxu0 %v5281
    %7463 = vmatpush1.bf16.msra.mxu0 %v5280
    %7464 = vmatprep.subr.bf16.mxu0 %v5289
    %7465 = vmatpush1.bf16.msra.mxu0 %v5288
    %7466 = vmatprep.subr.bf16.mxu0 %v5297
    %7467 = vmatpush1.bf16.msra.mxu0 %v5296
    %7468 = vmatprep.subr.bf16.mxu0 %v5305
    %7469 = vmatpush1.bf16.msra.mxu0 %v5304
    %7470 = vmatprep.subr.bf16.mxu0 %v5313
    %7471 = vmatpush1.bf16.msra.mxu0 %v5312
    %7472 = vmatprep.subr.bf16.mxu0 %v5321
    %7473 = vmatpush1.bf16.msra.mxu0 %v5320
    %7474 = vmatprep.subr.bf16.mxu0 %v5329
    %7475 = vmatpush1.bf16.msra.mxu0 %v5328
    %7476 = vmatprep.subr.bf16.mxu0 %v5337
    %7477 = vmatpush1.bf16.msra.mxu0 %v5336
    %7478 = vmatprep.subr.bf16.mxu0 %v5345
    %7479 = vmatpush1.bf16.msra.mxu0 %v5344
    %7480 = vmatprep.subr.bf16.mxu0 %v5353
    %7481 = vmatpush1.bf16.msra.mxu0 %v5352
    %7482 = vmatprep.subr.bf16.mxu0 %v5361
    %7483 = vmatpush1.bf16.msra.mxu0 %v5360
    %7484 = vmatprep.subr.bf16.mxu0 %v5369
    %7485 = vmatpush1.bf16.msra.mxu0 %v5368
    %7486 = vmatprep.subr.bf16.mxu0 %v5377
    %7487 = vmatpush1.bf16.msra.mxu0 %v5376
    %7488 = vmatprep.mubr.bf16.mxu0 %v849
    %7489 = vmatmul.mubr.bf16.gmra.mrb[0].mxu0 %v848
    %v7490 = vpop.f32.mrb[0].mxu0
    %v7491 = vadd.f32 %v7450, %v7490
    %v7492 = vpop.f32.mrb[0].mxu0
    %v7493 = vadd.f32 %v7452, %v7492
    %v7494 = vpop.f32.mrb[0].mxu0
    %v7495 = vpop.f32.mrb[0].mxu0
    %7496 = vdwg.mxu0
    %7497 = vmatprep.subr.bf16.mxu0 %v5385
    %7498 = vmatpush1.bf16.msra.mxu0 %v5384
    %7499 = vmatprep.subr.bf16.mxu0 %v5393
    %7500 = vmatpush1.bf16.msra.mxu0 %v5392
    %7501 = vmatprep.subr.bf16.mxu0 %v5401
    %7502 = vmatpush1.bf16.msra.mxu0 %v5400
    %7503 = vmatprep.subr.bf16.mxu0 %v5409
    %7504 = vmatpush1.bf16.msra.mxu0 %v5408
    %7505 = vmatprep.subr.bf16.mxu0 %v5417
    %7506 = vmatpush1.bf16.msra.mxu0 %v5416
    %7507 = vmatprep.subr.bf16.mxu0 %v5425
    %7508 = vmatpush1.bf16.msra.mxu0 %v5424
    %7509 = vmatprep.subr.bf16.mxu0 %v5433
    %7510 = vmatpush1.bf16.msra.mxu0 %v5432
    %7511 = vmatprep.subr.bf16.mxu0 %v5441
    %7512 = vmatpush1.bf16.msra.mxu0 %v5440
    %7513 = vmatprep.subr.bf16.mxu0 %v5449
    %7514 = vmatpush1.bf16.msra.mxu0 %v5448
    %7515 = vmatprep.subr.bf16.mxu0 %v5457
    %7516 = vmatpush1.bf16.msra.mxu0 %v5456
    %7517 = vmatprep.subr.bf16.mxu0 %v5465
    %7518 = vmatpush1.bf16.msra.mxu0 %v5464
    %7519 = vmatprep.subr.bf16.mxu0 %v5473
    %7520 = vmatpush1.bf16.msra.mxu0 %v5472
    %7521 = vmatprep.subr.bf16.mxu0 %v5481
    %7522 = vmatpush1.bf16.msra.mxu0 %v5480
    %7523 = vmatprep.subr.bf16.mxu0 %v5489
    %7524 = vmatpush1.bf16.msra.mxu0 %v5488
    %7525 = vmatprep.subr.bf16.mxu0 %v5497
    %7526 = vmatpush1.bf16.msra.mxu0 %v5496
    %7527 = vmatprep.subr.bf16.mxu0 %v5505
    %7528 = vmatpush1.bf16.msra.mxu0 %v5504
    %7529 = vmatprep.mubr.bf16.mxu0 %v851
    %7530 = vmatmul.mubr.bf16.gmra.mrb[0].mxu0 %v850
    %v7531 = vpop.f32.mrb[0].mxu0
    %v7532 = vadd.f32 %v7491, %v7531
    %v7533 = vpop.f32.mrb[0].mxu0
    %v7534 = vadd.f32 %v7493, %v7533
    %v7535 = vpop.f32.mrb[0].mxu0
    %v7536 = vpop.f32.mrb[0].mxu0
    %7537 = vdwg.mxu0
    %7538 = vmatprep.subr.bf16.mxu0 %v5513
    %7539 = vmatpush1.bf16.msra.mxu0 %v5512
    %7540 = vmatprep.subr.bf16.mxu0 %v5521
    %7541 = vmatpush1.bf16.msra.mxu0 %v5520
    %7542 = vmatprep.subr.bf16.mxu0 %v5529
    %7543 = vmatpush1.bf16.msra.mxu0 %v5528
    %7544 = vmatprep.subr.bf16.mxu0 %v5537
    %7545 = vmatpush1.bf16.msra.mxu0 %v5536
    %7546 = vmatprep.subr.bf16.mxu0 %v5545
    %7547 = vmatpush1.bf16.msra.mxu0 %v5544
    %7548 = vmatprep.subr.bf16.mxu0 %v5553
    %7549 = vmatpush1.bf16.msra.mxu0 %v5552
    %7550 = vmatprep.subr.bf16.mxu0 %v5561
    %7551 = vmatpush1.bf16.msra.mxu0 %v5560
    %7552 = vmatprep.subr.bf16.mxu0 %v5569
    %7553 = vmatpush1.bf16.msra.mxu0 %v5568
    %7554 = vmatprep.subr.bf16.mxu0 %v5577
    %7555 = vmatpush1.bf16.msra.mxu0 %v5576
    %7556 = vmatprep.subr.bf16.mxu0 %v5585
    %7557 = vmatpush1.bf16.msra.mxu0 %v5584
    %7558 = vmatprep.subr.bf16.mxu0 %v5593
    %7559 = vmatpush1.bf16.msra.mxu0 %v5592
    %7560 = vmatprep.subr.bf16.mxu0 %v5601
    %7561 = vmatpush1.bf16.msra.mxu0 %v5600
    %7562 = vmatprep.subr.bf16.mxu0 %v5609
    %7563 = vmatpush1.bf16.msra.mxu0 %v5608
    %7564 = vmatprep.subr.bf16.mxu0 %v5617
    %7565 = vmatpush1.bf16.msra.mxu0 %v5616
    %7566 = vmatprep.subr.bf16.mxu0 %v5625
    %7567 = vmatpush1.bf16.msra.mxu0 %v5624
    %7568 = vmatprep.subr.bf16.mxu0 %v5633
    %7569 = vmatpush1.bf16.msra.mxu0 %v5632
    %7570 = vmatprep.mubr.bf16.mxu0 %v853
    %7571 = vmatmul.mubr.bf16.gmra.mrb[0].mxu0 %v852
    %v7572 = vpop.f32.mrb[0].mxu0
    %v7573 = vadd.f32 %v7532, %v7572
    %v7574 = vpop.f32.mrb[0].mxu0
    %v7575 = vadd.f32 %v7534, %v7574
    %v7576 = vpop.f32.mrb[0].mxu0
    %v7577 = vpop.f32.mrb[0].mxu0
    %7578 = vdwg.mxu0
    %7579 = vmatprep.subr.bf16.mxu0 %v5641
    %7580 = vmatpush1.bf16.msra.mxu0 %v5640
    %7581 = vmatprep.subr.bf16.mxu0 %v5649
    %7582 = vmatpush1.bf16.msra.mxu0 %v5648
    %7583 = vmatprep.subr.bf16.mxu0 %v5657
    %7584 = vmatpush1.bf16.msra.mxu0 %v5656
    %7585 = vmatprep.subr.bf16.mxu0 %v5665
    %7586 = vmatpush1.bf16.msra.mxu0 %v5664
    %7587 = vmatprep.subr.bf16.mxu0 %v5673
    %7588 = vmatpush1.bf16.msra.mxu0 %v5672
    %7589 = vmatprep.subr.bf16.mxu0 %v5681
    %7590 = vmatpush1.bf16.msra.mxu0 %v5680
    %7591 = vmatprep.subr.bf16.mxu0 %v5689
    %7592 = vmatpush1.bf16.msra.mxu0 %v5688
    %7593 = vmatprep.subr.bf16.mxu0 %v5697
    %7594 = vmatpush1.bf16.msra.mxu0 %v5696
    %7595 = vmatprep.subr.bf16.mxu0 %v5705
    %7596 = vmatpush1.bf16.msra.mxu0 %v5704
    %7597 = vmatprep.subr.bf16.mxu0 %v5713
    %7598 = vmatpush1.bf16.msra.mxu0 %v5712
    %7599 = vmatprep.subr.bf16.mxu0 %v5721
    %7600 = vmatpush1.bf16.msra.mxu0 %v5720
    %7601 = vmatprep.subr.bf16.mxu0 %v5729
    %7602 = vmatpush1.bf16.msra.mxu0 %v5728
    %7603 = vmatprep.subr.bf16.mxu0 %v5737
    %7604 = vmatpush1.bf16.msra.mxu0 %v5736
    %7605 = vmatprep.subr.bf16.mxu0 %v5745
    %7606 = vmatpush1.bf16.msra.mxu0 %v5744
    %7607 = vmatprep.subr.bf16.mxu0 %v5753
    %7608 = vmatpush1.bf16.msra.mxu0 %v5752
    %7609 = vmatprep.subr.bf16.mxu0 %v5761
    %7610 = vmatpush1.bf16.msra.mxu0 %v5760
    %7611 = vmatprep.mubr.bf16.mxu0 %v855
    %7612 = vmatmul.mubr.bf16.gmra.mrb[0].mxu0 %v854
    %v7613 = vpop.f32.mrb[0].mxu0
    %v7614 = vadd.f32 %v7573, %v7613
    %v7615 = vpop.f32.mrb[0].mxu0
    %v7616 = vadd.f32 %v7575, %v7615
    %v7617 = vpop.f32.mrb[0].mxu0
    %v7618 = vpop.f32.mrb[0].mxu0
    %7619 = vdwg.mxu0
    %7620 = vmatprep.subr.bf16.mxu0 %v5769
    %7621 = vmatpush1.bf16.msra.mxu0 %v5768
    %7622 = vmatprep.subr.bf16.mxu0 %v5777
    %7623 = vmatpush1.bf16.msra.mxu0 %v5776
    %7624 = vmatprep.subr.bf16.mxu0 %v5785
    %7625 = vmatpush1.bf16.msra.mxu0 %v5784
    %7626 = vmatprep.subr.bf16.mxu0 %v5793
    %7627 = vmatpush1.bf16.msra.mxu0 %v5792
    %7628 = vmatprep.subr.bf16.mxu0 %v5801
    %7629 = vmatpush1.bf16.msra.mxu0 %v5800
    %7630 = vmatprep.subr.bf16.mxu0 %v5809
    %7631 = vmatpush1.bf16.msra.mxu0 %v5808
    %7632 = vmatprep.subr.bf16.mxu0 %v5817
    %7633 = vmatpush1.bf16.msra.mxu0 %v5816
    %7634 = vmatprep.subr.bf16.mxu0 %v5825
    %7635 = vmatpush1.bf16.msra.mxu0 %v5824
    %7636 = vmatprep.subr.bf16.mxu0 %v5833
    %7637 = vmatpush1.bf16.msra.mxu0 %v5832
    %7638 = vmatprep.subr.bf16.mxu0 %v5841
    %7639 = vmatpush1.bf16.msra.mxu0 %v5840
    %7640 = vmatprep.subr.bf16.mxu0 %v5849
    %7641 = vmatpush1.bf16.msra.mxu0 %v5848
    %7642 = vmatprep.subr.bf16.mxu0 %v5857
    %7643 = vmatpush1.bf16.msra.mxu0 %v5856
    %7644 = vmatprep.subr.bf16.mxu0 %v5865
    %7645 = vmatpush1.bf16.msra.mxu0 %v5864
    %7646 = vmatprep.subr.bf16.mxu0 %v5873
    %7647 = vmatpush1.bf16.msra.mxu0 %v5872
    %7648 = vmatprep.subr.bf16.mxu0 %v5881
    %7649 = vmatpush1.bf16.msra.mxu0 %v5880
    %7650 = vmatprep.subr.bf16.mxu0 %v5889
    %7651 = vmatpush1.bf16.msra.mxu0 %v5888
    %7652 = vmatprep.mubr.bf16.mxu0 %v857
    %7653 = vmatmul.mubr.bf16.gmra.mrb[0].mxu0 %v856
    %v7654 = vpop.f32.mrb[0].mxu0
    %v7655 = vadd.f32 %v7614, %v7654
    %v7656 = vpop.f32.mrb[0].mxu0
    %v7657 = vadd.f32 %v7616, %v7656
    %v7658 = vpop.f32.mrb[0].mxu0
    %v7659 = vpop.f32.mrb[0].mxu0
    %7660 = vdwg.mxu0
    %7661 = vmatprep.subr.bf16.mxu0 %v5897
    %7662 = vmatpush1.bf16.msra.mxu0 %v5896
    %7663 = vmatprep.subr.bf16.mxu0 %v5905
    %7664 = vmatpush1.bf16.msra.mxu0 %v5904
    %7665 = vmatprep.subr.bf16.mxu0 %v5913
    %7666 = vmatpush1.bf16.msra.mxu0 %v5912
    %7667 = vmatprep.subr.bf16.mxu0 %v5921
    %7668 = vmatpush1.bf16.msra.mxu0 %v5920
    %7669 = vmatprep.subr.bf16.mxu0 %v5929
    %7670 = vmatpush1.bf16.msra.mxu0 %v5928
    %7671 = vmatprep.subr.bf16.mxu0 %v5937
    %7672 = vmatpush1.bf16.msra.mxu0 %v5936
    %7673 = vmatprep.subr.bf16.mxu0 %v5945
    %7674 = vmatpush1.bf16.msra.mxu0 %v5944
    %7675 = vmatprep.subr.bf16.mxu0 %v5953
    %7676 = vmatpush1.bf16.msra.mxu0 %v5952
    %7677 = vmatprep.subr.bf16.mxu0 %v5961
    %7678 = vmatpush1.bf16.msra.mxu0 %v5960
    %7679 = vmatprep.subr.bf16.mxu0 %v5969
    %7680 = vmatpush1.bf16.msra.mxu0 %v5968
    %7681 = vmatprep.subr.bf16.mxu0 %v5977
    %7682 = vmatpush1.bf16.msra.mxu0 %v5976
    %7683 = vmatprep.subr.bf16.mxu0 %v5985
    %7684 = vmatpush1.bf16.msra.mxu0 %v5984
    %7685 = vmatprep.subr.bf16.mxu0 %v5993
    %7686 = vmatpush1.bf16.msra.mxu0 %v5992
    %7687 = vmatprep.subr.bf16.mxu0 %v6001
    %7688 = vmatpush1.bf16.msra.mxu0 %v6000
    %7689 = vmatprep.subr.bf16.mxu0 %v6009
    %7690 = vmatpush1.bf16.msra.mxu0 %v6008
    %7691 = vmatprep.subr.bf16.mxu0 %v6017
    %7692 = vmatpush1.bf16.msra.mxu0 %v6016
    %7693 = vmatprep.mubr.bf16.mxu0 %v859
    %7694 = vmatmul.mubr.bf16.gmra.mrb[0].mxu0 %v858
    %v7695 = vpop.f32.mrb[0].mxu0
    %v7696 = vadd.f32 %v7655, %v7695
    %v7697 = vpop.f32.mrb[0].mxu0
    %v7698 = vadd.f32 %v7657, %v7697
    %v7699 = vpop.f32.mrb[0].mxu0
    %v7700 = vpop.f32.mrb[0].mxu0
    %7701 = vdwg.mxu0
    %7702 = vmatprep.subr.bf16.mxu0 %v5003
    %7703 = vmatpush1.bf16.msra.mxu0 %v5002
    %7704 = vmatprep.subr.bf16.mxu0 %v5011
    %7705 = vmatpush1.bf16.msra.mxu0 %v5010
    %7706 = vmatprep.subr.bf16.mxu0 %v5019
    %7707 = vmatpush1.bf16.msra.mxu0 %v5018
    %7708 = vmatprep.subr.bf16.mxu0 %v5027
    %7709 = vmatpush1.bf16.msra.mxu0 %v5026
    %7710 = vmatprep.subr.bf16.mxu0 %v5035
    %7711 = vmatpush1.bf16.msra.mxu0 %v5034
    %7712 = vmatprep.subr.bf16.mxu0 %v5043
    %7713 = vmatpush1.bf16.msra.mxu0 %v5042
    %7714 = vmatprep.subr.bf16.mxu0 %v5051
    %7715 = vmatpush1.bf16.msra.mxu0 %v5050
    %7716 = vmatprep.subr.bf16.mxu0 %v5059
    %7717 = vmatpush1.bf16.msra.mxu0 %v5058
    %7718 = vmatprep.subr.bf16.mxu0 %v5067
    %7719 = vmatpush1.bf16.msra.mxu0 %v5066
    %7720 = vmatprep.subr.bf16.mxu0 %v5075
    %7721 = vmatpush1.bf16.msra.mxu0 %v5074
    %7722 = vmatprep.subr.bf16.mxu0 %v5083
    %7723 = vmatpush1.bf16.msra.mxu0 %v5082
    %7724 = vmatprep.subr.bf16.mxu0 %v5091
    %7725 = vmatpush1.bf16.msra.mxu0 %v5090
    %7726 = vmatprep.subr.bf16.mxu0 %v5099
    %7727 = vmatpush1.bf16.msra.mxu0 %v5098
    %7728 = vmatprep.subr.bf16.mxu0 %v5107
    %7729 = vmatpush1.bf16.msra.mxu0 %v5106
    %7730 = vmatprep.subr.bf16.mxu0 %v5115
    %7731 = vmatpush1.bf16.msra.mxu0 %v5114
    %7732 = vmatprep.subr.bf16.mxu0 %v5123
    %7733 = vmatpush1.bf16.msra.mxu0 %v5122
    %7734 = vmatprep.mubr.bf16.mxu0 %v845
    %7735 = vmatmul.mubr.bf16.gmra.mrb[0].mxu0 %v844
    %v7736 = vpop.f32.mrb[0].mxu0
    %v7737 = vadd.f32 %v1905, %v7736
    %v7738 = vpop.f32.mrb[0].mxu0
    %v7739 = vadd.f32 %v1909, %v7738
    %v7740 = vpop.f32.mrb[0].mxu0
    %v7741 = vpop.f32.mrb[0].mxu0
    %7742 = vdwg.mxu0
    %7743 = vmatprep.subr.bf16.mxu0 %v5131
    %7744 = vmatpush1.bf16.msra.mxu0 %v5130
    %7745 = vmatprep.subr.bf16.mxu0 %v5139
    %7746 = vmatpush1.bf16.msra.mxu0 %v5138
    %7747 = vmatprep.subr.bf16.mxu0 %v5147
    %7748 = vmatpush1.bf16.msra.mxu0 %v5146
    %7749 = vmatprep.subr.bf16.mxu0 %v5155
    %7750 = vmatpush1.bf16.msra.mxu0 %v5154
    %7751 = vmatprep.subr.bf16.mxu0 %v5163
    %7752 = vmatpush1.bf16.msra.mxu0 %v5162
    %7753 = vmatprep.subr.bf16.mxu0 %v5171
    %7754 = vmatpush1.bf16.msra.mxu0 %v5170
    %7755 = vmatprep.subr.bf16.mxu0 %v5179
    %7756 = vmatpush1.bf16.msra.mxu0 %v5178
    %7757 = vmatprep.subr.bf16.mxu0 %v5187
    %7758 = vmatpush1.bf16.msra.mxu0 %v5186
    %7759 = vmatprep.subr.bf16.mxu0 %v5195
    %7760 = vmatpush1.bf16.msra.mxu0 %v5194
    %7761 = vmatprep.subr.bf16.mxu0 %v5203
    %7762 = vmatpush1.bf16.msra.mxu0 %v5202
    %7763 = vmatprep.subr.bf16.mxu0 %v5211
    %7764 = vmatpush1.bf16.msra.mxu0 %v5210
    %7765 = vmatprep.subr.bf16.mxu0 %v5219
    %7766 = vmatpush1.bf16.msra.mxu0 %v5218
    %7767 = vmatprep.subr.bf16.mxu0 %v5227
    %7768 = vmatpush1.bf16.msra.mxu0 %v5226
    %7769 = vmatprep.subr.bf16.mxu0 %v5235
    %7770 = vmatpush1.bf16.msra.mxu0 %v5234
    %7771 = vmatprep.subr.bf16.mxu0 %v5243
    %7772 = vmatpush1.bf16.msra.mxu0 %v5242
    %7773 = vmatprep.subr.bf16.mxu0 %v5251
    %7774 = vmatpush1.bf16.msra.mxu0 %v5250
    %7775 = vmatprep.mubr.bf16.mxu0 %v847
    %7776 = vmatmul.mubr.bf16.gmra.mrb[0].mxu0 %v846
    %v7777 = vpop.f32.mrb[0].mxu0
    %v7778 = vadd.f32 %v7737, %v7777
    %v7779 = vpop.f32.mrb[0].mxu0
    %v7780 = vadd.f32 %v7739, %v7779
    %v7781 = vpop.f32.mrb[0].mxu0
    %v7782 = vpop.f32.mrb[0].mxu0
    %7783 = vdwg.mxu0
    %7784 = vmatprep.subr.bf16.mxu0 %v5259
    %7785 = vmatpush1.bf16.msra.mxu0 %v5258
    %7786 = vmatprep.subr.bf16.mxu0 %v5267
    %7787 = vmatpush1.bf16.msra.mxu0 %v5266
    %7788 = vmatprep.subr.bf16.mxu0 %v5275
    %7789 = vmatpush1.bf16.msra.mxu0 %v5274
    %7790 = vmatprep.subr.bf16.mxu0 %v5283
    %7791 = vmatpush1.bf16.msra.mxu0 %v5282
    %7792 = vmatprep.subr.bf16.mxu0 %v5291
    %7793 = vmatpush1.bf16.msra.mxu0 %v5290
    %7794 = vmatprep.subr.bf16.mxu0 %v5299
    %7795 = vmatpush1.bf16.msra.mxu0 %v5298
    %7796 = vmatprep.subr.bf16.mxu0 %v5307
    %7797 = vmatpush1.bf16.msra.mxu0 %v5306
    %7798 = vmatprep.subr.bf16.mxu0 %v5315
    %7799 = vmatpush1.bf16.msra.mxu0 %v5314
    %7800 = vmatprep.subr.bf16.mxu0 %v5323
    %7801 = vmatpush1.bf16.msra.mxu0 %v5322
    %7802 = vmatprep.subr.bf16.mxu0 %v5331
    %7803 = vmatpush1.bf16.msra.mxu0 %v5330
    %7804 = vmatprep.subr.bf16.mxu0 %v5339
    %7805 = vmatpush1.bf16.msra.mxu0 %v5338
    %7806 = vmatprep.subr.bf16.mxu0 %v5347
    %7807 = vmatpush1.bf16.msra.mxu0 %v5346
    %7808 = vmatprep.subr.bf16.mxu0 %v5355
    %7809 = vmatpush1.bf16.msra.mxu0 %v5354
    %7810 = vmatprep.subr.bf16.mxu0 %v5363
    %7811 = vmatpush1.bf16.msra.mxu0 %v5362
    %7812 = vmatprep.subr.bf16.mxu0 %v5371
    %7813 = vmatpush1.bf16.msra.mxu0 %v5370
    %7814 = vmatprep.subr.bf16.mxu0 %v5379
    %7815 = vmatpush1.bf16.msra.mxu0 %v5378
    %7816 = vmatprep.mubr.bf16.mxu0 %v849
    %7817 = vmatmul.mubr.bf16.gmra.mrb[0].mxu0 %v848
    %v7818 = vpop.f32.mrb[0].mxu0
    %v7819 = vadd.f32 %v7778, %v7818
    %v7820 = vpop.f32.mrb[0].mxu0
    %v7821 = vadd.f32 %v7780, %v7820
    %v7822 = vpop.f32.mrb[0].mxu0
    %v7823 = vpop.f32.mrb[0].mxu0
    %7824 = vdwg.mxu0
    %7825 = vmatprep.subr.bf16.mxu0 %v5387
    %7826 = vmatpush1.bf16.msra.mxu0 %v5386
    %7827 = vmatprep.subr.bf16.mxu0 %v5395
    %7828 = vmatpush1.bf16.msra.mxu0 %v5394
    %7829 = vmatprep.subr.bf16.mxu0 %v5403
    %7830 = vmatpush1.bf16.msra.mxu0 %v5402
    %7831 = vmatprep.subr.bf16.mxu0 %v5411
    %7832 = vmatpush1.bf16.msra.mxu0 %v5410
    %7833 = vmatprep.subr.bf16.mxu0 %v5419
    %7834 = vmatpush1.bf16.msra.mxu0 %v5418
    %7835 = vmatprep.subr.bf16.mxu0 %v5427
    %7836 = vmatpush1.bf16.msra.mxu0 %v5426
    %7837 = vmatprep.subr.bf16.mxu0 %v5435
    %7838 = vmatpush1.bf16.msra.mxu0 %v5434
    %7839 = vmatprep.subr.bf16.mxu0 %v5443
    %7840 = vmatpush1.bf16.msra.mxu0 %v5442
    %7841 = vmatprep.subr.bf16.mxu0 %v5451
    %7842 = vmatpush1.bf16.msra.mxu0 %v5450
    %7843 = vmatprep.subr.bf16.mxu0 %v5459
    %7844 = vmatpush1.bf16.msra.mxu0 %v5458
    %7845 = vmatprep.subr.bf16.mxu0 %v5467
    %7846 = vmatpush1.bf16.msra.mxu0 %v5466
    %7847 = vmatprep.subr.bf16.mxu0 %v5475
    %7848 = vmatpush1.bf16.msra.mxu0 %v5474
    %7849 = vmatprep.subr.bf16.mxu0 %v5483
    %7850 = vmatpush1.bf16.msra.mxu0 %v5482
    %7851 = vmatprep.subr.bf16.mxu0 %v5491
    %7852 = vmatpush1.bf16.msra.mxu0 %v5490
    %7853 = vmatprep.subr.bf16.mxu0 %v5499
    %7854 = vmatpush1.bf16.msra.mxu0 %v5498
    %7855 = vmatprep.subr.bf16.mxu0 %v5507
    %7856 = vmatpush1.bf16.msra.mxu0 %v5506
    %7857 = vmatprep.mubr.bf16.mxu0 %v851
    %7858 = vmatmul.mubr.bf16.gmra.mrb[0].mxu0 %v850
    %v7859 = vpop.f32.mrb[0].mxu0
    %v7860 = vadd.f32 %v7819, %v7859
    %v7861 = vpop.f32.mrb[0].mxu0
    %v7862 = vadd.f32 %v7821, %v7861
    %v7863 = vpop.f32.mrb[0].mxu0
    %v7864 = vpop.f32.mrb[0].mxu0
    %7865 = vdwg.mxu0
    %7866 = vmatprep.subr.bf16.mxu0 %v5515
    %7867 = vmatpush1.bf16.msra.mxu0 %v5514
    %7868 = vmatprep.subr.bf16.mxu0 %v5523
    %7869 = vmatpush1.bf16.msra.mxu0 %v5522
    %7870 = vmatprep.subr.bf16.mxu0 %v5531
    %7871 = vmatpush1.bf16.msra.mxu0 %v5530
    %7872 = vmatprep.subr.bf16.mxu0 %v5539
    %7873 = vmatpush1.bf16.msra.mxu0 %v5538
    %7874 = vmatprep.subr.bf16.mxu0 %v5547
    %7875 = vmatpush1.bf16.msra.mxu0 %v5546
    %7876 = vmatprep.subr.bf16.mxu0 %v5555
    %7877 = vmatpush1.bf16.msra.mxu0 %v5554
    %7878 = vmatprep.subr.bf16.mxu0 %v5563
    %7879 = vmatpush1.bf16.msra.mxu0 %v5562
    %7880 = vmatprep.subr.bf16.mxu0 %v5571
    %7881 = vmatpush1.bf16.msra.mxu0 %v5570
    %7882 = vmatprep.subr.bf16.mxu0 %v5579
    %7883 = vmatpush1.bf16.msra.mxu0 %v5578
    %7884 = vmatprep.subr.bf16.mxu0 %v5587
    %7885 = vmatpush1.bf16.msra.mxu0 %v5586
    %7886 = vmatprep.subr.bf16.mxu0 %v5595
    %7887 = vmatpush1.bf16.msra.mxu0 %v5594
    %7888 = vmatprep.subr.bf16.mxu0 %v5603
    %7889 = vmatpush1.bf16.msra.mxu0 %v5602
    %7890 = vmatprep.subr.bf16.mxu0 %v5611
    %7891 = vmatpush1.bf16.msra.mxu0 %v5610
    %7892 = vmatprep.subr.bf16.mxu0 %v5619
    %7893 = vmatpush1.bf16.msra.mxu0 %v5618
    %7894 = vmatprep.subr.bf16.mxu0 %v5627
    %7895 = vmatpush1.bf16.msra.mxu0 %v5626
    %7896 = vmatprep.subr.bf16.mxu0 %v5635
    %7897 = vmatpush1.bf16.msra.mxu0 %v5634
    %7898 = vmatprep.mubr.bf16.mxu0 %v853
    %7899 = vmatmul.mubr.bf16.gmra.mrb[0].mxu0 %v852
    %v7900 = vpop.f32.mrb[0].mxu0
    %v7901 = vadd.f32 %v7860, %v7900
    %v7902 = vpop.f32.mrb[0].mxu0
    %v7903 = vadd.f32 %v7862, %v7902
    %v7904 = vpop.f32.mrb[0].mxu0
    %v7905 = vpop.f32.mrb[0].mxu0
    %7906 = vdwg.mxu0
    %7907 = vmatprep.subr.bf16.mxu0 %v5643
    %7908 = vmatpush1.bf16.msra.mxu0 %v5642
    %7909 = vmatprep.subr.bf16.mxu0 %v5651
    %7910 = vmatpush1.bf16.msra.mxu0 %v5650
    %7911 = vmatprep.subr.bf16.mxu0 %v5659
    %7912 = vmatpush1.bf16.msra.mxu0 %v5658
    %7913 = vmatprep.subr.bf16.mxu0 %v5667
    %7914 = vmatpush1.bf16.msra.mxu0 %v5666
    %7915 = vmatprep.subr.bf16.mxu0 %v5675
    %7916 = vmatpush1.bf16.msra.mxu0 %v5674
    %7917 = vmatprep.subr.bf16.mxu0 %v5683
    %7918 = vmatpush1.bf16.msra.mxu0 %v5682
    %7919 = vmatprep.subr.bf16.mxu0 %v5691
    %7920 = vmatpush1.bf16.msra.mxu0 %v5690
    %7921 = vmatprep.subr.bf16.mxu0 %v5699
    %7922 = vmatpush1.bf16.msra.mxu0 %v5698
    %7923 = vmatprep.subr.bf16.mxu0 %v5707
    %7924 = vmatpush1.bf16.msra.mxu0 %v5706
    %7925 = vmatprep.subr.bf16.mxu0 %v5715
    %7926 = vmatpush1.bf16.msra.mxu0 %v5714
    %7927 = vmatprep.subr.bf16.mxu0 %v5723
    %7928 = vmatpush1.bf16.msra.mxu0 %v5722
    %7929 = vmatprep.subr.bf16.mxu0 %v5731
    %7930 = vmatpush1.bf16.msra.mxu0 %v5730
    %7931 = vmatprep.subr.bf16.mxu0 %v5739
    %7932 = vmatpush1.bf16.msra.mxu0 %v5738
    %7933 = vmatprep.subr.bf16.mxu0 %v5747
    %7934 = vmatpush1.bf16.msra.mxu0 %v5746
    %7935 = vmatprep.subr.bf16.mxu0 %v5755
    %7936 = vmatpush1.bf16.msra.mxu0 %v5754
    %7937 = vmatprep.subr.bf16.mxu0 %v5763
    %7938 = vmatpush1.bf16.msra.mxu0 %v5762
    %7939 = vmatprep.mubr.bf16.mxu0 %v855
    %7940 = vmatmul.mubr.bf16.gmra.mrb[0].mxu0 %v854
    %v7941 = vpop.f32.mrb[0].mxu0
    %v7942 = vadd.f32 %v7901, %v7941
    %v7943 = vpop.f32.mrb[0].mxu0
    %v7944 = vadd.f32 %v7903, %v7943
    %v7945 = vpop.f32.mrb[0].mxu0
    %v7946 = vpop.f32.mrb[0].mxu0
    %7947 = vdwg.mxu0
    %7948 = vmatprep.subr.bf16.mxu0 %v5771
    %7949 = vmatpush1.bf16.msra.mxu0 %v5770
    %7950 = vmatprep.subr.bf16.mxu0 %v5779
    %7951 = vmatpush1.bf16.msra.mxu0 %v5778
    %7952 = vmatprep.subr.bf16.mxu0 %v5787
    %7953 = vmatpush1.bf16.msra.mxu0 %v5786
    %7954 = vmatprep.subr.bf16.mxu0 %v5795
    %7955 = vmatpush1.bf16.msra.mxu0 %v5794
    %7956 = vmatprep.subr.bf16.mxu0 %v5803
    %7957 = vmatpush1.bf16.msra.mxu0 %v5802
    %7958 = vmatprep.subr.bf16.mxu0 %v5811
    %7959 = vmatpush1.bf16.msra.mxu0 %v5810
    %7960 = vmatprep.subr.bf16.mxu0 %v5819
    %7961 = vmatpush1.bf16.msra.mxu0 %v5818
    %7962 = vmatprep.subr.bf16.mxu0 %v5827
    %7963 = vmatpush1.bf16.msra.mxu0 %v5826
    %7964 = vmatprep.subr.bf16.mxu0 %v5835
    %7965 = vmatpush1.bf16.msra.mxu0 %v5834
    %7966 = vmatprep.subr.bf16.mxu0 %v5843
    %7967 = vmatpush1.bf16.msra.mxu0 %v5842
    %7968 = vmatprep.subr.bf16.mxu0 %v5851
    %7969 = vmatpush1.bf16.msra.mxu0 %v5850
    %7970 = vmatprep.subr.bf16.mxu0 %v5859
    %7971 = vmatpush1.bf16.msra.mxu0 %v5858
    %7972 = vmatprep.subr.bf16.mxu0 %v5867
    %7973 = vmatpush1.bf16.msra.mxu0 %v5866
    %7974 = vmatprep.subr.bf16.mxu0 %v5875
    %7975 = vmatpush1.bf16.msra.mxu0 %v5874
    %7976 = vmatprep.subr.bf16.mxu0 %v5883
    %7977 = vmatpush1.bf16.msra.mxu0 %v5882
    %7978 = vmatprep.subr.bf16.mxu0 %v5891
    %7979 = vmatpush1.bf16.msra.mxu0 %v5890
    %7980 = vmatprep.mubr.bf16.mxu0 %v857
    %7981 = vmatmul.mubr.bf16.gmra.mrb[0].mxu0 %v856
    %v7982 = vpop.f32.mrb[0].mxu0
    %v7983 = vadd.f32 %v7942, %v7982
    %v7984 = vpop.f32.mrb[0].mxu0
    %v7985 = vadd.f32 %v7944, %v7984
    %v7986 = vpop.f32.mrb[0].mxu0
    %v7987 = vpop.f32.mrb[0].mxu0
    %7988 = vdwg.mxu0
    %7989 = vmatprep.subr.bf16.mxu0 %v5899
    %7990 = vmatpush1.bf16.msra.mxu0 %v5898
    %7991 = vmatprep.subr.bf16.mxu0 %v5907
    %7992 = vmatpush1.bf16.msra.mxu0 %v5906
    %7993 = vmatprep.subr.bf16.mxu0 %v5915
    %7994 = vmatpush1.bf16.msra.mxu0 %v5914
    %7995 = vmatprep.subr.bf16.mxu0 %v5923
    %7996 = vmatpush1.bf16.msra.mxu0 %v5922
    %7997 = vmatprep.subr.bf16.mxu0 %v5931
    %7998 = vmatpush1.bf16.msra.mxu0 %v5930
    %7999 = vmatprep.subr.bf16.mxu0 %v5939
    %8000 = vmatpush1.bf16.msra.mxu0 %v5938
    %8001 = vmatprep.subr.bf16.mxu0 %v5947
    %8002 = vmatpush1.bf16.msra.mxu0 %v5946
    %8003 = vmatprep.subr.bf16.mxu0 %v5955
    %8004 = vmatpush1.bf16.msra.mxu0 %v5954
    %8005 = vmatprep.subr.bf16.mxu0 %v5963
    %8006 = vmatpush1.bf16.msra.mxu0 %v5962
    %8007 = vmatprep.subr.bf16.mxu0 %v5971
    %8008 = vmatpush1.bf16.msra.mxu0 %v5970
    %8009 = vmatprep.subr.bf16.mxu0 %v5979
    %8010 = vmatpush1.bf16.msra.mxu0 %v5978
    %8011 = vmatprep.subr.bf16.mxu0 %v5987
    %8012 = vmatpush1.bf16.msra.mxu0 %v5986
    %8013 = vmatprep.subr.bf16.mxu0 %v5995
    %8014 = vmatpush1.bf16.msra.mxu0 %v5994
    %8015 = vmatprep.subr.bf16.mxu0 %v6003
    %8016 = vmatpush1.bf16.msra.mxu0 %v6002
    %8017 = vmatprep.subr.bf16.mxu0 %v6011
    %8018 = vmatpush1.bf16.msra.mxu0 %v6010
    %8019 = vmatprep.subr.bf16.mxu0 %v6019
    %8020 = vmatpush1.bf16.msra.mxu0 %v6018
    %8021 = vmatprep.mubr.bf16.mxu0 %v859
    %8022 = vmatmul.mubr.bf16.gmra.mrb[0].mxu0 %v858
    %v8023 = vpop.f32.mrb[0].mxu0
    %v8024 = vadd.f32 %v7983, %v8023
    %v8025 = vpop.f32.mrb[0].mxu0
    %v8026 = vadd.f32 %v7985, %v8025
    %v8027 = vpop.f32.mrb[0].mxu0
    %v8028 = vpop.f32.mrb[0].mxu0
    %8029 = vdwg.mxu0
    %8030 = vmatprep.subr.bf16.mxu0 %v5005
    %8031 = vmatpush1.bf16.msra.mxu0 %v5004
    %8032 = vmatprep.subr.bf16.mxu0 %v5013
    %8033 = vmatpush1.bf16.msra.mxu0 %v5012
    %8034 = vmatprep.subr.bf16.mxu0 %v5021
    %8035 = vmatpush1.bf16.msra.mxu0 %v5020
    %8036 = vmatprep.subr.bf16.mxu0 %v5029
    %8037 = vmatpush1.bf16.msra.mxu0 %v5028
    %8038 = vmatprep.subr.bf16.mxu0 %v5037
    %8039 = vmatpush1.bf16.msra.mxu0 %v5036
    %8040 = vmatprep.subr.bf16.mxu0 %v5045
    %8041 = vmatpush1.bf16.msra.mxu0 %v5044
    %8042 = vmatprep.subr.bf16.mxu0 %v5053
    %8043 = vmatpush1.bf16.msra.mxu0 %v5052
    %8044 = vmatprep.subr.bf16.mxu0 %v5061
    %8045 = vmatpush1.bf16.msra.mxu0 %v5060
    %8046 = vmatprep.subr.bf16.mxu0 %v5069
    %8047 = vmatpush1.bf16.msra.mxu0 %v5068
    %8048 = vmatprep.subr.bf16.mxu0 %v5077
    %8049 = vmatpush1.bf16.msra.mxu0 %v5076
    %8050 = vmatprep.subr.bf16.mxu0 %v5085
    %8051 = vmatpush1.bf16.msra.mxu0 %v5084
    %8052 = vmatprep.subr.bf16.mxu0 %v5093
    %8053 = vmatpush1.bf16.msra.mxu0 %v5092
    %8054 = vmatprep.subr.bf16.mxu0 %v5101
    %8055 = vmatpush1.bf16.msra.mxu0 %v5100
    %8056 = vmatprep.subr.bf16.mxu0 %v5109
    %8057 = vmatpush1.bf16.msra.mxu0 %v5108
    %8058 = vmatprep.subr.bf16.mxu0 %v5117
    %8059 = vmatpush1.bf16.msra.mxu0 %v5116
    %8060 = vmatprep.subr.bf16.mxu0 %v5125
    %8061 = vmatpush1.bf16.msra.mxu0 %v5124
    %8062 = vmatprep.mubr.bf16.mxu0 %v845
    %8063 = vmatmul.mubr.bf16.gmra.mrb[0].mxu0 %v844
    %v8064 = vpop.f32.mrb[0].mxu0
    %v8065 = vadd.f32 %v1913, %v8064
    %v8066 = vpop.f32.mrb[0].mxu0
    %v8067 = vadd.f32 %v1917, %v8066
    %v8068 = vpop.f32.mrb[0].mxu0
    %v8069 = vpop.f32.mrb[0].mxu0
    %8070 = vdwg.mxu0
    %8071 = vmatprep.subr.bf16.mxu0 %v5133
    %8072 = vmatpush1.bf16.msra.mxu0 %v5132
    %8073 = vmatprep.subr.bf16.mxu0 %v5141
    %8074 = vmatpush1.bf16.msra.mxu0 %v5140
    %8075 = vmatprep.subr.bf16.mxu0 %v5149
    %8076 = vmatpush1.bf16.msra.mxu0 %v5148
    %8077 = vmatprep.subr.bf16.mxu0 %v5157
    %8078 = vmatpush1.bf16.msra.mxu0 %v5156
    %8079 = vmatprep.subr.bf16.mxu0 %v5165
    %8080 = vmatpush1.bf16.msra.mxu0 %v5164
    %8081 = vmatprep.subr.bf16.mxu0 %v5173
    %8082 = vmatpush1.bf16.msra.mxu0 %v5172
    %8083 = vmatprep.subr.bf16.mxu0 %v5181
    %8084 = vmatpush1.bf16.msra.mxu0 %v5180
    %8085 = vmatprep.subr.bf16.mxu0 %v5189
    %8086 = vmatpush1.bf16.msra.mxu0 %v5188
    %8087 = vmatprep.subr.bf16.mxu0 %v5197
    %8088 = vmatpush1.bf16.msra.mxu0 %v5196
    %8089 = vmatprep.subr.bf16.mxu0 %v5205
    %8090 = vmatpush1.bf16.msra.mxu0 %v5204
    %8091 = vmatprep.subr.bf16.mxu0 %v5213
    %8092 = vmatpush1.bf16.msra.mxu0 %v5212
    %8093 = vmatprep.subr.bf16.mxu0 %v5221
    %8094 = vmatpush1.bf16.msra.mxu0 %v5220
    %8095 = vmatprep.subr.bf16.mxu0 %v5229
    %8096 = vmatpush1.bf16.msra.mxu0 %v5228
    %8097 = vmatprep.subr.bf16.mxu0 %v5237
    %8098 = vmatpush1.bf16.msra.mxu0 %v5236
    %8099 = vmatprep.subr.bf16.mxu0 %v5245
    %8100 = vmatpush1.bf16.msra.mxu0 %v5244
    %8101 = vmatprep.subr.bf16.mxu0 %v5253
    %8102 = vmatpush1.bf16.msra.mxu0 %v5252
    %8103 = vmatprep.mubr.bf16.mxu0 %v847
    %8104 = vmatmul.mubr.bf16.gmra.mrb[0].mxu0 %v846
    %v8105 = vpop.f32.mrb[0].mxu0
    %v8106 = vadd.f32 %v8065, %v8105
    %v8107 = vpop.f32.mrb[0].mxu0
    %v8108 = vadd.f32 %v8067, %v8107
    %v8109 = vpop.f32.mrb[0].mxu0
    %v8110 = vpop.f32.mrb[0].mxu0
    %8111 = vdwg.mxu0
    %8112 = vmatprep.subr.bf16.mxu0 %v5261
    %8113 = vmatpush1.bf16.msra.mxu0 %v5260
    %8114 = vmatprep.subr.bf16.mxu0 %v5269
    %8115 = vmatpush1.bf16.msra.mxu0 %v5268
    %8116 = vmatprep.subr.bf16.mxu0 %v5277
    %8117 = vmatpush1.bf16.msra.mxu0 %v5276
    %8118 = vmatprep.subr.bf16.mxu0 %v5285
    %8119 = vmatpush1.bf16.msra.mxu0 %v5284
    %8120 = vmatprep.subr.bf16.mxu0 %v5293
    %8121 = vmatpush1.bf16.msra.mxu0 %v5292
    %8122 = vmatprep.subr.bf16.mxu0 %v5301
    %8123 = vmatpush1.bf16.msra.mxu0 %v5300
    %8124 = vmatprep.subr.bf16.mxu0 %v5309
    %8125 = vmatpush1.bf16.msra.mxu0 %v5308
    %8126 = vmatprep.subr.bf16.mxu0 %v5317
    %8127 = vmatpush1.bf16.msra.mxu0 %v5316
    %8128 = vmatprep.subr.bf16.mxu0 %v5325
    %8129 = vmatpush1.bf16.msra.mxu0 %v5324
    %8130 = vmatprep.subr.bf16.mxu0 %v5333
    %8131 = vmatpush1.bf16.msra.mxu0 %v5332
    %8132 = vmatprep.subr.bf16.mxu0 %v5341
    %8133 = vmatpush1.bf16.msra.mxu0 %v5340
    %8134 = vmatprep.subr.bf16.mxu0 %v5349
    %8135 = vmatpush1.bf16.msra.mxu0 %v5348
    %8136 = vmatprep.subr.bf16.mxu0 %v5357
    %8137 = vmatpush1.bf16.msra.mxu0 %v5356
    %8138 = vmatprep.subr.bf16.mxu0 %v5365
    %8139 = vmatpush1.bf16.msra.mxu0 %v5364
    %8140 = vmatprep.subr.bf16.mxu0 %v5373
    %8141 = vmatpush1.bf16.msra.mxu0 %v5372
    %8142 = vmatprep.subr.bf16.mxu0 %v5381
    %8143 = vmatpush1.bf16.msra.mxu0 %v5380
    %8144 = vmatprep.mubr.bf16.mxu0 %v849
    %8145 = vmatmul.mubr.bf16.gmra.mrb[0].mxu0 %v848
    %v8146 = vpop.f32.mrb[0].mxu0
    %v8147 = vadd.f32 %v8106, %v8146
    %v8148 = vpop.f32.mrb[0].mxu0
    %v8149 = vadd.f32 %v8108, %v8148
    %v8150 = vpop.f32.mrb[0].mxu0
    %v8151 = vpop.f32.mrb[0].mxu0
    %8152 = vdwg.mxu0
    %8153 = vmatprep.subr.bf16.mxu0 %v5389
    %8154 = vmatpush1.bf16.msra.mxu0 %v5388
    %8155 = vmatprep.subr.bf16.mxu0 %v5397
    %8156 = vmatpush1.bf16.msra.mxu0 %v5396
    %8157 = vmatprep.subr.bf16.mxu0 %v5405
    %8158 = vmatpush1.bf16.msra.mxu0 %v5404
    %8159 = vmatprep.subr.bf16.mxu0 %v5413
    %8160 = vmatpush1.bf16.msra.mxu0 %v5412
    %8161 = vmatprep.subr.bf16.mxu0 %v5421
    %8162 = vmatpush1.bf16.msra.mxu0 %v5420
    %8163 = vmatprep.subr.bf16.mxu0 %v5429
    %8164 = vmatpush1.bf16.msra.mxu0 %v5428
    %8165 = vmatprep.subr.bf16.mxu0 %v5437
    %8166 = vmatpush1.bf16.msra.mxu0 %v5436
    %8167 = vmatprep.subr.bf16.mxu0 %v5445
    %8168 = vmatpush1.bf16.msra.mxu0 %v5444
    %8169 = vmatprep.subr.bf16.mxu0 %v5453
    %8170 = vmatpush1.bf16.msra.mxu0 %v5452
    %8171 = vmatprep.subr.bf16.mxu0 %v5461
    %8172 = vmatpush1.bf16.msra.mxu0 %v5460
    %8173 = vmatprep.subr.bf16.mxu0 %v5469
    %8174 = vmatpush1.bf16.msra.mxu0 %v5468
    %8175 = vmatprep.subr.bf16.mxu0 %v5477
    %8176 = vmatpush1.bf16.msra.mxu0 %v5476
    %8177 = vmatprep.subr.bf16.mxu0 %v5485
    %8178 = vmatpush1.bf16.msra.mxu0 %v5484
    %8179 = vmatprep.subr.bf16.mxu0 %v5493
    %8180 = vmatpush1.bf16.msra.mxu0 %v5492
    %8181 = vmatprep.subr.bf16.mxu0 %v5501
    %8182 = vmatpush1.bf16.msra.mxu0 %v5500
    %8183 = vmatprep.subr.bf16.mxu0 %v5509
    %8184 = vmatpush1.bf16.msra.mxu0 %v5508
    %8185 = vmatprep.mubr.bf16.mxu0 %v851
    %8186 = vmatmul.mubr.bf16.gmra.mrb[0].mxu0 %v850
    %v8187 = vpop.f32.mrb[0].mxu0
    %v8188 = vadd.f32 %v8147, %v8187
    %v8189 = vpop.f32.mrb[0].mxu0
    %v8190 = vadd.f32 %v8149, %v8189
    %v8191 = vpop.f32.mrb[0].mxu0
    %v8192 = vpop.f32.mrb[0].mxu0
    %8193 = vdwg.mxu0
    %8194 = vmatprep.subr.bf16.mxu0 %v5517
    %8195 = vmatpush1.bf16.msra.mxu0 %v5516
    %8196 = vmatprep.subr.bf16.mxu0 %v5525
    %8197 = vmatpush1.bf16.msra.mxu0 %v5524
    %8198 = vmatprep.subr.bf16.mxu0 %v5533
    %8199 = vmatpush1.bf16.msra.mxu0 %v5532
    %8200 = vmatprep.subr.bf16.mxu0 %v5541
    %8201 = vmatpush1.bf16.msra.mxu0 %v5540
    %8202 = vmatprep.subr.bf16.mxu0 %v5549
    %8203 = vmatpush1.bf16.msra.mxu0 %v5548
    %8204 = vmatprep.subr.bf16.mxu0 %v5557
    %8205 = vmatpush1.bf16.msra.mxu0 %v5556
    %8206 = vmatprep.subr.bf16.mxu0 %v5565
    %8207 = vmatpush1.bf16.msra.mxu0 %v5564
    %8208 = vmatprep.subr.bf16.mxu0 %v5573
    %8209 = vmatpush1.bf16.msra.mxu0 %v5572
    %8210 = vmatprep.subr.bf16.mxu0 %v5581
    %8211 = vmatpush1.bf16.msra.mxu0 %v5580
    %8212 = vmatprep.subr.bf16.mxu0 %v5589
    %8213 = vmatpush1.bf16.msra.mxu0 %v5588
    %8214 = vmatprep.subr.bf16.mxu0 %v5597
    %8215 = vmatpush1.bf16.msra.mxu0 %v5596
    %8216 = vmatprep.subr.bf16.mxu0 %v5605
    %8217 = vmatpush1.bf16.msra.mxu0 %v5604
    %8218 = vmatprep.subr.bf16.mxu0 %v5613
    %8219 = vmatpush1.bf16.msra.mxu0 %v5612
    %8220 = vmatprep.subr.bf16.mxu0 %v5621
    %8221 = vmatpush1.bf16.msra.mxu0 %v5620
    %8222 = vmatprep.subr.bf16.mxu0 %v5629
    %8223 = vmatpush1.bf16.msra.mxu0 %v5628
    %8224 = vmatprep.subr.bf16.mxu0 %v5637
    %8225 = vmatpush1.bf16.msra.mxu0 %v5636
    %8226 = vmatprep.mubr.bf16.mxu0 %v853
    %8227 = vmatmul.mubr.bf16.gmra.mrb[0].mxu0 %v852
    %v8228 = vpop.f32.mrb[0].mxu0
    %v8229 = vadd.f32 %v8188, %v8228
    %v8230 = vpop.f32.mrb[0].mxu0
    %v8231 = vadd.f32 %v8190, %v8230
    %v8232 = vpop.f32.mrb[0].mxu0
    %v8233 = vpop.f32.mrb[0].mxu0
    %8234 = vdwg.mxu0
    %8235 = vmatprep.subr.bf16.mxu0 %v5645
    %8236 = vmatpush1.bf16.msra.mxu0 %v5644
    %8237 = vmatprep.subr.bf16.mxu0 %v5653
    %8238 = vmatpush1.bf16.msra.mxu0 %v5652
    %8239 = vmatprep.subr.bf16.mxu0 %v5661
    %8240 = vmatpush1.bf16.msra.mxu0 %v5660
    %8241 = vmatprep.subr.bf16.mxu0 %v5669
    %8242 = vmatpush1.bf16.msra.mxu0 %v5668
    %8243 = vmatprep.subr.bf16.mxu0 %v5677
    %8244 = vmatpush1.bf16.msra.mxu0 %v5676
    %8245 = vmatprep.subr.bf16.mxu0 %v5685
    %8246 = vmatpush1.bf16.msra.mxu0 %v5684
    %8247 = vmatprep.subr.bf16.mxu0 %v5693
    %8248 = vmatpush1.bf16.msra.mxu0 %v5692
    %8249 = vmatprep.subr.bf16.mxu0 %v5701
    %8250 = vmatpush1.bf16.msra.mxu0 %v5700
    %8251 = vmatprep.subr.bf16.mxu0 %v5709
    %8252 = vmatpush1.bf16.msra.mxu0 %v5708
    %8253 = vmatprep.subr.bf16.mxu0 %v5717
    %8254 = vmatpush1.bf16.msra.mxu0 %v5716
    %8255 = vmatprep.subr.bf16.mxu0 %v5725
    %8256 = vmatpush1.bf16.msra.mxu0 %v5724
    %8257 = vmatprep.subr.bf16.mxu0 %v5733
    %8258 = vmatpush1.bf16.msra.mxu0 %v5732
    %8259 = vmatprep.subr.bf16.mxu0 %v5741
    %8260 = vmatpush1.bf16.msra.mxu0 %v5740
    %8261 = vmatprep.subr.bf16.mxu0 %v5749
    %8262 = vmatpush1.bf16.msra.mxu0 %v5748
    %8263 = vmatprep.subr.bf16.mxu0 %v5757
    %8264 = vmatpush1.bf16.msra.mxu0 %v5756
    %8265 = vmatprep.subr.bf16.mxu0 %v5765
    %8266 = vmatpush1.bf16.msra.mxu0 %v5764
    %8267 = vmatprep.mubr.bf16.mxu0 %v855
    %8268 = vmatmul.mubr.bf16.gmra.mrb[0].mxu0 %v854
    %v8269 = vpop.f32.mrb[0].mxu0
    %v8270 = vadd.f32 %v8229, %v8269
    %v8271 = vpop.f32.mrb[0].mxu0
    %v8272 = vadd.f32 %v8231, %v8271
    %v8273 = vpop.f32.mrb[0].mxu0
    %v8274 = vpop.f32.mrb[0].mxu0
    %8275 = vdwg.mxu0
    %8276 = vmatprep.subr.bf16.mxu0 %v5773
    %8277 = vmatpush1.bf16.msra.mxu0 %v5772
    %8278 = vmatprep.subr.bf16.mxu0 %v5781
    %8279 = vmatpush1.bf16.msra.mxu0 %v5780
    %8280 = vmatprep.subr.bf16.mxu0 %v5789
    %8281 = vmatpush1.bf16.msra.mxu0 %v5788
    %8282 = vmatprep.subr.bf16.mxu0 %v5797
    %8283 = vmatpush1.bf16.msra.mxu0 %v5796
    %8284 = vmatprep.subr.bf16.mxu0 %v5805
    %8285 = vmatpush1.bf16.msra.mxu0 %v5804
    %8286 = vmatprep.subr.bf16.mxu0 %v5813
    %8287 = vmatpush1.bf16.msra.mxu0 %v5812
    %8288 = vmatprep.subr.bf16.mxu0 %v5821
    %8289 = vmatpush1.bf16.msra.mxu0 %v5820
    %8290 = vmatprep.subr.bf16.mxu0 %v5829
    %8291 = vmatpush1.bf16.msra.mxu0 %v5828
    %8292 = vmatprep.subr.bf16.mxu0 %v5837
    %8293 = vmatpush1.bf16.msra.mxu0 %v5836
    %8294 = vmatprep.subr.bf16.mxu0 %v5845
    %8295 = vmatpush1.bf16.msra.mxu0 %v5844
    %8296 = vmatprep.subr.bf16.mxu0 %v5853
    %8297 = vmatpush1.bf16.msra.mxu0 %v5852
    %8298 = vmatprep.subr.bf16.mxu0 %v5861
    %8299 = vmatpush1.bf16.msra.mxu0 %v5860
    %8300 = vmatprep.subr.bf16.mxu0 %v5869
    %8301 = vmatpush1.bf16.msra.mxu0 %v5868
    %8302 = vmatprep.subr.bf16.mxu0 %v5877
    %8303 = vmatpush1.bf16.msra.mxu0 %v5876
    %8304 = vmatprep.subr.bf16.mxu0 %v5885
    %8305 = vmatpush1.bf16.msra.mxu0 %v5884
    %8306 = vmatprep.subr.bf16.mxu0 %v5893
    %8307 = vmatpush1.bf16.msra.mxu0 %v5892
    %8308 = vmatprep.mubr.bf16.mxu0 %v857
    %8309 = vmatmul.mubr.bf16.gmra.mrb[0].mxu0 %v856
    %v8310 = vpop.f32.mrb[0].mxu0
    %v8311 = vadd.f32 %v8270, %v8310
    %v8312 = vpop.f32.mrb[0].mxu0
    %v8313 = vadd.f32 %v8272, %v8312
    %v8314 = vpop.f32.mrb[0].mxu0
    %v8315 = vpop.f32.mrb[0].mxu0
    %8316 = vdwg.mxu0
    %8317 = vmatprep.subr.bf16.mxu0 %v5901
    %8318 = vmatpush1.bf16.msra.mxu0 %v5900
    %8319 = vmatprep.subr.bf16.mxu0 %v5909
    %8320 = vmatpush1.bf16.msra.mxu0 %v5908
    %8321 = vmatprep.subr.bf16.mxu0 %v5917
    %8322 = vmatpush1.bf16.msra.mxu0 %v5916
    %8323 = vmatprep.subr.bf16.mxu0 %v5925
    %8324 = vmatpush1.bf16.msra.mxu0 %v5924
    %8325 = vmatprep.subr.bf16.mxu0 %v5933
    %8326 = vmatpush1.bf16.msra.mxu0 %v5932
    %8327 = vmatprep.subr.bf16.mxu0 %v5941
    %8328 = vmatpush1.bf16.msra.mxu0 %v5940
    %8329 = vmatprep.subr.bf16.mxu0 %v5949
    %8330 = vmatpush1.bf16.msra.mxu0 %v5948
    %8331 = vmatprep.subr.bf16.mxu0 %v5957
    %8332 = vmatpush1.bf16.msra.mxu0 %v5956
    %8333 = vmatprep.subr.bf16.mxu0 %v5965
    %8334 = vmatpush1.bf16.msra.mxu0 %v5964
    %8335 = vmatprep.subr.bf16.mxu0 %v5973
    %8336 = vmatpush1.bf16.msra.mxu0 %v5972
    %8337 = vmatprep.subr.bf16.mxu0 %v5981
    %8338 = vmatpush1.bf16.msra.mxu0 %v5980
    %8339 = vmatprep.subr.bf16.mxu0 %v5989
    %8340 = vmatpush1.bf16.msra.mxu0 %v5988
    %8341 = vmatprep.subr.bf16.mxu0 %v5997
    %8342 = vmatpush1.bf16.msra.mxu0 %v5996
    %8343 = vmatprep.subr.bf16.mxu0 %v6005
    %8344 = vmatpush1.bf16.msra.mxu0 %v6004
    %8345 = vmatprep.subr.bf16.mxu0 %v6013
    %8346 = vmatpush1.bf16.msra.mxu0 %v6012
    %8347 = vmatprep.subr.bf16.mxu0 %v6021
    %8348 = vmatpush1.bf16.msra.mxu0 %v6020
    %8349 = vmatprep.mubr.bf16.mxu0 %v859
    %8350 = vmatmul.mubr.bf16.gmra.mrb[0].mxu0 %v858
    %v8351 = vpop.f32.mrb[0].mxu0
    %v8352 = vadd.f32 %v8311, %v8351
    %v8353 = vpop.f32.mrb[0].mxu0
    %v8354 = vadd.f32 %v8313, %v8353
    %v8355 = vpop.f32.mrb[0].mxu0
    %v8356 = vpop.f32.mrb[0].mxu0
    %8357 = vdwg.mxu0
    %v8358 = vmax.f32 %v7368, 0.0
    %v8359 = vmax.f32 %v7370, 0.0
    %v8360 = vmax.f32 %v7696, 0.0
    %v8361 = vmax.f32 %v7698, 0.0
    %v8362 = vmax.f32 %v8024, 0.0
    %v8363 = vmax.f32 %v8026, 0.0
    %v8364 = vmax.f32 %v8352, 0.0
    %v8365 = vmax.f32 %v8354, 0.0
    %v8366 = vpack.c.bf16 %v8358, %v8358
    %v8367 = vpack.c.bf16 %v8359, %v8359
    %v8368 = vpack.c.bf16 %v8360, %v8360
    %v8369 = vpack.c.bf16 %v8361, %v8361
    %v8370 = vpack.c.bf16 %v8362, %v8362
    %v8371 = vpack.c.bf16 %v8363, %v8363
    %v8372 = vpack.c.bf16 %v8364, %v8364
    %v8373 = vpack.c.bf16 %v8365, %v8365
    %v8374 = vld [vmem:[%s6] sm:$0xf]
    %v8375 = vld [vmem:[%s6 + $0x4] sm:$0xf]
    %v8376 = vld [vmem:[%s6 + $0x8] sm:$0xf]
    %v8377 = vld [vmem:[%s6 + $0xc] sm:$0xf]
    %v8378 = vld [vmem:[%s6 + $0x10] sm:$0xf]
    %v8379 = vld [vmem:[%s6 + $0x14] sm:$0xf]
    %v8380 = vld [vmem:[%s6 + $0x18] sm:$0xf]
    %v8381 = vld [vmem:[%s6 + $0x1c] sm:$0xf]
    %v8382 = vld [vmem:[%s6 + $0x20] sm:$0xf]
    %v8383 = vld [vmem:[%s6 + $0x24] sm:$0xf]
    %v8384 = vld [vmem:[%s6 + $0x28] sm:$0xf]
    %v8385 = vld [vmem:[%s6 + $0x2c] sm:$0xf]
    %v8386 = vld [vmem:[%s6 + $0x30] sm:$0xf]
    %v8387 = vld [vmem:[%s6 + $0x34] sm:$0xf]
    %v8388 = vld [vmem:[%s6 + $0x38] sm:$0xf]
    %v8389 = vld [vmem:[%s6 + $0x3c] sm:$0xf]
    %v8390 = vld [vmem:[%s6 + $0x40] sm:$0xf]
    %v8391 = vld [vmem:[%s6 + $0x44] sm:$0xf]
    %v8392 = vld [vmem:[%s6 + $0x48] sm:$0xf]
    %v8393 = vld [vmem:[%s6 + $0x4c] sm:$0xf]
    %v8394 = vld [vmem:[%s6 + $0x50] sm:$0xf]
    %v8395 = vld [vmem:[%s6 + $0x54] sm:$0xf]
    %v8396 = vld [vmem:[%s6 + $0x58] sm:$0xf]
    %v8397 = vld [vmem:[%s6 + $0x5c] sm:$0xf]
    %v8398 = vld [vmem:[%s6 + $0x60] sm:$0xf]
    %v8399 = vld [vmem:[%s6 + $0x64] sm:$0xf]
    %v8400 = vld [vmem:[%s6 + $0x68] sm:$0xf]
    %v8401 = vld [vmem:[%s6 + $0x6c] sm:$0xf]
    %v8402 = vld [vmem:[%s6 + $0x70] sm:$0xf]
    %v8403 = vld [vmem:[%s6 + $0x74] sm:$0xf]
    %v8404 = vld [vmem:[%s6 + $0x78] sm:$0xf]
    %v8405 = vld [vmem:[%s6 + $0x7c] sm:$0xf]
    %v8406 = vld [vmem:[%s6 + $0x80] sm:$0xf]
    %v8407 = vld [vmem:[%s6 + $0x84] sm:$0xf]
    %v8408 = vld [vmem:[%s6 + $0x88] sm:$0xf]
    %v8409 = vld [vmem:[%s6 + $0x8c] sm:$0xf]
    %v8410 = vld [vmem:[%s6 + $0x90] sm:$0xf]
    %v8411 = vld [vmem:[%s6 + $0x94] sm:$0xf]
    %v8412 = vld [vmem:[%s6 + $0x98] sm:$0xf]
    %v8413 = vld [vmem:[%s6 + $0x9c] sm:$0xf]
    %v8414 = vld [vmem:[%s6 + $0xa0] sm:$0xf]
    %v8415 = vld [vmem:[%s6 + $0xa4] sm:$0xf]
    %v8416 = vld [vmem:[%s6 + $0xa8] sm:$0xf]
    %v8417 = vld [vmem:[%s6 + $0xac] sm:$0xf]
    %v8418 = vld [vmem:[%s6 + $0xb0] sm:$0xf]
    %v8419 = vld [vmem:[%s6 + $0xb4] sm:$0xf]
    %v8420 = vld [vmem:[%s6 + $0xb8] sm:$0xf]
    %v8421 = vld [vmem:[%s6 + $0xbc] sm:$0xf]
    %v8422 = vld [vmem:[%s6 + $0xc0] sm:$0xf]
    %v8423 = vld [vmem:[%s6 + $0xc4] sm:$0xf]
    %v8424 = vld [vmem:[%s6 + $0xc8] sm:$0xf]
    %v8425 = vld [vmem:[%s6 + $0xcc] sm:$0xf]
    %v8426 = vld [vmem:[%s6 + $0xd0] sm:$0xf]
    %v8427 = vld [vmem:[%s6 + $0xd4] sm:$0xf]
    %v8428 = vld [vmem:[%s6 + $0xd8] sm:$0xf]
    %v8429 = vld [vmem:[%s6 + $0xdc] sm:$0xf]
    %v8430 = vld [vmem:[%s6 + $0xe0] sm:$0xf]
    %v8431 = vld [vmem:[%s6 + $0xe4] sm:$0xf]
    %v8432 = vld [vmem:[%s6 + $0xe8] sm:$0xf]
    %v8433 = vld [vmem:[%s6 + $0xec] sm:$0xf]
    %v8434 = vld [vmem:[%s6 + $0xf0] sm:$0xf]
    %v8435 = vld [vmem:[%s6 + $0xf4] sm:$0xf]
    %v8436 = vld [vmem:[%s6 + $0xf8] sm:$0xf]
    %v8437 = vld [vmem:[%s6 + $0xfc] sm:$0xf]
    %v8438 = vld [vmem:[%s6 + $0x100] sm:$0xf]
    %v8439 = vld [vmem:[%s6 + $0x104] sm:$0xf]
    %v8440 = vld [vmem:[%s6 + $0x108] sm:$0xf]
    %v8441 = vld [vmem:[%s6 + $0x10c] sm:$0xf]
    %v8442 = vld [vmem:[%s6 + $0x110] sm:$0xf]
    %v8443 = vld [vmem:[%s6 + $0x114] sm:$0xf]
    %v8444 = vld [vmem:[%s6 + $0x118] sm:$0xf]
    %v8445 = vld [vmem:[%s6 + $0x11c] sm:$0xf]
    %v8446 = vld [vmem:[%s6 + $0x120] sm:$0xf]
    %v8447 = vld [vmem:[%s6 + $0x124] sm:$0xf]
    %v8448 = vld [vmem:[%s6 + $0x128] sm:$0xf]
    %v8449 = vld [vmem:[%s6 + $0x12c] sm:$0xf]
    %v8450 = vld [vmem:[%s6 + $0x130] sm:$0xf]
    %v8451 = vld [vmem:[%s6 + $0x134] sm:$0xf]
    %v8452 = vld [vmem:[%s6 + $0x138] sm:$0xf]
    %v8453 = vld [vmem:[%s6 + $0x13c] sm:$0xf]
    %v8454 = vld [vmem:[%s6 + $0x140] sm:$0xf]
    %v8455 = vld [vmem:[%s6 + $0x144] sm:$0xf]
    %v8456 = vld [vmem:[%s6 + $0x148] sm:$0xf]
    %v8457 = vld [vmem:[%s6 + $0x14c] sm:$0xf]
    %v8458 = vld [vmem:[%s6 + $0x150] sm:$0xf]
    %v8459 = vld [vmem:[%s6 + $0x154] sm:$0xf]
    %v8460 = vld [vmem:[%s6 + $0x158] sm:$0xf]
    %v8461 = vld [vmem:[%s6 + $0x15c] sm:$0xf]
    %v8462 = vld [vmem:[%s6 + $0x160] sm:$0xf]
    %v8463 = vld [vmem:[%s6 + $0x164] sm:$0xf]
    %v8464 = vld [vmem:[%s6 + $0x168] sm:$0xf]
    %v8465 = vld [vmem:[%s6 + $0x16c] sm:$0xf]
    %v8466 = vld [vmem:[%s6 + $0x170] sm:$0xf]
    %v8467 = vld [vmem:[%s6 + $0x174] sm:$0xf]
    %v8468 = vld [vmem:[%s6 + $0x178] sm:$0xf]
    %v8469 = vld [vmem:[%s6 + $0x17c] sm:$0xf]
    %v8470 = vld [vmem:[%s6 + $0x180] sm:$0xf]
    %v8471 = vld [vmem:[%s6 + $0x184] sm:$0xf]
    %v8472 = vld [vmem:[%s6 + $0x188] sm:$0xf]
    %v8473 = vld [vmem:[%s6 + $0x18c] sm:$0xf]
    %v8474 = vld [vmem:[%s6 + $0x190] sm:$0xf]
    %v8475 = vld [vmem:[%s6 + $0x194] sm:$0xf]
    %v8476 = vld [vmem:[%s6 + $0x198] sm:$0xf]
    %v8477 = vld [vmem:[%s6 + $0x19c] sm:$0xf]
    %v8478 = vld [vmem:[%s6 + $0x1a0] sm:$0xf]
    %v8479 = vld [vmem:[%s6 + $0x1a4] sm:$0xf]
    %v8480 = vld [vmem:[%s6 + $0x1a8] sm:$0xf]
    %v8481 = vld [vmem:[%s6 + $0x1ac] sm:$0xf]
    %v8482 = vld [vmem:[%s6 + $0x1b0] sm:$0xf]
    %v8483 = vld [vmem:[%s6 + $0x1b4] sm:$0xf]
    %v8484 = vld [vmem:[%s6 + $0x1b8] sm:$0xf]
    %v8485 = vld [vmem:[%s6 + $0x1bc] sm:$0xf]
    %v8486 = vld [vmem:[%s6 + $0x1c0] sm:$0xf]
    %v8487 = vld [vmem:[%s6 + $0x1c4] sm:$0xf]
    %v8488 = vld [vmem:[%s6 + $0x1c8] sm:$0xf]
    %v8489 = vld [vmem:[%s6 + $0x1cc] sm:$0xf]
    %v8490 = vld [vmem:[%s6 + $0x1d0] sm:$0xf]
    %v8491 = vld [vmem:[%s6 + $0x1d4] sm:$0xf]
    %v8492 = vld [vmem:[%s6 + $0x1d8] sm:$0xf]
    %v8493 = vld [vmem:[%s6 + $0x1dc] sm:$0xf]
    %v8494 = vld [vmem:[%s6 + $0x1e0] sm:$0xf]
    %v8495 = vld [vmem:[%s6 + $0x1e4] sm:$0xf]
    %v8496 = vld [vmem:[%s6 + $0x1e8] sm:$0xf]
    %v8497 = vld [vmem:[%s6 + $0x1ec] sm:$0xf]
    %v8498 = vld [vmem:[%s6 + $0x1f0] sm:$0xf]
    %v8499 = vld [vmem:[%s6 + $0x1f4] sm:$0xf]
    %v8500 = vld [vmem:[%s6 + $0x1f8] sm:$0xf]
    %v8501 = vld [vmem:[%s6 + $0x1fc] sm:$0xf]
    %v8502 = vld [vmem:[#allocation13] sm:$0x1]
    %v8504 = vlaneseq
    %v8505 = vshrl.u32 %v8504, 7
    %v8506 = vsub.s32 0, %v8505
    %v8507 = vrot.slane %v8502, %v8506
    %v8637 = vunpack.c.l.b16 %v8374
    %v8638 = vunpack.c.l.b16 %v8375
    %v8639 = vunpack.c.l.b16 %v8376
    %v8640 = vunpack.c.l.b16 %v8377
    %v8641 = vunpack.c.l.b16 %v8378
    %v8642 = vunpack.c.l.b16 %v8379
    %v8643 = vunpack.c.l.b16 %v8380
    %v8644 = vunpack.c.l.b16 %v8381
    %v8645 = vunpack.c.l.b16 %v8382
    %v8646 = vunpack.c.l.b16 %v8383
    %v8647 = vunpack.c.l.b16 %v8384
    %v8648 = vunpack.c.l.b16 %v8385
    %v8649 = vunpack.c.l.b16 %v8386
    %v8650 = vunpack.c.l.b16 %v8387
    %v8651 = vunpack.c.l.b16 %v8388
    %v8652 = vunpack.c.l.b16 %v8389
    %v8653 = vunpack.c.l.b16 %v8390
    %v8654 = vunpack.c.l.b16 %v8391
    %v8655 = vunpack.c.l.b16 %v8392
    %v8656 = vunpack.c.l.b16 %v8393
    %v8657 = vunpack.c.l.b16 %v8394
    %v8658 = vunpack.c.l.b16 %v8395
    %v8659 = vunpack.c.l.b16 %v8396
    %v8660 = vunpack.c.l.b16 %v8397
    %v8661 = vunpack.c.l.b16 %v8398
    %v8662 = vunpack.c.l.b16 %v8399
    %v8663 = vunpack.c.l.b16 %v8400
    %v8664 = vunpack.c.l.b16 %v8401
    %v8665 = vunpack.c.l.b16 %v8402
    %v8666 = vunpack.c.l.b16 %v8403
    %v8667 = vunpack.c.l.b16 %v8404
    %v8668 = vunpack.c.l.b16 %v8405
    %v8669 = vunpack.c.l.b16 %v8406
    %v8670 = vunpack.c.l.b16 %v8407
    %v8671 = vunpack.c.l.b16 %v8408
    %v8672 = vunpack.c.l.b16 %v8409
    %v8673 = vunpack.c.l.b16 %v8410
    %v8674 = vunpack.c.l.b16 %v8411
    %v8675 = vunpack.c.l.b16 %v8412
    %v8676 = vunpack.c.l.b16 %v8413
    %v8677 = vunpack.c.l.b16 %v8414
    %v8678 = vunpack.c.l.b16 %v8415
    %v8679 = vunpack.c.l.b16 %v8416
    %v8680 = vunpack.c.l.b16 %v8417
    %v8681 = vunpack.c.l.b16 %v8418
    %v8682 = vunpack.c.l.b16 %v8419
    %v8683 = vunpack.c.l.b16 %v8420
    %v8684 = vunpack.c.l.b16 %v8421
    %v8685 = vunpack.c.l.b16 %v8422
    %v8686 = vunpack.c.l.b16 %v8423
    %v8687 = vunpack.c.l.b16 %v8424
    %v8688 = vunpack.c.l.b16 %v8425
    %v8689 = vunpack.c.l.b16 %v8426
    %v8690 = vunpack.c.l.b16 %v8427
    %v8691 = vunpack.c.l.b16 %v8428
    %v8692 = vunpack.c.l.b16 %v8429
    %v8693 = vunpack.c.l.b16 %v8430
    %v8694 = vunpack.c.l.b16 %v8431
    %v8695 = vunpack.c.l.b16 %v8432
    %v8696 = vunpack.c.l.b16 %v8433
    %v8697 = vunpack.c.l.b16 %v8434
    %v8698 = vunpack.c.l.b16 %v8435
    %v8699 = vunpack.c.l.b16 %v8436
    %v8700 = vunpack.c.l.b16 %v8437
    %v8701 = vunpack.c.l.b16 %v8438
    %v8702 = vunpack.c.l.b16 %v8439
    %v8703 = vunpack.c.l.b16 %v8440
    %v8704 = vunpack.c.l.b16 %v8441
    %v8705 = vunpack.c.l.b16 %v8442
    %v8706 = vunpack.c.l.b16 %v8443
    %v8707 = vunpack.c.l.b16 %v8444
    %v8708 = vunpack.c.l.b16 %v8445
    %v8709 = vunpack.c.l.b16 %v8446
    %v8710 = vunpack.c.l.b16 %v8447
    %v8711 = vunpack.c.l.b16 %v8448
    %v8712 = vunpack.c.l.b16 %v8449
    %v8713 = vunpack.c.l.b16 %v8450
    %v8714 = vunpack.c.l.b16 %v8451
    %v8715 = vunpack.c.l.b16 %v8452
    %v8716 = vunpack.c.l.b16 %v8453
    %v8717 = vunpack.c.l.b16 %v8454
    %v8718 = vunpack.c.l.b16 %v8455
    %v8719 = vunpack.c.l.b16 %v8456
    %v8720 = vunpack.c.l.b16 %v8457
    %v8721 = vunpack.c.l.b16 %v8458
    %v8722 = vunpack.c.l.b16 %v8459
    %v8723 = vunpack.c.l.b16 %v8460
    %v8724 = vunpack.c.l.b16 %v8461
    %v8725 = vunpack.c.l.b16 %v8462
    %v8726 = vunpack.c.l.b16 %v8463
    %v8727 = vunpack.c.l.b16 %v8464
    %v8728 = vunpack.c.l.b16 %v8465
    %v8729 = vunpack.c.l.b16 %v8466
    %v8730 = vunpack.c.l.b16 %v8467
    %v8731 = vunpack.c.l.b16 %v8468
    %v8732 = vunpack.c.l.b16 %v8469
    %v8733 = vunpack.c.l.b16 %v8470
    %v8734 = vunpack.c.l.b16 %v8471
    %v8735 = vunpack.c.l.b16 %v8472
    %v8736 = vunpack.c.l.b16 %v8473
    %v8737 = vunpack.c.l.b16 %v8474
    %v8738 = vunpack.c.l.b16 %v8475
    %v8739 = vunpack.c.l.b16 %v8476
    %v8740 = vunpack.c.l.b16 %v8477
    %v8741 = vunpack.c.l.b16 %v8478
    %v8742 = vunpack.c.l.b16 %v8479
    %v8743 = vunpack.c.l.b16 %v8480
    %v8744 = vunpack.c.l.b16 %v8481
    %v8745 = vunpack.c.l.b16 %v8482
    %v8746 = vunpack.c.l.b16 %v8483
    %v8747 = vunpack.c.l.b16 %v8484
    %v8748 = vunpack.c.l.b16 %v8485
    %v8749 = vunpack.c.l.b16 %v8486
    %v8750 = vunpack.c.l.b16 %v8487
    %v8751 = vunpack.c.l.b16 %v8488
    %v8752 = vunpack.c.l.b16 %v8489
    %v8753 = vunpack.c.l.b16 %v8490
    %v8754 = vunpack.c.l.b16 %v8491
    %v8755 = vunpack.c.l.b16 %v8492
    %v8756 = vunpack.c.l.b16 %v8493
    %v8757 = vunpack.c.l.b16 %v8494
    %v8758 = vunpack.c.l.b16 %v8495
    %v8759 = vunpack.c.l.b16 %v8496
    %v8760 = vunpack.c.l.b16 %v8497
    %v8761 = vunpack.c.l.b16 %v8498
    %v8762 = vunpack.c.l.b16 %v8499
    %v8763 = vunpack.c.l.b16 %v8500
    %v8764 = vunpack.c.l.b16 %v8501
    %v8765 = vpack.c.b16 %v8638, %v8637
    %v8766 = vpack.c.b16 %v8640, %v8639
    %v8767 = vpack.c.b16 %v8642, %v8641
    %v8768 = vpack.c.b16 %v8644, %v8643
    %v8769 = vpack.c.b16 %v8646, %v8645
    %v8770 = vpack.c.b16 %v8648, %v8647
    %v8771 = vpack.c.b16 %v8650, %v8649
    %v8772 = vpack.c.b16 %v8652, %v8651
    %v8773 = vpack.c.b16 %v8654, %v8653
    %v8774 = vpack.c.b16 %v8656, %v8655
    %v8775 = vpack.c.b16 %v8658, %v8657
    %v8776 = vpack.c.b16 %v8660, %v8659
    %v8777 = vpack.c.b16 %v8662, %v8661
    %v8778 = vpack.c.b16 %v8664, %v8663
    %v8779 = vpack.c.b16 %v8666, %v8665
    %v8780 = vpack.c.b16 %v8668, %v8667
    %v8781 = vpack.c.b16 %v8670, %v8669
    %v8782 = vpack.c.b16 %v8672, %v8671
    %v8783 = vpack.c.b16 %v8674, %v8673
    %v8784 = vpack.c.b16 %v8676, %v8675
    %v8785 = vpack.c.b16 %v8678, %v8677
    %v8786 = vpack.c.b16 %v8680, %v8679
    %v8787 = vpack.c.b16 %v8682, %v8681
    %v8788 = vpack.c.b16 %v8684, %v8683
    %v8789 = vpack.c.b16 %v8686, %v8685
    %v8790 = vpack.c.b16 %v8688, %v8687
    %v8791 = vpack.c.b16 %v8690, %v8689
    %v8792 = vpack.c.b16 %v8692, %v8691
    %v8793 = vpack.c.b16 %v8694, %v8693
    %v8794 = vpack.c.b16 %v8696, %v8695
    %v8795 = vpack.c.b16 %v8698, %v8697
    %v8796 = vpack.c.b16 %v8700, %v8699
    %v8797 = vpack.c.b16 %v8702, %v8701
    %v8798 = vpack.c.b16 %v8704, %v8703
    %v8799 = vpack.c.b16 %v8706, %v8705
    %v8800 = vpack.c.b16 %v8708, %v8707
    %v8801 = vpack.c.b16 %v8710, %v8709
    %v8802 = vpack.c.b16 %v8712, %v8711
    %v8803 = vpack.c.b16 %v8714, %v8713
    %v8804 = vpack.c.b16 %v8716, %v8715
    %v8805 = vpack.c.b16 %v8718, %v8717
    %v8806 = vpack.c.b16 %v8720, %v8719
    %v8807 = vpack.c.b16 %v8722, %v8721
    %v8808 = vpack.c.b16 %v8724, %v8723
    %v8809 = vpack.c.b16 %v8726, %v8725
    %v8810 = vpack.c.b16 %v8728, %v8727
    %v8811 = vpack.c.b16 %v8730, %v8729
    %v8812 = vpack.c.b16 %v8732, %v8731
    %v8813 = vpack.c.b16 %v8734, %v8733
    %v8814 = vpack.c.b16 %v8736, %v8735
    %v8815 = vpack.c.b16 %v8738, %v8737
    %v8816 = vpack.c.b16 %v8740, %v8739
    %v8817 = vpack.c.b16 %v8742, %v8741
    %v8818 = vpack.c.b16 %v8744, %v8743
    %v8819 = vpack.c.b16 %v8746, %v8745
    %v8820 = vpack.c.b16 %v8748, %v8747
    %v8821 = vpack.c.b16 %v8750, %v8749
    %v8822 = vpack.c.b16 %v8752, %v8751
    %v8823 = vpack.c.b16 %v8754, %v8753
    %v8824 = vpack.c.b16 %v8756, %v8755
    %v8825 = vpack.c.b16 %v8758, %v8757
    %v8826 = vpack.c.b16 %v8760, %v8759
    %v8827 = vpack.c.b16 %v8762, %v8761
    %v8828 = vpack.c.b16 %v8764, %v8763
    %8893 = vmatprep.subr.bf16.mxu0 0
    %8894 = vmatpush1.bf16.msra.mxu0 %v8765
    %8895 = vmatprep.subr.bf16.mxu0 0
    %8896 = vmatpush1.bf16.msra.mxu0 %v8766
    %8897 = vmatprep.subr.bf16.mxu0 0
    %8898 = vmatpush1.bf16.msra.mxu0 %v8767
    %8899 = vmatprep.subr.bf16.mxu0 0
    %8900 = vmatpush1.bf16.msra.mxu0 %v8768
    %8901 = vmatprep.subr.bf16.mxu0 0
    %8902 = vmatpush1.bf16.msra.mxu0 %v8769
    %8903 = vmatprep.subr.bf16.mxu0 0
    %8904 = vmatpush1.bf16.msra.mxu0 %v8770
    %8905 = vmatprep.subr.bf16.mxu0 0
    %8906 = vmatpush1.bf16.msra.mxu0 %v8771
    %8907 = vmatprep.subr.bf16.mxu0 0
    %8908 = vmatpush1.bf16.msra.mxu0 %v8772
    %8909 = vmatprep.subr.bf16.mxu0 0
    %8910 = vmatpush1.bf16.msra.mxu0 %v8773
    %8911 = vmatprep.subr.bf16.mxu0 0
    %8912 = vmatpush1.bf16.msra.mxu0 %v8774
    %8913 = vmatprep.subr.bf16.mxu0 0
    %8914 = vmatpush1.bf16.msra.mxu0 %v8775
    %8915 = vmatprep.subr.bf16.mxu0 0
    %8916 = vmatpush1.bf16.msra.mxu0 %v8776
    %8917 = vmatprep.subr.bf16.mxu0 0
    %8918 = vmatpush1.bf16.msra.mxu0 %v8777
    %8919 = vmatprep.subr.bf16.mxu0 0
    %8920 = vmatpush1.bf16.msra.mxu0 %v8778
    %8921 = vmatprep.subr.bf16.mxu0 0
    %8922 = vmatpush1.bf16.msra.mxu0 %v8779
    %8923 = vmatprep.subr.bf16.mxu0 0
    %8924 = vmatpush1.bf16.msra.mxu0 %v8780
    %8925 = vmatprep.mubr.bf16.mxu0 %v8367
    %8926 = vmatmul.mubr.bf16.gmra.mrb[0].mxu0 %v8366
    %v8927 = vpop.f32.mrb[0].mxu0
    %v8928 = vadd.f32 %v8507, %v8927
    %v8929 = vpop.f32.mrb[0].mxu0
    %v8930 = vpop.f32.mrb[0].mxu0
    %v8931 = vpop.f32.mrb[0].mxu0
    %8932 = vdwg.mxu0
    %8933 = vmatprep.subr.bf16.mxu0 0
    %8934 = vmatpush1.bf16.msra.mxu0 %v8781
    %8935 = vmatprep.subr.bf16.mxu0 0
    %8936 = vmatpush1.bf16.msra.mxu0 %v8782
    %8937 = vmatprep.subr.bf16.mxu0 0
    %8938 = vmatpush1.bf16.msra.mxu0 %v8783
    %8939 = vmatprep.subr.bf16.mxu0 0
    %8940 = vmatpush1.bf16.msra.mxu0 %v8784
    %8941 = vmatprep.subr.bf16.mxu0 0
    %8942 = vmatpush1.bf16.msra.mxu0 %v8785
    %8943 = vmatprep.subr.bf16.mxu0 0
    %8944 = vmatpush1.bf16.msra.mxu0 %v8786
    %8945 = vmatprep.subr.bf16.mxu0 0
    %8946 = vmatpush1.bf16.msra.mxu0 %v8787
    %8947 = vmatprep.subr.bf16.mxu0 0
    %8948 = vmatpush1.bf16.msra.mxu0 %v8788
    %8949 = vmatprep.subr.bf16.mxu0 0
    %8950 = vmatpush1.bf16.msra.mxu0 %v8789
    %8951 = vmatprep.subr.bf16.mxu0 0
    %8952 = vmatpush1.bf16.msra.mxu0 %v8790
    %8953 = vmatprep.subr.bf16.mxu0 0
    %8954 = vmatpush1.bf16.msra.mxu0 %v8791
    %8955 = vmatprep.subr.bf16.mxu0 0
    %8956 = vmatpush1.bf16.msra.mxu0 %v8792
    %8957 = vmatprep.subr.bf16.mxu0 0
    %8958 = vmatpush1.bf16.msra.mxu0 %v8793
    %8959 = vmatprep.subr.bf16.mxu0 0
    %8960 = vmatpush1.bf16.msra.mxu0 %v8794
    %8961 = vmatprep.subr.bf16.mxu0 0
    %8962 = vmatpush1.bf16.msra.mxu0 %v8795
    %8963 = vmatprep.subr.bf16.mxu0 0
    %8964 = vmatpush1.bf16.msra.mxu0 %v8796
    %8965 = vmatprep.mubr.bf16.mxu0 %v8369
    %8966 = vmatmul.mubr.bf16.gmra.mrb[0].mxu0 %v8368
    %v8967 = vpop.f32.mrb[0].mxu0
    %v8968 = vadd.f32 %v8928, %v8967
    %v8969 = vpop.f32.mrb[0].mxu0
    %v8970 = vpop.f32.mrb[0].mxu0
    %v8971 = vpop.f32.mrb[0].mxu0
    %8972 = vdwg.mxu0
    %8973 = vmatprep.subr.bf16.mxu0 0
    %8974 = vmatpush1.bf16.msra.mxu0 %v8797
    %8975 = vmatprep.subr.bf16.mxu0 0
    %8976 = vmatpush1.bf16.msra.mxu0 %v8798
    %8977 = vmatprep.subr.bf16.mxu0 0
    %8978 = vmatpush1.bf16.msra.mxu0 %v8799
    %8979 = vmatprep.subr.bf16.mxu0 0
    %8980 = vmatpush1.bf16.msra.mxu0 %v8800
    %8981 = vmatprep.subr.bf16.mxu0 0
    %8982 = vmatpush1.bf16.msra.mxu0 %v8801
    %8983 = vmatprep.subr.bf16.mxu0 0
    %8984 = vmatpush1.bf16.msra.mxu0 %v8802
    %8985 = vmatprep.subr.bf16.mxu0 0
    %8986 = vmatpush1.bf16.msra.mxu0 %v8803
    %8987 = vmatprep.subr.bf16.mxu0 0
    %8988 = vmatpush1.bf16.msra.mxu0 %v8804
    %8989 = vmatprep.subr.bf16.mxu0 0
    %8990 = vmatpush1.bf16.msra.mxu0 %v8805
    %8991 = vmatprep.subr.bf16.mxu0 0
    %8992 = vmatpush1.bf16.msra.mxu0 %v8806
    %8993 = vmatprep.subr.bf16.mxu0 0
    %8994 = vmatpush1.bf16.msra.mxu0 %v8807
    %8995 = vmatprep.subr.bf16.mxu0 0
    %8996 = vmatpush1.bf16.msra.mxu0 %v8808
    %8997 = vmatprep.subr.bf16.mxu0 0
    %8998 = vmatpush1.bf16.msra.mxu0 %v8809
    %8999 = vmatprep.subr.bf16.mxu0 0
    %9000 = vmatpush1.bf16.msra.mxu0 %v8810
    %9001 = vmatprep.subr.bf16.mxu0 0
    %9002 = vmatpush1.bf16.msra.mxu0 %v8811
    %9003 = vmatprep.subr.bf16.mxu0 0
    %9004 = vmatpush1.bf16.msra.mxu0 %v8812
    %9005 = vmatprep.mubr.bf16.mxu0 %v8371
    %9006 = vmatmul.mubr.bf16.gmra.mrb[0].mxu0 %v8370
    %v9007 = vpop.f32.mrb[0].mxu0
    %v9008 = vadd.f32 %v8968, %v9007
    %v9009 = vpop.f32.mrb[0].mxu0
    %v9010 = vpop.f32.mrb[0].mxu0
    %v9011 = vpop.f32.mrb[0].mxu0
    %9012 = vdwg.mxu0
    %9013 = vmatprep.subr.bf16.mxu0 0
    %9014 = vmatpush1.bf16.msra.mxu0 %v8813
    %9015 = vmatprep.subr.bf16.mxu0 0
    %9016 = vmatpush1.bf16.msra.mxu0 %v8814
    %9017 = vmatprep.subr.bf16.mxu0 0
    %9018 = vmatpush1.bf16.msra.mxu0 %v8815
    %9019 = vmatprep.subr.bf16.mxu0 0
    %9020 = vmatpush1.bf16.msra.mxu0 %v8816
    %9021 = vmatprep.subr.bf16.mxu0 0
    %9022 = vmatpush1.bf16.msra.mxu0 %v8817
    %9023 = vmatprep.subr.bf16.mxu0 0
    %9024 = vmatpush1.bf16.msra.mxu0 %v8818
    %9025 = vmatprep.subr.bf16.mxu0 0
    %9026 = vmatpush1.bf16.msra.mxu0 %v8819
    %9027 = vmatprep.subr.bf16.mxu0 0
    %9028 = vmatpush1.bf16.msra.mxu0 %v8820
    %9029 = vmatprep.subr.bf16.mxu0 0
    %9030 = vmatpush1.bf16.msra.mxu0 %v8821
    %9031 = vmatprep.subr.bf16.mxu0 0
    %9032 = vmatpush1.bf16.msra.mxu0 %v8822
    %9033 = vmatprep.subr.bf16.mxu0 0
    %9034 = vmatpush1.bf16.msra.mxu0 %v8823
    %9035 = vmatprep.subr.bf16.mxu0 0
    %9036 = vmatpush1.bf16.msra.mxu0 %v8824
    %9037 = vmatprep.subr.bf16.mxu0 0
    %9038 = vmatpush1.bf16.msra.mxu0 %v8825
    %9039 = vmatprep.subr.bf16.mxu0 0
    %9040 = vmatpush1.bf16.msra.mxu0 %v8826
    %9041 = vmatprep.subr.bf16.mxu0 0
    %9042 = vmatpush1.bf16.msra.mxu0 %v8827
    %9043 = vmatprep.subr.bf16.mxu0 0
    %9044 = vmatpush1.bf16.msra.mxu0 %v8828
    %9045 = vmatprep.mubr.bf16.mxu0 %v8373
    %9046 = vmatmul.mubr.bf16.gmra.mrb[0].mxu0 %v8372
    %v9047 = vpop.f32.mrb[0].mxu0
    %v9048 = vadd.f32 %v9008, %v9047
    %v9049 = vpop.f32.mrb[0].mxu0
    %v9050 = vpop.f32.mrb[0].mxu0
    %v9051 = vpop.f32.mrb[0].mxu0
    %9052 = vdwg.mxu0
    %v9053 = vpack.c.bf16 %v9048, %v9048
    %v9054 = vld [vmem:[#allocation14] sm:$0xff]
    %v9055 = vld [vmem:[#allocation14 + $0x8] sm:$0xff]
    %v9056 = vld [vmem:[#allocation14 + $0x10] sm:$0xff]
    %v9057 = vld [vmem:[#allocation14 + $0x18] sm:$0xff]
    %v9058 = vld [vmem:[#allocation14 + $0x20] sm:$0xff]
    %v9059 = vld [vmem:[#allocation14 + $0x28] sm:$0xff]
    %v9060 = vld [vmem:[#allocation14 + $0x30] sm:$0xff]
    %v9061 = vld [vmem:[#allocation14 + $0x38] sm:$0xff]
    %v9062 = vld [vmem:[#allocation14 + $0x40] sm:$0xff]
    %v9063 = vld [vmem:[#allocation14 + $0x48] sm:$0xff]
    %v9064 = vld [vmem:[#allocation14 + $0x50] sm:$0xff]
    %v9065 = vld [vmem:[#allocation14 + $0x58] sm:$0xff]
    %v9066 = vld [vmem:[#allocation14 + $0x60] sm:$0xff]
    %v9067 = vld [vmem:[#allocation14 + $0x68] sm:$0xff]
    %v9068 = vld [vmem:[#allocation14 + $0x70] sm:$0xff]
    %v9069 = vld [vmem:[#allocation14 + $0x78] sm:$0xff]
    %v9070 = vld [vmem:[#allocation14 + $0x80] sm:$0xff]
    %v9071 = vld [vmem:[#allocation14 + $0x88] sm:$0xff]
    %v9072 = vld [vmem:[#allocation14 + $0x90] sm:$0xff]
    %v9073 = vld [vmem:[#allocation14 + $0x98] sm:$0xff]
    %v9074 = vld [vmem:[#allocation14 + $0xa0] sm:$0xff]
    %v9075 = vld [vmem:[#allocation14 + $0xa8] sm:$0xff]
    %v9076 = vld [vmem:[#allocation14 + $0xb0] sm:$0xff]
    %v9077 = vld [vmem:[#allocation14 + $0xb8] sm:$0xff]
    %v9078 = vld [vmem:[#allocation14 + $0xc0] sm:$0xff]
    %v9079 = vld [vmem:[#allocation14 + $0xc8] sm:$0xff]
    %v9080 = vld [vmem:[#allocation14 + $0xd0] sm:$0xff]
    %v9081 = vld [vmem:[#allocation14 + $0xd8] sm:$0xff]
    %v9082 = vld [vmem:[#allocation14 + $0xe0] sm:$0xff]
    %v9083 = vld [vmem:[#allocation14 + $0xe8] sm:$0xff]
    %v9084 = vld [vmem:[#allocation14 + $0xf0] sm:$0xff]
    %v9085 = vld [vmem:[#allocation14 + $0xf8] sm:$0xff]
    %v9086 = vld [vmem:[#allocation5] sm:$0xf]
    %v9087 = vld [vmem:[#allocation16] sm:$0xff]
    %v9088 = vld [vmem:[#allocation16 + $0x8] sm:$0xff]
    %v9089 = vld [vmem:[#allocation16 + $0x10] sm:$0xff]
    %v9090 = vld [vmem:[#allocation16 + $0x18] sm:$0xff]
    %v9091 = vld [vmem:[#allocation16 + $0x20] sm:$0xff]
    %v9092 = vld [vmem:[#allocation16 + $0x28] sm:$0xff]
    %v9093 = vld [vmem:[#allocation16 + $0x30] sm:$0xff]
    %v9094 = vld [vmem:[#allocation16 + $0x38] sm:$0xff]
    %v9095 = vld [vmem:[#allocation16 + $0x40] sm:$0xff]
    %v9096 = vld [vmem:[#allocation16 + $0x48] sm:$0xff]
    %v9097 = vld [vmem:[#allocation16 + $0x50] sm:$0xff]
    %v9098 = vld [vmem:[#allocation16 + $0x58] sm:$0xff]
    %v9099 = vld [vmem:[#allocation16 + $0x60] sm:$0xff]
    %v9100 = vld [vmem:[#allocation16 + $0x68] sm:$0xff]
    %v9101 = vld [vmem:[#allocation16 + $0x70] sm:$0xff]
    %v9102 = vld [vmem:[#allocation16 + $0x78] sm:$0xff]
    %v9103 = vld [vmem:[#allocation16 + $0x80] sm:$0xff]
    %v9104 = vld [vmem:[#allocation16 + $0x88] sm:$0xff]
    %v9105 = vld [vmem:[#allocation16 + $0x90] sm:$0xff]
    %v9106 = vld [vmem:[#allocation16 + $0x98] sm:$0xff]
    %v9107 = vld [vmem:[#allocation16 + $0xa0] sm:$0xff]
    %v9108 = vld [vmem:[#allocation16 + $0xa8] sm:$0xff]
    %v9109 = vld [vmem:[#allocation16 + $0xb0] sm:$0xff]
    %v9110 = vld [vmem:[#allocation16 + $0xb8] sm:$0xff]
    %v9111 = vld [vmem:[#allocation16 + $0xc0] sm:$0xff]
    %v9112 = vld [vmem:[#allocation16 + $0xc8] sm:$0xff]
    %v9113 = vld [vmem:[#allocation16 + $0xd0] sm:$0xff]
    %v9114 = vld [vmem:[#allocation16 + $0xd8] sm:$0xff]
    %v9115 = vld [vmem:[#allocation16 + $0xe0] sm:$0xff]
    %v9116 = vld [vmem:[#allocation16 + $0xe8] sm:$0xff]
    %v9117 = vld [vmem:[#allocation16 + $0xf0] sm:$0xff]
    %v9118 = vld [vmem:[#allocation16 + $0xf8] sm:$0xff]
    %v9151 = vunpack.c.l.b16 %v9087
    %v9152 = vunpack.c.h.b16 %v9087
    %v9153 = vunpack.c.l.b16 %v9088
    %v9154 = vunpack.c.h.b16 %v9088
    %v9155 = vunpack.c.l.b16 %v9089
    %v9156 = vunpack.c.h.b16 %v9089
    %v9157 = vunpack.c.l.b16 %v9090
    %v9158 = vunpack.c.h.b16 %v9090
    %v9159 = vunpack.c.l.b16 %v9091
    %v9160 = vunpack.c.h.b16 %v9091
    %v9161 = vunpack.c.l.b16 %v9092
    %v9162 = vunpack.c.h.b16 %v9092
    %v9163 = vunpack.c.l.b16 %v9093
    %v9164 = vunpack.c.h.b16 %v9093
    %v9165 = vunpack.c.l.b16 %v9094
    %v9166 = vunpack.c.h.b16 %v9094
    %v9167 = vunpack.c.l.b16 %v9095
    %v9168 = vunpack.c.h.b16 %v9095
    %v9169 = vunpack.c.l.b16 %v9096
    %v9170 = vunpack.c.h.b16 %v9096
    %v9171 = vunpack.c.l.b16 %v9097
    %v9172 = vunpack.c.h.b16 %v9097
    %v9173 = vunpack.c.l.b16 %v9098
    %v9174 = vunpack.c.h.b16 %v9098
    %v9175 = vunpack.c.l.b16 %v9099
    %v9176 = vunpack.c.h.b16 %v9099
    %v9177 = vunpack.c.l.b16 %v9100
    %v9178 = vunpack.c.h.b16 %v9100
    %v9179 = vunpack.c.l.b16 %v9101
    %v9180 = vunpack.c.h.b16 %v9101
    %v9181 = vunpack.c.l.b16 %v9102
    %v9182 = vunpack.c.h.b16 %v9102
    %v9183 = vunpack.c.l.b16 %v9103
    %v9184 = vunpack.c.h.b16 %v9103
    %v9185 = vunpack.c.l.b16 %v9104
    %v9186 = vunpack.c.h.b16 %v9104
    %v9187 = vunpack.c.l.b16 %v9105
    %v9188 = vunpack.c.h.b16 %v9105
    %v9189 = vunpack.c.l.b16 %v9106
    %v9190 = vunpack.c.h.b16 %v9106
    %v9191 = vunpack.c.l.b16 %v9107
    %v9192 = vunpack.c.h.b16 %v9107
    %v9193 = vunpack.c.l.b16 %v9108
    %v9194 = vunpack.c.h.b16 %v9108
    %v9195 = vunpack.c.l.b16 %v9109
    %v9196 = vunpack.c.h.b16 %v9109
    %v9197 = vunpack.c.l.b16 %v9110
    %v9198 = vunpack.c.h.b16 %v9110
    %v9199 = vunpack.c.l.b16 %v9111
    %v9200 = vunpack.c.h.b16 %v9111
    %v9201 = vunpack.c.l.b16 %v9112
    %v9202 = vunpack.c.h.b16 %v9112
    %v9203 = vunpack.c.l.b16 %v9113
    %v9204 = vunpack.c.h.b16 %v9113
    %v9205 = vunpack.c.l.b16 %v9114
    %v9206 = vunpack.c.h.b16 %v9114
    %v9207 = vunpack.c.l.b16 %v9115
    %v9208 = vunpack.c.h.b16 %v9115
    %v9209 = vunpack.c.l.b16 %v9116
    %v9210 = vunpack.c.h.b16 %v9116
    %v9211 = vunpack.c.l.b16 %v9117
    %v9212 = vunpack.c.h.b16 %v9117
    %v9213 = vunpack.c.l.b16 %v9118
    %v9214 = vunpack.c.h.b16 %v9118
    %v9215 = vpack.c.b16 %v9159, %v9151
    %v9216 = vpack.c.b16 %v9160, %v9152
    %v9217 = vpack.c.b16 %v9161, %v9153
    %v9218 = vpack.c.b16 %v9162, %v9154
    %v9219 = vpack.c.b16 %v9163, %v9155
    %v9220 = vpack.c.b16 %v9164, %v9156
    %v9221 = vpack.c.b16 %v9165, %v9157
    %v9222 = vpack.c.b16 %v9166, %v9158
    %v9223 = vpack.c.b16 %v9175, %v9167
    %v9224 = vpack.c.b16 %v9176, %v9168
    %v9225 = vpack.c.b16 %v9177, %v9169
    %v9226 = vpack.c.b16 %v9178, %v9170
    %v9227 = vpack.c.b16 %v9179, %v9171
    %v9228 = vpack.c.b16 %v9180, %v9172
    %v9229 = vpack.c.b16 %v9181, %v9173
    %v9230 = vpack.c.b16 %v9182, %v9174
    %v9231 = vpack.c.b16 %v9191, %v9183
    %v9232 = vpack.c.b16 %v9192, %v9184
    %v9233 = vpack.c.b16 %v9193, %v9185
    %v9234 = vpack.c.b16 %v9194, %v9186
    %v9235 = vpack.c.b16 %v9195, %v9187
    %v9236 = vpack.c.b16 %v9196, %v9188
    %v9237 = vpack.c.b16 %v9197, %v9189
    %v9238 = vpack.c.b16 %v9198, %v9190
    %v9239 = vpack.c.b16 %v9207, %v9199
    %v9240 = vpack.c.b16 %v9208, %v9200
    %v9241 = vpack.c.b16 %v9209, %v9201
    %v9242 = vpack.c.b16 %v9210, %v9202
    %v9243 = vpack.c.b16 %v9211, %v9203
    %v9244 = vpack.c.b16 %v9212, %v9204
    %v9245 = vpack.c.b16 %v9213, %v9205
    %v9246 = vpack.c.b16 %v9214, %v9206
    %vm9279 = vcmask 523264
    %v9281 = vsel %vm9279, %v9086, 0
    %9283 = vmatprep.subr.bf16.mxu0 %v9216
    %9284 = vmatpush1.bf16.msra.mxu0 %v9215
    %9285 = vmatprep.subr.bf16.mxu0 %v9224
    %9286 = vmatpush1.bf16.msra.mxu0 %v9223
    %9287 = vmatprep.subr.bf16.mxu0 %v9232
    %9288 = vmatpush1.bf16.msra.mxu0 %v9231
    %9289 = vmatprep.subr.bf16.mxu0 %v9240
    %9290 = vmatpush1.bf16.msra.mxu0 %v9239
    %9291 = vmatprep.subr.bf16.mxu0 0
    %9292 = vmatpush1.bf16.msra.mxu0 0
    %9293 = vmatprep.subr.bf16.mxu0 0
    %9294 = vmatpush1.bf16.msra.mxu0 0
    %9295 = vmatprep.subr.bf16.mxu0 0
    %9296 = vmatpush1.bf16.msra.mxu0 0
    %9297 = vmatprep.subr.bf16.mxu0 0
    %9298 = vmatpush1.bf16.msra.mxu0 0
    %9299 = vmatprep.subr.bf16.mxu0 0
    %9300 = vmatpush1.bf16.msra.mxu0 0
    %9301 = vmatprep.subr.bf16.mxu0 0
    %9302 = vmatpush1.bf16.msra.mxu0 0
    %9303 = vmatprep.subr.bf16.mxu0 0
    %9304 = vmatpush1.bf16.msra.mxu0 0
    %9305 = vmatprep.subr.bf16.mxu0 0
    %9306 = vmatpush1.bf16.msra.mxu0 0
    %9307 = vmatprep.subr.bf16.mxu0 0
    %9308 = vmatpush1.bf16.msra.mxu0 0
    %9309 = vmatprep.subr.bf16.mxu0 0
    %9310 = vmatpush1.bf16.msra.mxu0 0
    %9311 = vmatprep.subr.bf16.mxu0 0
    %9312 = vmatpush1.bf16.msra.mxu0 0
    %9313 = vmatprep.subr.bf16.mxu0 0
    %9314 = vmatpush1.bf16.msra.mxu0 0
    %9315 = vmatprep.mubr.bf16.mxu0 0
    %9316 = vmatmul.mubr.bf16.gmra.mrb[0].mxu0 %v9281
    %v9317 = vpop.f32.mrb[0].mxu0
    %v9318 = vadd.f32 0.0, %v9317
    %v9319 = vpop.f32.mrb[0].mxu0
    %v9320 = vadd.f32 0.0, %v9319
    %v9321 = vpop.f32.mrb[0].mxu0
    %v9322 = vpop.f32.mrb[0].mxu0
    %9323 = vdwg.mxu0
    %9324 = vmatprep.subr.bf16.mxu0 %v9218
    %9325 = vmatpush1.bf16.msra.mxu0 %v9217
    %9326 = vmatprep.subr.bf16.mxu0 %v9226
    %9327 = vmatpush1.bf16.msra.mxu0 %v9225
    %9328 = vmatprep.subr.bf16.mxu0 %v9234
    %9329 = vmatpush1.bf16.msra.mxu0 %v9233
    %9330 = vmatprep.subr.bf16.mxu0 %v9242
    %9331 = vmatpush1.bf16.msra.mxu0 %v9241
    %9332 = vmatprep.subr.bf16.mxu0 0
    %9333 = vmatpush1.bf16.msra.mxu0 0
    %9334 = vmatprep.subr.bf16.mxu0 0
    %9335 = vmatpush1.bf16.msra.mxu0 0
    %9336 = vmatprep.subr.bf16.mxu0 0
    %9337 = vmatpush1.bf16.msra.mxu0 0
    %9338 = vmatprep.subr.bf16.mxu0 0
    %9339 = vmatpush1.bf16.msra.mxu0 0
    %9340 = vmatprep.subr.bf16.mxu0 0
    %9341 = vmatpush1.bf16.msra.mxu0 0
    %9342 = vmatprep.subr.bf16.mxu0 0
    %9343 = vmatpush1.bf16.msra.mxu0 0
    %9344 = vmatprep.subr.bf16.mxu0 0
    %9345 = vmatpush1.bf16.msra.mxu0 0
    %9346 = vmatprep.subr.bf16.mxu0 0
    %9347 = vmatpush1.bf16.msra.mxu0 0
    %9348 = vmatprep.subr.bf16.mxu0 0
    %9349 = vmatpush1.bf16.msra.mxu0 0
    %9350 = vmatprep.subr.bf16.mxu0 0
    %9351 = vmatpush1.bf16.msra.mxu0 0
    %9352 = vmatprep.subr.bf16.mxu0 0
    %9353 = vmatpush1.bf16.msra.mxu0 0
    %9354 = vmatprep.subr.bf16.mxu0 0
    %9355 = vmatpush1.bf16.msra.mxu0 0
    %9356 = vmatprep.mubr.bf16.mxu0 0
    %9357 = vmatmul.mubr.bf16.gmra.mrb[0].mxu0 %v9281
    %v9358 = vpop.f32.mrb[0].mxu0
    %v9359 = vadd.f32 0.0, %v9358
    %v9360 = vpop.f32.mrb[0].mxu0
    %v9361 = vadd.f32 0.0, %v9360
    %v9362 = vpop.f32.mrb[0].mxu0
    %v9363 = vpop.f32.mrb[0].mxu0
    %9364 = vdwg.mxu0
    %9365 = vmatprep.subr.bf16.mxu0 %v9220
    %9366 = vmatpush1.bf16.msra.mxu0 %v9219
    %9367 = vmatprep.subr.bf16.mxu0 %v9228
    %9368 = vmatpush1.bf16.msra.mxu0 %v9227
    %9369 = vmatprep.subr.bf16.mxu0 %v9236
    %9370 = vmatpush1.bf16.msra.mxu0 %v9235
    %9371 = vmatprep.subr.bf16.mxu0 %v9244
    %9372 = vmatpush1.bf16.msra.mxu0 %v9243
    %9373 = vmatprep.subr.bf16.mxu0 0
    %9374 = vmatpush1.bf16.msra.mxu0 0
    %9375 = vmatprep.subr.bf16.mxu0 0
    %9376 = vmatpush1.bf16.msra.mxu0 0
    %9377 = vmatprep.subr.bf16.mxu0 0
    %9378 = vmatpush1.bf16.msra.mxu0 0
    %9379 = vmatprep.subr.bf16.mxu0 0
    %9380 = vmatpush1.bf16.msra.mxu0 0
    %9381 = vmatprep.subr.bf16.mxu0 0
    %9382 = vmatpush1.bf16.msra.mxu0 0
    %9383 = vmatprep.subr.bf16.mxu0 0
    %9384 = vmatpush1.bf16.msra.mxu0 0
    %9385 = vmatprep.subr.bf16.mxu0 0
    %9386 = vmatpush1.bf16.msra.mxu0 0
    %9387 = vmatprep.subr.bf16.mxu0 0
    %9388 = vmatpush1.bf16.msra.mxu0 0
    %9389 = vmatprep.subr.bf16.mxu0 0
    %9390 = vmatpush1.bf16.msra.mxu0 0
    %9391 = vmatprep.subr.bf16.mxu0 0
    %9392 = vmatpush1.bf16.msra.mxu0 0
    %9393 = vmatprep.subr.bf16.mxu0 0
    %9394 = vmatpush1.bf16.msra.mxu0 0
    %9395 = vmatprep.subr.bf16.mxu0 0
    %9396 = vmatpush1.bf16.msra.mxu0 0
    %9397 = vmatprep.mubr.bf16.mxu0 0
    %9398 = vmatmul.mubr.bf16.gmra.mrb[0].mxu0 %v9281
    %v9399 = vpop.f32.mrb[0].mxu0
    %v9400 = vadd.f32 0.0, %v9399
    %v9401 = vpop.f32.mrb[0].mxu0
    %v9402 = vadd.f32 0.0, %v9401
    %v9403 = vpop.f32.mrb[0].mxu0
    %v9404 = vpop.f32.mrb[0].mxu0
    %9405 = vdwg.mxu0
    %9406 = vmatprep.subr.bf16.mxu0 %v9222
    %9407 = vmatpush1.bf16.msra.mxu0 %v9221
    %9408 = vmatprep.subr.bf16.mxu0 %v9230
    %9409 = vmatpush1.bf16.msra.mxu0 %v9229
    %9410 = vmatprep.subr.bf16.mxu0 %v9238
    %9411 = vmatpush1.bf16.msra.mxu0 %v9237
    %9412 = vmatprep.subr.bf16.mxu0 %v9246
    %9413 = vmatpush1.bf16.msra.mxu0 %v9245
    %9414 = vmatprep.subr.bf16.mxu0 0
    %9415 = vmatpush1.bf16.msra.mxu0 0
    %9416 = vmatprep.subr.bf16.mxu0 0
    %9417 = vmatpush1.bf16.msra.mxu0 0
    %9418 = vmatprep.subr.bf16.mxu0 0
    %9419 = vmatpush1.bf16.msra.mxu0 0
    %9420 = vmatprep.subr.bf16.mxu0 0
    %9421 = vmatpush1.bf16.msra.mxu0 0
    %9422 = vmatprep.subr.bf16.mxu0 0
    %9423 = vmatpush1.bf16.msra.mxu0 0
    %9424 = vmatprep.subr.bf16.mxu0 0
    %9425 = vmatpush1.bf16.msra.mxu0 0
    %9426 = vmatprep.subr.bf16.mxu0 0
    %9427 = vmatpush1.bf16.msra.mxu0 0
    %9428 = vmatprep.subr.bf16.mxu0 0
    %9429 = vmatpush1.bf16.msra.mxu0 0
    %9430 = vmatprep.subr.bf16.mxu0 0
    %9431 = vmatpush1.bf16.msra.mxu0 0
    %9432 = vmatprep.subr.bf16.mxu0 0
    %9433 = vmatpush1.bf16.msra.mxu0 0
    %9434 = vmatprep.subr.bf16.mxu0 0
    %9435 = vmatpush1.bf16.msra.mxu0 0
    %9436 = vmatprep.subr.bf16.mxu0 0
    %9437 = vmatpush1.bf16.msra.mxu0 0
    %9438 = vmatprep.mubr.bf16.mxu0 0
    %9439 = vmatmul.mubr.bf16.gmra.mrb[0].mxu0 %v9281
    %v9440 = vpop.f32.mrb[0].mxu0
    %v9441 = vadd.f32 0.0, %v9440
    %v9442 = vpop.f32.mrb[0].mxu0
    %v9443 = vadd.f32 0.0, %v9442
    %v9444 = vpop.f32.mrb[0].mxu0
    %v9445 = vpop.f32.mrb[0].mxu0
    %9446 = vdwg.mxu0
    %v9479 = vunpack.c.l.b16 %v9054
    %v9480 = vunpack.c.h.b16 %v9054
    %v9481 = vunpack.c.l.b16 %v9055
    %v9482 = vunpack.c.h.b16 %v9055
    %v9483 = vunpack.c.l.b16 %v9056
    %v9484 = vunpack.c.h.b16 %v9056
    %v9485 = vunpack.c.l.b16 %v9057
    %v9486 = vunpack.c.h.b16 %v9057
    %v9487 = vunpack.c.l.b16 %v9058
    %v9488 = vunpack.c.h.b16 %v9058
    %v9489 = vunpack.c.l.b16 %v9059
    %v9490 = vunpack.c.h.b16 %v9059
    %v9491 = vunpack.c.l.b16 %v9060
    %v9492 = vunpack.c.h.b16 %v9060
    %v9493 = vunpack.c.l.b16 %v9061
    %v9494 = vunpack.c.h.b16 %v9061
    %v9495 = vunpack.c.l.b16 %v9062
    %v9496 = vunpack.c.h.b16 %v9062
    %v9497 = vunpack.c.l.b16 %v9063
    %v9498 = vunpack.c.h.b16 %v9063
    %v9499 = vunpack.c.l.b16 %v9064
    %v9500 = vunpack.c.h.b16 %v9064
    %v9501 = vunpack.c.l.b16 %v9065
    %v9502 = vunpack.c.h.b16 %v9065
    %v9503 = vunpack.c.l.b16 %v9066
    %v9504 = vunpack.c.h.b16 %v9066
    %v9505 = vunpack.c.l.b16 %v9067
    %v9506 = vunpack.c.h.b16 %v9067
    %v9507 = vunpack.c.l.b16 %v9068
    %v9508 = vunpack.c.h.b16 %v9068
    %v9509 = vunpack.c.l.b16 %v9069
    %v9510 = vunpack.c.h.b16 %v9069
    %v9511 = vunpack.c.l.b16 %v9070
    %v9512 = vunpack.c.h.b16 %v9070
    %v9513 = vunpack.c.l.b16 %v9071
    %v9514 = vunpack.c.h.b16 %v9071
    %v9515 = vunpack.c.l.b16 %v9072
    %v9516 = vunpack.c.h.b16 %v9072
    %v9517 = vunpack.c.l.b16 %v9073
    %v9518 = vunpack.c.h.b16 %v9073
    %v9519 = vunpack.c.l.b16 %v9074
    %v9520 = vunpack.c.h.b16 %v9074
    %v9521 = vunpack.c.l.b16 %v9075
    %v9522 = vunpack.c.h.b16 %v9075
    %v9523 = vunpack.c.l.b16 %v9076
    %v9524 = vunpack.c.h.b16 %v9076
    %v9525 = vunpack.c.l.b16 %v9077
    %v9526 = vunpack.c.h.b16 %v9077
    %v9527 = vunpack.c.l.b16 %v9078
    %v9528 = vunpack.c.h.b16 %v9078
    %v9529 = vunpack.c.l.b16 %v9079
    %v9530 = vunpack.c.h.b16 %v9079
    %v9531 = vunpack.c.l.b16 %v9080
    %v9532 = vunpack.c.h.b16 %v9080
    %v9533 = vunpack.c.l.b16 %v9081
    %v9534 = vunpack.c.h.b16 %v9081
    %v9535 = vunpack.c.l.b16 %v9082
    %v9536 = vunpack.c.h.b16 %v9082
    %v9537 = vunpack.c.l.b16 %v9083
    %v9538 = vunpack.c.h.b16 %v9083
    %v9539 = vunpack.c.l.b16 %v9084
    %v9540 = vunpack.c.h.b16 %v9084
    %v9541 = vunpack.c.l.b16 %v9085
    %v9542 = vunpack.c.h.b16 %v9085
    %v9543 = vpack.c.b16 %v9487, %v9479
    %v9544 = vpack.c.b16 %v9488, %v9480
    %v9545 = vpack.c.b16 %v9489, %v9481
    %v9546 = vpack.c.b16 %v9490, %v9482
    %v9547 = vpack.c.b16 %v9491, %v9483
    %v9548 = vpack.c.b16 %v9492, %v9484
    %v9549 = vpack.c.b16 %v9493, %v9485
    %v9550 = vpack.c.b16 %v9494, %v9486
    %v9551 = vpack.c.b16 %v9503, %v9495
    %v9552 = vpack.c.b16 %v9504, %v9496
    %v9553 = vpack.c.b16 %v9505, %v9497
    %v9554 = vpack.c.b16 %v9506, %v9498
    %v9555 = vpack.c.b16 %v9507, %v9499
    %v9556 = vpack.c.b16 %v9508, %v9500
    %v9557 = vpack.c.b16 %v9509, %v9501
    %v9558 = vpack.c.b16 %v9510, %v9502
    %v9559 = vpack.c.b16 %v9519, %v9511
    %v9560 = vpack.c.b16 %v9520, %v9512
    %v9561 = vpack.c.b16 %v9521, %v9513
    %v9562 = vpack.c.b16 %v9522, %v9514
    %v9563 = vpack.c.b16 %v9523, %v9515
    %v9564 = vpack.c.b16 %v9524, %v9516
    %v9565 = vpack.c.b16 %v9525, %v9517
    %v9566 = vpack.c.b16 %v9526, %v9518
    %v9567 = vpack.c.b16 %v9535, %v9527
    %v9568 = vpack.c.b16 %v9536, %v9528
    %v9569 = vpack.c.b16 %v9537, %v9529
    %v9570 = vpack.c.b16 %v9538, %v9530
    %v9571 = vpack.c.b16 %v9539, %v9531
    %v9572 = vpack.c.b16 %v9540, %v9532
    %v9573 = vpack.c.b16 %v9541, %v9533
    %v9574 = vpack.c.b16 %v9542, %v9534
    %v9608 = vsel %vm9279, %v9053, 0
    %9610 = vmatprep.subr.bf16.mxu0 %v9544
    %9611 = vmatpush1.bf16.msra.mxu0 %v9543
    %9612 = vmatprep.subr.bf16.mxu0 %v9552
    %9613 = vmatpush1.bf16.msra.mxu0 %v9551
    %9614 = vmatprep.subr.bf16.mxu0 %v9560
    %9615 = vmatpush1.bf16.msra.mxu0 %v9559
    %9616 = vmatprep.subr.bf16.mxu0 %v9568
    %9617 = vmatpush1.bf16.msra.mxu0 %v9567
    %9618 = vmatprep.subr.bf16.mxu0 0
    %9619 = vmatpush1.bf16.msra.mxu0 0
    %9620 = vmatprep.subr.bf16.mxu0 0
    %9621 = vmatpush1.bf16.msra.mxu0 0
    %9622 = vmatprep.subr.bf16.mxu0 0
    %9623 = vmatpush1.bf16.msra.mxu0 0
    %9624 = vmatprep.subr.bf16.mxu0 0
    %9625 = vmatpush1.bf16.msra.mxu0 0
    %9626 = vmatprep.subr.bf16.mxu0 0
    %9627 = vmatpush1.bf16.msra.mxu0 0
    %9628 = vmatprep.subr.bf16.mxu0 0
    %9629 = vmatpush1.bf16.msra.mxu0 0
    %9630 = vmatprep.subr.bf16.mxu0 0
    %9631 = vmatpush1.bf16.msra.mxu0 0
    %9632 = vmatprep.subr.bf16.mxu0 0
    %9633 = vmatpush1.bf16.msra.mxu0 0
    %9634 = vmatprep.subr.bf16.mxu0 0
    %9635 = vmatpush1.bf16.msra.mxu0 0
    %9636 = vmatprep.subr.bf16.mxu0 0
    %9637 = vmatpush1.bf16.msra.mxu0 0
    %9638 = vmatprep.subr.bf16.mxu0 0
    %9639 = vmatpush1.bf16.msra.mxu0 0
    %9640 = vmatprep.subr.bf16.mxu0 0
    %9641 = vmatpush1.bf16.msra.mxu0 0
    %9642 = vmatprep.mubr.bf16.mxu0 0
    %9643 = vmatmul.mubr.bf16.gmra.mrb[0].mxu0 %v9608
    %v9644 = vpop.f32.mrb[0].mxu0
    %v9645 = vadd.f32 %v9318, %v9644
    %v9646 = vpop.f32.mrb[0].mxu0
    %v9647 = vadd.f32 %v9320, %v9646
    %v9648 = vpop.f32.mrb[0].mxu0
    %v9649 = vpop.f32.mrb[0].mxu0
    %9650 = vdwg.mxu0
    %9651 = vmatprep.subr.bf16.mxu0 %v9546
    %9652 = vmatpush1.bf16.msra.mxu0 %v9545
    %9653 = vmatprep.subr.bf16.mxu0 %v9554
    %9654 = vmatpush1.bf16.msra.mxu0 %v9553
    %9655 = vmatprep.subr.bf16.mxu0 %v9562
    %9656 = vmatpush1.bf16.msra.mxu0 %v9561
    %9657 = vmatprep.subr.bf16.mxu0 %v9570
    %9658 = vmatpush1.bf16.msra.mxu0 %v9569
    %9659 = vmatprep.subr.bf16.mxu0 0
    %9660 = vmatpush1.bf16.msra.mxu0 0
    %9661 = vmatprep.subr.bf16.mxu0 0
    %9662 = vmatpush1.bf16.msra.mxu0 0
    %9663 = vmatprep.subr.bf16.mxu0 0
    %9664 = vmatpush1.bf16.msra.mxu0 0
    %9665 = vmatprep.subr.bf16.mxu0 0
    %9666 = vmatpush1.bf16.msra.mxu0 0
    %9667 = vmatprep.subr.bf16.mxu0 0
    %9668 = vmatpush1.bf16.msra.mxu0 0
    %9669 = vmatprep.subr.bf16.mxu0 0
    %9670 = vmatpush1.bf16.msra.mxu0 0
    %9671 = vmatprep.subr.bf16.mxu0 0
    %9672 = vmatpush1.bf16.msra.mxu0 0
    %9673 = vmatprep.subr.bf16.mxu0 0
    %9674 = vmatpush1.bf16.msra.mxu0 0
    %9675 = vmatprep.subr.bf16.mxu0 0
    %9676 = vmatpush1.bf16.msra.mxu0 0
    %9677 = vmatprep.subr.bf16.mxu0 0
    %9678 = vmatpush1.bf16.msra.mxu0 0
    %9679 = vmatprep.subr.bf16.mxu0 0
    %9680 = vmatpush1.bf16.msra.mxu0 0
    %9681 = vmatprep.subr.bf16.mxu0 0
    %9682 = vmatpush1.bf16.msra.mxu0 0
    %9683 = vmatprep.mubr.bf16.mxu0 0
    %9684 = vmatmul.mubr.bf16.gmra.mrb[0].mxu0 %v9608
    %v9685 = vpop.f32.mrb[0].mxu0
    %v9686 = vadd.f32 %v9359, %v9685
    %v9687 = vpop.f32.mrb[0].mxu0
    %v9688 = vadd.f32 %v9361, %v9687
    %v9689 = vpop.f32.mrb[0].mxu0
    %v9690 = vpop.f32.mrb[0].mxu0
    %9691 = vdwg.mxu0
    %9692 = vmatprep.subr.bf16.mxu0 %v9548
    %9693 = vmatpush1.bf16.msra.mxu0 %v9547
    %9694 = vmatprep.subr.bf16.mxu0 %v9556
    %9695 = vmatpush1.bf16.msra.mxu0 %v9555
    %9696 = vmatprep.subr.bf16.mxu0 %v9564
    %9697 = vmatpush1.bf16.msra.mxu0 %v9563
    %9698 = vmatprep.subr.bf16.mxu0 %v9572
    %9699 = vmatpush1.bf16.msra.mxu0 %v9571
    %9700 = vmatprep.subr.bf16.mxu0 0
    %9701 = vmatpush1.bf16.msra.mxu0 0
    %9702 = vmatprep.subr.bf16.mxu0 0
    %9703 = vmatpush1.bf16.msra.mxu0 0
    %9704 = vmatprep.subr.bf16.mxu0 0
    %9705 = vmatpush1.bf16.msra.mxu0 0
    %9706 = vmatprep.subr.bf16.mxu0 0
    %9707 = vmatpush1.bf16.msra.mxu0 0
    %9708 = vmatprep.subr.bf16.mxu0 0
    %9709 = vmatpush1.bf16.msra.mxu0 0
    %9710 = vmatprep.subr.bf16.mxu0 0
    %9711 = vmatpush1.bf16.msra.mxu0 0
    %9712 = vmatprep.subr.bf16.mxu0 0
    %9713 = vmatpush1.bf16.msra.mxu0 0
    %9714 = vmatprep.subr.bf16.mxu0 0
    %9715 = vmatpush1.bf16.msra.mxu0 0
    %9716 = vmatprep.subr.bf16.mxu0 0
    %9717 = vmatpush1.bf16.msra.mxu0 0
    %9718 = vmatprep.subr.bf16.mxu0 0
    %9719 = vmatpush1.bf16.msra.mxu0 0
    %9720 = vmatprep.subr.bf16.mxu0 0
    %9721 = vmatpush1.bf16.msra.mxu0 0
    %9722 = vmatprep.subr.bf16.mxu0 0
    %9723 = vmatpush1.bf16.msra.mxu0 0
    %9724 = vmatprep.mubr.bf16.mxu0 0
    %9725 = vmatmul.mubr.bf16.gmra.mrb[0].mxu0 %v9608
    %v9726 = vpop.f32.mrb[0].mxu0
    %v9727 = vadd.f32 %v9400, %v9726
    %v9728 = vpop.f32.mrb[0].mxu0
    %v9729 = vadd.f32 %v9402, %v9728
    %v9730 = vpop.f32.mrb[0].mxu0
    %v9731 = vpop.f32.mrb[0].mxu0
    %9732 = vdwg.mxu0
    %9733 = vmatprep.subr.bf16.mxu0 %v9550
    %9734 = vmatpush1.bf16.msra.mxu0 %v9549
    %9735 = vmatprep.subr.bf16.mxu0 %v9558
    %9736 = vmatpush1.bf16.msra.mxu0 %v9557
    %9737 = vmatprep.subr.bf16.mxu0 %v9566
    %9738 = vmatpush1.bf16.msra.mxu0 %v9565
    %9739 = vmatprep.subr.bf16.mxu0 %v9574
    %9740 = vmatpush1.bf16.msra.mxu0 %v9573
    %9741 = vmatprep.subr.bf16.mxu0 0
    %9742 = vmatpush1.bf16.msra.mxu0 0
    %9743 = vmatprep.subr.bf16.mxu0 0
    %9744 = vmatpush1.bf16.msra.mxu0 0
    %9745 = vmatprep.subr.bf16.mxu0 0
    %9746 = vmatpush1.bf16.msra.mxu0 0
    %9747 = vmatprep.subr.bf16.mxu0 0
    %9748 = vmatpush1.bf16.msra.mxu0 0
    %9749 = vmatprep.subr.bf16.mxu0 0
    %9750 = vmatpush1.bf16.msra.mxu0 0
    %9751 = vmatprep.subr.bf16.mxu0 0
    %9752 = vmatpush1.bf16.msra.mxu0 0
    %9753 = vmatprep.subr.bf16.mxu0 0
    %9754 = vmatpush1.bf16.msra.mxu0 0
    %9755 = vmatprep.subr.bf16.mxu0 0
    %9756 = vmatpush1.bf16.msra.mxu0 0
    %9757 = vmatprep.subr.bf16.mxu0 0
    %9758 = vmatpush1.bf16.msra.mxu0 0
    %9759 = vmatprep.subr.bf16.mxu0 0
    %9760 = vmatpush1.bf16.msra.mxu0 0
    %9761 = vmatprep.subr.bf16.mxu0 0
    %9762 = vmatpush1.bf16.msra.mxu0 0
    %9763 = vmatprep.subr.bf16.mxu0 0
    %9764 = vmatpush1.bf16.msra.mxu0 0
    %9765 = vmatprep.mubr.bf16.mxu0 0
    %9766 = vmatmul.mubr.bf16.gmra.mrb[0].mxu0 %v9608
    %v9767 = vpop.f32.mrb[0].mxu0
    %v9768 = vadd.f32 %v9441, %v9767
    %v9769 = vpop.f32.mrb[0].mxu0
    %v9770 = vadd.f32 %v9443, %v9769
    %v9771 = vpop.f32.mrb[0].mxu0
    %v9772 = vpop.f32.mrb[0].mxu0
    %9773 = vdwg.mxu0
    %v9774 = vld [vmem:[#allocation17] sm:$0xff]
    %v9776 = vlaneseq
    %v9777 = vshrl.u32 %v9776, 7
    %v9778 = vsub.s32 0, %v9777
    %v9779 = vrot.slane %v9774, %v9778
    %v9780 = vlaneseq
    %v9781 = vshrl.u32 %v9780, 7
    %v9782 = vsub.s32 1, %v9781
    %v9783 = vrot.slane %v9774, %v9782
    %v9784 = vlaneseq
    %v9785 = vshrl.u32 %v9784, 7
    %v9786 = vsub.s32 2, %v9785
    %v9787 = vrot.slane %v9774, %v9786
    %v9788 = vlaneseq
    %v9789 = vshrl.u32 %v9788, 7
    %v9790 = vsub.s32 3, %v9789
    %v9791 = vrot.slane %v9774, %v9790
    %v9792 = vlaneseq
    %v9793 = vshrl.u32 %v9792, 7
    %v9794 = vsub.s32 4, %v9793
    %v9795 = vrot.slane %v9774, %v9794
    %v9796 = vlaneseq
    %v9797 = vshrl.u32 %v9796, 7
    %v9798 = vsub.s32 5, %v9797
    %v9799 = vrot.slane %v9774, %v9798
    %v9800 = vlaneseq
    %v9801 = vshrl.u32 %v9800, 7
    %v9802 = vsub.s32 6, %v9801
    %v9803 = vrot.slane %v9774, %v9802
    %v9804 = vlaneseq
    %v9805 = vshrl.u32 %v9804, 7
    %v9806 = vsub.s32 7, %v9805
    %v9807 = vrot.slane %v9774, %v9806
    %v9816 = vadd.f32 %v9645, %v9779
    %v9817 = vadd.f32 %v9647, %v9783
    %v9818 = vadd.f32 %v9686, %v9787
    %v9819 = vadd.f32 %v9688, %v9791
    %v9820 = vadd.f32 %v9727, %v9795
    %v9821 = vadd.f32 %v9729, %v9799
    %v9822 = vadd.f32 %v9768, %v9803
    %v9823 = vadd.f32 %v9770, %v9807
    %v9824 = vmax.f32 %v9816, 0.0
    %v9825 = vmax.f32 %v9817, 0.0
    %v9826 = vmax.f32 %v9818, 0.0
    %v9827 = vmax.f32 %v9819, 0.0
    %v9828 = vmax.f32 %v9820, 0.0
    %v9829 = vmax.f32 %v9821, 0.0
    %v9830 = vmax.f32 %v9822, 0.0
    %v9831 = vmax.f32 %v9823, 0.0
    %v9832 = vpack.c.bf16 %v9824, %v9824
    %v9833 = vpack.c.bf16 %v9825, %v9825
    %v9834 = vpack.c.bf16 %v9826, %v9826
    %v9835 = vpack.c.bf16 %v9827, %v9827
    %v9836 = vpack.c.bf16 %v9828, %v9828
    %v9837 = vpack.c.bf16 %v9829, %v9829
    %v9838 = vpack.c.bf16 %v9830, %v9830
    %v9839 = vpack.c.bf16 %v9831, %v9831
    %v9840 = vld [vmem:[#allocation19] sm:$0xf]
    %v9841 = vld [vmem:[#allocation19 + $0x4] sm:$0xf]
    %v9842 = vld [vmem:[#allocation19 + $0x8] sm:$0xf]
    %v9843 = vld [vmem:[#allocation19 + $0xc] sm:$0xf]
    %v9844 = vld [vmem:[#allocation19 + $0x10] sm:$0xf]
    %v9845 = vld [vmem:[#allocation19 + $0x14] sm:$0xf]
    %v9846 = vld [vmem:[#allocation19 + $0x18] sm:$0xf]
    %v9847 = vld [vmem:[#allocation19 + $0x1c] sm:$0xf]
    %v9848 = vld [vmem:[#allocation19 + $0x20] sm:$0xf]
    %v9849 = vld [vmem:[#allocation19 + $0x24] sm:$0xf]
    %v9850 = vld [vmem:[#allocation19 + $0x28] sm:$0xf]
    %v9851 = vld [vmem:[#allocation19 + $0x2c] sm:$0xf]
    %v9852 = vld [vmem:[#allocation19 + $0x30] sm:$0xf]
    %v9853 = vld [vmem:[#allocation19 + $0x34] sm:$0xf]
    %v9854 = vld [vmem:[#allocation19 + $0x38] sm:$0xf]
    %v9855 = vld [vmem:[#allocation19 + $0x3c] sm:$0xf]
    %v9856 = vld [vmem:[#allocation19 + $0x40] sm:$0xf]
    %v9857 = vld [vmem:[#allocation19 + $0x44] sm:$0xf]
    %v9858 = vld [vmem:[#allocation19 + $0x48] sm:$0xf]
    %v9859 = vld [vmem:[#allocation19 + $0x4c] sm:$0xf]
    %v9860 = vld [vmem:[#allocation19 + $0x50] sm:$0xf]
    %v9861 = vld [vmem:[#allocation19 + $0x54] sm:$0xf]
    %v9862 = vld [vmem:[#allocation19 + $0x58] sm:$0xf]
    %v9863 = vld [vmem:[#allocation19 + $0x5c] sm:$0xf]
    %v9864 = vld [vmem:[#allocation19 + $0x60] sm:$0xf]
    %v9865 = vld [vmem:[#allocation19 + $0x64] sm:$0xf]
    %v9866 = vld [vmem:[#allocation19 + $0x68] sm:$0xf]
    %v9867 = vld [vmem:[#allocation19 + $0x6c] sm:$0xf]
    %v9868 = vld [vmem:[#allocation19 + $0x70] sm:$0xf]
    %v9869 = vld [vmem:[#allocation19 + $0x74] sm:$0xf]
    %v9870 = vld [vmem:[#allocation19 + $0x78] sm:$0xf]
    %v9871 = vld [vmem:[#allocation19 + $0x7c] sm:$0xf]
    %v9872 = vld [vmem:[#allocation19 + $0x80] sm:$0xf]
    %v9873 = vld [vmem:[#allocation19 + $0x84] sm:$0xf]
    %v9874 = vld [vmem:[#allocation19 + $0x88] sm:$0xf]
    %v9875 = vld [vmem:[#allocation19 + $0x8c] sm:$0xf]
    %v9876 = vld [vmem:[#allocation19 + $0x90] sm:$0xf]
    %v9877 = vld [vmem:[#allocation19 + $0x94] sm:$0xf]
    %v9878 = vld [vmem:[#allocation19 + $0x98] sm:$0xf]
    %v9879 = vld [vmem:[#allocation19 + $0x9c] sm:$0xf]
    %v9880 = vld [vmem:[#allocation19 + $0xa0] sm:$0xf]
    %v9881 = vld [vmem:[#allocation19 + $0xa4] sm:$0xf]
    %v9882 = vld [vmem:[#allocation19 + $0xa8] sm:$0xf]
    %v9883 = vld [vmem:[#allocation19 + $0xac] sm:$0xf]
    %v9884 = vld [vmem:[#allocation19 + $0xb0] sm:$0xf]
    %v9885 = vld [vmem:[#allocation19 + $0xb4] sm:$0xf]
    %v9886 = vld [vmem:[#allocation19 + $0xb8] sm:$0xf]
    %v9887 = vld [vmem:[#allocation19 + $0xbc] sm:$0xf]
    %v9888 = vld [vmem:[#allocation19 + $0xc0] sm:$0xf]
    %v9889 = vld [vmem:[#allocation19 + $0xc4] sm:$0xf]
    %v9890 = vld [vmem:[#allocation19 + $0xc8] sm:$0xf]
    %v9891 = vld [vmem:[#allocation19 + $0xcc] sm:$0xf]
    %v9892 = vld [vmem:[#allocation19 + $0xd0] sm:$0xf]
    %v9893 = vld [vmem:[#allocation19 + $0xd4] sm:$0xf]
    %v9894 = vld [vmem:[#allocation19 + $0xd8] sm:$0xf]
    %v9895 = vld [vmem:[#allocation19 + $0xdc] sm:$0xf]
    %v9896 = vld [vmem:[#allocation19 + $0xe0] sm:$0xf]
    %v9897 = vld [vmem:[#allocation19 + $0xe4] sm:$0xf]
    %v9898 = vld [vmem:[#allocation19 + $0xe8] sm:$0xf]
    %v9899 = vld [vmem:[#allocation19 + $0xec] sm:$0xf]
    %v9900 = vld [vmem:[#allocation19 + $0xf0] sm:$0xf]
    %v9901 = vld [vmem:[#allocation19 + $0xf4] sm:$0xf]
    %v9902 = vld [vmem:[#allocation19 + $0xf8] sm:$0xf]
    %v9903 = vld [vmem:[#allocation19 + $0xfc] sm:$0xf]
    %v9904 = vld [vmem:[#allocation19 + $0x100] sm:$0xf]
    %v9905 = vld [vmem:[#allocation19 + $0x104] sm:$0xf]
    %v9906 = vld [vmem:[#allocation19 + $0x108] sm:$0xf]
    %v9907 = vld [vmem:[#allocation19 + $0x10c] sm:$0xf]
    %v9908 = vld [vmem:[#allocation19 + $0x110] sm:$0xf]
    %v9909 = vld [vmem:[#allocation19 + $0x114] sm:$0xf]
    %v9910 = vld [vmem:[#allocation19 + $0x118] sm:$0xf]
    %v9911 = vld [vmem:[#allocation19 + $0x11c] sm:$0xf]
    %v9912 = vld [vmem:[#allocation19 + $0x120] sm:$0xf]
    %v9913 = vld [vmem:[#allocation19 + $0x124] sm:$0xf]
    %v9914 = vld [vmem:[#allocation19 + $0x128] sm:$0xf]
    %v9915 = vld [vmem:[#allocation19 + $0x12c] sm:$0xf]
    %v9916 = vld [vmem:[#allocation19 + $0x130] sm:$0xf]
    %v9917 = vld [vmem:[#allocation19 + $0x134] sm:$0xf]
    %v9918 = vld [vmem:[#allocation19 + $0x138] sm:$0xf]
    %v9919 = vld [vmem:[#allocation19 + $0x13c] sm:$0xf]
    %v9920 = vld [vmem:[#allocation19 + $0x140] sm:$0xf]
    %v9921 = vld [vmem:[#allocation19 + $0x144] sm:$0xf]
    %v9922 = vld [vmem:[#allocation19 + $0x148] sm:$0xf]
    %v9923 = vld [vmem:[#allocation19 + $0x14c] sm:$0xf]
    %v9924 = vld [vmem:[#allocation19 + $0x150] sm:$0xf]
    %v9925 = vld [vmem:[#allocation19 + $0x154] sm:$0xf]
    %v9926 = vld [vmem:[#allocation19 + $0x158] sm:$0xf]
    %v9927 = vld [vmem:[#allocation19 + $0x15c] sm:$0xf]
    %v9928 = vld [vmem:[#allocation19 + $0x160] sm:$0xf]
    %v9929 = vld [vmem:[#allocation19 + $0x164] sm:$0xf]
    %v9930 = vld [vmem:[#allocation19 + $0x168] sm:$0xf]
    %v9931 = vld [vmem:[#allocation19 + $0x16c] sm:$0xf]
    %v9932 = vld [vmem:[#allocation19 + $0x170] sm:$0xf]
    %v9933 = vld [vmem:[#allocation19 + $0x174] sm:$0xf]
    %v9934 = vld [vmem:[#allocation19 + $0x178] sm:$0xf]
    %v9935 = vld [vmem:[#allocation19 + $0x17c] sm:$0xf]
    %v9936 = vld [vmem:[#allocation19 + $0x180] sm:$0xf]
    %v9937 = vld [vmem:[#allocation19 + $0x184] sm:$0xf]
    %v9938 = vld [vmem:[#allocation19 + $0x188] sm:$0xf]
    %v9939 = vld [vmem:[#allocation19 + $0x18c] sm:$0xf]
    %v9940 = vld [vmem:[#allocation19 + $0x190] sm:$0xf]
    %v9941 = vld [vmem:[#allocation19 + $0x194] sm:$0xf]
    %v9942 = vld [vmem:[#allocation19 + $0x198] sm:$0xf]
    %v9943 = vld [vmem:[#allocation19 + $0x19c] sm:$0xf]
    %v9944 = vld [vmem:[#allocation19 + $0x1a0] sm:$0xf]
    %v9945 = vld [vmem:[#allocation19 + $0x1a4] sm:$0xf]
    %v9946 = vld [vmem:[#allocation19 + $0x1a8] sm:$0xf]
    %v9947 = vld [vmem:[#allocation19 + $0x1ac] sm:$0xf]
    %v9948 = vld [vmem:[#allocation19 + $0x1b0] sm:$0xf]
    %v9949 = vld [vmem:[#allocation19 + $0x1b4] sm:$0xf]
    %v9950 = vld [vmem:[#allocation19 + $0x1b8] sm:$0xf]
    %v9951 = vld [vmem:[#allocation19 + $0x1bc] sm:$0xf]
    %v9952 = vld [vmem:[#allocation19 + $0x1c0] sm:$0xf]
    %v9953 = vld [vmem:[#allocation19 + $0x1c4] sm:$0xf]
    %v9954 = vld [vmem:[#allocation19 + $0x1c8] sm:$0xf]
    %v9955 = vld [vmem:[#allocation19 + $0x1cc] sm:$0xf]
    %v9956 = vld [vmem:[#allocation19 + $0x1d0] sm:$0xf]
    %v9957 = vld [vmem:[#allocation19 + $0x1d4] sm:$0xf]
    %v9958 = vld [vmem:[#allocation19 + $0x1d8] sm:$0xf]
    %v9959 = vld [vmem:[#allocation19 + $0x1dc] sm:$0xf]
    %v9960 = vld [vmem:[#allocation19 + $0x1e0] sm:$0xf]
    %v9961 = vld [vmem:[#allocation19 + $0x1e4] sm:$0xf]
    %v9962 = vld [vmem:[#allocation19 + $0x1e8] sm:$0xf]
    %v9963 = vld [vmem:[#allocation19 + $0x1ec] sm:$0xf]
    %v9964 = vld [vmem:[#allocation19 + $0x1f0] sm:$0xf]
    %v9965 = vld [vmem:[#allocation19 + $0x1f4] sm:$0xf]
    %v9966 = vld [vmem:[#allocation19 + $0x1f8] sm:$0xf]
    %v9967 = vld [vmem:[#allocation19 + $0x1fc] sm:$0xf]
    %v9968 = vld [vmem:[#allocation20] sm:$0x1]
    %v9970 = vlaneseq
    %v9971 = vshrl.u32 %v9970, 7
    %v9972 = vsub.s32 0, %v9971
    %v9973 = vrot.slane %v9968, %v9972
    %v10103 = vunpack.c.l.b16 %v9840
    %v10104 = vunpack.c.l.b16 %v9841
    %v10105 = vunpack.c.l.b16 %v9842
    %v10106 = vunpack.c.l.b16 %v9843
    %v10107 = vunpack.c.l.b16 %v9844
    %v10108 = vunpack.c.l.b16 %v9845
    %v10109 = vunpack.c.l.b16 %v9846
    %v10110 = vunpack.c.l.b16 %v9847
    %v10111 = vunpack.c.l.b16 %v9848
    %v10112 = vunpack.c.l.b16 %v9849
    %v10113 = vunpack.c.l.b16 %v9850
    %v10114 = vunpack.c.l.b16 %v9851
    %v10115 = vunpack.c.l.b16 %v9852
    %v10116 = vunpack.c.l.b16 %v9853
    %v10117 = vunpack.c.l.b16 %v9854
    %v10118 = vunpack.c.l.b16 %v9855
    %v10119 = vunpack.c.l.b16 %v9856
    %v10120 = vunpack.c.l.b16 %v9857
    %v10121 = vunpack.c.l.b16 %v9858
    %v10122 = vunpack.c.l.b16 %v9859
    %v10123 = vunpack.c.l.b16 %v9860
    %v10124 = vunpack.c.l.b16 %v9861
    %v10125 = vunpack.c.l.b16 %v9862
    %v10126 = vunpack.c.l.b16 %v9863
    %v10127 = vunpack.c.l.b16 %v9864
    %v10128 = vunpack.c.l.b16 %v9865
    %v10129 = vunpack.c.l.b16 %v9866
    %v10130 = vunpack.c.l.b16 %v9867
    %v10131 = vunpack.c.l.b16 %v9868
    %v10132 = vunpack.c.l.b16 %v9869
    %v10133 = vunpack.c.l.b16 %v9870
    %v10134 = vunpack.c.l.b16 %v9871
    %v10135 = vunpack.c.l.b16 %v9872
    %v10136 = vunpack.c.l.b16 %v9873
    %v10137 = vunpack.c.l.b16 %v9874
    %v10138 = vunpack.c.l.b16 %v9875
    %v10139 = vunpack.c.l.b16 %v9876
    %v10140 = vunpack.c.l.b16 %v9877
    %v10141 = vunpack.c.l.b16 %v9878
    %v10142 = vunpack.c.l.b16 %v9879
    %v10143 = vunpack.c.l.b16 %v9880
    %v10144 = vunpack.c.l.b16 %v9881
    %v10145 = vunpack.c.l.b16 %v9882
    %v10146 = vunpack.c.l.b16 %v9883
    %v10147 = vunpack.c.l.b16 %v9884
    %v10148 = vunpack.c.l.b16 %v9885
    %v10149 = vunpack.c.l.b16 %v9886
    %v10150 = vunpack.c.l.b16 %v9887
    %v10151 = vunpack.c.l.b16 %v9888
    %v10152 = vunpack.c.l.b16 %v9889
    %v10153 = vunpack.c.l.b16 %v9890
    %v10154 = vunpack.c.l.b16 %v9891
    %v10155 = vunpack.c.l.b16 %v9892
    %v10156 = vunpack.c.l.b16 %v9893
    %v10157 = vunpack.c.l.b16 %v9894
    %v10158 = vunpack.c.l.b16 %v9895
    %v10159 = vunpack.c.l.b16 %v9896
    %v10160 = vunpack.c.l.b16 %v9897
    %v10161 = vunpack.c.l.b16 %v9898
    %v10162 = vunpack.c.l.b16 %v9899
    %v10163 = vunpack.c.l.b16 %v9900
    %v10164 = vunpack.c.l.b16 %v9901
    %v10165 = vunpack.c.l.b16 %v9902
    %v10166 = vunpack.c.l.b16 %v9903
    %v10167 = vunpack.c.l.b16 %v9904
    %v10168 = vunpack.c.l.b16 %v9905
    %v10169 = vunpack.c.l.b16 %v9906
    %v10170 = vunpack.c.l.b16 %v9907
    %v10171 = vunpack.c.l.b16 %v9908
    %v10172 = vunpack.c.l.b16 %v9909
    %v10173 = vunpack.c.l.b16 %v9910
    %v10174 = vunpack.c.l.b16 %v9911
    %v10175 = vunpack.c.l.b16 %v9912
    %v10176 = vunpack.c.l.b16 %v9913
    %v10177 = vunpack.c.l.b16 %v9914
    %v10178 = vunpack.c.l.b16 %v9915
    %v10179 = vunpack.c.l.b16 %v9916
    %v10180 = vunpack.c.l.b16 %v9917
    %v10181 = vunpack.c.l.b16 %v9918
    %v10182 = vunpack.c.l.b16 %v9919
    %v10183 = vunpack.c.l.b16 %v9920
    %v10184 = vunpack.c.l.b16 %v9921
    %v10185 = vunpack.c.l.b16 %v9922
    %v10186 = vunpack.c.l.b16 %v9923
    %v10187 = vunpack.c.l.b16 %v9924
    %v10188 = vunpack.c.l.b16 %v9925
    %v10189 = vunpack.c.l.b16 %v9926
    %v10190 = vunpack.c.l.b16 %v9927
    %v10191 = vunpack.c.l.b16 %v9928
    %v10192 = vunpack.c.l.b16 %v9929
    %v10193 = vunpack.c.l.b16 %v9930
    %v10194 = vunpack.c.l.b16 %v9931
    %v10195 = vunpack.c.l.b16 %v9932
    %v10196 = vunpack.c.l.b16 %v9933
    %v10197 = vunpack.c.l.b16 %v9934
    %v10198 = vunpack.c.l.b16 %v9935
    %v10199 = vunpack.c.l.b16 %v9936
    %v10200 = vunpack.c.l.b16 %v9937
    %v10201 = vunpack.c.l.b16 %v9938
    %v10202 = vunpack.c.l.b16 %v9939
    %v10203 = vunpack.c.l.b16 %v9940
    %v10204 = vunpack.c.l.b16 %v9941
    %v10205 = vunpack.c.l.b16 %v9942
    %v10206 = vunpack.c.l.b16 %v9943
    %v10207 = vunpack.c.l.b16 %v9944
    %v10208 = vunpack.c.l.b16 %v9945
    %v10209 = vunpack.c.l.b16 %v9946
    %v10210 = vunpack.c.l.b16 %v9947
    %v10211 = vunpack.c.l.b16 %v9948
    %v10212 = vunpack.c.l.b16 %v9949
    %v10213 = vunpack.c.l.b16 %v9950
    %v10214 = vunpack.c.l.b16 %v9951
    %v10215 = vunpack.c.l.b16 %v9952
    %v10216 = vunpack.c.l.b16 %v9953
    %v10217 = vunpack.c.l.b16 %v9954
    %v10218 = vunpack.c.l.b16 %v9955
    %v10219 = vunpack.c.l.b16 %v9956
    %v10220 = vunpack.c.l.b16 %v9957
    %v10221 = vunpack.c.l.b16 %v9958
    %v10222 = vunpack.c.l.b16 %v9959
    %v10223 = vunpack.c.l.b16 %v9960
    %v10224 = vunpack.c.l.b16 %v9961
    %v10225 = vunpack.c.l.b16 %v9962
    %v10226 = vunpack.c.l.b16 %v9963
    %v10227 = vunpack.c.l.b16 %v9964
    %v10228 = vunpack.c.l.b16 %v9965
    %v10229 = vunpack.c.l.b16 %v9966
    %v10230 = vunpack.c.l.b16 %v9967
    %v10231 = vpack.c.b16 %v10104, %v10103
    %v10232 = vpack.c.b16 %v10106, %v10105
    %v10233 = vpack.c.b16 %v10108, %v10107
    %v10234 = vpack.c.b16 %v10110, %v10109
    %v10235 = vpack.c.b16 %v10112, %v10111
    %v10236 = vpack.c.b16 %v10114, %v10113
    %v10237 = vpack.c.b16 %v10116, %v10115
    %v10238 = vpack.c.b16 %v10118, %v10117
    %v10239 = vpack.c.b16 %v10120, %v10119
    %v10240 = vpack.c.b16 %v10122, %v10121
    %v10241 = vpack.c.b16 %v10124, %v10123
    %v10242 = vpack.c.b16 %v10126, %v10125
    %v10243 = vpack.c.b16 %v10128, %v10127
    %v10244 = vpack.c.b16 %v10130, %v10129
    %v10245 = vpack.c.b16 %v10132, %v10131
    %v10246 = vpack.c.b16 %v10134, %v10133
    %v10247 = vpack.c.b16 %v10136, %v10135
    %v10248 = vpack.c.b16 %v10138, %v10137
    %v10249 = vpack.c.b16 %v10140, %v10139
    %v10250 = vpack.c.b16 %v10142, %v10141
    %v10251 = vpack.c.b16 %v10144, %v10143
    %v10252 = vpack.c.b16 %v10146, %v10145
    %v10253 = vpack.c.b16 %v10148, %v10147
    %v10254 = vpack.c.b16 %v10150, %v10149
    %v10255 = vpack.c.b16 %v10152, %v10151
    %v10256 = vpack.c.b16 %v10154, %v10153
    %v10257 = vpack.c.b16 %v10156, %v10155
    %v10258 = vpack.c.b16 %v10158, %v10157
    %v10259 = vpack.c.b16 %v10160, %v10159
    %v10260 = vpack.c.b16 %v10162, %v10161
    %v10261 = vpack.c.b16 %v10164, %v10163
    %v10262 = vpack.c.b16 %v10166, %v10165
    %v10263 = vpack.c.b16 %v10168, %v10167
    %v10264 = vpack.c.b16 %v10170, %v10169
    %v10265 = vpack.c.b16 %v10172, %v10171
    %v10266 = vpack.c.b16 %v10174, %v10173
    %v10267 = vpack.c.b16 %v10176, %v10175
    %v10268 = vpack.c.b16 %v10178, %v10177
    %v10269 = vpack.c.b16 %v10180, %v10179
    %v10270 = vpack.c.b16 %v10182, %v10181
    %v10271 = vpack.c.b16 %v10184, %v10183
    %v10272 = vpack.c.b16 %v10186, %v10185
    %v10273 = vpack.c.b16 %v10188, %v10187
    %v10274 = vpack.c.b16 %v10190, %v10189
    %v10275 = vpack.c.b16 %v10192, %v10191
    %v10276 = vpack.c.b16 %v10194, %v10193
    %v10277 = vpack.c.b16 %v10196, %v10195
    %v10278 = vpack.c.b16 %v10198, %v10197
    %v10279 = vpack.c.b16 %v10200, %v10199
    %v10280 = vpack.c.b16 %v10202, %v10201
    %v10281 = vpack.c.b16 %v10204, %v10203
    %v10282 = vpack.c.b16 %v10206, %v10205
    %v10283 = vpack.c.b16 %v10208, %v10207
    %v10284 = vpack.c.b16 %v10210, %v10209
    %v10285 = vpack.c.b16 %v10212, %v10211
    %v10286 = vpack.c.b16 %v10214, %v10213
    %v10287 = vpack.c.b16 %v10216, %v10215
    %v10288 = vpack.c.b16 %v10218, %v10217
    %v10289 = vpack.c.b16 %v10220, %v10219
    %v10290 = vpack.c.b16 %v10222, %v10221
    %v10291 = vpack.c.b16 %v10224, %v10223
    %v10292 = vpack.c.b16 %v10226, %v10225
    %v10293 = vpack.c.b16 %v10228, %v10227
    %v10294 = vpack.c.b16 %v10230, %v10229
    %10359 = vmatprep.subr.bf16.mxu0 0
    %10360 = vmatpush1.bf16.msra.mxu0 %v10231
    %10361 = vmatprep.subr.bf16.mxu0 0
    %10362 = vmatpush1.bf16.msra.mxu0 %v10232
    %10363 = vmatprep.subr.bf16.mxu0 0
    %10364 = vmatpush1.bf16.msra.mxu0 %v10233
    %10365 = vmatprep.subr.bf16.mxu0 0
    %10366 = vmatpush1.bf16.msra.mxu0 %v10234
    %10367 = vmatprep.subr.bf16.mxu0 0
    %10368 = vmatpush1.bf16.msra.mxu0 %v10235
    %10369 = vmatprep.subr.bf16.mxu0 0
    %10370 = vmatpush1.bf16.msra.mxu0 %v10236
    %10371 = vmatprep.subr.bf16.mxu0 0
    %10372 = vmatpush1.bf16.msra.mxu0 %v10237
    %10373 = vmatprep.subr.bf16.mxu0 0
    %10374 = vmatpush1.bf16.msra.mxu0 %v10238
    %10375 = vmatprep.subr.bf16.mxu0 0
    %10376 = vmatpush1.bf16.msra.mxu0 %v10239
    %10377 = vmatprep.subr.bf16.mxu0 0
    %10378 = vmatpush1.bf16.msra.mxu0 %v10240
    %10379 = vmatprep.subr.bf16.mxu0 0
    %10380 = vmatpush1.bf16.msra.mxu0 %v10241
    %10381 = vmatprep.subr.bf16.mxu0 0
    %10382 = vmatpush1.bf16.msra.mxu0 %v10242
    %10383 = vmatprep.subr.bf16.mxu0 0
    %10384 = vmatpush1.bf16.msra.mxu0 %v10243
    %10385 = vmatprep.subr.bf16.mxu0 0
    %10386 = vmatpush1.bf16.msra.mxu0 %v10244
    %10387 = vmatprep.subr.bf16.mxu0 0
    %10388 = vmatpush1.bf16.msra.mxu0 %v10245
    %10389 = vmatprep.subr.bf16.mxu0 0
    %10390 = vmatpush1.bf16.msra.mxu0 %v10246
    %10391 = vmatprep.mubr.bf16.mxu0 %v9833
    %10392 = vmatmul.mubr.bf16.gmra.mrb[0].mxu0 %v9832
    %v10393 = vpop.f32.mrb[0].mxu0
    %v10394 = vadd.f32 %v9973, %v10393
    %v10395 = vpop.f32.mrb[0].mxu0
    %v10396 = vpop.f32.mrb[0].mxu0
    %v10397 = vpop.f32.mrb[0].mxu0
    %10398 = vdwg.mxu0
    %10399 = vmatprep.subr.bf16.mxu0 0
    %10400 = vmatpush1.bf16.msra.mxu0 %v10247
    %10401 = vmatprep.subr.bf16.mxu0 0
    %10402 = vmatpush1.bf16.msra.mxu0 %v10248
    %10403 = vmatprep.subr.bf16.mxu0 0
    %10404 = vmatpush1.bf16.msra.mxu0 %v10249
    %10405 = vmatprep.subr.bf16.mxu0 0
    %10406 = vmatpush1.bf16.msra.mxu0 %v10250
    %10407 = vmatprep.subr.bf16.mxu0 0
    %10408 = vmatpush1.bf16.msra.mxu0 %v10251
    %10409 = vmatprep.subr.bf16.mxu0 0
    %10410 = vmatpush1.bf16.msra.mxu0 %v10252
    %10411 = vmatprep.subr.bf16.mxu0 0
    %10412 = vmatpush1.bf16.msra.mxu0 %v10253
    %10413 = vmatprep.subr.bf16.mxu0 0
    %10414 = vmatpush1.bf16.msra.mxu0 %v10254
    %10415 = vmatprep.subr.bf16.mxu0 0
    %10416 = vmatpush1.bf16.msra.mxu0 %v10255
    %10417 = vmatprep.subr.bf16.mxu0 0
    %10418 = vmatpush1.bf16.msra.mxu0 %v10256
    %10419 = vmatprep.subr.bf16.mxu0 0
    %10420 = vmatpush1.bf16.msra.mxu0 %v10257
    %10421 = vmatprep.subr.bf16.mxu0 0
    %10422 = vmatpush1.bf16.msra.mxu0 %v10258
    %10423 = vmatprep.subr.bf16.mxu0 0
    %10424 = vmatpush1.bf16.msra.mxu0 %v10259
    %10425 = vmatprep.subr.bf16.mxu0 0
    %10426 = vmatpush1.bf16.msra.mxu0 %v10260
    %10427 = vmatprep.subr.bf16.mxu0 0
    %10428 = vmatpush1.bf16.msra.mxu0 %v10261
    %10429 = vmatprep.subr.bf16.mxu0 0
    %10430 = vmatpush1.bf16.msra.mxu0 %v10262
    %10431 = vmatprep.mubr.bf16.mxu0 %v9835
    %10432 = vmatmul.mubr.bf16.gmra.mrb[0].mxu0 %v9834
    %v10433 = vpop.f32.mrb[0].mxu0
    %v10434 = vadd.f32 %v10394, %v10433
    %v10435 = vpop.f32.mrb[0].mxu0
    %v10436 = vpop.f32.mrb[0].mxu0
    %v10437 = vpop.f32.mrb[0].mxu0
    %10438 = vdwg.mxu0
    %10439 = vmatprep.subr.bf16.mxu0 0
    %10440 = vmatpush1.bf16.msra.mxu0 %v10263
    %10441 = vmatprep.subr.bf16.mxu0 0
    %10442 = vmatpush1.bf16.msra.mxu0 %v10264
    %10443 = vmatprep.subr.bf16.mxu0 0
    %10444 = vmatpush1.bf16.msra.mxu0 %v10265
    %10445 = vmatprep.subr.bf16.mxu0 0
    %10446 = vmatpush1.bf16.msra.mxu0 %v10266
    %10447 = vmatprep.subr.bf16.mxu0 0
    %10448 = vmatpush1.bf16.msra.mxu0 %v10267
    %10449 = vmatprep.subr.bf16.mxu0 0
    %10450 = vmatpush1.bf16.msra.mxu0 %v10268
    %10451 = vmatprep.subr.bf16.mxu0 0
    %10452 = vmatpush1.bf16.msra.mxu0 %v10269
    %10453 = vmatprep.subr.bf16.mxu0 0
    %10454 = vmatpush1.bf16.msra.mxu0 %v10270
    %10455 = vmatprep.subr.bf16.mxu0 0
    %10456 = vmatpush1.bf16.msra.mxu0 %v10271
    %10457 = vmatprep.subr.bf16.mxu0 0
    %10458 = vmatpush1.bf16.msra.mxu0 %v10272
    %10459 = vmatprep.subr.bf16.mxu0 0
    %10460 = vmatpush1.bf16.msra.mxu0 %v10273
    %10461 = vmatprep.subr.bf16.mxu0 0
    %10462 = vmatpush1.bf16.msra.mxu0 %v10274
    %10463 = vmatprep.subr.bf16.mxu0 0
    %10464 = vmatpush1.bf16.msra.mxu0 %v10275
    %10465 = vmatprep.subr.bf16.mxu0 0
    %10466 = vmatpush1.bf16.msra.mxu0 %v10276
    %10467 = vmatprep.subr.bf16.mxu0 0
    %10468 = vmatpush1.bf16.msra.mxu0 %v10277
    %10469 = vmatprep.subr.bf16.mxu0 0
    %10470 = vmatpush1.bf16.msra.mxu0 %v10278
    %10471 = vmatprep.mubr.bf16.mxu0 %v9837
    %10472 = vmatmul.mubr.bf16.gmra.mrb[0].mxu0 %v9836
    %v10473 = vpop.f32.mrb[0].mxu0
    %v10474 = vadd.f32 %v10434, %v10473
    %v10475 = vpop.f32.mrb[0].mxu0
    %v10476 = vpop.f32.mrb[0].mxu0
    %v10477 = vpop.f32.mrb[0].mxu0
    %10478 = vdwg.mxu0
    %10479 = vmatprep.subr.bf16.mxu0 0
    %10480 = vmatpush1.bf16.msra.mxu0 %v10279
    %10481 = vmatprep.subr.bf16.mxu0 0
    %10482 = vmatpush1.bf16.msra.mxu0 %v10280
    %10483 = vmatprep.subr.bf16.mxu0 0
    %10484 = vmatpush1.bf16.msra.mxu0 %v10281
    %10485 = vmatprep.subr.bf16.mxu0 0
    %10486 = vmatpush1.bf16.msra.mxu0 %v10282
    %10487 = vmatprep.subr.bf16.mxu0 0
    %10488 = vmatpush1.bf16.msra.mxu0 %v10283
    %10489 = vmatprep.subr.bf16.mxu0 0
    %10490 = vmatpush1.bf16.msra.mxu0 %v10284
    %10491 = vmatprep.subr.bf16.mxu0 0
    %10492 = vmatpush1.bf16.msra.mxu0 %v10285
    %10493 = vmatprep.subr.bf16.mxu0 0
    %10494 = vmatpush1.bf16.msra.mxu0 %v10286
    %10495 = vmatprep.subr.bf16.mxu0 0
    %10496 = vmatpush1.bf16.msra.mxu0 %v10287
    %10497 = vmatprep.subr.bf16.mxu0 0
    %10498 = vmatpush1.bf16.msra.mxu0 %v10288
    %10499 = vmatprep.subr.bf16.mxu0 0
    %10500 = vmatpush1.bf16.msra.mxu0 %v10289
    %10501 = vmatprep.subr.bf16.mxu0 0
    %10502 = vmatpush1.bf16.msra.mxu0 %v10290
    %10503 = vmatprep.subr.bf16.mxu0 0
    %10504 = vmatpush1.bf16.msra.mxu0 %v10291
    %10505 = vmatprep.subr.bf16.mxu0 0
    %10506 = vmatpush1.bf16.msra.mxu0 %v10292
    %10507 = vmatprep.subr.bf16.mxu0 0
    %10508 = vmatpush1.bf16.msra.mxu0 %v10293
    %10509 = vmatprep.subr.bf16.mxu0 0
    %10510 = vmatpush1.bf16.msra.mxu0 %v10294
    %10511 = vmatprep.mubr.bf16.mxu0 %v9839
    %10512 = vmatmul.mubr.bf16.gmra.mrb[0].mxu0 %v9838
    %v10513 = vpop.f32.mrb[0].mxu0
    %v10514 = vadd.f32 %v10474, %v10513
    %v10515 = vpop.f32.mrb[0].mxu0
    %v10516 = vpop.f32.mrb[0].mxu0
    %v10517 = vpop.f32.mrb[0].mxu0
    %10518 = vdwg.mxu0
    %v10519 = vmax.f32 %v10514, 0.0
    %v10520 = vpack.c.bf16 %v10519, %v10519
    %v10521 = vld [vmem:[%s13] sm:$0xf]
    %v10522 = vld [vmem:[%s13 + $0x4] sm:$0xf]
    %v10523 = vld [vmem:[%s13 + $0x8] sm:$0xf]
    %v10524 = vld [vmem:[%s13 + $0xc] sm:$0xf]
    %v10525 = vld [vmem:[%s13 + $0x10] sm:$0xf]
    %v10526 = vld [vmem:[%s13 + $0x14] sm:$0xf]
    %v10527 = vld [vmem:[%s13 + $0x18] sm:$0xf]
    %v10528 = vld [vmem:[%s13 + $0x1c] sm:$0xf]
    %v10529 = vld [vmem:[%s13 + $0x20] sm:$0xf]
    %v10530 = vld [vmem:[%s13 + $0x24] sm:$0xf]
    %v10531 = vld [vmem:[%s13 + $0x28] sm:$0xf]
    %v10532 = vld [vmem:[%s13 + $0x2c] sm:$0xf]
    %v10533 = vld [vmem:[%s13 + $0x30] sm:$0xf]
    %v10534 = vld [vmem:[%s13 + $0x34] sm:$0xf]
    %v10535 = vld [vmem:[%s13 + $0x38] sm:$0xf]
    %v10536 = vld [vmem:[%s13 + $0x3c] sm:$0xf]
    %v10537 = vld [vmem:[#allocation22] sm:$0x1]
    %v10539 = vlaneseq
    %v10540 = vshrl.u32 %v10539, 7
    %v10541 = vsub.s32 0, %v10540
    %v10542 = vrot.slane %v10537, %v10541
    %v10560 = vunpack.c.l.b16 %v10521
    %v10561 = vunpack.c.l.b16 %v10522
    %v10562 = vunpack.c.l.b16 %v10523
    %v10563 = vunpack.c.l.b16 %v10524
    %v10564 = vunpack.c.l.b16 %v10525
    %v10565 = vunpack.c.l.b16 %v10526
    %v10566 = vunpack.c.l.b16 %v10527
    %v10567 = vunpack.c.l.b16 %v10528
    %v10568 = vunpack.c.l.b16 %v10529
    %v10569 = vunpack.c.l.b16 %v10530
    %v10570 = vunpack.c.l.b16 %v10531
    %v10571 = vunpack.c.l.b16 %v10532
    %v10572 = vunpack.c.l.b16 %v10533
    %v10573 = vunpack.c.l.b16 %v10534
    %v10574 = vunpack.c.l.b16 %v10535
    %v10575 = vunpack.c.l.b16 %v10536
    %v10576 = vpack.c.b16 %v10561, %v10560
    %v10577 = vpack.c.b16 %v10563, %v10562
    %v10578 = vpack.c.b16 %v10565, %v10564
    %v10579 = vpack.c.b16 %v10567, %v10566
    %v10580 = vpack.c.b16 %v10569, %v10568
    %v10581 = vpack.c.b16 %v10571, %v10570
    %v10582 = vpack.c.b16 %v10573, %v10572
    %v10583 = vpack.c.b16 %v10575, %v10574
    %10592 = vmatprep.subr.bf16.mxu0 0
    %10593 = vmatpush1.bf16.msra.mxu0 %v10576
    %10594 = vmatprep.subr.bf16.mxu0 0
    %10595 = vmatpush1.bf16.msra.mxu0 %v10577
    %10596 = vmatprep.subr.bf16.mxu0 0
    %10597 = vmatpush1.bf16.msra.mxu0 %v10578
    %10598 = vmatprep.subr.bf16.mxu0 0
    %10599 = vmatpush1.bf16.msra.mxu0 %v10579
    %10600 = vmatprep.subr.bf16.mxu0 0
    %10601 = vmatpush1.bf16.msra.mxu0 %v10580
    %10602 = vmatprep.subr.bf16.mxu0 0
    %10603 = vmatpush1.bf16.msra.mxu0 %v10581
    %10604 = vmatprep.subr.bf16.mxu0 0
    %10605 = vmatpush1.bf16.msra.mxu0 %v10582
    %10606 = vmatprep.subr.bf16.mxu0 0
    %10607 = vmatpush1.bf16.msra.mxu0 %v10583
    %10608 = vmatprep.subr.bf16.mxu0 0
    %10609 = vmatpush1.bf16.msra.mxu0 0
    %10610 = vmatprep.subr.bf16.mxu0 0
    %10611 = vmatpush1.bf16.msra.mxu0 0
    %10612 = vmatprep.subr.bf16.mxu0 0
    %10613 = vmatpush1.bf16.msra.mxu0 0
    %10614 = vmatprep.subr.bf16.mxu0 0
    %10615 = vmatpush1.bf16.msra.mxu0 0
    %10616 = vmatprep.subr.bf16.mxu0 0
    %10617 = vmatpush1.bf16.msra.mxu0 0
    %10618 = vmatprep.subr.bf16.mxu0 0
    %10619 = vmatpush1.bf16.msra.mxu0 0
    %10620 = vmatprep.subr.bf16.mxu0 0
    %10621 = vmatpush1.bf16.msra.mxu0 0
    %10622 = vmatprep.subr.bf16.mxu0 0
    %10623 = vmatpush1.bf16.msra.mxu0 0
    %10624 = vmatprep.mubr.bf16.mxu0 0
    %10625 = vmatmul.mubr.bf16.gmra.mrb[0].mxu0 %v10520
    %v10626 = vpop.f32.mrb[0].mxu0
    %v10627 = vadd.f32 %v10542, %v10626
    %v10628 = vpop.f32.mrb[0].mxu0
    %v10629 = vpop.f32.mrb[0].mxu0
    %v10630 = vpop.f32.mrb[0].mxu0
    %10631 = vdwg.mxu0
    %v10632 = vmax.f32 %v10627, 0.0
    %v10633 = vpack.c.bf16 %v10632, %v10632
    %v10634 = vld [vmem:[%s15] sm:$0xf]
    %v10635 = vld [vmem:[%s15 + $0x4] sm:$0xf]
    %v10636 = vld [vmem:[#allocation2] sm:$0x1]
    %v10638 = vlaneseq
    %v10639 = vshrl.u32 %v10638, 7
    %v10640 = vsub.s32 0, %v10639
    %v10641 = vrot.slane %v10636, %v10640
    %v10645 = vunpack.c.l.b16 %v10634
    %v10646 = vunpack.c.l.b16 %v10635
    %v10647 = vpack.c.b16 %v10646, %v10645
    %vm10649 = vcmask 130048
    %v10651 = vsel %vm10649, %v10633, 0
    %10653 = vmatprep.subr.bf16.mxu0 0
    %10654 = vmatpush1.bf16.msra.mxu0 %v10647
    %10655 = vmatprep.subr.bf16.mxu0 0
    %10656 = vmatpush1.bf16.msra.mxu0 0
    %10657 = vmatprep.subr.bf16.mxu0 0
    %10658 = vmatpush1.bf16.msra.mxu0 0
    %10659 = vmatprep.subr.bf16.mxu0 0
    %10660 = vmatpush1.bf16.msra.mxu0 0
    %10661 = vmatprep.subr.bf16.mxu0 0
    %10662 = vmatpush1.bf16.msra.mxu0 0
    %10663 = vmatprep.subr.bf16.mxu0 0
    %10664 = vmatpush1.bf16.msra.mxu0 0
    %10665 = vmatprep.subr.bf16.mxu0 0
    %10666 = vmatpush1.bf16.msra.mxu0 0
    %10667 = vmatprep.subr.bf16.mxu0 0
    %10668 = vmatpush1.bf16.msra.mxu0 0
    %10669 = vmatprep.subr.bf16.mxu0 0
    %10670 = vmatpush1.bf16.msra.mxu0 0
    %10671 = vmatprep.subr.bf16.mxu0 0
    %10672 = vmatpush1.bf16.msra.mxu0 0
    %10673 = vmatprep.subr.bf16.mxu0 0
    %10674 = vmatpush1.bf16.msra.mxu0 0
    %10675 = vmatprep.subr.bf16.mxu0 0
    %10676 = vmatpush1.bf16.msra.mxu0 0
    %10677 = vmatprep.subr.bf16.mxu0 0
    %10678 = vmatpush1.bf16.msra.mxu0 0
    %10679 = vmatprep.subr.bf16.mxu0 0
    %10680 = vmatpush1.bf16.msra.mxu0 0
    %10681 = vmatprep.subr.bf16.mxu0 0
    %10682 = vmatpush1.bf16.msra.mxu0 0
    %10683 = vmatprep.subr.bf16.mxu0 0
    %10684 = vmatpush1.bf16.msra.mxu0 0
    %10685 = vmatprep.mubr.bf16.mxu0 0
    %10686 = vmatmul.mubr.bf16.gmra.mrb[0].mxu0 %v10651
    %v10687 = vpop.f32.mrb[0].mxu0
    %v10688 = vadd.f32 %v10641, %v10687
    %v10689 = vpop.f32.mrb[0].mxu0
    %v10690 = vpop.f32.mrb[0].mxu0
    %v10691 = vpop.f32.mrb[0].mxu0
    %10692 = vdwg.mxu0
    %v10693 = vxor.u32 %v10688, 2147483648
    %v10694 = vmul.f32 %v10693, 1.442695
    %v10695 = vpow.pop %v10694
    %v10696 = vadd.f32 %v10695, 1.0
    %v10697 = vrcp.pop %v10696
    %v10698 = vmul.f32 1.0, %v10697
    %vm10699 = vcmask 7168
    %10700 = vst.msk [vmem:[%s17] sm:$0xff] %vm10699, %v10698
    // Predicated region
    $region122: #{tpu_custom_call.1} parent=1 // pred_check
      _
    $region123: #{tpu_custom_call.1} parent=1 // pred_check_branch
      %10702 = sbr.rel (0) target = $region125
    $region124: #{tpu_custom_call.1} parent=1 // pred_region
      _
    $region125: #{tpu_custom_call.1} parent=1 // pred_fallthru
      _
    // Predicated region
    $region126: #{tpu_custom_call.1} parent=1 // pred_check
      _
    $region127: #{tpu_custom_call.1} parent=1 // pred_check_branch
      %10704 = sbr.rel (0) target = $region129
    $region128: #{tpu_custom_call.1} parent=1 // pred_region
      _
    $region129: #{tpu_custom_call.1} parent=1 // pred_fallthru
      _
    %10705 = vsyncpa [#allocation4], 1
    %10706 = vsyncpa [#allocation6], 1
    %10707 = vsyncpa [#allocation9], 1
    %10708 = vsyncpa [#allocation12], 1
    %10709 = vsyncpa [#allocation15], 1
    %10710 = vsyncpa [#allocation18], 1
    %10711 = vsyncpa [#allocation21], 1

</llo_original>
